<compile_context>
chip_gen: v6e
topology: v6e:2x2x1
jax: 0.10.0
libtpu: 0.0.40
codegen_flags: <defaults>
</compile_context>

<pallas_src>
import functools

import jax
import jax.numpy as jnp
from jax.experimental import pallas as pl
from jax.experimental.pallas import tpu as pltpu

# ------------------------------ tiling config --------------------------------
TM = 256                        # node row tile (output rows per grid step)
TK = 256                        # contraction tile over A_hat columns
LANE = 128                      # feature dims padded to multiples of 128 lanes
VMEM_LIMIT = 48 * 1024 * 1024   # headroom below v7x's 64 MiB physical VMEM


def _round_up(x, m):
    return (x + m - 1) // m * m


# ------------------------------ Pallas kernels -------------------------------
def _moment_rows(h):
    """(8, F) tile: row 0 = per-feature sum(h), row 1 = per-feature sum(h^2)."""
    f = h.shape[1]
    s = jnp.sum(h, axis=0, keepdims=True)
    ss = jnp.sum(h * h, axis=0, keepdims=True)
    rid = jax.lax.broadcasted_iota(jnp.int32, (8, f), 0)
    return jnp.where(rid == 0, jnp.broadcast_to(s, (8, f)),
                     jnp.where(rid == 1, jnp.broadcast_to(ss, (8, f)),
                               jnp.zeros((8, f), jnp.float32)))


def _agg_kernel(a_ref, z_ref, *rest, fuse_w):
    """One row tile of H = (A_hat @ Z) [@ W], accumulated over K tiles of A_hat.

    Also writes per-row-tile BatchNorm moments so H never has to be re-read
    from HBM to compute the batch statistics.
    """
    if fuse_w:
        w_ref, o_ref, stats_ref, acc_ref = rest
    else:
        o_ref, stats_ref, acc_ref = rest

    k = pl.program_id(1)

    @pl.when(k == 0)
    def _():
        acc_ref[...] = jnp.zeros_like(acc_ref)

    # bf16 operands, f32 accumulation on the MXU.
    acc_ref[...] += jnp.dot(a_ref[...], z_ref[...],
                            preferred_element_type=jnp.float32)

    @pl.when(k == pl.num_programs(1) - 1)
    def _():
        if fuse_w:
            h = jnp.dot(acc_ref[...].astype(jnp.bfloat16), w_ref[...],
                        preferred_element_type=jnp.float32)
        else:
            h = acc_ref[...]
        o_ref[...] = h
        stats_ref[...] = _moment_rows(h)[None]


def _xw_kernel(x_ref, w_ref, o_ref):
    """Row tile of X @ W (transform-first layers, f_in_pad > f_out_pad)."""
    o_ref[...] = jnp.dot(x_ref[...], w_ref[...],
                         preferred_element_type=jnp.float32).astype(o_ref.dtype)


def _bn_apply_kernel(h_ref, scale_ref, shift_ref, o_ref, *, apply_relu):
    h = h_ref[...] * scale_ref[...] + shift_ref[...]
    if apply_relu:
        h = jnp.maximum(h, 0.0)
    o_ref[...] = h.astype(o_ref.dtype)


# ------------------------------ kernel wrappers -------------------------------
def aggregate(a_hat, z, w=None):
    """H = (A_hat @ Z) @ W (if w is given) or A_hat @ Z.

    Returns (H_f32, stats) with stats[:, 0, :] / stats[:, 1, :] the per-row-tile
    feature sums / sums of squares of H.
    """
    n_pad = a_hat.shape[0]
    f_mid = z.shape[1]
    fuse_w = w is not None
    f_out = w.shape[1] if fuse_w else f_mid
    n_row = n_pad // TM
    n_k = n_pad // TK

    in_specs = [
        pl.BlockSpec((TM, TK), lambda i, k: (i, k)),      # A_hat row/K tile
        pl.BlockSpec((TK, f_mid), lambda i, k: (k, 0)),   # Z K tile
    ]
    args = [a_hat, z]
    if fuse_w:
        in_specs.append(pl.BlockSpec((f_mid, f_out), lambda i, k: (0, 0)))
        args.append(w)

    return pl.pallas_call(
        functools.partial(_agg_kernel, fuse_w=fuse_w),
        grid=(n_row, n_k),
        in_specs=in_specs,
        out_specs=(
            pl.BlockSpec((TM, f_out), lambda i, k: (i, 0)),       # pre-BN H
            pl.BlockSpec((1, 8, f_out), lambda i, k: (i, 0, 0)),  # moments
        ),
        out_shape=(
            jax.ShapeDtypeStruct((n_pad, f_out), jnp.float32),
            jax.ShapeDtypeStruct((n_row, 8, f_out), jnp.float32),
        ),
        scratch_shapes=[pltpu.VMEM((TM, f_mid), jnp.float32)],
        compiler_params=pltpu.CompilerParams(
            dimension_semantics=("parallel", "arbitrary"),
            vmem_limit_bytes=VMEM_LIMIT),
    )(*args)


def transform(x, w):
    n_pad, f_in = x.shape
    f_out = w.shape[1]
    return pl.pallas_call(
        _xw_kernel,
        grid=(n_pad // TM,),
        in_specs=[pl.BlockSpec((TM, f_in), lambda i: (i, 0)),
                  pl.BlockSpec((f_in, f_out), lambda i: (0, 0))],
        out_specs=pl.BlockSpec((TM, f_out), lambda i: (i, 0)),
        out_shape=jax.ShapeDtypeStruct((n_pad, f_out), jnp.bfloat16),
        compiler_params=pltpu.CompilerParams(
            dimension_semantics=("parallel",),
            vmem_limit_bytes=VMEM_LIMIT),
    )(x, w)


def bn_apply(h, scale, shift, *, apply_relu, out_dtype):
    n_pad, f_out = h.shape
    return pl.pallas_call(
        functools.partial(_bn_apply_kernel, apply_relu=apply_relu),
        grid=(n_pad // TM,),
        in_specs=[pl.BlockSpec((TM, f_out), lambda i: (i, 0)),
                  pl.BlockSpec((1, f_out), lambda i: (0, 0)),
                  pl.BlockSpec((1, f_out), lambda i: (0, 0))],
        out_specs=pl.BlockSpec((TM, f_out), lambda i: (i, 0)),
        out_shape=jax.ShapeDtypeStruct((n_pad, f_out), out_dtype),
        compiler_params=pltpu.CompilerParams(
            dimension_semantics=("parallel",),
            vmem_limit_bytes=VMEM_LIMIT),
    )(h, scale, shift)


# ----------------------------- graph preprocessing ----------------------------
def build_normalized_adjacency(edge_index, edge_weight, num_nodes, n_pad):
    """Dense A_hat[dst, src] with PyG gcn_norm semantics (add_self_loops=True)."""
    row, col = edge_index[0], edge_index[1]          # row = source, col = target
    loop = jnp.arange(num_nodes, dtype=edge_index.dtype)
    row = jnp.concatenate([row, loop])
    col = jnp.concatenate([col, loop])
    w = jnp.concatenate(
        [edge_weight, jnp.ones((num_nodes,), dtype=edge_weight.dtype)])

    deg = jnp.zeros((num_nodes,), jnp.float32).at[col].add(w)
    dinv = jnp.where(deg > 0, 1.0 / jnp.sqrt(deg), 0.0)
    norm = dinv[row] * w * dinv[col]

    a_hat = jnp.zeros((n_pad, n_pad), jnp.float32).at[col, row].add(norm)
    # Single bf16 copy shared by all 5 layers (halves the dominant N^2 traffic).
    return a_hat.astype(jnp.bfloat16)


def _pad2(x, rows, cols, dtype):
    out = jnp.zeros((rows, cols), dtype)
    return out.at[: x.shape[0], : x.shape[1]].set(x.astype(dtype))


# --------------------------------- full model ---------------------------------
def gcn_forward(params, x, edge_index, edge_weight, ca_idx):
    num_nodes, num_features = x.shape
    n_pad = _round_up(num_nodes, max(TM, TK))
    a_hat = build_normalized_adjacency(edge_index, edge_weight, num_nodes, n_pad)

    h = _pad2(x, n_pad, _round_up(num_features, LANE), jnp.bfloat16)

    n_layers = len(params["w"])
    inv_n = 1.0 / jnp.float32(num_nodes)
    for i in range(n_layers):
        w = params["w"][i]
        f_in, f_out = w.shape
        fi_p, fo_p = _round_up(f_in, LANE), _round_up(f_out, LANE)
        w_p = _pad2(w, fi_p, fo_p, jnp.bfloat16)
        gamma = jnp.zeros((fo_p,), jnp.float32).at[:f_out].set(params["gamma"][i])
        beta = jnp.zeros((fo_p,), jnp.float32).at[:f_out].set(params["beta"][i])

        # GCNConv bias is dropped: a per-feature constant added before
        # training-mode BatchNorm cancels under the mean subtraction.
        if fi_p <= fo_p:
            # Aggregate-first: run the dominant N^2 matmul at the narrower
            # width and fuse the trailing @W into the same kernel.
            h_pre, stats = aggregate(a_hat, h, w_p)
        else:
            # Transform-first: X@W once (own small kernel), then aggregate.
            h_pre, stats = aggregate(a_hat, transform(h, w_p))

        # BatchNorm1d: training-mode batch statistics over the true N nodes
        # (padded rows of h_pre are exactly zero, so they do not bias the sums).
        s = jnp.sum(stats[:, 0, :], axis=0)
        ss = jnp.sum(stats[:, 1, :], axis=0)
        mean = s * inv_n
        var = jnp.maximum(ss * inv_n - mean * mean, 0.0)
        scale = gamma * jax.lax.rsqrt(var + 1e-5)
        shift = beta - mean * scale

        last = i == n_layers - 1
        h = bn_apply(h_pre, scale.reshape(1, fo_p), shift.reshape(1, fo_p),
                     apply_relu=not last,
                     out_dtype=jnp.float32 if last else jnp.bfloat16)

    f_last = params["w"][-1].shape[1]
    h = h[:num_nodes, :f_last]
    # torch.index_select(x, 0, ca_idx)
    return jnp.take(h, ca_idx, axis=0)


def init_params(key, num_features, hidden_dim):
    dims = [
        (num_features, hidden_dim),           # conv1
        (hidden_dim, hidden_dim * 2),         # conv2
        (hidden_dim * 2, hidden_dim * 4),     # conv3
        (hidden_dim * 4, hidden_dim * 4),     # conv4
        (hidden_dim * 4, hidden_dim * 2),     # conv5
    ]
    ws, gs, betas = [], [], []
    for (fi, fo) in dims:
        key, k1, k2 = jax.random.split(key, 3)
        ws.append(0.1 * jax.random.normal(k1, (fi, fo), dtype=jnp.float32))
        gs.append(1.0 + 0.1 * jax.random.normal(k2, (fo,), dtype=jnp.float32))
        betas.append(jnp.zeros((fo,), dtype=jnp.float32))
    return {"w": ws, "gamma": gs, "beta": betas}


if __name__ == "__main__":
    key = jax.random.PRNGKey(0)

    num_nodes = 300      # pads to 512 -> 2 row tiles x 2 K tiles per layer
    num_features = 16
    hidden_dim = 64      # conv5 is 256 -> 128: exercises the transform-first path
    num_edges = 1200

    k_x, k_src, k_dst, k_w, k_ca, k_p = jax.random.split(key, 6)
    x = jax.random.normal(k_x, (num_nodes, num_features), dtype=jnp.float32)
    src = jax.random.randint(k_src, (num_edges,), 0, num_nodes, dtype=jnp.int32)
    dst = jax.random.randint(k_dst, (num_edges,), 0, num_nodes, dtype=jnp.int32)
    edge_index = jnp.stack([src, dst], axis=0)                 # (2, E)
    edge_weight = jax.random.uniform(k_w, (num_edges,), dtype=jnp.float32) + 0.1
    ca_idx = jax.random.permutation(k_ca, num_nodes)[: num_nodes // 4].astype(
        jnp.int32)

    params = init_params(k_p, num_features, hidden_dim)

    out = jax.jit(gcn_forward)(params, x, edge_index, edge_weight, ca_idx)
    jax.block_until_ready(out)

    assert out.shape == (num_nodes // 4, hidden_dim * 2)
    assert bool(jnp.all(jnp.isfinite(out)))
    print("KERNEL_OK")
</pallas_src>

<mosaic_0001>
module attributes {stable_mosaic.version = 11 : i64} {
  func.func @_agg_kernel(%arg0: i32, %arg1: i32, %arg2: memref<256x256xbf16, #tpu.memory_space<vmem>>, %arg3: memref<256x128xbf16, #tpu.memory_space<vmem>>, %arg4: memref<128x128xbf16, #tpu.memory_space<vmem>>, %arg5: memref<256x128xf32, #tpu.memory_space<vmem>>, %arg6: memref<1x8x128xf32, #tpu.memory_space<vmem>>, %arg7: memref<256x128xf32, #tpu.memory_space<vmem>>) attributes {dimension_semantics = [#tpu.dimension_semantics<parallel>, #tpu.dimension_semantics<arbitrary>], iteration_bounds = array<i64: 2, 2>, scalar_prefetch = 0 : i64, scratch_operands = 1 : i64, tpu.core_type = #tpu.core_type<tc>, window_params = [{transform_indices = @transform_0, window_bounds = array<i64: 256, 256>}, {transform_indices = @transform_1, window_bounds = array<i64: 256, 128>}, {pipeline_mode = #tpu.pipeline_mode<synchronous>, transform_indices = @transform_2, window_bounds = array<i64: 128, 128>}, {transform_indices = @transform_3, window_bounds = array<i64: 256, 128>}, {transform_indices = @transform_4, window_bounds = array<i64: 1, 8, 128>}]} {
    %c0_i32 = arith.constant 0 : i32
    %0 = arith.cmpi eq, %arg1, %c0_i32 : i32
    %1 = arith.extui %0 : i1 to i32
    %c0_i32_0 = arith.constant 0 : i32
    %2 = arith.cmpi ne, %1, %c0_i32_0 : i32
    scf.if %2 {
      %cst_9 = arith.constant 0.000000e+00 : f32
      %12 = vector.broadcast %cst_9 : f32 to vector<256x128xf32>
      %c0_10 = arith.constant 0 : index
      %c0_11 = arith.constant 0 : index
      %13 = vector.load %arg7[%c0_10, %c0_11] : memref<256x128xf32, #tpu.memory_space<vmem>>, vector<256x128xf32>
      tpu.vector_store %arg7[%c0_10, %c0_11], %12 {strides = array<i32>} : memref<256x128xf32, #tpu.memory_space<vmem>>, vector<256x128xf32>,
    } else {
    }
    %c0 = arith.constant 0 : index
    %c0_1 = arith.constant 0 : index
    %3 = vector.load %arg7[%c0, %c0_1] : memref<256x128xf32, #tpu.memory_space<vmem>>, vector<256x128xf32>
    %c0_2 = arith.constant 0 : index
    %c0_3 = arith.constant 0 : index
    %4 = vector.load %arg2[%c0_2, %c0_3] : memref<256x256xbf16, #tpu.memory_space<vmem>>, vector<256x256xbf16>
    %c0_4 = arith.constant 0 : index
    %c0_5 = arith.constant 0 : index
    %5 = vector.load %arg3[%c0_4, %c0_5] : memref<256x128xbf16, #tpu.memory_space<vmem>>, vector<256x128xbf16>
    %cst = arith.constant dense<0.000000e+00> : vector<256x128xf32>
    %6 = tpu.matmul %4, %5, %cst {dimension_numbers = #tpu.dot_dimension_numbers<[1], [0], [0], [1], [0, 0, 1, 1], [], []>} : vector<256x256xbf16>, vector<256x128xbf16>, vector<256x128xf32> -> vector<256x128xf32>
    %7 = arith.addf %3, %6 : vector<256x128xf32>
    %c0_6 = arith.constant 0 : index
    %c0_7 = arith.constant 0 : index
    %8 = vector.load %arg7[%c0_6, %c0_7] : memref<256x128xf32, #tpu.memory_space<vmem>>, vector<256x128xf32>
    tpu.vector_store %arg7[%c0_6, %c0_7], %7 {strides = array<i32>} : memref<256x128xf32, #tpu.memory_space<vmem>>, vector<256x128xf32>,
    %c1_i32 = arith.constant 1 : i32
    %9 = arith.cmpi eq, %arg1, %c1_i32 : i32
    %10 = arith.extui %9 : i1 to i32
    %c0_i32_8 = arith.constant 0 : i32
    %11 = arith.cmpi ne, %10, %c0_i32_8 : i32
    scf.if %11 {
      %c0_9 = arith.constant 0 : index
      %c0_10 = arith.constant 0 : index
      %12 = vector.load %arg7[%c0_9, %c0_10] : memref<256x128xf32, #tpu.memory_space<vmem>>, vector<256x128xf32>
      %13 = arith.truncf %12 : vector<256x128xf32> to vector<256x128xbf16>
      %c0_11 = arith.constant 0 : index
      %c0_12 = arith.constant 0 : index
      %14 = vector.load %arg4[%c0_11, %c0_12] : memref<128x128xbf16, #tpu.memory_space<vmem>>, vector<128x128xbf16>
      %cst_13 = arith.constant dense<0.000000e+00> : vector<256x128xf32>
      %15 = tpu.matmul %13, %14, %cst_13 {dimension_numbers = #tpu.dot_dimension_numbers<[1], [0], [0], [1], [0, 0, 1, 1], [], []>} : vector<256x128xbf16>, vector<128x128xbf16>, vector<256x128xf32> -> vector<256x128xf32>
      %c0_14 = arith.constant 0 : index
      %c0_15 = arith.constant 0 : index
      %16 = vector.load %arg5[%c0_14, %c0_15] : memref<256x128xf32, #tpu.memory_space<vmem>>, vector<256x128xf32>
      tpu.vector_store %arg5[%c0_14, %c0_15], %15 {strides = array<i32>} : memref<256x128xf32, #tpu.memory_space<vmem>>, vector<256x128xf32>,
      %cst_16 = arith.constant dense<0.000000e+00> : vector<128xf32>
      %17 = vector.multi_reduction <add>, %15, %cst_16 [0] : vector<256x128xf32> to vector<128xf32>
      %18 = vector.shape_cast %17 : vector<128xf32> to vector<1x128xf32>
      %19 = arith.mulf %15, %15 : vector<256x128xf32>
      %cst_17 = arith.constant dense<0.000000e+00> : vector<128xf32>
      %20 = vector.multi_reduction <add>, %19, %cst_17 [0] : vector<256x128xf32> to vector<128xf32>
      %21 = vector.shape_cast %20 : vector<128xf32> to vector<1x128xf32>
      %22 = tpu.iota {dimensions = array<i32: 0>} : vector<8x128xi32>
      %c0_i32_18 = arith.constant 0 : i32
      %23 = vector.broadcast %c0_i32_18 : i32 to vector<8x128xi32>
      %24 = arith.cmpi eq, %22, %23 : vector<8x128xi32>
      %25 = vector.shape_cast %18 : vector<1x128xf32> to vector<1x128xf32>
      %26 = vector.broadcast %25 : vector<1x128xf32> to vector<8x128xf32>
      %c1_i32_19 = arith.constant 1 : i32
      %27 = vector.broadcast %c1_i32_19 : i32 to vector<8x128xi32>
      %28 = arith.cmpi eq, %22, %27 : vector<8x128xi32>
      %29 = vector.shape_cast %21 : vector<1x128xf32> to vector<1x128xf32>
      %30 = vector.broadcast %29 : vector<1x128xf32> to vector<8x128xf32>
      %cst_20 = arith.constant 0.000000e+00 : f32
      %31 = vector.broadcast %cst_20 : f32 to vector<8x128xf32>
      %32 = arith.select %28, %30, %31 : vector<8x128xi1>, vector<8x128xf32>
      %33 = arith.select %24, %26, %32 : vector<8x128xi1>, vector<8x128xf32>
      %34 = vector.shape_cast %33 : vector<8x128xf32> to vector<1x8x128xf32>
      %c0_21 = arith.constant 0 : index
      %c0_22 = arith.constant 0 : index
      %c0_23 = arith.constant 0 : index
      %35 = vector.load %arg6[%c0_21, %c0_22, %c0_23] : memref<1x8x128xf32, #tpu.memory_space<vmem>>, vector<1x8x128xf32>
      tpu.vector_store %arg6[%c0_21, %c0_22, %c0_23], %34 {strides = array<i32>} : memref<1x8x128xf32, #tpu.memory_space<vmem>>, vector<1x8x128xf32>,
    } else {
    }
    return
  }
  func.func @transform_0(%arg0: i32, %arg1: i32) -> (i32, i32) {
    %c0_i32 = arith.constant 0 : i32
    return %arg0, %arg1 : i32, i32
  }
  func.func @transform_1(%arg0: i32, %arg1: i32) -> (i32, i32) {
    %c0_i32 = arith.constant 0 : i32
    %c0_i32_0 = arith.constant 0 : i32
    return %arg1, %c0_i32 : i32, i32
  }
  func.func @transform_2(%arg0: i32, %arg1: i32) -> (i32, i32) {
    %c0_i32 = arith.constant 0 : i32
    %c0_i32_0 = arith.constant 0 : i32
    %c0_i32_1 = arith.constant 0 : i32
    return %c0_i32, %c0_i32_0 : i32, i32
  }
  func.func @transform_3(%arg0: i32, %arg1: i32) -> (i32, i32) {
    %c0_i32 = arith.constant 0 : i32
    %c0_i32_0 = arith.constant 0 : i32
    return %arg0, %c0_i32 : i32, i32
  }
  func.func @transform_4(%arg0: i32, %arg1: i32) -> (i32, i32, i32) {
    %c0_i32 = arith.constant 0 : i32
    %c0_i32_0 = arith.constant 0 : i32
    %c0_i32_1 = arith.constant 0 : i32
    return %arg0, %c0_i32, %c0_i32_0 : i32, i32, i32
  }
}

module attributes {stable_mosaic.version = 11 : i64} {
  func.func @_bn_apply_kernel(%arg0: i32, %arg1: memref<256x128xf32, #tpu.memory_space<vmem>>, %arg2: memref<1x128xf32, #tpu.memory_space<vmem>>, %arg3: memref<1x128xf32, #tpu.memory_space<vmem>>, %arg4: memref<256x128xbf16, #tpu.memory_space<vmem>>) attributes {dimension_semantics = [#tpu.dimension_semantics<parallel>], iteration_bounds = array<i64: 2>, scalar_prefetch = 0 : i64, scratch_operands = 0 : i64, tpu.core_type = #tpu.core_type<tc>, window_params = [{transform_indices = @transform_0, window_bounds = array<i64: 256, 128>}, {pipeline_mode = #tpu.pipeline_mode<synchronous>, transform_indices = @transform_1, window_bounds = array<i64: 1, 128>}, {pipeline_mode = #tpu.pipeline_mode<synchronous>, transform_indices = @transform_2, window_bounds = array<i64: 1, 128>}, {transform_indices = @transform_3, window_bounds = array<i64: 256, 128>}]} {
    %c0 = arith.constant 0 : index
    %c0_0 = arith.constant 0 : index
    %0 = vector.load %arg1[%c0, %c0_0] : memref<256x128xf32, #tpu.memory_space<vmem>>, vector<256x128xf32>
    %c0_1 = arith.constant 0 : index
    %c0_2 = arith.constant 0 : index
    %1 = vector.load %arg2[%c0_1, %c0_2] : memref<1x128xf32, #tpu.memory_space<vmem>>, vector<1x128xf32>
    %2 = vector.broadcast %1 : vector<1x128xf32> to vector<256x128xf32>
    %3 = arith.mulf %0, %2 : vector<256x128xf32>
    %c0_3 = arith.constant 0 : index
    %c0_4 = arith.constant 0 : index
    %4 = vector.load %arg3[%c0_3, %c0_4] : memref<1x128xf32, #tpu.memory_space<vmem>>, vector<1x128xf32>
    %5 = vector.broadcast %4 : vector<1x128xf32> to vector<256x128xf32>
    %6 = arith.addf %3, %5 : vector<256x128xf32>
    %cst = arith.constant 0.000000e+00 : f32
    %7 = vector.broadcast %cst : f32 to vector<256x128xf32>
    %8 = arith.maximumf %6, %7 : vector<256x128xf32>
    %9 = arith.truncf %8 : vector<256x128xf32> to vector<256x128xbf16>
    %c0_5 = arith.constant 0 : index
    %c0_6 = arith.constant 0 : index
    %10 = vector.load %arg4[%c0_5, %c0_6] : memref<256x128xbf16, #tpu.memory_space<vmem>>, vector<256x128xbf16>
    tpu.vector_store %arg4[%c0_5, %c0_6], %9 {strides = array<i32>} : memref<256x128xbf16, #tpu.memory_space<vmem>>, vector<256x128xbf16>,
    return
  }
  func.func @transform_0(%arg0: i32) -> (i32, i32) {
    %c0_i32 = arith.constant 0 : i32
    %c0_i32_0 = arith.constant 0 : i32
    return %arg0, %c0_i32 : i32, i32
  }
  func.func @transform_1(%arg0: i32) -> (i32, i32) {
    %c0_i32 = arith.constant 0 : i32
    %c0_i32_0 = arith.constant 0 : i32
    %c0_i32_1 = arith.constant 0 : i32
    return %c0_i32, %c0_i32_0 : i32, i32
  }
  func.func @transform_2(%arg0: i32) -> (i32, i32) {
    %c0_i32 = arith.constant 0 : i32
    %c0_i32_0 = arith.constant 0 : i32
    %c0_i32_1 = arith.constant 0 : i32
    return %c0_i32, %c0_i32_0 : i32, i32
  }
  func.func @transform_3(%arg0: i32) -> (i32, i32) {
    %c0_i32 = arith.constant 0 : i32
    %c0_i32_0 = arith.constant 0 : i32
    return %arg0, %c0_i32 : i32, i32
  }
}

module attributes {stable_mosaic.version = 11 : i64} {
  func.func @_agg_kernel(%arg0: i32, %arg1: i32, %arg2: memref<256x256xbf16, #tpu.memory_space<vmem>>, %arg3: memref<256x128xbf16, #tpu.memory_space<vmem>>, %arg4: memref<128x256xbf16, #tpu.memory_space<vmem>>, %arg5: memref<256x256xf32, #tpu.memory_space<vmem>>, %arg6: memref<1x8x256xf32, #tpu.memory_space<vmem>>, %arg7: memref<256x128xf32, #tpu.memory_space<vmem>>) attributes {dimension_semantics = [#tpu.dimension_semantics<parallel>, #tpu.dimension_semantics<arbitrary>], iteration_bounds = array<i64: 2, 2>, scalar_prefetch = 0 : i64, scratch_operands = 1 : i64, tpu.core_type = #tpu.core_type<tc>, window_params = [{transform_indices = @transform_0, window_bounds = array<i64: 256, 256>}, {transform_indices = @transform_1, window_bounds = array<i64: 256, 128>}, {pipeline_mode = #tpu.pipeline_mode<synchronous>, transform_indices = @transform_2, window_bounds = array<i64: 128, 256>}, {transform_indices = @transform_3, window_bounds = array<i64: 256, 256>}, {transform_indices = @transform_4, window_bounds = array<i64: 1, 8, 256>}]} {
    %c0_i32 = arith.constant 0 : i32
    %0 = arith.cmpi eq, %arg1, %c0_i32 : i32
    %1 = arith.extui %0 : i1 to i32
    %c0_i32_0 = arith.constant 0 : i32
    %2 = arith.cmpi ne, %1, %c0_i32_0 : i32
    scf.if %2 {
      %cst_9 = arith.constant 0.000000e+00 : f32
      %12 = vector.broadcast %cst_9 : f32 to vector<256x128xf32>
      %c0_10 = arith.constant 0 : index
      %c0_11 = arith.constant 0 : index
      %13 = vector.load %arg7[%c0_10, %c0_11] : memref<256x128xf32, #tpu.memory_space<vmem>>, vector<256x128xf32>
      tpu.vector_store %arg7[%c0_10, %c0_11], %12 {strides = array<i32>} : memref<256x128xf32, #tpu.memory_space<vmem>>, vector<256x128xf32>,
    } else {
    }
    %c0 = arith.constant 0 : index
    %c0_1 = arith.constant 0 : index
    %3 = vector.load %arg7[%c0, %c0_1] : memref<256x128xf32, #tpu.memory_space<vmem>>, vector<256x128xf32>
    %c0_2 = arith.constant 0 : index
    %c0_3 = arith.constant 0 : index
    %4 = vector.load %arg2[%c0_2, %c0_3] : memref<256x256xbf16, #tpu.memory_space<vmem>>, vector<256x256xbf16>
    %c0_4 = arith.constant 0 : index
    %c0_5 = arith.constant 0 : index
    %5 = vector.load %arg3[%c0_4, %c0_5] : memref<256x128xbf16, #tpu.memory_space<vmem>>, vector<256x128xbf16>
    %cst = arith.constant dense<0.000000e+00> : vector<256x128xf32>
    %6 = tpu.matmul %4, %5, %cst {dimension_numbers = #tpu.dot_dimension_numbers<[1], [0], [0], [1], [0, 0, 1, 1], [], []>} : vector<256x256xbf16>, vector<256x128xbf16>, vector<256x128xf32> -> vector<256x128xf32>
    %7 = arith.addf %3, %6 : vector<256x128xf32>
    %c0_6 = arith.constant 0 : index
    %c0_7 = arith.constant 0 : index
    %8 = vector.load %arg7[%c0_6, %c0_7] : memref<256x128xf32, #tpu.memory_space<vmem>>, vector<256x128xf32>
    tpu.vector_store %arg7[%c0_6, %c0_7], %7 {strides = array<i32>} : memref<256x128xf32, #tpu.memory_space<vmem>>, vector<256x128xf32>,
    %c1_i32 = arith.constant 1 : i32
    %9 = arith.cmpi eq, %arg1, %c1_i32 : i32
    %10 = arith.extui %9 : i1 to i32
    %c0_i32_8 = arith.constant 0 : i32
    %11 = arith.cmpi ne, %10, %c0_i32_8 : i32
    scf.if %11 {
      %c0_9 = arith.constant 0 : index
      %c0_10 = arith.constant 0 : index
      %12 = vector.load %arg7[%c0_9, %c0_10] : memref<256x128xf32, #tpu.memory_space<vmem>>, vector<256x128xf32>
      %13 = arith.truncf %12 : vector<256x128xf32> to vector<256x128xbf16>
      %c0_11 = arith.constant 0 : index
      %c0_12 = arith.constant 0 : index
      %14 = vector.load %arg4[%c0_11, %c0_12] : memref<128x256xbf16, #tpu.memory_space<vmem>>, vector<128x256xbf16>
      %cst_13 = arith.constant dense<0.000000e+00> : vector<256x256xf32>
      %15 = tpu.matmul %13, %14, %cst_13 {dimension_numbers = #tpu.dot_dimension_numbers<[1], [0], [0], [1], [0, 0, 1, 1], [], []>} : vector<256x128xbf16>, vector<128x256xbf16>, vector<256x256xf32> -> vector<256x256xf32>
      %c0_14 = arith.constant 0 : index
      %c0_15 = arith.constant 0 : index
      %16 = vector.load %arg5[%c0_14, %c0_15] : memref<256x256xf32, #tpu.memory_space<vmem>>, vector<256x256xf32>
      tpu.vector_store %arg5[%c0_14, %c0_15], %15 {strides = array<i32>} : memref<256x256xf32, #tpu.memory_space<vmem>>, vector<256x256xf32>,
      %cst_16 = arith.constant dense<0.000000e+00> : vector<256xf32>
      %17 = vector.multi_reduction <add>, %15, %cst_16 [0] : vector<256x256xf32> to vector<256xf32>
      %18 = vector.shape_cast %17 : vector<256xf32> to vector<1x256xf32>
      %19 = arith.mulf %15, %15 : vector<256x256xf32>
      %cst_17 = arith.constant dense<0.000000e+00> : vector<256xf32>
      %20 = vector.multi_reduction <add>, %19, %cst_17 [0] : vector<256x256xf32> to vector<256xf32>
      %21 = vector.shape_cast %20 : vector<256xf32> to vector<1x256xf32>
      %22 = tpu.iota {dimensions = array<i32: 0>} : vector<8x256xi32>
      %c0_i32_18 = arith.constant 0 : i32
      %23 = vector.broadcast %c0_i32_18 : i32 to vector<8x256xi32>
      %24 = arith.cmpi eq, %22, %23 : vector<8x256xi32>
      %25 = vector.shape_cast %18 : vector<1x256xf32> to vector<1x256xf32>
      %26 = vector.broadcast %25 : vector<1x256xf32> to vector<8x256xf32>
      %c1_i32_19 = arith.constant 1 : i32
      %27 = vector.broadcast %c1_i32_19 : i32 to vector<8x256xi32>
      %28 = arith.cmpi eq, %22, %27 : vector<8x256xi32>
      %29 = vector.shape_cast %21 : vector<1x256xf32> to vector<1x256xf32>
      %30 = vector.broadcast %29 : vector<1x256xf32> to vector<8x256xf32>
      %cst_20 = arith.constant 0.000000e+00 : f32
      %31 = vector.broadcast %cst_20 : f32 to vector<8x256xf32>
      %32 = arith.select %28, %30, %31 : vector<8x256xi1>, vector<8x256xf32>
      %33 = arith.select %24, %26, %32 : vector<8x256xi1>, vector<8x256xf32>
      %34 = vector.shape_cast %33 : vector<8x256xf32> to vector<1x8x256xf32>
      %c0_21 = arith.constant 0 : index
      %c0_22 = arith.constant 0 : index
      %c0_23 = arith.constant 0 : index
      %35 = vector.load %arg6[%c0_21, %c0_22, %c0_23] : memref<1x8x256xf32, #tpu.memory_space<vmem>>, vector<1x8x256xf32>
      tpu.vector_store %arg6[%c0_21, %c0_22, %c0_23], %34 {strides = array<i32>} : memref<1x8x256xf32, #tpu.memory_space<vmem>>, vector<1x8x256xf32>,
    } else {
    }
    return
  }
  func.func @transform_0(%arg0: i32, %arg1: i32) -> (i32, i32) {
    %c0_i32 = arith.constant 0 : i32
    return %arg0, %arg1 : i32, i32
  }
  func.func @transform_1(%arg0: i32, %arg1: i32) -> (i32, i32) {
    %c0_i32 = arith.constant 0 : i32
    %c0_i32_0 = arith.constant 0 : i32
    return %arg1, %c0_i32 : i32, i32
  }
  func.func @transform_2(%arg0: i32, %arg1: i32) -> (i32, i32) {
    %c0_i32 = arith.constant 0 : i32
    %c0_i32_0 = arith.constant 0 : i32
    %c0_i32_1 = arith.constant 0 : i32
    return %c0_i32, %c0_i32_0 : i32, i32
  }
  func.func @transform_3(%arg0: i32, %arg1: i32) -> (i32, i32) {
    %c0_i32 = arith.constant 0 : i32
    %c0_i32_0 = arith.constant 0 : i32
    return %arg0, %c0_i32 : i32, i32
  }
  func.func @transform_4(%arg0: i32, %arg1: i32) -> (i32, i32, i32) {
    %c0_i32 = arith.constant 0 : i32
    %c0_i32_0 = arith.constant 0 : i32
    %c0_i32_1 = arith.constant 0 : i32
    return %arg0, %c0_i32, %c0_i32_0 : i32, i32, i32
  }
}

module attributes {stable_mosaic.version = 11 : i64} {
  func.func @_bn_apply_kernel(%arg0: i32, %arg1: memref<256x256xf32, #tpu.memory_space<vmem>>, %arg2: memref<1x256xf32, #tpu.memory_space<vmem>>, %arg3: memref<1x256xf32, #tpu.memory_space<vmem>>, %arg4: memref<256x256xbf16, #tpu.memory_space<vmem>>) attributes {dimension_semantics = [#tpu.dimension_semantics<parallel>], iteration_bounds = array<i64: 2>, scalar_prefetch = 0 : i64, scratch_operands = 0 : i64, tpu.core_type = #tpu.core_type<tc>, window_params = [{transform_indices = @transform_0, window_bounds = array<i64: 256, 256>}, {pipeline_mode = #tpu.pipeline_mode<synchronous>, transform_indices = @transform_1, window_bounds = array<i64: 1, 256>}, {pipeline_mode = #tpu.pipeline_mode<synchronous>, transform_indices = @transform_2, window_bounds = array<i64: 1, 256>}, {transform_indices = @transform_3, window_bounds = array<i64: 256, 256>}]} {
    %c0 = arith.constant 0 : index
    %c0_0 = arith.constant 0 : index
    %0 = vector.load %arg1[%c0, %c0_0] : memref<256x256xf32, #tpu.memory_space<vmem>>, vector<256x256xf32>
    %c0_1 = arith.constant 0 : index
    %c0_2 = arith.constant 0 : index
    %1 = vector.load %arg2[%c0_1, %c0_2] : memref<1x256xf32, #tpu.memory_space<vmem>>, vector<1x256xf32>
    %2 = vector.broadcast %1 : vector<1x256xf32> to vector<256x256xf32>
    %3 = arith.mulf %0, %2 : vector<256x256xf32>
    %c0_3 = arith.constant 0 : index
    %c0_4 = arith.constant 0 : index
    %4 = vector.load %arg3[%c0_3, %c0_4] : memref<1x256xf32, #tpu.memory_space<vmem>>, vector<1x256xf32>
    %5 = vector.broadcast %4 : vector<1x256xf32> to vector<256x256xf32>
    %6 = arith.addf %3, %5 : vector<256x256xf32>
    %cst = arith.constant 0.000000e+00 : f32
    %7 = vector.broadcast %cst : f32 to vector<256x256xf32>
    %8 = arith.maximumf %6, %7 : vector<256x256xf32>
    %9 = arith.truncf %8 : vector<256x256xf32> to vector<256x256xbf16>
    %c0_5 = arith.constant 0 : index
    %c0_6 = arith.constant 0 : index
    %10 = vector.load %arg4[%c0_5, %c0_6] : memref<256x256xbf16, #tpu.memory_space<vmem>>, vector<256x256xbf16>
    tpu.vector_store %arg4[%c0_5, %c0_6], %9 {strides = array<i32>} : memref<256x256xbf16, #tpu.memory_space<vmem>>, vector<256x256xbf16>,
    return
  }
  func.func @transform_0(%arg0: i32) -> (i32, i32) {
    %c0_i32 = arith.constant 0 : i32
    %c0_i32_0 = arith.constant 0 : i32
    return %arg0, %c0_i32 : i32, i32
  }
  func.func @transform_1(%arg0: i32) -> (i32, i32) {
    %c0_i32 = arith.constant 0 : i32
    %c0_i32_0 = arith.constant 0 : i32
    %c0_i32_1 = arith.constant 0 : i32
    return %c0_i32, %c0_i32_0 : i32, i32
  }
  func.func @transform_2(%arg0: i32) -> (i32, i32) {
    %c0_i32 = arith.constant 0 : i32
    %c0_i32_0 = arith.constant 0 : i32
    %c0_i32_1 = arith.constant 0 : i32
    return %c0_i32, %c0_i32_0 : i32, i32
  }
  func.func @transform_3(%arg0: i32) -> (i32, i32) {
    %c0_i32 = arith.constant 0 : i32
    %c0_i32_0 = arith.constant 0 : i32
    return %arg0, %c0_i32 : i32, i32
  }
}

module attributes {stable_mosaic.version = 11 : i64} {
  func.func @_xw_kernel(%arg0: i32, %arg1: memref<256x256xbf16, #tpu.memory_space<vmem>>, %arg2: memref<256x128xbf16, #tpu.memory_space<vmem>>, %arg3: memref<256x128xbf16, #tpu.memory_space<vmem>>) attributes {dimension_semantics = [#tpu.dimension_semantics<parallel>], iteration_bounds = array<i64: 2>, scalar_prefetch = 0 : i64, scratch_operands = 0 : i64, tpu.core_type = #tpu.core_type<tc>, window_params = [{transform_indices = @transform_0, window_bounds = array<i64: 256, 256>}, {pipeline_mode = #tpu.pipeline_mode<synchronous>, transform_indices = @transform_1, window_bounds = array<i64: 256, 128>}, {transform_indices = @transform_2, window_bounds = array<i64: 256, 128>}]} {
    %c0 = arith.constant 0 : index
    %c0_0 = arith.constant 0 : index
    %0 = vector.load %arg1[%c0, %c0_0] : memref<256x256xbf16, #tpu.memory_space<vmem>>, vector<256x256xbf16>
    %c0_1 = arith.constant 0 : index
    %c0_2 = arith.constant 0 : index
    %1 = vector.load %arg2[%c0_1, %c0_2] : memref<256x128xbf16, #tpu.memory_space<vmem>>, vector<256x128xbf16>
    %cst = arith.constant dense<0.000000e+00> : vector<256x128xf32>
    %2 = tpu.matmul %0, %1, %cst {dimension_numbers = #tpu.dot_dimension_numbers<[1], [0], [0], [1], [0, 0, 1, 1], [], []>} : vector<256x256xbf16>, vector<256x128xbf16>, vector<256x128xf32> -> vector<256x128xf32>
    %3 = arith.truncf %2 : vector<256x128xf32> to vector<256x128xbf16>
    %c0_3 = arith.constant 0 : index
    %c0_4 = arith.constant 0 : index
    %4 = vector.load %arg3[%c0_3, %c0_4] : memref<256x128xbf16, #tpu.memory_space<vmem>>, vector<256x128xbf16>
    tpu.vector_store %arg3[%c0_3, %c0_4], %3 {strides = array<i32>} : memref<256x128xbf16, #tpu.memory_space<vmem>>, vector<256x128xbf16>,
    return
  }
  func.func @transform_0(%arg0: i32) -> (i32, i32) {
    %c0_i32 = arith.constant 0 : i32
    %c0_i32_0 = arith.constant 0 : i32
    return %arg0, %c0_i32 : i32, i32
  }
  func.func @transform_1(%arg0: i32) -> (i32, i32) {
    %c0_i32 = arith.constant 0 : i32
    %c0_i32_0 = arith.constant 0 : i32
    %c0_i32_1 = arith.constant 0 : i32
    return %c0_i32, %c0_i32_0 : i32, i32
  }
  func.func @transform_2(%arg0: i32) -> (i32, i32) {
    %c0_i32 = arith.constant 0 : i32
    %c0_i32_0 = arith.constant 0 : i32
    return %arg0, %c0_i32 : i32, i32
  }
}

module attributes {stable_mosaic.version = 11 : i64} {
  func.func @_agg_kernel(%arg0: i32, %arg1: i32, %arg2: memref<256x256xbf16, #tpu.memory_space<vmem>>, %arg3: memref<256x256xbf16, #tpu.memory_space<vmem>>, %arg4: memref<256x256xbf16, #tpu.memory_space<vmem>>, %arg5: memref<256x256xf32, #tpu.memory_space<vmem>>, %arg6: memref<1x8x256xf32, #tpu.memory_space<vmem>>, %arg7: memref<256x256xf32, #tpu.memory_space<vmem>>) attributes {dimension_semantics = [#tpu.dimension_semantics<parallel>, #tpu.dimension_semantics<arbitrary>], iteration_bounds = array<i64: 2, 2>, scalar_prefetch = 0 : i64, scratch_operands = 1 : i64, tpu.core_type = #tpu.core_type<tc>, window_params = [{transform_indices = @transform_0, window_bounds = array<i64: 256, 256>}, {transform_indices = @transform_1, window_bounds = array<i64: 256, 256>}, {pipeline_mode = #tpu.pipeline_mode<synchronous>, transform_indices = @transform_2, window_bounds = array<i64: 256, 256>}, {transform_indices = @transform_3, window_bounds = array<i64: 256, 256>}, {transform_indices = @transform_4, window_bounds = array<i64: 1, 8, 256>}]} {
    %c0_i32 = arith.constant 0 : i32
    %0 = arith.cmpi eq, %arg1, %c0_i32 : i32
    %1 = arith.extui %0 : i1 to i32
    %c0_i32_0 = arith.constant 0 : i32
    %2 = arith.cmpi ne, %1, %c0_i32_0 : i32
    scf.if %2 {
      %cst_9 = arith.constant 0.000000e+00 : f32
      %12 = vector.broadcast %cst_9 : f32 to vector<256x256xf32>
      %c0_10 = arith.constant 0 : index
      %c0_11 = arith.constant 0 : index
      %13 = vector.load %arg7[%c0_10, %c0_11] : memref<256x256xf32, #tpu.memory_space<vmem>>, vector<256x256xf32>
      tpu.vector_store %arg7[%c0_10, %c0_11], %12 {strides = array<i32>} : memref<256x256xf32, #tpu.memory_space<vmem>>, vector<256x256xf32>,
    } else {
    }
    %c0 = arith.constant 0 : index
    %c0_1 = arith.constant 0 : index
    %3 = vector.load %arg7[%c0, %c0_1] : memref<256x256xf32, #tpu.memory_space<vmem>>, vector<256x256xf32>
    %c0_2 = arith.constant 0 : index
    %c0_3 = arith.constant 0 : index
    %4 = vector.load %arg2[%c0_2, %c0_3] : memref<256x256xbf16, #tpu.memory_space<vmem>>, vector<256x256xbf16>
    %c0_4 = arith.constant 0 : index
    %c0_5 = arith.constant 0 : index
    %5 = vector.load %arg3[%c0_4, %c0_5] : memref<256x256xbf16, #tpu.memory_space<vmem>>, vector<256x256xbf16>
    %cst = arith.constant dense<0.000000e+00> : vector<256x256xf32>
    %6 = tpu.matmul %4, %5, %cst {dimension_numbers = #tpu.dot_dimension_numbers<[1], [0], [0], [1], [0, 0, 1, 1], [], []>} : vector<256x256xbf16>, vector<256x256xbf16>, vector<256x256xf32> -> vector<256x256xf32>
    %7 = arith.addf %3, %6 : vector<256x256xf32>
    %c0_6 = arith.constant 0 : index
    %c0_7 = arith.constant 0 : index
    %8 = vector.load %arg7[%c0_6, %c0_7] : memref<256x256xf32, #tpu.memory_space<vmem>>, vector<256x256xf32>
    tpu.vector_store %arg7[%c0_6, %c0_7], %7 {strides = array<i32>} : memref<256x256xf32, #tpu.memory_space<vmem>>, vector<256x256xf32>,
    %c1_i32 = arith.constant 1 : i32
    %9 = arith.cmpi eq, %arg1, %c1_i32 : i32
    %10 = arith.extui %9 : i1 to i32
    %c0_i32_8 = arith.constant 0 : i32
    %11 = arith.cmpi ne, %10, %c0_i32_8 : i32
    scf.if %11 {
      %c0_9 = arith.constant 0 : index
      %c0_10 = arith.constant 0 : index
      %12 = vector.load %arg7[%c0_9, %c0_10] : memref<256x256xf32, #tpu.memory_space<vmem>>, vector<256x256xf32>
      %13 = arith.truncf %12 : vector<256x256xf32> to vector<256x256xbf16>
      %c0_11 = arith.constant 0 : index
      %c0_12 = arith.constant 0 : index
      %14 = vector.load %arg4[%c0_11, %c0_12] : memref<256x256xbf16, #tpu.memory_space<vmem>>, vector<256x256xbf16>
      %cst_13 = arith.constant dense<0.000000e+00> : vector<256x256xf32>
      %15 = tpu.matmul %13, %14, %cst_13 {dimension_numbers = #tpu.dot_dimension_numbers<[1], [0], [0], [1], [0, 0, 1, 1], [], []>} : vector<256x256xbf16>, vector<256x256xbf16>, vector<256x256xf32> -> vector<256x256xf32>
      %c0_14 = arith.constant 0 : index
      %c0_15 = arith.constant 0 : index
      %16 = vector.load %arg5[%c0_14, %c0_15] : memref<256x256xf32, #tpu.memory_space<vmem>>, vector<256x256xf32>
      tpu.vector_store %arg5[%c0_14, %c0_15], %15 {strides = array<i32>} : memref<256x256xf32, #tpu.memory_space<vmem>>, vector<256x256xf32>,
      %cst_16 = arith.constant dense<0.000000e+00> : vector<256xf32>
      %17 = vector.multi_reduction <add>, %15, %cst_16 [0] : vector<256x256xf32> to vector<256xf32>
      %18 = vector.shape_cast %17 : vector<256xf32> to vector<1x256xf32>
      %19 = arith.mulf %15, %15 : vector<256x256xf32>
      %cst_17 = arith.constant dense<0.000000e+00> : vector<256xf32>
      %20 = vector.multi_reduction <add>, %19, %cst_17 [0] : vector<256x256xf32> to vector<256xf32>
      %21 = vector.shape_cast %20 : vector<256xf32> to vector<1x256xf32>
      %22 = tpu.iota {dimensions = array<i32: 0>} : vector<8x256xi32>
      %c0_i32_18 = arith.constant 0 : i32
      %23 = vector.broadcast %c0_i32_18 : i32 to vector<8x256xi32>
      %24 = arith.cmpi eq, %22, %23 : vector<8x256xi32>
      %25 = vector.shape_cast %18 : vector<1x256xf32> to vector<1x256xf32>
      %26 = vector.broadcast %25 : vector<1x256xf32> to vector<8x256xf32>
      %c1_i32_19 = arith.constant 1 : i32
      %27 = vector.broadcast %c1_i32_19 : i32 to vector<8x256xi32>
      %28 = arith.cmpi eq, %22, %27 : vector<8x256xi32>
      %29 = vector.shape_cast %21 : vector<1x256xf32> to vector<1x256xf32>
      %30 = vector.broadcast %29 : vector<1x256xf32> to vector<8x256xf32>
      %cst_20 = arith.constant 0.000000e+00 : f32
      %31 = vector.broadcast %cst_20 : f32 to vector<8x256xf32>
      %32 = arith.select %28, %30, %31 : vector<8x256xi1>, vector<8x256xf32>
      %33 = arith.select %24, %26, %32 : vector<8x256xi1>, vector<8x256xf32>
      %34 = vector.shape_cast %33 : vector<8x256xf32> to vector<1x8x256xf32>
      %c0_21 = arith.constant 0 : index
      %c0_22 = arith.constant 0 : index
      %c0_23 = arith.constant 0 : index
      %35 = vector.load %arg6[%c0_21, %c0_22, %c0_23] : memref<1x8x256xf32, #tpu.memory_space<vmem>>, vector<1x8x256xf32>
      tpu.vector_store %arg6[%c0_21, %c0_22, %c0_23], %34 {strides = array<i32>} : memref<1x8x256xf32, #tpu.memory_space<vmem>>, vector<1x8x256xf32>,
    } else {
    }
    return
  }
  func.func @transform_0(%arg0: i32, %arg1: i32) -> (i32, i32) {
    %c0_i32 = arith.constant 0 : i32
    return %arg0, %arg1 : i32, i32
  }
  func.func @transform_1(%arg0: i32, %arg1: i32) -> (i32, i32) {
    %c0_i32 = arith.constant 0 : i32
    %c0_i32_0 = arith.constant 0 : i32
    return %arg1, %c0_i32 : i32, i32
  }
  func.func @transform_2(%arg0: i32, %arg1: i32) -> (i32, i32) {
    %c0_i32 = arith.constant 0 : i32
    %c0_i32_0 = arith.constant 0 : i32
    %c0_i32_1 = arith.constant 0 : i32
    return %c0_i32, %c0_i32_0 : i32, i32
  }
  func.func @transform_3(%arg0: i32, %arg1: i32) -> (i32, i32) {
    %c0_i32 = arith.constant 0 : i32
    %c0_i32_0 = arith.constant 0 : i32
    return %arg0, %c0_i32 : i32, i32
  }
  func.func @transform_4(%arg0: i32, %arg1: i32) -> (i32, i32, i32) {
    %c0_i32 = arith.constant 0 : i32
    %c0_i32_0 = arith.constant 0 : i32
    %c0_i32_1 = arith.constant 0 : i32
    return %arg0, %c0_i32, %c0_i32_0 : i32, i32, i32
  }
}

module attributes {stable_mosaic.version = 11 : i64} {
  func.func @_agg_kernel(%arg0: i32, %arg1: i32, %arg2: memref<256x256xbf16, #tpu.memory_space<vmem>>, %arg3: memref<256x128xbf16, #tpu.memory_space<vmem>>, %arg4: memref<256x128xf32, #tpu.memory_space<vmem>>, %arg5: memref<1x8x128xf32, #tpu.memory_space<vmem>>, %arg6: memref<256x128xf32, #tpu.memory_space<vmem>>) attributes {dimension_semantics = [#tpu.dimension_semantics<parallel>, #tpu.dimension_semantics<arbitrary>], iteration_bounds = array<i64: 2, 2>, scalar_prefetch = 0 : i64, scratch_operands = 1 : i64, tpu.core_type = #tpu.core_type<tc>, window_params = [{transform_indices = @transform_0, window_bounds = array<i64: 256, 256>}, {transform_indices = @transform_1, window_bounds = array<i64: 256, 128>}, {transform_indices = @transform_2, window_bounds = array<i64: 256, 128>}, {transform_indices = @transform_3, window_bounds = array<i64: 1, 8, 128>}]} {
    %c0_i32 = arith.constant 0 : i32
    %0 = arith.cmpi eq, %arg1, %c0_i32 : i32
    %1 = arith.extui %0 : i1 to i32
    %c0_i32_0 = arith.constant 0 : i32
    %2 = arith.cmpi ne, %1, %c0_i32_0 : i32
    scf.if %2 {
      %cst_9 = arith.constant 0.000000e+00 : f32
      %12 = vector.broadcast %cst_9 : f32 to vector<256x128xf32>
      %c0_10 = arith.constant 0 : index
      %c0_11 = arith.constant 0 : index
      %13 = vector.load %arg6[%c0_10, %c0_11] : memref<256x128xf32, #tpu.memory_space<vmem>>, vector<256x128xf32>
      tpu.vector_store %arg6[%c0_10, %c0_11], %12 {strides = array<i32>} : memref<256x128xf32, #tpu.memory_space<vmem>>, vector<256x128xf32>,
    } else {
    }
    %c0 = arith.constant 0 : index
    %c0_1 = arith.constant 0 : index
    %3 = vector.load %arg6[%c0, %c0_1] : memref<256x128xf32, #tpu.memory_space<vmem>>, vector<256x128xf32>
    %c0_2 = arith.constant 0 : index
    %c0_3 = arith.constant 0 : index
    %4 = vector.load %arg2[%c0_2, %c0_3] : memref<256x256xbf16, #tpu.memory_space<vmem>>, vector<256x256xbf16>
    %c0_4 = arith.constant 0 : index
    %c0_5 = arith.constant 0 : index
    %5 = vector.load %arg3[%c0_4, %c0_5] : memref<256x128xbf16, #tpu.memory_space<vmem>>, vector<256x128xbf16>
    %cst = arith.constant dense<0.000000e+00> : vector<256x128xf32>
    %6 = tpu.matmul %4, %5, %cst {dimension_numbers = #tpu.dot_dimension_numbers<[1], [0], [0], [1], [0, 0, 1, 1], [], []>} : vector<256x256xbf16>, vector<256x128xbf16>, vector<256x128xf32> -> vector<256x128xf32>
    %7 = arith.addf %3, %6 : vector<256x128xf32>
    %c0_6 = arith.constant 0 : index
    %c0_7 = arith.constant 0 : index
    %8 = vector.load %arg6[%c0_6, %c0_7] : memref<256x128xf32, #tpu.memory_space<vmem>>, vector<256x128xf32>
    tpu.vector_store %arg6[%c0_6, %c0_7], %7 {strides = array<i32>} : memref<256x128xf32, #tpu.memory_space<vmem>>, vector<256x128xf32>,
    %c1_i32 = arith.constant 1 : i32
    %9 = arith.cmpi eq, %arg1, %c1_i32 : i32
    %10 = arith.extui %9 : i1 to i32
    %c0_i32_8 = arith.constant 0 : i32
    %11 = arith.cmpi ne, %10, %c0_i32_8 : i32
    scf.if %11 {
      %c0_9 = arith.constant 0 : index
      %c0_10 = arith.constant 0 : index
      %12 = vector.load %arg6[%c0_9, %c0_10] : memref<256x128xf32, #tpu.memory_space<vmem>>, vector<256x128xf32>
      %c0_11 = arith.constant 0 : index
      %c0_12 = arith.constant 0 : index
      %13 = vector.load %arg4[%c0_11, %c0_12] : memref<256x128xf32, #tpu.memory_space<vmem>>, vector<256x128xf32>
      tpu.vector_store %arg4[%c0_11, %c0_12], %12 {strides = array<i32>} : memref<256x128xf32, #tpu.memory_space<vmem>>, vector<256x128xf32>,
      %cst_13 = arith.constant dense<0.000000e+00> : vector<128xf32>
      %14 = vector.multi_reduction <add>, %12, %cst_13 [0] : vector<256x128xf32> to vector<128xf32>
      %15 = vector.shape_cast %14 : vector<128xf32> to vector<1x128xf32>
      %16 = arith.mulf %12, %12 : vector<256x128xf32>
      %cst_14 = arith.constant dense<0.000000e+00> : vector<128xf32>
      %17 = vector.multi_reduction <add>, %16, %cst_14 [0] : vector<256x128xf32> to vector<128xf32>
      %18 = vector.shape_cast %17 : vector<128xf32> to vector<1x128xf32>
      %19 = tpu.iota {dimensions = array<i32: 0>} : vector<8x128xi32>
      %c0_i32_15 = arith.constant 0 : i32
      %20 = vector.broadcast %c0_i32_15 : i32 to vector<8x128xi32>
      %21 = arith.cmpi eq, %19, %20 : vector<8x128xi32>
      %22 = vector.shape_cast %15 : vector<1x128xf32> to vector<1x128xf32>
      %23 = vector.broadcast %22 : vector<1x128xf32> to vector<8x128xf32>
      %c1_i32_16 = arith.constant 1 : i32
      %24 = vector.broadcast %c1_i32_16 : i32 to vector<8x128xi32>
      %25 = arith.cmpi eq, %19, %24 : vector<8x128xi32>
      %26 = vector.shape_cast %18 : vector<1x128xf32> to vector<1x128xf32>
      %27 = vector.broadcast %26 : vector<1x128xf32> to vector<8x128xf32>
      %cst_17 = arith.constant 0.000000e+00 : f32
      %28 = vector.broadcast %cst_17 : f32 to vector<8x128xf32>
      %29 = arith.select %25, %27, %28 : vector<8x128xi1>, vector<8x128xf32>
      %30 = arith.select %21, %23, %29 : vector<8x128xi1>, vector<8x128xf32>
      %31 = vector.shape_cast %30 : vector<8x128xf32> to vector<1x8x128xf32>
      %c0_18 = arith.constant 0 : index
      %c0_19 = arith.constant 0 : index
      %c0_20 = arith.constant 0 : index
      %32 = vector.load %arg5[%c0_18, %c0_19, %c0_20] : memref<1x8x128xf32, #tpu.memory_space<vmem>>, vector<1x8x128xf32>
      tpu.vector_store %arg5[%c0_18, %c0_19, %c0_20], %31 {strides = array<i32>} : memref<1x8x128xf32, #tpu.memory_space<vmem>>, vector<1x8x128xf32>,
    } else {
    }
    return
  }
  func.func @transform_0(%arg0: i32, %arg1: i32) -> (i32, i32) {
    %c0_i32 = arith.constant 0 : i32
    return %arg0, %arg1 : i32, i32
  }
  func.func @transform_1(%arg0: i32, %arg1: i32) -> (i32, i32) {
    %c0_i32 = arith.constant 0 : i32
    %c0_i32_0 = arith.constant 0 : i32
    return %arg1, %c0_i32 : i32, i32
  }
  func.func @transform_2(%arg0: i32, %arg1: i32) -> (i32, i32) {
    %c0_i32 = arith.constant 0 : i32
    %c0_i32_0 = arith.constant 0 : i32
    return %arg0, %c0_i32 : i32, i32
  }
  func.func @transform_3(%arg0: i32, %arg1: i32) -> (i32, i32, i32) {
    %c0_i32 = arith.constant 0 : i32
    %c0_i32_0 = arith.constant 0 : i32
    %c0_i32_1 = arith.constant 0 : i32
    return %arg0, %c0_i32, %c0_i32_0 : i32, i32, i32
  }
}

module attributes {stable_mosaic.version = 11 : i64} {
  func.func @_bn_apply_kernel(%arg0: i32, %arg1: memref<256x128xf32, #tpu.memory_space<vmem>>, %arg2: memref<1x128xf32, #tpu.memory_space<vmem>>, %arg3: memref<1x128xf32, #tpu.memory_space<vmem>>, %arg4: memref<256x128xf32, #tpu.memory_space<vmem>>) attributes {dimension_semantics = [#tpu.dimension_semantics<parallel>], iteration_bounds = array<i64: 2>, scalar_prefetch = 0 : i64, scratch_operands = 0 : i64, tpu.core_type = #tpu.core_type<tc>, window_params = [{transform_indices = @transform_0, window_bounds = array<i64: 256, 128>}, {pipeline_mode = #tpu.pipeline_mode<synchronous>, transform_indices = @transform_1, window_bounds = array<i64: 1, 128>}, {pipeline_mode = #tpu.pipeline_mode<synchronous>, transform_indices = @transform_2, window_bounds = array<i64: 1, 128>}, {transform_indices = @transform_3, window_bounds = array<i64: 256, 128>}]} {
    %c0 = arith.constant 0 : index
    %c0_0 = arith.constant 0 : index
    %0 = vector.load %arg1[%c0, %c0_0] : memref<256x128xf32, #tpu.memory_space<vmem>>, vector<256x128xf32>
    %c0_1 = arith.constant 0 : index
    %c0_2 = arith.constant 0 : index
    %1 = vector.load %arg2[%c0_1, %c0_2] : memref<1x128xf32, #tpu.memory_space<vmem>>, vector<1x128xf32>
    %2 = vector.broadcast %1 : vector<1x128xf32> to vector<256x128xf32>
    %3 = arith.mulf %0, %2 : vector<256x128xf32>
    %c0_3 = arith.constant 0 : index
    %c0_4 = arith.constant 0 : index
    %4 = vector.load %arg3[%c0_3, %c0_4] : memref<1x128xf32, #tpu.memory_space<vmem>>, vector<1x128xf32>
    %5 = vector.broadcast %4 : vector<1x128xf32> to vector<256x128xf32>
    %6 = arith.addf %3, %5 : vector<256x128xf32>
    %c0_5 = arith.constant 0 : index
    %c0_6 = arith.constant 0 : index
    %7 = vector.load %arg4[%c0_5, %c0_6] : memref<256x128xf32, #tpu.memory_space<vmem>>, vector<256x128xf32>
    tpu.vector_store %arg4[%c0_5, %c0_6], %6 {strides = array<i32>} : memref<256x128xf32, #tpu.memory_space<vmem>>, vector<256x128xf32>,
    return
  }
  func.func @transform_0(%arg0: i32) -> (i32, i32) {
    %c0_i32 = arith.constant 0 : i32
    %c0_i32_0 = arith.constant 0 : i32
    return %arg0, %c0_i32 : i32, i32
  }
  func.func @transform_1(%arg0: i32) -> (i32, i32) {
    %c0_i32 = arith.constant 0 : i32
    %c0_i32_0 = arith.constant 0 : i32
    %c0_i32_1 = arith.constant 0 : i32
    return %c0_i32, %c0_i32_0 : i32, i32
  }
  func.func @transform_2(%arg0: i32) -> (i32, i32) {
    %c0_i32 = arith.constant 0 : i32
    %c0_i32_0 = arith.constant 0 : i32
    %c0_i32_1 = arith.constant 0 : i32
    return %c0_i32, %c0_i32_0 : i32, i32
  }
  func.func @transform_3(%arg0: i32) -> (i32, i32) {
    %c0_i32 = arith.constant 0 : i32
    %c0_i32_0 = arith.constant 0 : i32
    return %arg0, %c0_i32 : i32, i32
  }
}

</mosaic_0001>

<llo_original>
// kernel: gcn_forward.12
$region0: #{gcn_forward.12}
  #allocation0 [shape = 'u32[]', space=smem, size = 0x4, offset = 0x4, fixed_abs, tag = 'smem constant byte address 0x4 - core index']
  #allocation1 [shape = 'u32[144,128]{1,0:T(1,128)}', space=vmem, size = 0x12000, scoped, tag = 'internal scratch']
  %s0 = inlined_call_operand.vmem [shape: f32[512,128], index: 0, kind: input, shape index: {}]
  %s1 = inlined_call_operand.vmem [shape: f32[1,128], index: 1, kind: input, shape index: {}]
  %s2 = inlined_call_operand.vmem [shape: f32[1,128], index: 2, kind: input, shape index: {}]
  %s3 = inlined_call_operand.vmem [shape: bf16[512,128], index: 3, kind: output, shape index: {}]
  %s4 = sld [smem:[#allocation0]]
  $region45: #{gcn_forward.12} parent=0
    _
  %s6 = ssub.s32 1, %s4
  %s7 = scalar_select 0, %s6, %s4
  loop: start=0, step=1, limit=4
  $region2: #{gcn_forward.12} parent=0 // loop_pre_header
    _
  $region3: #{gcn_forward.12} parent=0 // loop_header
    %s9 = sphi 0, %s13
    %p10 = scmp.ge.s32.totalorder %s9, 4
    %s19 = sphi 0, %s21
    %s22 = sphi 0, %s19
    %s23 = sphi 0, %s22
    %s39 = sphi 0, %s23
    %s43 = sphi 0, %s43
    %s45 = sphi 0, %s43
    %s46 = sphi 0, %s45
    %s60 = sphi 0, %s46
    %s64 = sphi 0, %s64
    %s66 = sphi 0, %s64
    %s67 = sphi 0, %s66
    %s81 = sphi 0, %s67
    %s87 = sphi 0, %s89
    %s90 = sphi 0, %s87
    %s91 = sphi 0, %s90
    %s107 = sphi 0, %s91
  $region4: #{gcn_forward.12} parent=0 // loop_header_branch
    %12 = sbr.rel (%p10) target = $region8
  $region5: #{gcn_forward.12} parent=0 // loop_body
    %s14 = ssub.s32 %s9, 1
    %s15 = ssub.s32 %s9, 2
    %s16 = sadd.s32 %s9, 1
    %s17 = ssub.s32 %s9, %s16
    %p18 = scmp.eq.s32.totalorder %s17, 0
    %s20 = sadd.s32 %s19, 1
    %s21 = scalar_select %p18, %s19, %s20
    %p24 = pneg %p18
    %p25 = scmp.eq.s32.totalorder %s9, 1
    %p26 = por %p24, %p25
    %p27 = scmp.ne.s32.totalorder %s19, %s22
    %p28 = scmp.eq.s32.totalorder %s9, 0
    %p29 = por %p27, %p28
    %p30 = scmp.ne.s32.totalorder %s19, %s22
    %p31 = scmp.eq.s32.totalorder %s14, 1
    %p32 = por %p30, %p31
    %p33 = scmp.ne.s32.totalorder %s22, %s23
    %p34 = scmp.eq.s32.totalorder %s14, 0
    %p35 = por %p33, %p34
    %p36 = scmp.ne.s32.totalorder %s22, %s23
    %p37 = scmp.eq.s32.totalorder %s15, 1
    %p38 = por %p36, %p37
    %p40 = scmp.ne.s32.totalorder %s23, %s39
    %p41 = scmp.eq.s32.totalorder %s15, 0
    %p42 = por %p40, %p41
    %s44 = sadd.s32 %s43, 1
    %p47 = scmp.eq.s32.totalorder %s9, 1
    %p48 = scmp.ne.s32.totalorder %s43, %s45
    %p49 = scmp.eq.s32.totalorder %s9, 0
    %p50 = por %p48, %p49
    %p51 = scmp.ne.s32.totalorder %s43, %s45
    %p52 = scmp.eq.s32.totalorder %s14, 1
    %p53 = por %p51, %p52
    %p54 = scmp.ne.s32.totalorder %s45, %s46
    %p55 = scmp.eq.s32.totalorder %s14, 0
    %p56 = por %p54, %p55
    %p57 = scmp.ne.s32.totalorder %s45, %s46
    %p58 = scmp.eq.s32.totalorder %s15, 1
    %p59 = por %p57, %p58
    %p61 = scmp.ne.s32.totalorder %s46, %s60
    %p62 = scmp.eq.s32.totalorder %s15, 0
    %p63 = por %p61, %p62
    %s65 = sadd.s32 %s64, 1
    %p68 = scmp.eq.s32.totalorder %s9, 1
    %p69 = scmp.ne.s32.totalorder %s64, %s66
    %p70 = scmp.eq.s32.totalorder %s9, 0
    %p71 = por %p69, %p70
    %p72 = scmp.ne.s32.totalorder %s64, %s66
    %p73 = scmp.eq.s32.totalorder %s14, 1
    %p74 = por %p72, %p73
    %p75 = scmp.ne.s32.totalorder %s66, %s67
    %p76 = scmp.eq.s32.totalorder %s14, 0
    %p77 = por %p75, %p76
    %p78 = scmp.ne.s32.totalorder %s66, %s67
    %p79 = scmp.eq.s32.totalorder %s15, 1
    %p80 = por %p78, %p79
    %p82 = scmp.ne.s32.totalorder %s67, %s81
    %p83 = scmp.eq.s32.totalorder %s15, 0
    %p84 = por %p82, %p83
    %s85 = ssub.s32 %s9, %s16
    %p86 = scmp.eq.s32.totalorder %s85, 0
    %s88 = sadd.s32 %s87, 1
    %s89 = scalar_select %p86, %s87, %s88
    %p92 = pneg %p86
    %p93 = scmp.eq.s32.totalorder %s9, 1
    %p94 = por %p92, %p93
    %p95 = scmp.ne.s32.totalorder %s87, %s90
    %p96 = scmp.eq.s32.totalorder %s9, 0
    %p97 = por %p95, %p96
    %p98 = scmp.ne.s32.totalorder %s87, %s90
    %p99 = scmp.eq.s32.totalorder %s14, 1
    %p100 = por %p98, %p99
    %p101 = scmp.ne.s32.totalorder %s90, %s91
    %p102 = scmp.eq.s32.totalorder %s14, 0
    %p103 = por %p101, %p102
    %p104 = scmp.ne.s32.totalorder %s90, %s91
    %p105 = scmp.eq.s32.totalorder %s15, 1
    %p106 = por %p104, %p105
    %p108 = scmp.ne.s32.totalorder %s91, %s107
    %p109 = scmp.eq.s32.totalorder %s15, 0
    %p110 = por %p108, %p109
    %p111 = scmp.le.s32.totalorder 1, %s9
    %p112 = scmp.lt.s32.totalorder %s9, 3
    %p113 = pnand %p111, %p112
    %p114 = pneg %p113
    // Predicated region
    $region9: #{gcn_forward.12} parent=5 // pred_check
      _
    $region10: #{gcn_forward.12} parent=5 // pred_check_branch
      %116 = sbr.rel (%p113) target = $region12
    $region11: #{gcn_forward.12} parent=5 // pred_region
      %s117 = ssub.s32 %s9, 1
      // Predicated region
      $region13: #{gcn_forward.12} parent=11 // pred_check
        %p118 = pneg %p56
      $region14: #{gcn_forward.12} parent=11 // pred_check_branch
        %120 = sbr.rel (%p118) target = $region16
      $region15: #{gcn_forward.12} parent=11 // pred_region
        _
      $region16: #{gcn_forward.12} parent=11 // pred_fallthru
        _
      // Predicated region
      $region17: #{gcn_forward.12} parent=11 // pred_check
        %p121 = pneg %p77
      $region18: #{gcn_forward.12} parent=11 // pred_check_branch
        %123 = sbr.rel (%p121) target = $region20
      $region19: #{gcn_forward.12} parent=11 // pred_region
        _
      $region20: #{gcn_forward.12} parent=11 // pred_fallthru
        _
    $region12: #{gcn_forward.12} parent=5 // pred_fallthru
      _
    %p124 = scmp.lt.s32.totalorder %s9, 2
    // Predicated region
    $region21: #{gcn_forward.12} parent=5 // pred_check
      %p125 = pneg %p124
    $region22: #{gcn_forward.12} parent=5 // pred_check_branch
      %127 = sbr.rel (%p125) target = $region24
    $region23: #{gcn_forward.12} parent=5 // pred_region
      // Predicated region
      $region25: #{gcn_forward.12} parent=23 // pred_check
        %p128 = pneg %p29
      $region26: #{gcn_forward.12} parent=23 // pred_check_branch
        %130 = sbr.rel (%p128) target = $region28
      $region27: #{gcn_forward.12} parent=23 // pred_region
        %s131 = smul.u32 32, %s9
        %p132 = scmp.lt.s32.totalorder %s131, 63
        %s133 = scalar_select %p132, %s131, 63
        %s134 = smul.addr %s133, 8
        %s135 = scalar_lea.vmem %s0, %s134
        %s136 = smul.u32 32, %s9
      $region28: #{gcn_forward.12} parent=23 // pred_fallthru
        _
    $region24: #{gcn_forward.12} parent=5 // pred_fallthru
      _
    %p137 = scmp.le.s32.totalorder 1, %s9
    %p138 = scmp.lt.s32.totalorder %s9, 3
    %p139 = pnand %p137, %p138
    %p140 = pneg %p139
    // Predicated region
    $region29: #{gcn_forward.12} parent=5 // pred_check
      _
    $region30: #{gcn_forward.12} parent=5 // pred_check_branch
      %142 = sbr.rel (%p139) target = $region32
    $region31: #{gcn_forward.12} parent=5 // pred_region
      %s143 = ssub.s32 %s9, 1
      %s144 = smul.u32 32, %s14
      %p145 = scmp.lt.s32.totalorder %s144, 63
      %s146 = scalar_select %p145, %s144, 63
      %s147 = smul.addr %s146, 8
      %s148 = scalar_lea.vmem %s0, %s147
      %p149 = pneg %p35
      %p150 = pneg %p32
      %p151 = pneg %p56
      %p152 = pneg %p53
      %p153 = pneg %p77
      %p154 = pneg %p74
      %p155 = pneg %p103
      %p156 = pneg %p100
      %s157 = smul.u32 32, %s14
      %p158 = scmp.lt.s32.totalorder %s157, 63
      %s159 = scalar_select %p158, %s157, 63
      %s160 = smul.addr %s159, 4
      %s161 = scalar_lea.vmem %s3, %s160
      %s162 = smul.u32 32, %s14
      %p163 = scmp.lt.s32.totalorder %s162, 63
      %s164 = scalar_select %p163, %s162, 63
      %s165 = smul.addr %s164, 8
      %s166 = scalar_lea.vmem %s0, %s165
      %s167 = smul.u32 32, %s14
      %s168 = smul.u32 32, %s14
      %p169 = scmp.lt.s32.totalorder %s168, 63
      %s170 = scalar_select %p169, %s168, 63
      %s171 = smul.addr %s170, 4
      %s172 = scalar_lea.vmem %s3, %s171
      %s173 = smul.u32 32, %s14
      %v174 = vld [vmem:[%s166] sm:$0xff]
      %v175 = vld [vmem:[%s166 + $0x8] sm:$0xff]
      %v176 = vld [vmem:[%s166 + $0x10] sm:$0xff]
      %v177 = vld [vmem:[%s166 + $0x18] sm:$0xff]
      %v178 = vld [vmem:[%s166 + $0x20] sm:$0xff]
      %v179 = vld [vmem:[%s166 + $0x28] sm:$0xff]
      %v180 = vld [vmem:[%s166 + $0x30] sm:$0xff]
      %v181 = vld [vmem:[%s166 + $0x38] sm:$0xff]
      %v182 = vld [vmem:[%s166 + $0x40] sm:$0xff]
      %v183 = vld [vmem:[%s166 + $0x48] sm:$0xff]
      %v184 = vld [vmem:[%s166 + $0x50] sm:$0xff]
      %v185 = vld [vmem:[%s166 + $0x58] sm:$0xff]
      %v186 = vld [vmem:[%s166 + $0x60] sm:$0xff]
      %v187 = vld [vmem:[%s166 + $0x68] sm:$0xff]
      %v188 = vld [vmem:[%s166 + $0x70] sm:$0xff]
      %v189 = vld [vmem:[%s166 + $0x78] sm:$0xff]
      %v190 = vld [vmem:[%s166 + $0x80] sm:$0xff]
      %v191 = vld [vmem:[%s166 + $0x88] sm:$0xff]
      %v192 = vld [vmem:[%s166 + $0x90] sm:$0xff]
      %v193 = vld [vmem:[%s166 + $0x98] sm:$0xff]
      %v194 = vld [vmem:[%s166 + $0xa0] sm:$0xff]
      %v195 = vld [vmem:[%s166 + $0xa8] sm:$0xff]
      %v196 = vld [vmem:[%s166 + $0xb0] sm:$0xff]
      %v197 = vld [vmem:[%s166 + $0xb8] sm:$0xff]
      %v198 = vld [vmem:[%s166 + $0xc0] sm:$0xff]
      %v199 = vld [vmem:[%s166 + $0xc8] sm:$0xff]
      %v200 = vld [vmem:[%s166 + $0xd0] sm:$0xff]
      %v201 = vld [vmem:[%s166 + $0xd8] sm:$0xff]
      %v202 = vld [vmem:[%s166 + $0xe0] sm:$0xff]
      %v203 = vld [vmem:[%s166 + $0xe8] sm:$0xff]
      %v204 = vld [vmem:[%s166 + $0xf0] sm:$0xff]
      %v205 = vld [vmem:[%s166 + $0xf8] sm:$0xff]
      %v206 = vld [vmem:[%s1] sm:$0x1]
      %v208 = vlaneseq
      %v209 = vshrl.u32 %v208, 7
      %v210 = vsub.s32 0, %v209
      %v211 = vrot.slane %v206, %v210
      %v213 = vmul.f32 %v174, %v211
      %v214 = vmul.f32 %v175, %v211
      %v215 = vmul.f32 %v176, %v211
      %v216 = vmul.f32 %v177, %v211
      %v217 = vmul.f32 %v178, %v211
      %v218 = vmul.f32 %v179, %v211
      %v219 = vmul.f32 %v180, %v211
      %v220 = vmul.f32 %v181, %v211
      %v221 = vmul.f32 %v182, %v211
      %v222 = vmul.f32 %v183, %v211
      %v223 = vmul.f32 %v184, %v211
      %v224 = vmul.f32 %v185, %v211
      %v225 = vmul.f32 %v186, %v211
      %v226 = vmul.f32 %v187, %v211
      %v227 = vmul.f32 %v188, %v211
      %v228 = vmul.f32 %v189, %v211
      %v229 = vmul.f32 %v190, %v211
      %v230 = vmul.f32 %v191, %v211
      %v231 = vmul.f32 %v192, %v211
      %v232 = vmul.f32 %v193, %v211
      %v233 = vmul.f32 %v194, %v211
      %v234 = vmul.f32 %v195, %v211
      %v235 = vmul.f32 %v196, %v211
      %v236 = vmul.f32 %v197, %v211
      %v237 = vmul.f32 %v198, %v211
      %v238 = vmul.f32 %v199, %v211
      %v239 = vmul.f32 %v200, %v211
      %v240 = vmul.f32 %v201, %v211
      %v241 = vmul.f32 %v202, %v211
      %v242 = vmul.f32 %v203, %v211
      %v243 = vmul.f32 %v204, %v211
      %v244 = vmul.f32 %v205, %v211
      %v245 = vld [vmem:[%s2] sm:$0x1]
      %v247 = vlaneseq
      %v248 = vshrl.u32 %v247, 7
      %v249 = vsub.s32 0, %v248
      %v250 = vrot.slane %v245, %v249
      %v252 = vadd.f32 %v213, %v250
      %v253 = vadd.f32 %v214, %v250
      %v254 = vadd.f32 %v215, %v250
      %v255 = vadd.f32 %v216, %v250
      %v256 = vadd.f32 %v217, %v250
      %v257 = vadd.f32 %v218, %v250
      %v258 = vadd.f32 %v219, %v250
      %v259 = vadd.f32 %v220, %v250
      %v260 = vadd.f32 %v221, %v250
      %v261 = vadd.f32 %v222, %v250
      %v262 = vadd.f32 %v223, %v250
      %v263 = vadd.f32 %v224, %v250
      %v264 = vadd.f32 %v225, %v250
      %v265 = vadd.f32 %v226, %v250
      %v266 = vadd.f32 %v227, %v250
      %v267 = vadd.f32 %v228, %v250
      %v268 = vadd.f32 %v229, %v250
      %v269 = vadd.f32 %v230, %v250
      %v270 = vadd.f32 %v231, %v250
      %v271 = vadd.f32 %v232, %v250
      %v272 = vadd.f32 %v233, %v250
      %v273 = vadd.f32 %v234, %v250
      %v274 = vadd.f32 %v235, %v250
      %v275 = vadd.f32 %v236, %v250
      %v276 = vadd.f32 %v237, %v250
      %v277 = vadd.f32 %v238, %v250
      %v278 = vadd.f32 %v239, %v250
      %v279 = vadd.f32 %v240, %v250
      %v280 = vadd.f32 %v241, %v250
      %v281 = vadd.f32 %v242, %v250
      %v282 = vadd.f32 %v243, %v250
      %v283 = vadd.f32 %v244, %v250
      %v284 = vmax.f32 %v252, 0.0
      %v285 = vmax.f32 %v253, 0.0
      %v286 = vmax.f32 %v254, 0.0
      %v287 = vmax.f32 %v255, 0.0
      %v288 = vmax.f32 %v256, 0.0
      %v289 = vmax.f32 %v257, 0.0
      %v290 = vmax.f32 %v258, 0.0
      %v291 = vmax.f32 %v259, 0.0
      %v292 = vmax.f32 %v260, 0.0
      %v293 = vmax.f32 %v261, 0.0
      %v294 = vmax.f32 %v262, 0.0
      %v295 = vmax.f32 %v263, 0.0
      %v296 = vmax.f32 %v264, 0.0
      %v297 = vmax.f32 %v265, 0.0
      %v298 = vmax.f32 %v266, 0.0
      %v299 = vmax.f32 %v267, 0.0
      %v300 = vmax.f32 %v268, 0.0
      %v301 = vmax.f32 %v269, 0.0
      %v302 = vmax.f32 %v270, 0.0
      %v303 = vmax.f32 %v271, 0.0
      %v304 = vmax.f32 %v272, 0.0
      %v305 = vmax.f32 %v273, 0.0
      %v306 = vmax.f32 %v274, 0.0
      %v307 = vmax.f32 %v275, 0.0
      %v308 = vmax.f32 %v276, 0.0
      %v309 = vmax.f32 %v277, 0.0
      %v310 = vmax.f32 %v278, 0.0
      %v311 = vmax.f32 %v279, 0.0
      %v312 = vmax.f32 %v280, 0.0
      %v313 = vmax.f32 %v281, 0.0
      %v314 = vmax.f32 %v282, 0.0
      %v315 = vmax.f32 %v283, 0.0
      %v316 = vpack.c.bf16 %v285, %v284
      %v317 = vpack.c.bf16 %v287, %v286
      %v318 = vpack.c.bf16 %v289, %v288
      %v319 = vpack.c.bf16 %v291, %v290
      %v320 = vpack.c.bf16 %v293, %v292
      %v321 = vpack.c.bf16 %v295, %v294
      %v322 = vpack.c.bf16 %v297, %v296
      %v323 = vpack.c.bf16 %v299, %v298
      %v324 = vpack.c.bf16 %v301, %v300
      %v325 = vpack.c.bf16 %v303, %v302
      %v326 = vpack.c.bf16 %v305, %v304
      %v327 = vpack.c.bf16 %v307, %v306
      %v328 = vpack.c.bf16 %v309, %v308
      %v329 = vpack.c.bf16 %v311, %v310
      %v330 = vpack.c.bf16 %v313, %v312
      %v331 = vpack.c.bf16 %v315, %v314
      %v348 = vunpack.c.l.b16 %v316
      %v349 = vunpack.c.h.b16 %v316
      %v350 = vunpack.c.l.b16 %v317
      %v351 = vunpack.c.h.b16 %v317
      %v352 = vunpack.c.l.b16 %v318
      %v353 = vunpack.c.h.b16 %v318
      %v354 = vunpack.c.l.b16 %v319
      %v355 = vunpack.c.h.b16 %v319
      %v356 = vunpack.c.l.b16 %v320
      %v357 = vunpack.c.h.b16 %v320
      %v358 = vunpack.c.l.b16 %v321
      %v359 = vunpack.c.h.b16 %v321
      %v360 = vunpack.c.l.b16 %v322
      %v361 = vunpack.c.h.b16 %v322
      %v362 = vunpack.c.l.b16 %v323
      %v363 = vunpack.c.h.b16 %v323
      %v364 = vunpack.c.l.b16 %v324
      %v365 = vunpack.c.h.b16 %v324
      %v366 = vunpack.c.l.b16 %v325
      %v367 = vunpack.c.h.b16 %v325
      %v368 = vunpack.c.l.b16 %v326
      %v369 = vunpack.c.h.b16 %v326
      %v370 = vunpack.c.l.b16 %v327
      %v371 = vunpack.c.h.b16 %v327
      %v372 = vunpack.c.l.b16 %v328
      %v373 = vunpack.c.h.b16 %v328
      %v374 = vunpack.c.l.b16 %v329
      %v375 = vunpack.c.h.b16 %v329
      %v376 = vunpack.c.l.b16 %v330
      %v377 = vunpack.c.h.b16 %v330
      %v378 = vunpack.c.l.b16 %v331
      %v379 = vunpack.c.h.b16 %v331
      %v380 = vpack.c.b16 %v348, %v348
      %v381 = vpack.c.b16 %v349, %v349
      %v382 = vpack.c.b16 %v350, %v350
      %v383 = vpack.c.b16 %v351, %v351
      %v384 = vpack.c.b16 %v352, %v352
      %v385 = vpack.c.b16 %v353, %v353
      %v386 = vpack.c.b16 %v354, %v354
      %v387 = vpack.c.b16 %v355, %v355
      %v388 = vpack.c.b16 %v356, %v356
      %v389 = vpack.c.b16 %v357, %v357
      %v390 = vpack.c.b16 %v358, %v358
      %v391 = vpack.c.b16 %v359, %v359
      %v392 = vpack.c.b16 %v360, %v360
      %v393 = vpack.c.b16 %v361, %v361
      %v394 = vpack.c.b16 %v362, %v362
      %v395 = vpack.c.b16 %v363, %v363
      %v396 = vpack.c.b16 %v364, %v364
      %v397 = vpack.c.b16 %v365, %v365
      %v398 = vpack.c.b16 %v366, %v366
      %v399 = vpack.c.b16 %v367, %v367
      %v400 = vpack.c.b16 %v368, %v368
      %v401 = vpack.c.b16 %v369, %v369
      %v402 = vpack.c.b16 %v370, %v370
      %v403 = vpack.c.b16 %v371, %v371
      %v404 = vpack.c.b16 %v372, %v372
      %v405 = vpack.c.b16 %v373, %v373
      %v406 = vpack.c.b16 %v374, %v374
      %v407 = vpack.c.b16 %v375, %v375
      %v408 = vpack.c.b16 %v376, %v376
      %v409 = vpack.c.b16 %v377, %v377
      %v410 = vpack.c.b16 %v378, %v378
      %v411 = vpack.c.b16 %v379, %v379
      %444 = vst [vmem:[%s172] sm:$0xf] %v380
      %445 = vst [vmem:[%s172 + $0x4] sm:$0xf] %v381
      %446 = vst [vmem:[%s172 + $0x8] sm:$0xf] %v382
      %447 = vst [vmem:[%s172 + $0xc] sm:$0xf] %v383
      %448 = vst [vmem:[%s172 + $0x10] sm:$0xf] %v384
      %449 = vst [vmem:[%s172 + $0x14] sm:$0xf] %v385
      %450 = vst [vmem:[%s172 + $0x18] sm:$0xf] %v386
      %451 = vst [vmem:[%s172 + $0x1c] sm:$0xf] %v387
      %452 = vst [vmem:[%s172 + $0x20] sm:$0xf] %v388
      %453 = vst [vmem:[%s172 + $0x24] sm:$0xf] %v389
      %454 = vst [vmem:[%s172 + $0x28] sm:$0xf] %v390
      %455 = vst [vmem:[%s172 + $0x2c] sm:$0xf] %v391
      %456 = vst [vmem:[%s172 + $0x30] sm:$0xf] %v392
      %457 = vst [vmem:[%s172 + $0x34] sm:$0xf] %v393
      %458 = vst [vmem:[%s172 + $0x38] sm:$0xf] %v394
      %459 = vst [vmem:[%s172 + $0x3c] sm:$0xf] %v395
      %460 = vst [vmem:[%s172 + $0x40] sm:$0xf] %v396
      %461 = vst [vmem:[%s172 + $0x44] sm:$0xf] %v397
      %462 = vst [vmem:[%s172 + $0x48] sm:$0xf] %v398
      %463 = vst [vmem:[%s172 + $0x4c] sm:$0xf] %v399
      %464 = vst [vmem:[%s172 + $0x50] sm:$0xf] %v400
      %465 = vst [vmem:[%s172 + $0x54] sm:$0xf] %v401
      %466 = vst [vmem:[%s172 + $0x58] sm:$0xf] %v402
      %467 = vst [vmem:[%s172 + $0x5c] sm:$0xf] %v403
      %468 = vst [vmem:[%s172 + $0x60] sm:$0xf] %v404
      %469 = vst [vmem:[%s172 + $0x64] sm:$0xf] %v405
      %470 = vst [vmem:[%s172 + $0x68] sm:$0xf] %v406
      %471 = vst [vmem:[%s172 + $0x6c] sm:$0xf] %v407
      %472 = vst [vmem:[%s172 + $0x70] sm:$0xf] %v408
      %473 = vst [vmem:[%s172 + $0x74] sm:$0xf] %v409
      %474 = vst [vmem:[%s172 + $0x78] sm:$0xf] %v410
      %475 = vst [vmem:[%s172 + $0x7c] sm:$0xf] %v411
      %s476 = smul.u32 32, %s14
      %p477 = scmp.lt.s32.totalorder %s476, 63
      %s478 = scalar_select %p477, %s476, 63
      %s479 = smul.addr %s478, 4
      %s480 = scalar_lea.vmem %s3, %s479
      // Predicated region
      $region33: #{gcn_forward.12} parent=31 // pred_check
        %p481 = pneg %p100
      $region34: #{gcn_forward.12} parent=31 // pred_check_branch
        %483 = sbr.rel (%p481) target = $region36
      $region35: #{gcn_forward.12} parent=31 // pred_region
        %s484 = smul.u32 32, %s14
      $region36: #{gcn_forward.12} parent=31 // pred_fallthru
        _
    $region32: #{gcn_forward.12} parent=5 // pred_fallthru
      _
    %p485 = scmp.le.s32.totalorder 2, %s9
    // Predicated region
    $region37: #{gcn_forward.12} parent=5 // pred_check
      %p486 = pneg %p485
    $region38: #{gcn_forward.12} parent=5 // pred_check_branch
      %488 = sbr.rel (%p486) target = $region40
    $region39: #{gcn_forward.12} parent=5 // pred_region
      %s489 = ssub.s32 %s9, 2
      // Predicated region
      $region41: #{gcn_forward.12} parent=39 // pred_check
        %p490 = pneg %p106
      $region42: #{gcn_forward.12} parent=39 // pred_check_branch
        %492 = sbr.rel (%p490) target = $region44
      $region43: #{gcn_forward.12} parent=39 // pred_region
        %s493 = smul.u32 32, %s15
        %p494 = scmp.lt.s32.totalorder %s493, 63
        %s495 = scalar_select %p494, %s493, 63
        %s496 = smul.addr %s495, 4
        %s497 = scalar_lea.vmem %s3, %s496
      $region44: #{gcn_forward.12} parent=39 // pred_fallthru
        _
    $region40: #{gcn_forward.12} parent=5 // pred_fallthru
      _
  $region6: #{gcn_forward.12} parent=0 // loop_footer
    %s13 = sadd.s32 1, %s9
  $region7: #{gcn_forward.12} parent=0 // loop_footer_branch
    %8 = sbr.rel target = $region3
  $region8: #{gcn_forward.12} parent=0 // loop_exit
    _

// kernel: gcn_forward.11
$region0: #{gcn_forward.11}
  #allocation0 [shape = 'u32[]', space=smem, size = 0x4, offset = 0x4, fixed_abs, tag = 'smem constant byte address 0x4 - core index']
  #allocation1 [shape = 'u32[144,128]{1,0:T(1,128)}', space=vmem, size = 0x12000, scoped, tag = 'internal scratch']
  #allocation2 [shape = 'f32[256,128]{1,0:T(8,128)}', space=vmem, size = 0x20000, scoped, tag = 'scratch operand']
  %s0 = inlined_call_operand.vmem [shape: bf16[512,512], index: 0, kind: input, shape index: {}]
  %s1 = inlined_call_operand.vmem [shape: bf16[512,128], index: 1, kind: input, shape index: {}]
  %s2 = inlined_call_operand.vmem [shape: bf16[128,128], index: 2, kind: input, shape index: {}]
  %s3 = inlined_call_operand.vmem [shape: f32[512,128], index: 3, kind: output, shape index: {0}]
  %s4 = inlined_call_operand.vmem [shape: f32[2,8,128], index: 4, kind: output, shape index: {1}]
  %5 = xla_tuple %s3, %s4
  %s6 = sld [smem:[#allocation0]]
  $region99: #{gcn_forward.11} parent=0
    _
  %s8 = ssub.s32 1, %s6
  %s9 = scalar_select 0, %s8, %s6
  $region1: #{gcn_forward.11} parent=0
    #allocation3 [shape = 'u8[262144]{0}', space=vmem, size = 0x40000, scoped, tag = 'input window, operand 0']
    loop: start=0, step=1, limit=6
    $region2: #{gcn_forward.11} parent=1 // loop_pre_header
      _
    $region3: #{gcn_forward.11} parent=1 // loop_header
      %s11 = sphi 0, %s15
      %p12 = scmp.ge.s32.totalorder %s11, 6
      %s18 = sphi 0, %s30
      %s19 = sphi 0, %s26
      %s20 = sphi 0, %s18
      %s21 = sphi 0, %s19
      %s22 = sphi 0, %s20
      %s23 = sphi 0, %s21
      %s35 = sphi 0, %s37
      %s38 = sphi 0, %s35
      %s39 = sphi 0, %s38
      %s55 = sphi 0, %s39
      %s61 = sphi 0, %s63
      %s64 = sphi 0, %s61
      %s65 = sphi 0, %s64
      %s81 = sphi 0, %s65
      %s85 = sphi 0, %s85
      %s87 = sphi 0, %s85
      %s88 = sphi 0, %s87
      %s102 = sphi 0, %s88
      %s108 = sphi 0, %s110
      %s111 = sphi 0, %s108
      %s112 = sphi 0, %s111
      %s128 = sphi 0, %s112
      %s134 = sphi 0, %s136
      %s137 = sphi 0, %s134
      %s138 = sphi 0, %s137
      %s154 = sphi 0, %s138
    $region4: #{gcn_forward.11} parent=1 // loop_header_branch
      %14 = sbr.rel (%p12) target = $region8
    $region5: #{gcn_forward.11} parent=1 // loop_body
      %s16 = ssub.s32 %s11, 1
      %s17 = ssub.s32 %s11, 2
      %s24 = sadd.s32 1, %s19
      %p25 = scmp.ge.s32.totalorder %s24, 2
      %s26 = scalar_select %p25, 0, %s24
      %s27 = sadd.s32 1, %s18
      %s28 = scalar_select %p25, %s27, %s18
      %p29 = scmp.ge.s32.totalorder %s28, 2
      %s30 = scalar_select %p29, 0, %s28
      %s31 = ssub.s32 %s18, %s30
      %s32 = ssub.s32 %s19, %s26
      %s33 = sor.u32 %s31, %s32
      %p34 = scmp.eq.s32.totalorder %s33, 0
      %s36 = sadd.s32 %s35, 1
      %s37 = scalar_select %p34, %s35, %s36
      %p40 = pneg %p34
      %p41 = scmp.eq.s32.totalorder %s11, 3
      %p42 = por %p40, %p41
      %p43 = scmp.ne.s32.totalorder %s35, %s38
      %p44 = scmp.eq.s32.totalorder %s11, 0
      %p45 = por %p43, %p44
      %p46 = scmp.ne.s32.totalorder %s35, %s38
      %p47 = scmp.eq.s32.totalorder %s16, 3
      %p48 = por %p46, %p47
      %p49 = scmp.ne.s32.totalorder %s38, %s39
      %p50 = scmp.eq.s32.totalorder %s16, 0
      %p51 = por %p49, %p50
      %p52 = scmp.ne.s32.totalorder %s38, %s39
      %p53 = scmp.eq.s32.totalorder %s17, 3
      %p54 = por %p52, %p53
      %p56 = scmp.ne.s32.totalorder %s39, %s55
      %p57 = scmp.eq.s32.totalorder %s17, 0
      %p58 = por %p56, %p57
      %s59 = ssub.s32 %s19, %s26
      %p60 = scmp.eq.s32.totalorder %s59, 0
      %s62 = sadd.s32 %s61, 1
      %s63 = scalar_select %p60, %s61, %s62
      %p66 = pneg %p60
      %p67 = scmp.eq.s32.totalorder %s11, 3
      %p68 = por %p66, %p67
      %p69 = scmp.ne.s32.totalorder %s61, %s64
      %p70 = scmp.eq.s32.totalorder %s11, 0
      %p71 = por %p69, %p70
      %p72 = scmp.ne.s32.totalorder %s61, %s64
      %p73 = scmp.eq.s32.totalorder %s16, 3
      %p74 = por %p72, %p73
      %p75 = scmp.ne.s32.totalorder %s64, %s65
      %p76 = scmp.eq.s32.totalorder %s16, 0
      %p77 = por %p75, %p76
      %p78 = scmp.ne.s32.totalorder %s64, %s65
      %p79 = scmp.eq.s32.totalorder %s17, 3
      %p80 = por %p78, %p79
      %p82 = scmp.ne.s32.totalorder %s65, %s81
      %p83 = scmp.eq.s32.totalorder %s17, 0
      %p84 = por %p82, %p83
      %s86 = sadd.s32 %s85, 1
      %p89 = scmp.eq.s32.totalorder %s11, 3
      %p90 = scmp.ne.s32.totalorder %s85, %s87
      %p91 = scmp.eq.s32.totalorder %s11, 0
      %p92 = por %p90, %p91
      %p93 = scmp.ne.s32.totalorder %s85, %s87
      %p94 = scmp.eq.s32.totalorder %s16, 3
      %p95 = por %p93, %p94
      %p96 = scmp.ne.s32.totalorder %s87, %s88
      %p97 = scmp.eq.s32.totalorder %s16, 0
      %p98 = por %p96, %p97
      %p99 = scmp.ne.s32.totalorder %s87, %s88
      %p100 = scmp.eq.s32.totalorder %s17, 3
      %p101 = por %p99, %p100
      %p103 = scmp.ne.s32.totalorder %s88, %s102
      %p104 = scmp.eq.s32.totalorder %s17, 0
      %p105 = por %p103, %p104
      %s106 = ssub.s32 %s18, %s30
      %p107 = scmp.eq.s32.totalorder %s106, 0
      %s109 = sadd.s32 %s108, 1
      %s110 = scalar_select %p107, %s108, %s109
      %p113 = pneg %p107
      %p114 = scmp.eq.s32.totalorder %s11, 3
      %p115 = por %p113, %p114
      %p116 = scmp.ne.s32.totalorder %s108, %s111
      %p117 = scmp.eq.s32.totalorder %s11, 0
      %p118 = por %p116, %p117
      %p119 = scmp.ne.s32.totalorder %s108, %s111
      %p120 = scmp.eq.s32.totalorder %s16, 3
      %p121 = por %p119, %p120
      %p122 = scmp.ne.s32.totalorder %s111, %s112
      %p123 = scmp.eq.s32.totalorder %s16, 0
      %p124 = por %p122, %p123
      %p125 = scmp.ne.s32.totalorder %s111, %s112
      %p126 = scmp.eq.s32.totalorder %s17, 3
      %p127 = por %p125, %p126
      %p129 = scmp.ne.s32.totalorder %s112, %s128
      %p130 = scmp.eq.s32.totalorder %s17, 0
      %p131 = por %p129, %p130
      %s132 = ssub.s32 %s18, %s30
      %p133 = scmp.eq.s32.totalorder %s132, 0
      %s135 = sadd.s32 %s134, 1
      %s136 = scalar_select %p133, %s134, %s135
      %p139 = pneg %p133
      %p140 = scmp.eq.s32.totalorder %s11, 3
      %p141 = por %p139, %p140
      %p142 = scmp.ne.s32.totalorder %s134, %s137
      %p143 = scmp.eq.s32.totalorder %s11, 0
      %p144 = por %p142, %p143
      %p145 = scmp.ne.s32.totalorder %s134, %s137
      %p146 = scmp.eq.s32.totalorder %s16, 3
      %p147 = por %p145, %p146
      %p148 = scmp.ne.s32.totalorder %s137, %s138
      %p149 = scmp.eq.s32.totalorder %s16, 0
      %p150 = por %p148, %p149
      %p151 = scmp.ne.s32.totalorder %s137, %s138
      %p152 = scmp.eq.s32.totalorder %s17, 3
      %p153 = por %p151, %p152
      %p155 = scmp.ne.s32.totalorder %s138, %s154
      %p156 = scmp.eq.s32.totalorder %s17, 0
      %p157 = por %p155, %p156
      %p158 = scmp.le.s32.totalorder 1, %s11
      %p159 = scmp.lt.s32.totalorder %s11, 5
      %p160 = pnand %p158, %p159
      %p161 = pneg %p160
      // Predicated region
      $region9: #{gcn_forward.11} parent=5 // pred_check
        _
      $region10: #{gcn_forward.11} parent=5 // pred_check_branch
        %163 = sbr.rel (%p160) target = $region12
      $region11: #{gcn_forward.11} parent=5 // pred_region
        %s164 = ssub.s32 %s11, 1
        // Predicated region
        $region13: #{gcn_forward.11} parent=11 // pred_check
          %p165 = pneg %p98
        $region14: #{gcn_forward.11} parent=11 // pred_check_branch
          %167 = sbr.rel (%p165) target = $region16
        $region15: #{gcn_forward.11} parent=11 // pred_region
          _
        $region16: #{gcn_forward.11} parent=11 // pred_fallthru
          _
      $region12: #{gcn_forward.11} parent=5 // pred_fallthru
        _
      %p168 = scmp.lt.s32.totalorder %s11, 4
      // Predicated region
      $region17: #{gcn_forward.11} parent=5 // pred_check
        %p169 = pneg %p168
      $region18: #{gcn_forward.11} parent=5 // pred_check_branch
        %171 = sbr.rel (%p169) target = $region20
      $region19: #{gcn_forward.11} parent=5 // pred_region
        // Predicated region
        $region21: #{gcn_forward.11} parent=19 // pred_check
          %p172 = pneg %p45
        $region22: #{gcn_forward.11} parent=19 // pred_check_branch
          %174 = sbr.rel (%p172) target = $region24
        $region23: #{gcn_forward.11} parent=19 // pred_region
          %s175 = sand.u32 %s35, 1
          %s176 = sand.u32 %s35, 1
          %s177 = smul.addr %s176, 256
          %s178 = scalar_lea.vmem [#allocation3], %s177
          %s179 = smul.u32 32, %s18
          %s180 = smul.u32 2, %s19
          %s181 = smul.addr %s179, 4
          %s182 = sadd.s32 %s180, %s181
          %s183 = smul.addr %s182, 4
          %s184 = scalar_lea.vmem %s0, %s183
          // Predicated region
          $region25: #{gcn_forward.11} parent=23 // pred_check
            _
          $region26: #{gcn_forward.11} parent=23 // pred_check_branch
            %186 = sbr.rel (0) target = $region28
          $region27: #{gcn_forward.11} parent=23 // pred_region
            // Predicated region
            $region29: #{gcn_forward.11} parent=27 // pred_check
              _
            $region30: #{gcn_forward.11} parent=27 // pred_check_branch
              %188 = sbr.rel (0) target = $region32
            $region31: #{gcn_forward.11} parent=27 // pred_region
              // Predicated region
              $region44: #{gcn_forward.11} parent=31 // pred_check
                _
              $region45: #{gcn_forward.11} parent=31 // pred_check_branch
                %266 = sbr.rel (0) target = $region47
              $region46: #{gcn_forward.11} parent=31 // pred_region
                loop: start=0, step=1, limit=1
                $region48: #{gcn_forward.11} parent=46 // loop_pre_header
                  _
                $region49: #{gcn_forward.11} parent=46 // loop_header
                  %s268 = sphi 0, %s272
                  %p269 = scmp.ge.s32.totalorder %s268, 1
                  %s273 = sphi %s184, %s184
                  %s274 = sphi %s178, %s178
                $region50: #{gcn_forward.11} parent=46 // loop_header_branch
                  %271 = sbr.rel (%p269) target = $region54
                $region51: #{gcn_forward.11} parent=46 // loop_body
                  %v275 = vld [vmem:[%s273] sm:$0xff]
                  %276 = vst [vmem:[%s274] sm:$0xff] %v275
                  %v277 = vld [vmem:[%s273 + $0x10] sm:$0xff]
                  %278 = vst [vmem:[%s274 + $0x8] sm:$0xff] %v277
                  %v279 = vld [vmem:[%s273 + $0x20] sm:$0xff]
                  %280 = vst [vmem:[%s274 + $0x10] sm:$0xff] %v279
                  %v281 = vld [vmem:[%s273 + $0x30] sm:$0xff]
                  %282 = vst [vmem:[%s274 + $0x18] sm:$0xff] %v281
                  %v283 = vld [vmem:[%s273 + $0x40] sm:$0xff]
                  %284 = vst [vmem:[%s274 + $0x20] sm:$0xff] %v283
                  %v285 = vld [vmem:[%s273 + $0x50] sm:$0xff]
                  %286 = vst [vmem:[%s274 + $0x28] sm:$0xff] %v285
                  %v287 = vld [vmem:[%s273 + $0x60] sm:$0xff]
                  %288 = vst [vmem:[%s274 + $0x30] sm:$0xff] %v287
                  %v289 = vld [vmem:[%s273 + $0x70] sm:$0xff]
                  %290 = vst [vmem:[%s274 + $0x38] sm:$0xff] %v289
                  %v291 = vld [vmem:[%s273 + $0x80] sm:$0xff]
                  %292 = vst [vmem:[%s274 + $0x40] sm:$0xff] %v291
                  %v293 = vld [vmem:[%s273 + $0x90] sm:$0xff]
                  %294 = vst [vmem:[%s274 + $0x48] sm:$0xff] %v293
                  %v295 = vld [vmem:[%s273 + $0xa0] sm:$0xff]
                  %296 = vst [vmem:[%s274 + $0x50] sm:$0xff] %v295
                  %v297 = vld [vmem:[%s273 + $0xb0] sm:$0xff]
                  %298 = vst [vmem:[%s274 + $0x58] sm:$0xff] %v297
                  %v299 = vld [vmem:[%s273 + $0xc0] sm:$0xff]
                  %300 = vst [vmem:[%s274 + $0x60] sm:$0xff] %v299
                  %v301 = vld [vmem:[%s273 + $0xd0] sm:$0xff]
                  %302 = vst [vmem:[%s274 + $0x68] sm:$0xff] %v301
                  %v303 = vld [vmem:[%s273 + $0xe0] sm:$0xff]
                  %304 = vst [vmem:[%s274 + $0x70] sm:$0xff] %v303
                  %v305 = vld [vmem:[%s273 + $0xf0] sm:$0xff]
                  %306 = vst [vmem:[%s274 + $0x78] sm:$0xff] %v305
                  %v307 = vld [vmem:[%s273 + $0x100] sm:$0xff]
                  %308 = vst [vmem:[%s274 + $0x80] sm:$0xff] %v307
                  %v309 = vld [vmem:[%s273 + $0x110] sm:$0xff]
                  %310 = vst [vmem:[%s274 + $0x88] sm:$0xff] %v309
                  %v311 = vld [vmem:[%s273 + $0x120] sm:$0xff]
                  %312 = vst [vmem:[%s274 + $0x90] sm:$0xff] %v311
                  %v313 = vld [vmem:[%s273 + $0x130] sm:$0xff]
                  %314 = vst [vmem:[%s274 + $0x98] sm:$0xff] %v313
                  %v315 = vld [vmem:[%s273 + $0x140] sm:$0xff]
                  %316 = vst [vmem:[%s274 + $0xa0] sm:$0xff] %v315
                  %v317 = vld [vmem:[%s273 + $0x150] sm:$0xff]
                  %318 = vst [vmem:[%s274 + $0xa8] sm:$0xff] %v317
                  %v319 = vld [vmem:[%s273 + $0x160] sm:$0xff]
                  %320 = vst [vmem:[%s274 + $0xb0] sm:$0xff] %v319
                  %v321 = vld [vmem:[%s273 + $0x170] sm:$0xff]
                  %322 = vst [vmem:[%s274 + $0xb8] sm:$0xff] %v321
                  %v323 = vld [vmem:[%s273 + $0x180] sm:$0xff]
                  %324 = vst [vmem:[%s274 + $0xc0] sm:$0xff] %v323
                  %v325 = vld [vmem:[%s273 + $0x190] sm:$0xff]
                  %326 = vst [vmem:[%s274 + $0xc8] sm:$0xff] %v325
                  %v327 = vld [vmem:[%s273 + $0x1a0] sm:$0xff]
                  %328 = vst [vmem:[%s274 + $0xd0] sm:$0xff] %v327
                  %v329 = vld [vmem:[%s273 + $0x1b0] sm:$0xff]
                  %330 = vst [vmem:[%s274 + $0xd8] sm:$0xff] %v329
                  %v331 = vld [vmem:[%s273 + $0x1c0] sm:$0xff]
                  %332 = vst [vmem:[%s274 + $0xe0] sm:$0xff] %v331
                  %v333 = vld [vmem:[%s273 + $0x1d0] sm:$0xff]
                  %334 = vst [vmem:[%s274 + $0xe8] sm:$0xff] %v333
                  %v335 = vld [vmem:[%s273 + $0x1e0] sm:$0xff]
                  %336 = vst [vmem:[%s274 + $0xf0] sm:$0xff] %v335
                  %v337 = vld [vmem:[%s273 + $0x1f0] sm:$0xff]
                  %338 = vst [vmem:[%s274 + $0xf8] sm:$0xff] %v337
                $region52: #{gcn_forward.11} parent=46 // loop_footer
                  %s272 = sadd.s32 1, %s268
                $region53: #{gcn_forward.11} parent=46 // loop_footer_branch
                  %267 = sbr.rel target = $region49
                $region54: #{gcn_forward.11} parent=46 // loop_exit
                  _
              $region47: #{gcn_forward.11} parent=31 // pred_fallthru
                _
              // Predicated region
              $region55: #{gcn_forward.11} parent=31 // pred_check
                _
              $region56: #{gcn_forward.11} parent=31 // pred_check_branch
                %340 = sbr.rel target = $region58
              $region57: #{gcn_forward.11} parent=31 // pred_region
                _
              $region58: #{gcn_forward.11} parent=31 // pred_fallthru
                _
            $region32: #{gcn_forward.11} parent=27 // pred_fallthru
              _
            // Predicated region
            $region33: #{gcn_forward.11} parent=27 // pred_check
              _
            $region34: #{gcn_forward.11} parent=27 // pred_check_branch
              %190 = sbr.rel target = $region36
            $region35: #{gcn_forward.11} parent=27 // pred_region
              %s192 = ssub.s32 256, 1
              loop: start=0, step=1, limit=1
              $region37: #{gcn_forward.11} parent=35 // loop_pre_header
                _
              $region38: #{gcn_forward.11} parent=35 // loop_header
                %s194 = sphi 0, %s198
                %p195 = scmp.ge.s32.totalorder %s194, 1
                %s199 = sphi %s184, %s184
                %s200 = sphi %s178, %s178
              $region39: #{gcn_forward.11} parent=35 // loop_header_branch
                %197 = sbr.rel (%p195) target = $region43
              $region40: #{gcn_forward.11} parent=35 // loop_body
                %v201 = vld [vmem:[%s199] sm:%s192]
                %202 = vst [vmem:[%s200] sm:%s192] %v201
                %v203 = vld [vmem:[%s199 + $0x10] sm:%s192]
                %204 = vst [vmem:[%s200 + $0x8] sm:%s192] %v203
                %v205 = vld [vmem:[%s199 + $0x20] sm:%s192]
                %206 = vst [vmem:[%s200 + $0x10] sm:%s192] %v205
                %v207 = vld [vmem:[%s199 + $0x30] sm:%s192]
                %208 = vst [vmem:[%s200 + $0x18] sm:%s192] %v207
                %v209 = vld [vmem:[%s199 + $0x40] sm:%s192]
                %210 = vst [vmem:[%s200 + $0x20] sm:%s192] %v209
                %v211 = vld [vmem:[%s199 + $0x50] sm:%s192]
                %212 = vst [vmem:[%s200 + $0x28] sm:%s192] %v211
                %v213 = vld [vmem:[%s199 + $0x60] sm:%s192]
                %214 = vst [vmem:[%s200 + $0x30] sm:%s192] %v213
                %v215 = vld [vmem:[%s199 + $0x70] sm:%s192]
                %216 = vst [vmem:[%s200 + $0x38] sm:%s192] %v215
                %v217 = vld [vmem:[%s199 + $0x80] sm:%s192]
                %218 = vst [vmem:[%s200 + $0x40] sm:%s192] %v217
                %v219 = vld [vmem:[%s199 + $0x90] sm:%s192]
                %220 = vst [vmem:[%s200 + $0x48] sm:%s192] %v219
                %v221 = vld [vmem:[%s199 + $0xa0] sm:%s192]
                %222 = vst [vmem:[%s200 + $0x50] sm:%s192] %v221
                %v223 = vld [vmem:[%s199 + $0xb0] sm:%s192]
                %224 = vst [vmem:[%s200 + $0x58] sm:%s192] %v223
                %v225 = vld [vmem:[%s199 + $0xc0] sm:%s192]
                %226 = vst [vmem:[%s200 + $0x60] sm:%s192] %v225
                %v227 = vld [vmem:[%s199 + $0xd0] sm:%s192]
                %228 = vst [vmem:[%s200 + $0x68] sm:%s192] %v227
                %v229 = vld [vmem:[%s199 + $0xe0] sm:%s192]
                %230 = vst [vmem:[%s200 + $0x70] sm:%s192] %v229
                %v231 = vld [vmem:[%s199 + $0xf0] sm:%s192]
                %232 = vst [vmem:[%s200 + $0x78] sm:%s192] %v231
                %v233 = vld [vmem:[%s199 + $0x100] sm:%s192]
                %234 = vst [vmem:[%s200 + $0x80] sm:%s192] %v233
                %v235 = vld [vmem:[%s199 + $0x110] sm:%s192]
                %236 = vst [vmem:[%s200 + $0x88] sm:%s192] %v235
                %v237 = vld [vmem:[%s199 + $0x120] sm:%s192]
                %238 = vst [vmem:[%s200 + $0x90] sm:%s192] %v237
                %v239 = vld [vmem:[%s199 + $0x130] sm:%s192]
                %240 = vst [vmem:[%s200 + $0x98] sm:%s192] %v239
                %v241 = vld [vmem:[%s199 + $0x140] sm:%s192]
                %242 = vst [vmem:[%s200 + $0xa0] sm:%s192] %v241
                %v243 = vld [vmem:[%s199 + $0x150] sm:%s192]
                %244 = vst [vmem:[%s200 + $0xa8] sm:%s192] %v243
                %v245 = vld [vmem:[%s199 + $0x160] sm:%s192]
                %246 = vst [vmem:[%s200 + $0xb0] sm:%s192] %v245
                %v247 = vld [vmem:[%s199 + $0x170] sm:%s192]
                %248 = vst [vmem:[%s200 + $0xb8] sm:%s192] %v247
                %v249 = vld [vmem:[%s199 + $0x180] sm:%s192]
                %250 = vst [vmem:[%s200 + $0xc0] sm:%s192] %v249
                %v251 = vld [vmem:[%s199 + $0x190] sm:%s192]
                %252 = vst [vmem:[%s200 + $0xc8] sm:%s192] %v251
                %v253 = vld [vmem:[%s199 + $0x1a0] sm:%s192]
                %254 = vst [vmem:[%s200 + $0xd0] sm:%s192] %v253
                %v255 = vld [vmem:[%s199 + $0x1b0] sm:%s192]
                %256 = vst [vmem:[%s200 + $0xd8] sm:%s192] %v255
                %v257 = vld [vmem:[%s199 + $0x1c0] sm:%s192]
                %258 = vst [vmem:[%s200 + $0xe0] sm:%s192] %v257
                %v259 = vld [vmem:[%s199 + $0x1d0] sm:%s192]
                %260 = vst [vmem:[%s200 + $0xe8] sm:%s192] %v259
                %v261 = vld [vmem:[%s199 + $0x1e0] sm:%s192]
                %262 = vst [vmem:[%s200 + $0xf0] sm:%s192] %v261
                %v263 = vld [vmem:[%s199 + $0x1f0] sm:%s192]
                %264 = vst [vmem:[%s200 + $0xf8] sm:%s192] %v263
              $region41: #{gcn_forward.11} parent=35 // loop_footer
                %s198 = sadd.s32 1, %s194
              $region42: #{gcn_forward.11} parent=35 // loop_footer_branch
                %193 = sbr.rel target = $region38
              $region43: #{gcn_forward.11} parent=35 // loop_exit
                _
            $region36: #{gcn_forward.11} parent=27 // pred_fallthru
              _
          $region28: #{gcn_forward.11} parent=23 // pred_fallthru
            _
          %341 = vnop
        $region24: #{gcn_forward.11} parent=19 // pred_fallthru
          _
        // Predicated region
        $region59: #{gcn_forward.11} parent=19 // pred_check
          %p342 = pneg %p71
        $region60: #{gcn_forward.11} parent=19 // pred_check_branch
          %344 = sbr.rel (%p342) target = $region62
        $region61: #{gcn_forward.11} parent=19 // pred_region
          %s345 = smul.u32 32, %s19
          %p346 = scmp.lt.s32.totalorder %s345, 63
          %s347 = scalar_select %p346, %s345, 63
          %s348 = smul.addr %s347, 4
          %s349 = scalar_lea.vmem %s1, %s348
          %s350 = smul.u32 32, %s19
        $region62: #{gcn_forward.11} parent=19 // pred_fallthru
          _
      $region20: #{gcn_forward.11} parent=5 // pred_fallthru
        _
      %p351 = scmp.le.s32.totalorder 1, %s11
      %p352 = scmp.lt.s32.totalorder %s11, 5
      %p353 = pnand %p351, %p352
      %p354 = pneg %p353
      // Predicated region
      $region63: #{gcn_forward.11} parent=5 // pred_check
        _
      $region64: #{gcn_forward.11} parent=5 // pred_check_branch
        %356 = sbr.rel (%p353) target = $region66
      $region65: #{gcn_forward.11} parent=5 // pred_region
        %s357 = ssub.s32 %s11, 1
        %s358 = sand.u32 %s38, 1
        %s359 = sand.u32 %s38, 1
        %s360 = smul.addr %s359, 256
        %s361 = scalar_lea.vmem [#allocation3], %s360
        // Predicated region
        $region67: #{gcn_forward.11} parent=65 // pred_check
          %p362 = pneg %p51
        $region68: #{gcn_forward.11} parent=65 // pred_check_branch
          %364 = sbr.rel (%p362) target = $region70
        $region69: #{gcn_forward.11} parent=65 // pred_region
          _
        $region70: #{gcn_forward.11} parent=65 // pred_fallthru
          _
        %s365 = sand.u32 %s38, 1
        %s366 = sand.u32 %s38, 1
        %s367 = smul.addr %s366, 256
        %s368 = scalar_lea.vmem [#allocation3], %s367
        %p369 = pneg %p51
        %p370 = pneg %p48
        %s371 = smul.u32 32, %s21
        %p372 = scmp.lt.s32.totalorder %s371, 63
        %s373 = scalar_select %p372, %s371, 63
        %s374 = smul.addr %s373, 4
        %s375 = scalar_lea.vmem %s1, %s374
        %p376 = pneg %p77
        %p377 = pneg %p74
        %p378 = pneg %p98
        %p379 = pneg %p95
        %p380 = pneg %p124
        %p381 = pneg %p121
        %s382 = smul.u32 32, %s20
        %p383 = scmp.lt.s32.totalorder %s382, 63
        %s384 = scalar_select %p383, %s382, 63
        %s385 = smul.addr %s384, 8
        %s386 = scalar_lea.vmem %s3, %s385
        %p387 = pneg %p150
        %p388 = pneg %p147
        %p389 = scmp.lt.s32.totalorder %s20, 1
        %s390 = scalar_select %p389, %s20, 1
        %s391 = smul.addr %s390, 8
        %s392 = scalar_lea.vmem %s4, %s391
        %s393 = smul.u32 32, %s20
        %s394 = smul.u32 2, %s21
        %s395 = smul.u32 32, %s21
        %p396 = scmp.lt.s32.totalorder %s395, 63
        %s397 = scalar_select %p396, %s395, 63
        %s398 = smul.addr %s397, 4
        %s399 = scalar_lea.vmem %s1, %s398
        %s400 = smul.u32 32, %s21
        %s401 = smul.u32 32, %s20
        %p402 = scmp.lt.s32.totalorder %s401, 63
        %s403 = scalar_select %p402, %s401, 63
        %s404 = smul.addr %s403, 8
        %s405 = scalar_lea.vmem %s3, %s404
        %s406 = smul.u32 32, %s20
        %p407 = scmp.lt.s32.totalorder %s20, 1
        %s408 = scalar_select %p407, %s20, 1
        %s409 = smul.addr %s408, 8
        %s410 = scalar_lea.vmem %s4, %s409
        %p412 = scmp.eq.s32.totalorder %s21, 0
        // Predicated region
        $region71: #{gcn_forward.11} parent=65 // pred_check
          %p413 = pneg %p412
        $region72: #{gcn_forward.11} parent=65 // pred_check_branch
          %415 = sbr.rel (%p413) target = $region74
        $region73: #{gcn_forward.11} parent=65 // pred_region
          %416 = vst [vmem:[#allocation2] sm:$0xff] 0.0
          %417 = vst [vmem:[#allocation2 + $0x8] sm:$0xff] 0.0
          %418 = vst [vmem:[#allocation2 + $0x10] sm:$0xff] 0.0
          %419 = vst [vmem:[#allocation2 + $0x18] sm:$0xff] 0.0
          %420 = vst [vmem:[#allocation2 + $0x20] sm:$0xff] 0.0
          %421 = vst [vmem:[#allocation2 + $0x28] sm:$0xff] 0.0
          %422 = vst [vmem:[#allocation2 + $0x30] sm:$0xff] 0.0
          %423 = vst [vmem:[#allocation2 + $0x38] sm:$0xff] 0.0
          %424 = vst [vmem:[#allocation2 + $0x40] sm:$0xff] 0.0
          %425 = vst [vmem:[#allocation2 + $0x48] sm:$0xff] 0.0
          %426 = vst [vmem:[#allocation2 + $0x50] sm:$0xff] 0.0
          %427 = vst [vmem:[#allocation2 + $0x58] sm:$0xff] 0.0
          %428 = vst [vmem:[#allocation2 + $0x60] sm:$0xff] 0.0
          %429 = vst [vmem:[#allocation2 + $0x68] sm:$0xff] 0.0
          %430 = vst [vmem:[#allocation2 + $0x70] sm:$0xff] 0.0
          %431 = vst [vmem:[#allocation2 + $0x78] sm:$0xff] 0.0
          %432 = vst [vmem:[#allocation2 + $0x80] sm:$0xff] 0.0
          %433 = vst [vmem:[#allocation2 + $0x88] sm:$0xff] 0.0
          %434 = vst [vmem:[#allocation2 + $0x90] sm:$0xff] 0.0
          %435 = vst [vmem:[#allocation2 + $0x98] sm:$0xff] 0.0
          %436 = vst [vmem:[#allocation2 + $0xa0] sm:$0xff] 0.0
          %437 = vst [vmem:[#allocation2 + $0xa8] sm:$0xff] 0.0
          %438 = vst [vmem:[#allocation2 + $0xb0] sm:$0xff] 0.0
          %439 = vst [vmem:[#allocation2 + $0xb8] sm:$0xff] 0.0
          %440 = vst [vmem:[#allocation2 + $0xc0] sm:$0xff] 0.0
          %441 = vst [vmem:[#allocation2 + $0xc8] sm:$0xff] 0.0
          %442 = vst [vmem:[#allocation2 + $0xd0] sm:$0xff] 0.0
          %443 = vst [vmem:[#allocation2 + $0xd8] sm:$0xff] 0.0
          %444 = vst [vmem:[#allocation2 + $0xe0] sm:$0xff] 0.0
          %445 = vst [vmem:[#allocation2 + $0xe8] sm:$0xff] 0.0
          %446 = vst [vmem:[#allocation2 + $0xf0] sm:$0xff] 0.0
          %447 = vst [vmem:[#allocation2 + $0xf8] sm:$0xff] 0.0
        $region74: #{gcn_forward.11} parent=65 // pred_fallthru
          _
        %v448 = vld [vmem:[#allocation2] sm:$0xff]
        %v449 = vld [vmem:[#allocation2 + $0x8] sm:$0xff]
        %v450 = vld [vmem:[#allocation2 + $0x10] sm:$0xff]
        %v451 = vld [vmem:[#allocation2 + $0x18] sm:$0xff]
        %v452 = vld [vmem:[#allocation2 + $0x20] sm:$0xff]
        %v453 = vld [vmem:[#allocation2 + $0x28] sm:$0xff]
        %v454 = vld [vmem:[#allocation2 + $0x30] sm:$0xff]
        %v455 = vld [vmem:[#allocation2 + $0x38] sm:$0xff]
        %v456 = vld [vmem:[#allocation2 + $0x40] sm:$0xff]
        %v457 = vld [vmem:[#allocation2 + $0x48] sm:$0xff]
        %v458 = vld [vmem:[#allocation2 + $0x50] sm:$0xff]
        %v459 = vld [vmem:[#allocation2 + $0x58] sm:$0xff]
        %v460 = vld [vmem:[#allocation2 + $0x60] sm:$0xff]
        %v461 = vld [vmem:[#allocation2 + $0x68] sm:$0xff]
        %v462 = vld [vmem:[#allocation2 + $0x70] sm:$0xff]
        %v463 = vld [vmem:[#allocation2 + $0x78] sm:$0xff]
        %v464 = vld [vmem:[#allocation2 + $0x80] sm:$0xff]
        %v465 = vld [vmem:[#allocation2 + $0x88] sm:$0xff]
        %v466 = vld [vmem:[#allocation2 + $0x90] sm:$0xff]
        %v467 = vld [vmem:[#allocation2 + $0x98] sm:$0xff]
        %v468 = vld [vmem:[#allocation2 + $0xa0] sm:$0xff]
        %v469 = vld [vmem:[#allocation2 + $0xa8] sm:$0xff]
        %v470 = vld [vmem:[#allocation2 + $0xb0] sm:$0xff]
        %v471 = vld [vmem:[#allocation2 + $0xb8] sm:$0xff]
        %v472 = vld [vmem:[#allocation2 + $0xc0] sm:$0xff]
        %v473 = vld [vmem:[#allocation2 + $0xc8] sm:$0xff]
        %v474 = vld [vmem:[#allocation2 + $0xd0] sm:$0xff]
        %v475 = vld [vmem:[#allocation2 + $0xd8] sm:$0xff]
        %v476 = vld [vmem:[#allocation2 + $0xe0] sm:$0xff]
        %v477 = vld [vmem:[#allocation2 + $0xe8] sm:$0xff]
        %v478 = vld [vmem:[#allocation2 + $0xf0] sm:$0xff]
        %v479 = vld [vmem:[#allocation2 + $0xf8] sm:$0xff]
        %v480 = vld [vmem:[%s361] sm:$0xff]
        %v481 = vld [vmem:[%s361 + $0x8] sm:$0xff]
        %v482 = vld [vmem:[%s361 + $0x10] sm:$0xff]
        %v483 = vld [vmem:[%s361 + $0x18] sm:$0xff]
        %v484 = vld [vmem:[%s361 + $0x20] sm:$0xff]
        %v485 = vld [vmem:[%s361 + $0x28] sm:$0xff]
        %v486 = vld [vmem:[%s361 + $0x30] sm:$0xff]
        %v487 = vld [vmem:[%s361 + $0x38] sm:$0xff]
        %v488 = vld [vmem:[%s361 + $0x40] sm:$0xff]
        %v489 = vld [vmem:[%s361 + $0x48] sm:$0xff]
        %v490 = vld [vmem:[%s361 + $0x50] sm:$0xff]
        %v491 = vld [vmem:[%s361 + $0x58] sm:$0xff]
        %v492 = vld [vmem:[%s361 + $0x60] sm:$0xff]
        %v493 = vld [vmem:[%s361 + $0x68] sm:$0xff]
        %v494 = vld [vmem:[%s361 + $0x70] sm:$0xff]
        %v495 = vld [vmem:[%s361 + $0x78] sm:$0xff]
        %v496 = vld [vmem:[%s361 + $0x80] sm:$0xff]
        %v497 = vld [vmem:[%s361 + $0x88] sm:$0xff]
        %v498 = vld [vmem:[%s361 + $0x90] sm:$0xff]
        %v499 = vld [vmem:[%s361 + $0x98] sm:$0xff]
        %v500 = vld [vmem:[%s361 + $0xa0] sm:$0xff]
        %v501 = vld [vmem:[%s361 + $0xa8] sm:$0xff]
        %v502 = vld [vmem:[%s361 + $0xb0] sm:$0xff]
        %v503 = vld [vmem:[%s361 + $0xb8] sm:$0xff]
        %v504 = vld [vmem:[%s361 + $0xc0] sm:$0xff]
        %v505 = vld [vmem:[%s361 + $0xc8] sm:$0xff]
        %v506 = vld [vmem:[%s361 + $0xd0] sm:$0xff]
        %v507 = vld [vmem:[%s361 + $0xd8] sm:$0xff]
        %v508 = vld [vmem:[%s361 + $0xe0] sm:$0xff]
        %v509 = vld [vmem:[%s361 + $0xe8] sm:$0xff]
        %v510 = vld [vmem:[%s361 + $0xf0] sm:$0xff]
        %v511 = vld [vmem:[%s361 + $0xf8] sm:$0xff]
        %v512 = vld [vmem:[%s399] sm:$0xf]
        %v513 = vld [vmem:[%s399 + $0x4] sm:$0xf]
        %v514 = vld [vmem:[%s399 + $0x8] sm:$0xf]
        %v515 = vld [vmem:[%s399 + $0xc] sm:$0xf]
        %v516 = vld [vmem:[%s399 + $0x10] sm:$0xf]
        %v517 = vld [vmem:[%s399 + $0x14] sm:$0xf]
        %v518 = vld [vmem:[%s399 + $0x18] sm:$0xf]
        %v519 = vld [vmem:[%s399 + $0x1c] sm:$0xf]
        %v520 = vld [vmem:[%s399 + $0x20] sm:$0xf]
        %v521 = vld [vmem:[%s399 + $0x24] sm:$0xf]
        %v522 = vld [vmem:[%s399 + $0x28] sm:$0xf]
        %v523 = vld [vmem:[%s399 + $0x2c] sm:$0xf]
        %v524 = vld [vmem:[%s399 + $0x30] sm:$0xf]
        %v525 = vld [vmem:[%s399 + $0x34] sm:$0xf]
        %v526 = vld [vmem:[%s399 + $0x38] sm:$0xf]
        %v527 = vld [vmem:[%s399 + $0x3c] sm:$0xf]
        %v528 = vld [vmem:[%s399 + $0x40] sm:$0xf]
        %v529 = vld [vmem:[%s399 + $0x44] sm:$0xf]
        %v530 = vld [vmem:[%s399 + $0x48] sm:$0xf]
        %v531 = vld [vmem:[%s399 + $0x4c] sm:$0xf]
        %v532 = vld [vmem:[%s399 + $0x50] sm:$0xf]
        %v533 = vld [vmem:[%s399 + $0x54] sm:$0xf]
        %v534 = vld [vmem:[%s399 + $0x58] sm:$0xf]
        %v535 = vld [vmem:[%s399 + $0x5c] sm:$0xf]
        %v536 = vld [vmem:[%s399 + $0x60] sm:$0xf]
        %v537 = vld [vmem:[%s399 + $0x64] sm:$0xf]
        %v538 = vld [vmem:[%s399 + $0x68] sm:$0xf]
        %v539 = vld [vmem:[%s399 + $0x6c] sm:$0xf]
        %v540 = vld [vmem:[%s399 + $0x70] sm:$0xf]
        %v541 = vld [vmem:[%s399 + $0x74] sm:$0xf]
        %v542 = vld [vmem:[%s399 + $0x78] sm:$0xf]
        %v543 = vld [vmem:[%s399 + $0x7c] sm:$0xf]
        %v576 = vunpack.c.l.b16 %v480
        %v577 = vunpack.c.h.b16 %v480
        %v578 = vunpack.c.l.b16 %v481
        %v579 = vunpack.c.h.b16 %v481
        %v580 = vunpack.c.l.b16 %v482
        %v581 = vunpack.c.h.b16 %v482
        %v582 = vunpack.c.l.b16 %v483
        %v583 = vunpack.c.h.b16 %v483
        %v584 = vunpack.c.l.b16 %v484
        %v585 = vunpack.c.h.b16 %v484
        %v586 = vunpack.c.l.b16 %v485
        %v587 = vunpack.c.h.b16 %v485
        %v588 = vunpack.c.l.b16 %v486
        %v589 = vunpack.c.h.b16 %v486
        %v590 = vunpack.c.l.b16 %v487
        %v591 = vunpack.c.h.b16 %v487
        %v592 = vunpack.c.l.b16 %v488
        %v593 = vunpack.c.h.b16 %v488
        %v594 = vunpack.c.l.b16 %v489
        %v595 = vunpack.c.h.b16 %v489
        %v596 = vunpack.c.l.b16 %v490
        %v597 = vunpack.c.h.b16 %v490
        %v598 = vunpack.c.l.b16 %v491
        %v599 = vunpack.c.h.b16 %v491
        %v600 = vunpack.c.l.b16 %v492
        %v601 = vunpack.c.h.b16 %v492
        %v602 = vunpack.c.l.b16 %v493
        %v603 = vunpack.c.h.b16 %v493
        %v604 = vunpack.c.l.b16 %v494
        %v605 = vunpack.c.h.b16 %v494
        %v606 = vunpack.c.l.b16 %v495
        %v607 = vunpack.c.h.b16 %v495
        %v608 = vunpack.c.l.b16 %v496
        %v609 = vunpack.c.h.b16 %v496
        %v610 = vunpack.c.l.b16 %v497
        %v611 = vunpack.c.h.b16 %v497
        %v612 = vunpack.c.l.b16 %v498
        %v613 = vunpack.c.h.b16 %v498
        %v614 = vunpack.c.l.b16 %v499
        %v615 = vunpack.c.h.b16 %v499
        %v616 = vunpack.c.l.b16 %v500
        %v617 = vunpack.c.h.b16 %v500
        %v618 = vunpack.c.l.b16 %v501
        %v619 = vunpack.c.h.b16 %v501
        %v620 = vunpack.c.l.b16 %v502
        %v621 = vunpack.c.h.b16 %v502
        %v622 = vunpack.c.l.b16 %v503
        %v623 = vunpack.c.h.b16 %v503
        %v624 = vunpack.c.l.b16 %v504
        %v625 = vunpack.c.h.b16 %v504
        %v626 = vunpack.c.l.b16 %v505
        %v627 = vunpack.c.h.b16 %v505
        %v628 = vunpack.c.l.b16 %v506
        %v629 = vunpack.c.h.b16 %v506
        %v630 = vunpack.c.l.b16 %v507
        %v631 = vunpack.c.h.b16 %v507
        %v632 = vunpack.c.l.b16 %v508
        %v633 = vunpack.c.h.b16 %v508
        %v634 = vunpack.c.l.b16 %v509
        %v635 = vunpack.c.h.b16 %v509
        %v636 = vunpack.c.l.b16 %v510
        %v637 = vunpack.c.h.b16 %v510
        %v638 = vunpack.c.l.b16 %v511
        %v639 = vunpack.c.h.b16 %v511
        %v640 = vpack.c.b16 %v578, %v576
        %v641 = vpack.c.b16 %v579, %v577
        %v642 = vpack.c.b16 %v582, %v580
        %v643 = vpack.c.b16 %v583, %v581
        %v644 = vpack.c.b16 %v586, %v584
        %v645 = vpack.c.b16 %v587, %v585
        %v646 = vpack.c.b16 %v590, %v588
        %v647 = vpack.c.b16 %v591, %v589
        %v648 = vpack.c.b16 %v594, %v592
        %v649 = vpack.c.b16 %v595, %v593
        %v650 = vpack.c.b16 %v598, %v596
        %v651 = vpack.c.b16 %v599, %v597
        %v652 = vpack.c.b16 %v602, %v600
        %v653 = vpack.c.b16 %v603, %v601
        %v654 = vpack.c.b16 %v606, %v604
        %v655 = vpack.c.b16 %v607, %v605
        %v656 = vpack.c.b16 %v610, %v608
        %v657 = vpack.c.b16 %v611, %v609
        %v658 = vpack.c.b16 %v614, %v612
        %v659 = vpack.c.b16 %v615, %v613
        %v660 = vpack.c.b16 %v618, %v616
        %v661 = vpack.c.b16 %v619, %v617
        %v662 = vpack.c.b16 %v622, %v620
        %v663 = vpack.c.b16 %v623, %v621
        %v664 = vpack.c.b16 %v626, %v624
        %v665 = vpack.c.b16 %v627, %v625
        %v666 = vpack.c.b16 %v630, %v628
        %v667 = vpack.c.b16 %v631, %v629
        %v668 = vpack.c.b16 %v634, %v632
        %v669 = vpack.c.b16 %v635, %v633
        %v670 = vpack.c.b16 %v638, %v636
        %v671 = vpack.c.b16 %v639, %v637
        %v736 = vunpack.c.l.b16 %v512
        %v737 = vunpack.c.l.b16 %v513
        %v738 = vunpack.c.l.b16 %v514
        %v739 = vunpack.c.l.b16 %v515
        %v740 = vunpack.c.l.b16 %v516
        %v741 = vunpack.c.l.b16 %v517
        %v742 = vunpack.c.l.b16 %v518
        %v743 = vunpack.c.l.b16 %v519
        %v744 = vunpack.c.l.b16 %v520
        %v745 = vunpack.c.l.b16 %v521
        %v746 = vunpack.c.l.b16 %v522
        %v747 = vunpack.c.l.b16 %v523
        %v748 = vunpack.c.l.b16 %v524
        %v749 = vunpack.c.l.b16 %v525
        %v750 = vunpack.c.l.b16 %v526
        %v751 = vunpack.c.l.b16 %v527
        %v752 = vunpack.c.l.b16 %v528
        %v753 = vunpack.c.l.b16 %v529
        %v754 = vunpack.c.l.b16 %v530
        %v755 = vunpack.c.l.b16 %v531
        %v756 = vunpack.c.l.b16 %v532
        %v757 = vunpack.c.l.b16 %v533
        %v758 = vunpack.c.l.b16 %v534
        %v759 = vunpack.c.l.b16 %v535
        %v760 = vunpack.c.l.b16 %v536
        %v761 = vunpack.c.l.b16 %v537
        %v762 = vunpack.c.l.b16 %v538
        %v763 = vunpack.c.l.b16 %v539
        %v764 = vunpack.c.l.b16 %v540
        %v765 = vunpack.c.l.b16 %v541
        %v766 = vunpack.c.l.b16 %v542
        %v767 = vunpack.c.l.b16 %v543
        %v768 = vpack.c.b16 %v737, %v736
        %v769 = vpack.c.b16 %v739, %v738
        %v770 = vpack.c.b16 %v741, %v740
        %v771 = vpack.c.b16 %v743, %v742
        %v772 = vpack.c.b16 %v745, %v744
        %v773 = vpack.c.b16 %v747, %v746
        %v774 = vpack.c.b16 %v749, %v748
        %v775 = vpack.c.b16 %v751, %v750
        %v776 = vpack.c.b16 %v753, %v752
        %v777 = vpack.c.b16 %v755, %v754
        %v778 = vpack.c.b16 %v757, %v756
        %v779 = vpack.c.b16 %v759, %v758
        %v780 = vpack.c.b16 %v761, %v760
        %v781 = vpack.c.b16 %v763, %v762
        %v782 = vpack.c.b16 %v765, %v764
        %v783 = vpack.c.b16 %v767, %v766
        %800 = vmatprep.subr.bf16.mxu0 0
        %801 = vmatpush1.bf16.msra.mxu0 %v775
        %802 = vmatprep.subr.bf16.mxu0 0
        %803 = vmatpush1.bf16.msra.mxu0 %v774
        %804 = vmatprep.subr.bf16.mxu0 0
        %805 = vmatpush1.bf16.msra.mxu0 %v773
        %806 = vmatprep.subr.bf16.mxu0 0
        %807 = vmatpush1.bf16.msra.mxu0 %v772
        %808 = vmatprep.subr.bf16.mxu0 0
        %809 = vmatpush1.bf16.msra.mxu0 %v771
        %810 = vmatprep.subr.bf16.mxu0 0
        %811 = vmatpush1.bf16.msra.mxu0 %v770
        %812 = vmatprep.subr.bf16.mxu0 0
        %813 = vmatpush1.bf16.msra.mxu0 %v769
        %814 = vmatprep.subr.bf16.mxu0 0
        %815 = vmatpush1.bf16.msra.mxu0 %v768
        %816 = vmatprep.subr.bf16.mxu0 0
        %817 = vmatpush2.bf16.msra.mxu0 %v783
        %818 = vmatprep.subr.bf16.mxu0 0
        %819 = vmatpush2.bf16.msra.mxu0 %v782
        %820 = vmatprep.subr.bf16.mxu0 0
        %821 = vmatpush2.bf16.msra.mxu0 %v781
        %822 = vmatprep.subr.bf16.mxu0 0
        %823 = vmatpush2.bf16.msra.mxu0 %v780
        %824 = vmatprep.subr.bf16.mxu0 0
        %825 = vmatpush2.bf16.msra.mxu0 %v779
        %826 = vmatprep.subr.bf16.mxu0 0
        %827 = vmatpush2.bf16.msra.mxu0 %v778
        %828 = vmatprep.subr.bf16.mxu0 0
        %829 = vmatpush2.bf16.msra.mxu0 %v777
        %830 = vmatprep.subr.bf16.mxu0 0
        %831 = vmatpush2.bf16.msra.mxu0 %v776
        %832 = vmatprep.mubr.bf16.mxu0 %v641
        %833 = vmatmul.mubr.bf16.gmra.mxu0 %v640
        %v834 = vpop.f32.mrf.mxu0
        %v835 = vadd.f32 0.0, %v834
        %v836 = vpop.f32.mrf.mxu0
        %v837 = vpop.f32.mrf.mxu0
        %v838 = vadd.f32 0.0, %v837
        %v839 = vpop.f32.mrf.mxu0
        %840 = vmatprep.mubr.bf16.mxu0 %v643
        %841 = vmatmul.mubr.bf16.gmra.mxu0 %v642
        %v842 = vpop.f32.mrf.mxu0
        %v843 = vadd.f32 0.0, %v842
        %v844 = vpop.f32.mrf.mxu0
        %v845 = vpop.f32.mrf.mxu0
        %v846 = vadd.f32 0.0, %v845
        %v847 = vpop.f32.mrf.mxu0
        %848 = vmatprep.mubr.bf16.mxu0 %v645
        %849 = vmatmul.mubr.bf16.gmra.mxu0 %v644
        %v850 = vpop.f32.mrf.mxu0
        %v851 = vadd.f32 0.0, %v850
        %v852 = vpop.f32.mrf.mxu0
        %v853 = vpop.f32.mrf.mxu0
        %v854 = vadd.f32 0.0, %v853
        %v855 = vpop.f32.mrf.mxu0
        %856 = vmatprep.mubr.bf16.mxu0 %v647
        %857 = vmatmul.mubr.bf16.gmra.mxu0 %v646
        %v858 = vpop.f32.mrf.mxu0
        %v859 = vadd.f32 0.0, %v858
        %v860 = vpop.f32.mrf.mxu0
        %v861 = vpop.f32.mrf.mxu0
        %v862 = vadd.f32 0.0, %v861
        %v863 = vpop.f32.mrf.mxu0
        %864 = vmatprep.mubr.bf16.mxu0 %v649
        %865 = vmatmul.mubr.bf16.gmra.mxu0 %v648
        %v866 = vpop.f32.mrf.mxu0
        %v867 = vadd.f32 0.0, %v866
        %v868 = vpop.f32.mrf.mxu0
        %v869 = vpop.f32.mrf.mxu0
        %v870 = vadd.f32 0.0, %v869
        %v871 = vpop.f32.mrf.mxu0
        %872 = vmatprep.mubr.bf16.mxu0 %v651
        %873 = vmatmul.mubr.bf16.gmra.mxu0 %v650
        %v874 = vpop.f32.mrf.mxu0
        %v875 = vadd.f32 0.0, %v874
        %v876 = vpop.f32.mrf.mxu0
        %v877 = vpop.f32.mrf.mxu0
        %v878 = vadd.f32 0.0, %v877
        %v879 = vpop.f32.mrf.mxu0
        %880 = vmatprep.mubr.bf16.mxu0 %v653
        %881 = vmatmul.mubr.bf16.gmra.mxu0 %v652
        %v882 = vpop.f32.mrf.mxu0
        %v883 = vadd.f32 0.0, %v882
        %v884 = vpop.f32.mrf.mxu0
        %v885 = vpop.f32.mrf.mxu0
        %v886 = vadd.f32 0.0, %v885
        %v887 = vpop.f32.mrf.mxu0
        %888 = vmatprep.mubr.bf16.mxu0 %v655
        %889 = vmatmul.mubr.bf16.gmra.mxu0 %v654
        %v890 = vpop.f32.mrf.mxu0
        %v891 = vadd.f32 0.0, %v890
        %v892 = vpop.f32.mrf.mxu0
        %v893 = vpop.f32.mrf.mxu0
        %v894 = vadd.f32 0.0, %v893
        %v895 = vpop.f32.mrf.mxu0
        %896 = vmatprep.mubr.bf16.mxu0 %v657
        %897 = vmatmul.mubr.bf16.gmra.mxu0 %v656
        %v898 = vpop.f32.mrf.mxu0
        %v899 = vadd.f32 0.0, %v898
        %v900 = vpop.f32.mrf.mxu0
        %v901 = vpop.f32.mrf.mxu0
        %v902 = vadd.f32 0.0, %v901
        %v903 = vpop.f32.mrf.mxu0
        %904 = vmatprep.mubr.bf16.mxu0 %v659
        %905 = vmatmul.mubr.bf16.gmra.mxu0 %v658
        %v906 = vpop.f32.mrf.mxu0
        %v907 = vadd.f32 0.0, %v906
        %v908 = vpop.f32.mrf.mxu0
        %v909 = vpop.f32.mrf.mxu0
        %v910 = vadd.f32 0.0, %v909
        %v911 = vpop.f32.mrf.mxu0
        %912 = vmatprep.mubr.bf16.mxu0 %v661
        %913 = vmatmul.mubr.bf16.gmra.mxu0 %v660
        %v914 = vpop.f32.mrf.mxu0
        %v915 = vadd.f32 0.0, %v914
        %v916 = vpop.f32.mrf.mxu0
        %v917 = vpop.f32.mrf.mxu0
        %v918 = vadd.f32 0.0, %v917
        %v919 = vpop.f32.mrf.mxu0
        %920 = vmatprep.mubr.bf16.mxu0 %v663
        %921 = vmatmul.mubr.bf16.gmra.mxu0 %v662
        %v922 = vpop.f32.mrf.mxu0
        %v923 = vadd.f32 0.0, %v922
        %v924 = vpop.f32.mrf.mxu0
        %v925 = vpop.f32.mrf.mxu0
        %v926 = vadd.f32 0.0, %v925
        %v927 = vpop.f32.mrf.mxu0
        %928 = vmatprep.mubr.bf16.mxu0 %v665
        %929 = vmatmul.mubr.bf16.gmra.mxu0 %v664
        %v930 = vpop.f32.mrf.mxu0
        %v931 = vadd.f32 0.0, %v930
        %v932 = vpop.f32.mrf.mxu0
        %v933 = vpop.f32.mrf.mxu0
        %v934 = vadd.f32 0.0, %v933
        %v935 = vpop.f32.mrf.mxu0
        %936 = vmatprep.mubr.bf16.mxu0 %v667
        %937 = vmatmul.mubr.bf16.gmra.mxu0 %v666
        %v938 = vpop.f32.mrf.mxu0
        %v939 = vadd.f32 0.0, %v938
        %v940 = vpop.f32.mrf.mxu0
        %v941 = vpop.f32.mrf.mxu0
        %v942 = vadd.f32 0.0, %v941
        %v943 = vpop.f32.mrf.mxu0
        %944 = vmatprep.mubr.bf16.mxu0 %v669
        %945 = vmatmul.mubr.bf16.gmra.mxu0 %v668
        %v946 = vpop.f32.mrf.mxu0
        %v947 = vadd.f32 0.0, %v946
        %v948 = vpop.f32.mrf.mxu0
        %v949 = vpop.f32.mrf.mxu0
        %v950 = vadd.f32 0.0, %v949
        %v951 = vpop.f32.mrf.mxu0
        %952 = vmatprep.mubr.bf16.mxu0 %v671
        %953 = vmatmul.mubr.bf16.gmra.mxu0 %v670
        %v954 = vpop.f32.mrf.mxu0
        %v955 = vadd.f32 0.0, %v954
        %v956 = vpop.f32.mrf.mxu0
        %v957 = vpop.f32.mrf.mxu0
        %v958 = vadd.f32 0.0, %v957
        %v959 = vpop.f32.mrf.mxu0
        %960 = vdwg.mxu0
        %v961 = vadd.f32 %v448, %v835
        %v962 = vadd.f32 %v449, %v838
        %v963 = vadd.f32 %v450, %v843
        %v964 = vadd.f32 %v451, %v846
        %v965 = vadd.f32 %v452, %v851
        %v966 = vadd.f32 %v453, %v854
        %v967 = vadd.f32 %v454, %v859
        %v968 = vadd.f32 %v455, %v862
        %v969 = vadd.f32 %v456, %v867
        %v970 = vadd.f32 %v457, %v870
        %v971 = vadd.f32 %v458, %v875
        %v972 = vadd.f32 %v459, %v878
        %v973 = vadd.f32 %v460, %v883
        %v974 = vadd.f32 %v461, %v886
        %v975 = vadd.f32 %v462, %v891
        %v976 = vadd.f32 %v463, %v894
        %v977 = vadd.f32 %v464, %v899
        %v978 = vadd.f32 %v465, %v902
        %v979 = vadd.f32 %v466, %v907
        %v980 = vadd.f32 %v467, %v910
        %v981 = vadd.f32 %v468, %v915
        %v982 = vadd.f32 %v469, %v918
        %v983 = vadd.f32 %v470, %v923
        %v984 = vadd.f32 %v471, %v926
        %v985 = vadd.f32 %v472, %v931
        %v986 = vadd.f32 %v473, %v934
        %v987 = vadd.f32 %v474, %v939
        %v988 = vadd.f32 %v475, %v942
        %v989 = vadd.f32 %v476, %v947
        %v990 = vadd.f32 %v477, %v950
        %v991 = vadd.f32 %v478, %v955
        %v992 = vadd.f32 %v479, %v958
        %993 = vst [vmem:[#allocation2] sm:$0xff] %v961
        %994 = vst [vmem:[#allocation2 + $0x8] sm:$0xff] %v962
        %995 = vst [vmem:[#allocation2 + $0x10] sm:$0xff] %v963
        %996 = vst [vmem:[#allocation2 + $0x18] sm:$0xff] %v964
        %997 = vst [vmem:[#allocation2 + $0x20] sm:$0xff] %v965
        %998 = vst [vmem:[#allocation2 + $0x28] sm:$0xff] %v966
        %999 = vst [vmem:[#allocation2 + $0x30] sm:$0xff] %v967
        %1000 = vst [vmem:[#allocation2 + $0x38] sm:$0xff] %v968
        %1001 = vst [vmem:[#allocation2 + $0x40] sm:$0xff] %v969
        %1002 = vst [vmem:[#allocation2 + $0x48] sm:$0xff] %v970
        %1003 = vst [vmem:[#allocation2 + $0x50] sm:$0xff] %v971
        %1004 = vst [vmem:[#allocation2 + $0x58] sm:$0xff] %v972
        %1005 = vst [vmem:[#allocation2 + $0x60] sm:$0xff] %v973
        %1006 = vst [vmem:[#allocation2 + $0x68] sm:$0xff] %v974
        %1007 = vst [vmem:[#allocation2 + $0x70] sm:$0xff] %v975
        %1008 = vst [vmem:[#allocation2 + $0x78] sm:$0xff] %v976
        %1009 = vst [vmem:[#allocation2 + $0x80] sm:$0xff] %v977
        %1010 = vst [vmem:[#allocation2 + $0x88] sm:$0xff] %v978
        %1011 = vst [vmem:[#allocation2 + $0x90] sm:$0xff] %v979
        %1012 = vst [vmem:[#allocation2 + $0x98] sm:$0xff] %v980
        %1013 = vst [vmem:[#allocation2 + $0xa0] sm:$0xff] %v981
        %1014 = vst [vmem:[#allocation2 + $0xa8] sm:$0xff] %v982
        %1015 = vst [vmem:[#allocation2 + $0xb0] sm:$0xff] %v983
        %1016 = vst [vmem:[#allocation2 + $0xb8] sm:$0xff] %v984
        %1017 = vst [vmem:[#allocation2 + $0xc0] sm:$0xff] %v985
        %1018 = vst [vmem:[#allocation2 + $0xc8] sm:$0xff] %v986
        %1019 = vst [vmem:[#allocation2 + $0xd0] sm:$0xff] %v987
        %1020 = vst [vmem:[#allocation2 + $0xd8] sm:$0xff] %v988
        %1021 = vst [vmem:[#allocation2 + $0xe0] sm:$0xff] %v989
        %1022 = vst [vmem:[#allocation2 + $0xe8] sm:$0xff] %v990
        %1023 = vst [vmem:[#allocation2 + $0xf0] sm:$0xff] %v991
        %1024 = vst [vmem:[#allocation2 + $0xf8] sm:$0xff] %v992
        %p1025 = scmp.eq.s32.totalorder %s21, 1
        // Predicated region
        $region75: #{gcn_forward.11} parent=65 // pred_check
          %p1026 = pneg %p1025
        $region76: #{gcn_forward.11} parent=65 // pred_check_branch
          %1028 = sbr.rel (%p1026) target = $region78
        $region77: #{gcn_forward.11} parent=65 // pred_region
          %v1029 = vld [vmem:[#allocation2] sm:$0xff]
          %v1030 = vld [vmem:[#allocation2 + $0x8] sm:$0xff]
          %v1031 = vld [vmem:[#allocation2 + $0x10] sm:$0xff]
          %v1032 = vld [vmem:[#allocation2 + $0x18] sm:$0xff]
          %v1033 = vld [vmem:[#allocation2 + $0x20] sm:$0xff]
          %v1034 = vld [vmem:[#allocation2 + $0x28] sm:$0xff]
          %v1035 = vld [vmem:[#allocation2 + $0x30] sm:$0xff]
          %v1036 = vld [vmem:[#allocation2 + $0x38] sm:$0xff]
          %v1037 = vld [vmem:[#allocation2 + $0x40] sm:$0xff]
          %v1038 = vld [vmem:[#allocation2 + $0x48] sm:$0xff]
          %v1039 = vld [vmem:[#allocation2 + $0x50] sm:$0xff]
          %v1040 = vld [vmem:[#allocation2 + $0x58] sm:$0xff]
          %v1041 = vld [vmem:[#allocation2 + $0x60] sm:$0xff]
          %v1042 = vld [vmem:[#allocation2 + $0x68] sm:$0xff]
          %v1043 = vld [vmem:[#allocation2 + $0x70] sm:$0xff]
          %v1044 = vld [vmem:[#allocation2 + $0x78] sm:$0xff]
          %v1045 = vld [vmem:[#allocation2 + $0x80] sm:$0xff]
          %v1046 = vld [vmem:[#allocation2 + $0x88] sm:$0xff]
          %v1047 = vld [vmem:[#allocation2 + $0x90] sm:$0xff]
          %v1048 = vld [vmem:[#allocation2 + $0x98] sm:$0xff]
          %v1049 = vld [vmem:[#allocation2 + $0xa0] sm:$0xff]
          %v1050 = vld [vmem:[#allocation2 + $0xa8] sm:$0xff]
          %v1051 = vld [vmem:[#allocation2 + $0xb0] sm:$0xff]
          %v1052 = vld [vmem:[#allocation2 + $0xb8] sm:$0xff]
          %v1053 = vld [vmem:[#allocation2 + $0xc0] sm:$0xff]
          %v1054 = vld [vmem:[#allocation2 + $0xc8] sm:$0xff]
          %v1055 = vld [vmem:[#allocation2 + $0xd0] sm:$0xff]
          %v1056 = vld [vmem:[#allocation2 + $0xd8] sm:$0xff]
          %v1057 = vld [vmem:[#allocation2 + $0xe0] sm:$0xff]
          %v1058 = vld [vmem:[#allocation2 + $0xe8] sm:$0xff]
          %v1059 = vld [vmem:[#allocation2 + $0xf0] sm:$0xff]
          %v1060 = vld [vmem:[#allocation2 + $0xf8] sm:$0xff]
          %v1061 = vpack.c.bf16 %v1030, %v1029
          %v1062 = vpack.c.bf16 %v1032, %v1031
          %v1063 = vpack.c.bf16 %v1034, %v1033
          %v1064 = vpack.c.bf16 %v1036, %v1035
          %v1065 = vpack.c.bf16 %v1038, %v1037
          %v1066 = vpack.c.bf16 %v1040, %v1039
          %v1067 = vpack.c.bf16 %v1042, %v1041
          %v1068 = vpack.c.bf16 %v1044, %v1043
          %v1069 = vpack.c.bf16 %v1046, %v1045
          %v1070 = vpack.c.bf16 %v1048, %v1047
          %v1071 = vpack.c.bf16 %v1050, %v1049
          %v1072 = vpack.c.bf16 %v1052, %v1051
          %v1073 = vpack.c.bf16 %v1054, %v1053
          %v1074 = vpack.c.bf16 %v1056, %v1055
          %v1075 = vpack.c.bf16 %v1058, %v1057
          %v1076 = vpack.c.bf16 %v1060, %v1059
          %v1077 = vld [vmem:[%s2] sm:$0xf]
          %v1078 = vld [vmem:[%s2 + $0x4] sm:$0xf]
          %v1079 = vld [vmem:[%s2 + $0x8] sm:$0xf]
          %v1080 = vld [vmem:[%s2 + $0xc] sm:$0xf]
          %v1081 = vld [vmem:[%s2 + $0x10] sm:$0xf]
          %v1082 = vld [vmem:[%s2 + $0x14] sm:$0xf]
          %v1083 = vld [vmem:[%s2 + $0x18] sm:$0xf]
          %v1084 = vld [vmem:[%s2 + $0x1c] sm:$0xf]
          %v1085 = vld [vmem:[%s2 + $0x20] sm:$0xf]
          %v1086 = vld [vmem:[%s2 + $0x24] sm:$0xf]
          %v1087 = vld [vmem:[%s2 + $0x28] sm:$0xf]
          %v1088 = vld [vmem:[%s2 + $0x2c] sm:$0xf]
          %v1089 = vld [vmem:[%s2 + $0x30] sm:$0xf]
          %v1090 = vld [vmem:[%s2 + $0x34] sm:$0xf]
          %v1091 = vld [vmem:[%s2 + $0x38] sm:$0xf]
          %v1092 = vld [vmem:[%s2 + $0x3c] sm:$0xf]
          %v1109 = vunpack.c.l.b16 %v1077
          %v1110 = vunpack.c.l.b16 %v1078
          %v1111 = vunpack.c.l.b16 %v1079
          %v1112 = vunpack.c.l.b16 %v1080
          %v1113 = vunpack.c.l.b16 %v1081
          %v1114 = vunpack.c.l.b16 %v1082
          %v1115 = vunpack.c.l.b16 %v1083
          %v1116 = vunpack.c.l.b16 %v1084
          %v1117 = vunpack.c.l.b16 %v1085
          %v1118 = vunpack.c.l.b16 %v1086
          %v1119 = vunpack.c.l.b16 %v1087
          %v1120 = vunpack.c.l.b16 %v1088
          %v1121 = vunpack.c.l.b16 %v1089
          %v1122 = vunpack.c.l.b16 %v1090
          %v1123 = vunpack.c.l.b16 %v1091
          %v1124 = vunpack.c.l.b16 %v1092
          %v1125 = vpack.c.b16 %v1110, %v1109
          %v1126 = vpack.c.b16 %v1112, %v1111
          %v1127 = vpack.c.b16 %v1114, %v1113
          %v1128 = vpack.c.b16 %v1116, %v1115
          %v1129 = vpack.c.b16 %v1118, %v1117
          %v1130 = vpack.c.b16 %v1120, %v1119
          %v1131 = vpack.c.b16 %v1122, %v1121
          %v1132 = vpack.c.b16 %v1124, %v1123
          %1141 = vmatprep.subr.bf16.mxu0 0
          %1142 = vmatpush1.bf16.msra.mxu0 %v1132
          %1143 = vmatprep.subr.bf16.mxu0 0
          %1144 = vmatpush1.bf16.msra.mxu0 %v1131
          %1145 = vmatprep.subr.bf16.mxu0 0
          %1146 = vmatpush1.bf16.msra.mxu0 %v1130
          %1147 = vmatprep.subr.bf16.mxu0 0
          %1148 = vmatpush1.bf16.msra.mxu0 %v1129
          %1149 = vmatprep.subr.bf16.mxu0 0
          %1150 = vmatpush1.bf16.msra.mxu0 %v1128
          %1151 = vmatprep.subr.bf16.mxu0 0
          %1152 = vmatpush1.bf16.msra.mxu0 %v1127
          %1153 = vmatprep.subr.bf16.mxu0 0
          %1154 = vmatpush1.bf16.msra.mxu0 %v1126
          %1155 = vmatprep.subr.bf16.mxu0 0
          %1156 = vmatpush1.bf16.msra.mxu0 %v1125
          %1157 = vmatprep.subr.bf16.mxu0 0
          %1158 = vmatpush2.bf16.msra.mxu0 0
          %1159 = vmatprep.subr.bf16.mxu0 0
          %1160 = vmatpush2.bf16.msra.mxu0 0
          %1161 = vmatprep.subr.bf16.mxu0 0
          %1162 = vmatpush2.bf16.msra.mxu0 0
          %1163 = vmatprep.subr.bf16.mxu0 0
          %1164 = vmatpush2.bf16.msra.mxu0 0
          %1165 = vmatprep.subr.bf16.mxu0 0
          %1166 = vmatpush2.bf16.msra.mxu0 0
          %1167 = vmatprep.subr.bf16.mxu0 0
          %1168 = vmatpush2.bf16.msra.mxu0 0
          %1169 = vmatprep.subr.bf16.mxu0 0
          %1170 = vmatpush2.bf16.msra.mxu0 0
          %1171 = vmatprep.subr.bf16.mxu0 0
          %1172 = vmatpush2.bf16.msra.mxu0 0
          %1173 = vmatprep.mubr.bf16.mxu0 0
          %1174 = vmatmul.mubr.bf16.gmra.mxu0 %v1061
          %v1175 = vpop.f32.mrf.mxu0
          %v1176 = vadd.f32 0.0, %v1175
          %v1177 = vpop.f32.mrf.mxu0
          %v1178 = vpop.f32.mrf.mxu0
          %v1179 = vadd.f32 0.0, %v1178
          %v1180 = vpop.f32.mrf.mxu0
          %1181 = vmatprep.mubr.bf16.mxu0 0
          %1182 = vmatmul.mubr.bf16.gmra.mxu0 %v1062
          %v1183 = vpop.f32.mrf.mxu0
          %v1184 = vadd.f32 0.0, %v1183
          %v1185 = vpop.f32.mrf.mxu0
          %v1186 = vpop.f32.mrf.mxu0
          %v1187 = vadd.f32 0.0, %v1186
          %v1188 = vpop.f32.mrf.mxu0
          %1189 = vmatprep.mubr.bf16.mxu0 0
          %1190 = vmatmul.mubr.bf16.gmra.mxu0 %v1063
          %v1191 = vpop.f32.mrf.mxu0
          %v1192 = vadd.f32 0.0, %v1191
          %v1193 = vpop.f32.mrf.mxu0
          %v1194 = vpop.f32.mrf.mxu0
          %v1195 = vadd.f32 0.0, %v1194
          %v1196 = vpop.f32.mrf.mxu0
          %1197 = vmatprep.mubr.bf16.mxu0 0
          %1198 = vmatmul.mubr.bf16.gmra.mxu0 %v1064
          %v1199 = vpop.f32.mrf.mxu0
          %v1200 = vadd.f32 0.0, %v1199
          %v1201 = vpop.f32.mrf.mxu0
          %v1202 = vpop.f32.mrf.mxu0
          %v1203 = vadd.f32 0.0, %v1202
          %v1204 = vpop.f32.mrf.mxu0
          %1205 = vmatprep.mubr.bf16.mxu0 0
          %1206 = vmatmul.mubr.bf16.gmra.mxu0 %v1065
          %v1207 = vpop.f32.mrf.mxu0
          %v1208 = vadd.f32 0.0, %v1207
          %v1209 = vpop.f32.mrf.mxu0
          %v1210 = vpop.f32.mrf.mxu0
          %v1211 = vadd.f32 0.0, %v1210
          %v1212 = vpop.f32.mrf.mxu0
          %1213 = vmatprep.mubr.bf16.mxu0 0
          %1214 = vmatmul.mubr.bf16.gmra.mxu0 %v1066
          %v1215 = vpop.f32.mrf.mxu0
          %v1216 = vadd.f32 0.0, %v1215
          %v1217 = vpop.f32.mrf.mxu0
          %v1218 = vpop.f32.mrf.mxu0
          %v1219 = vadd.f32 0.0, %v1218
          %v1220 = vpop.f32.mrf.mxu0
          %1221 = vmatprep.mubr.bf16.mxu0 0
          %1222 = vmatmul.mubr.bf16.gmra.mxu0 %v1067
          %v1223 = vpop.f32.mrf.mxu0
          %v1224 = vadd.f32 0.0, %v1223
          %v1225 = vpop.f32.mrf.mxu0
          %v1226 = vpop.f32.mrf.mxu0
          %v1227 = vadd.f32 0.0, %v1226
          %v1228 = vpop.f32.mrf.mxu0
          %1229 = vmatprep.mubr.bf16.mxu0 0
          %1230 = vmatmul.mubr.bf16.gmra.mxu0 %v1068
          %v1231 = vpop.f32.mrf.mxu0
          %v1232 = vadd.f32 0.0, %v1231
          %v1233 = vpop.f32.mrf.mxu0
          %v1234 = vpop.f32.mrf.mxu0
          %v1235 = vadd.f32 0.0, %v1234
          %v1236 = vpop.f32.mrf.mxu0
          %1237 = vmatprep.mubr.bf16.mxu0 0
          %1238 = vmatmul.mubr.bf16.gmra.mxu0 %v1069
          %v1239 = vpop.f32.mrf.mxu0
          %v1240 = vadd.f32 0.0, %v1239
          %v1241 = vpop.f32.mrf.mxu0
          %v1242 = vpop.f32.mrf.mxu0
          %v1243 = vadd.f32 0.0, %v1242
          %v1244 = vpop.f32.mrf.mxu0
          %1245 = vmatprep.mubr.bf16.mxu0 0
          %1246 = vmatmul.mubr.bf16.gmra.mxu0 %v1070
          %v1247 = vpop.f32.mrf.mxu0
          %v1248 = vadd.f32 0.0, %v1247
          %v1249 = vpop.f32.mrf.mxu0
          %v1250 = vpop.f32.mrf.mxu0
          %v1251 = vadd.f32 0.0, %v1250
          %v1252 = vpop.f32.mrf.mxu0
          %1253 = vmatprep.mubr.bf16.mxu0 0
          %1254 = vmatmul.mubr.bf16.gmra.mxu0 %v1071
          %v1255 = vpop.f32.mrf.mxu0
          %v1256 = vadd.f32 0.0, %v1255
          %v1257 = vpop.f32.mrf.mxu0
          %v1258 = vpop.f32.mrf.mxu0
          %v1259 = vadd.f32 0.0, %v1258
          %v1260 = vpop.f32.mrf.mxu0
          %1261 = vmatprep.mubr.bf16.mxu0 0
          %1262 = vmatmul.mubr.bf16.gmra.mxu0 %v1072
          %v1263 = vpop.f32.mrf.mxu0
          %v1264 = vadd.f32 0.0, %v1263
          %v1265 = vpop.f32.mrf.mxu0
          %v1266 = vpop.f32.mrf.mxu0
          %v1267 = vadd.f32 0.0, %v1266
          %v1268 = vpop.f32.mrf.mxu0
          %1269 = vmatprep.mubr.bf16.mxu0 0
          %1270 = vmatmul.mubr.bf16.gmra.mxu0 %v1073
          %v1271 = vpop.f32.mrf.mxu0
          %v1272 = vadd.f32 0.0, %v1271
          %v1273 = vpop.f32.mrf.mxu0
          %v1274 = vpop.f32.mrf.mxu0
          %v1275 = vadd.f32 0.0, %v1274
          %v1276 = vpop.f32.mrf.mxu0
          %1277 = vmatprep.mubr.bf16.mxu0 0
          %1278 = vmatmul.mubr.bf16.gmra.mxu0 %v1074
          %v1279 = vpop.f32.mrf.mxu0
          %v1280 = vadd.f32 0.0, %v1279
          %v1281 = vpop.f32.mrf.mxu0
          %v1282 = vpop.f32.mrf.mxu0
          %v1283 = vadd.f32 0.0, %v1282
          %v1284 = vpop.f32.mrf.mxu0
          %1285 = vmatprep.mubr.bf16.mxu0 0
          %1286 = vmatmul.mubr.bf16.gmra.mxu0 %v1075
          %v1287 = vpop.f32.mrf.mxu0
          %v1288 = vadd.f32 0.0, %v1287
          %v1289 = vpop.f32.mrf.mxu0
          %v1290 = vpop.f32.mrf.mxu0
          %v1291 = vadd.f32 0.0, %v1290
          %v1292 = vpop.f32.mrf.mxu0
          %1293 = vmatprep.mubr.bf16.mxu0 0
          %1294 = vmatmul.mubr.bf16.gmra.mxu0 %v1076
          %v1295 = vpop.f32.mrf.mxu0
          %v1296 = vadd.f32 0.0, %v1295
          %v1297 = vpop.f32.mrf.mxu0
          %v1298 = vpop.f32.mrf.mxu0
          %v1299 = vadd.f32 0.0, %v1298
          %v1300 = vpop.f32.mrf.mxu0
          %1301 = vdwg.mxu0
          %1302 = vst [vmem:[%s405] sm:$0xff] %v1176
          %1303 = vst [vmem:[%s405 + $0x8] sm:$0xff] %v1179
          %1304 = vst [vmem:[%s405 + $0x10] sm:$0xff] %v1184
          %1305 = vst [vmem:[%s405 + $0x18] sm:$0xff] %v1187
          %1306 = vst [vmem:[%s405 + $0x20] sm:$0xff] %v1192
          %1307 = vst [vmem:[%s405 + $0x28] sm:$0xff] %v1195
          %1308 = vst [vmem:[%s405 + $0x30] sm:$0xff] %v1200
          %1309 = vst [vmem:[%s405 + $0x38] sm:$0xff] %v1203
          %1310 = vst [vmem:[%s405 + $0x40] sm:$0xff] %v1208
          %1311 = vst [vmem:[%s405 + $0x48] sm:$0xff] %v1211
          %1312 = vst [vmem:[%s405 + $0x50] sm:$0xff] %v1216
          %1313 = vst [vmem:[%s405 + $0x58] sm:$0xff] %v1219
          %1314 = vst [vmem:[%s405 + $0x60] sm:$0xff] %v1224
          %1315 = vst [vmem:[%s405 + $0x68] sm:$0xff] %v1227
          %1316 = vst [vmem:[%s405 + $0x70] sm:$0xff] %v1232
          %1317 = vst [vmem:[%s405 + $0x78] sm:$0xff] %v1235
          %1318 = vst [vmem:[%s405 + $0x80] sm:$0xff] %v1240
          %1319 = vst [vmem:[%s405 + $0x88] sm:$0xff] %v1243
          %1320 = vst [vmem:[%s405 + $0x90] sm:$0xff] %v1248
          %1321 = vst [vmem:[%s405 + $0x98] sm:$0xff] %v1251
          %1322 = vst [vmem:[%s405 + $0xa0] sm:$0xff] %v1256
          %1323 = vst [vmem:[%s405 + $0xa8] sm:$0xff] %v1259
          %1324 = vst [vmem:[%s405 + $0xb0] sm:$0xff] %v1264
          %1325 = vst [vmem:[%s405 + $0xb8] sm:$0xff] %v1267
          %1326 = vst [vmem:[%s405 + $0xc0] sm:$0xff] %v1272
          %1327 = vst [vmem:[%s405 + $0xc8] sm:$0xff] %v1275
          %1328 = vst [vmem:[%s405 + $0xd0] sm:$0xff] %v1280
          %1329 = vst [vmem:[%s405 + $0xd8] sm:$0xff] %v1283
          %1330 = vst [vmem:[%s405 + $0xe0] sm:$0xff] %v1288
          %1331 = vst [vmem:[%s405 + $0xe8] sm:$0xff] %v1291
          %1332 = vst [vmem:[%s405 + $0xf0] sm:$0xff] %v1296
          %1333 = vst [vmem:[%s405 + $0xf8] sm:$0xff] %v1299
          %v1334 = vadd.f32 %v1176, %v1179
          %v1335 = vadd.f32 %v1334, %v1184
          %v1336 = vadd.f32 %v1335, %v1187
          %v1337 = vadd.f32 %v1336, %v1192
          %v1338 = vadd.f32 %v1337, %v1195
          %v1339 = vadd.f32 %v1338, %v1200
          %v1340 = vadd.f32 %v1339, %v1203
          %v1341 = vadd.f32 %v1340, %v1208
          %v1342 = vadd.f32 %v1341, %v1211
          %v1343 = vadd.f32 %v1342, %v1216
          %v1344 = vadd.f32 %v1343, %v1219
          %v1345 = vadd.f32 %v1344, %v1224
          %v1346 = vadd.f32 %v1345, %v1227
          %v1347 = vadd.f32 %v1346, %v1232
          %v1348 = vadd.f32 %v1347, %v1235
          %v1349 = vadd.f32 %v1348, %v1240
          %v1350 = vadd.f32 %v1349, %v1243
          %v1351 = vadd.f32 %v1350, %v1248
          %v1352 = vadd.f32 %v1351, %v1251
          %v1353 = vadd.f32 %v1352, %v1256
          %v1354 = vadd.f32 %v1353, %v1259
          %v1355 = vadd.f32 %v1354, %v1264
          %v1356 = vadd.f32 %v1355, %v1267
          %v1357 = vadd.f32 %v1356, %v1272
          %v1358 = vadd.f32 %v1357, %v1275
          %v1359 = vadd.f32 %v1358, %v1280
          %v1360 = vadd.f32 %v1359, %v1283
          %v1361 = vadd.f32 %v1360, %v1288
          %v1362 = vadd.f32 %v1361, %v1291
          %v1363 = vadd.f32 %v1362, %v1296
          %v1364 = vadd.f32 %v1363, %v1299
          %v1365 = vrot.slane %v1364, 4
          %v1366 = vadd.f32 %v1364, %v1365
          %v1367 = vrot.slane %v1366, 2
          %v1368 = vadd.f32 %v1366, %v1367
          %v1369 = vrot.slane %v1368, 1
          %v1370 = vadd.f32 %v1368, %v1369
          %v1371 = vmul.f32 %v1176, %v1176
          %v1372 = vmul.f32 %v1179, %v1179
          %v1373 = vmul.f32 %v1184, %v1184
          %v1374 = vmul.f32 %v1187, %v1187
          %v1375 = vmul.f32 %v1192, %v1192
          %v1376 = vmul.f32 %v1195, %v1195
          %v1377 = vmul.f32 %v1200, %v1200
          %v1378 = vmul.f32 %v1203, %v1203
          %v1379 = vmul.f32 %v1208, %v1208
          %v1380 = vmul.f32 %v1211, %v1211
          %v1381 = vmul.f32 %v1216, %v1216
          %v1382 = vmul.f32 %v1219, %v1219
          %v1383 = vmul.f32 %v1224, %v1224
          %v1384 = vmul.f32 %v1227, %v1227
          %v1385 = vmul.f32 %v1232, %v1232
          %v1386 = vmul.f32 %v1235, %v1235
          %v1387 = vmul.f32 %v1240, %v1240
          %v1388 = vmul.f32 %v1243, %v1243
          %v1389 = vmul.f32 %v1248, %v1248
          %v1390 = vmul.f32 %v1251, %v1251
          %v1391 = vmul.f32 %v1256, %v1256
          %v1392 = vmul.f32 %v1259, %v1259
          %v1393 = vmul.f32 %v1264, %v1264
          %v1394 = vmul.f32 %v1267, %v1267
          %v1395 = vmul.f32 %v1272, %v1272
          %v1396 = vmul.f32 %v1275, %v1275
          %v1397 = vmul.f32 %v1280, %v1280
          %v1398 = vmul.f32 %v1283, %v1283
          %v1399 = vmul.f32 %v1288, %v1288
          %v1400 = vmul.f32 %v1291, %v1291
          %v1401 = vmul.f32 %v1296, %v1296
          %v1402 = vmul.f32 %v1299, %v1299
          %v1403 = vadd.f32 %v1371, %v1372
          %v1404 = vadd.f32 %v1403, %v1373
          %v1405 = vadd.f32 %v1404, %v1374
          %v1406 = vadd.f32 %v1405, %v1375
          %v1407 = vadd.f32 %v1406, %v1376
          %v1408 = vadd.f32 %v1407, %v1377
          %v1409 = vadd.f32 %v1408, %v1378
          %v1410 = vadd.f32 %v1409, %v1379
          %v1411 = vadd.f32 %v1410, %v1380
          %v1412 = vadd.f32 %v1411, %v1381
          %v1413 = vadd.f32 %v1412, %v1382
          %v1414 = vadd.f32 %v1413, %v1383
          %v1415 = vadd.f32 %v1414, %v1384
          %v1416 = vadd.f32 %v1415, %v1385
          %v1417 = vadd.f32 %v1416, %v1386
          %v1418 = vadd.f32 %v1417, %v1387
          %v1419 = vadd.f32 %v1418, %v1388
          %v1420 = vadd.f32 %v1419, %v1389
          %v1421 = vadd.f32 %v1420, %v1390
          %v1422 = vadd.f32 %v1421, %v1391
          %v1423 = vadd.f32 %v1422, %v1392
          %v1424 = vadd.f32 %v1423, %v1393
          %v1425 = vadd.f32 %v1424, %v1394
          %v1426 = vadd.f32 %v1425, %v1395
          %v1427 = vadd.f32 %v1426, %v1396
          %v1428 = vadd.f32 %v1427, %v1397
          %v1429 = vadd.f32 %v1428, %v1398
          %v1430 = vadd.f32 %v1429, %v1399
          %v1431 = vadd.f32 %v1430, %v1400
          %v1432 = vadd.f32 %v1431, %v1401
          %v1433 = vadd.f32 %v1432, %v1402
          %v1434 = vrot.slane %v1433, 4
          %v1435 = vadd.f32 %v1433, %v1434
          %v1436 = vrot.slane %v1435, 2
          %v1437 = vadd.f32 %v1435, %v1436
          %v1438 = vrot.slane %v1437, 1
          %v1439 = vadd.f32 %v1437, %v1438
          %v1440 = vlaneseq
          %v1441 = vshrl.u32 %v1440, 7
          %vm1442 = vcmp.eq.s32.totalorder %v1441, 0
          %vm1443 = vcmp.eq.s32.totalorder %v1441, 1
          %v1444 = vsel %vm1443, %v1439, 0.0
          %v1445 = vsel %vm1442, %v1370, %v1444
          %1446 = vst [vmem:[%s410] sm:$0xff] %v1445
        $region78: #{gcn_forward.11} parent=65 // pred_fallthru
          _
        %s1447 = smul.u32 32, %s20
        %p1448 = scmp.lt.s32.totalorder %s1447, 63
        %s1449 = scalar_select %p1448, %s1447, 63
        %s1450 = smul.addr %s1449, 8
        %s1451 = scalar_lea.vmem %s3, %s1450
        %p1452 = scmp.lt.s32.totalorder %s20, 1
        %s1453 = scalar_select %p1452, %s20, 1
        %s1454 = smul.addr %s1453, 8
        %s1455 = scalar_lea.vmem %s4, %s1454
        // Predicated region
        $region79: #{gcn_forward.11} parent=65 // pred_check
          %p1456 = pneg %p121
        $region80: #{gcn_forward.11} parent=65 // pred_check_branch
          %1458 = sbr.rel (%p1456) target = $region82
        $region81: #{gcn_forward.11} parent=65 // pred_region
          %s1459 = smul.u32 32, %s20
        $region82: #{gcn_forward.11} parent=65 // pred_fallthru
          _
        // Predicated region
        $region83: #{gcn_forward.11} parent=65 // pred_check
          %p1460 = pneg %p147
        $region84: #{gcn_forward.11} parent=65 // pred_check_branch
          %1462 = sbr.rel (%p1460) target = $region86
        $region85: #{gcn_forward.11} parent=65 // pred_region
          _
        $region86: #{gcn_forward.11} parent=65 // pred_fallthru
          _
      $region66: #{gcn_forward.11} parent=5 // pred_fallthru
        _
      %p1463 = scmp.le.s32.totalorder 2, %s11
      // Predicated region
      $region87: #{gcn_forward.11} parent=5 // pred_check
        %p1464 = pneg %p1463
      $region88: #{gcn_forward.11} parent=5 // pred_check_branch
        %1466 = sbr.rel (%p1464) target = $region90
      $region89: #{gcn_forward.11} parent=5 // pred_region
        %s1467 = ssub.s32 %s11, 2
        // Predicated region
        $region91: #{gcn_forward.11} parent=89 // pred_check
          %p1468 = pneg %p127
        $region92: #{gcn_forward.11} parent=89 // pred_check_branch
          %1470 = sbr.rel (%p1468) target = $region94
        $region93: #{gcn_forward.11} parent=89 // pred_region
          %s1471 = smul.u32 32, %s22
          %p1472 = scmp.lt.s32.totalorder %s1471, 63
          %s1473 = scalar_select %p1472, %s1471, 63
          %s1474 = smul.addr %s1473, 8
          %s1475 = scalar_lea.vmem %s3, %s1474
        $region94: #{gcn_forward.11} parent=89 // pred_fallthru
          _
        // Predicated region
        $region95: #{gcn_forward.11} parent=89 // pred_check
          %p1476 = pneg %p153
        $region96: #{gcn_forward.11} parent=89 // pred_check_branch
          %1478 = sbr.rel (%p1476) target = $region98
        $region97: #{gcn_forward.11} parent=89 // pred_region
          %p1479 = scmp.lt.s32.totalorder %s22, 1
          %s1480 = scalar_select %p1479, %s22, 1
          %s1481 = smul.addr %s1480, 8
          %s1482 = scalar_lea.vmem %s4, %s1481
        $region98: #{gcn_forward.11} parent=89 // pred_fallthru
          _
      $region90: #{gcn_forward.11} parent=5 // pred_fallthru
        _
    $region6: #{gcn_forward.11} parent=1 // loop_footer
      %s15 = sadd.s32 1, %s11
    $region7: #{gcn_forward.11} parent=1 // loop_footer_branch
      %10 = sbr.rel target = $region3
    $region8: #{gcn_forward.11} parent=1 // loop_exit
      _

// kernel: gcn_forward.16
$region0: #{gcn_forward.16}
  #allocation0 [shape = 'u32[]', space=smem, size = 0x4, offset = 0x4, fixed_abs, tag = 'smem constant byte address 0x4 - core index']
  #allocation1 [shape = 'u32[144,128]{1,0:T(1,128)}', space=vmem, size = 0x12000, scoped, tag = 'internal scratch']
  %s0 = inlined_call_operand.vmem [shape: f32[512,256], index: 0, kind: input, shape index: {}]
  %s1 = inlined_call_operand.vmem [shape: f32[1,256], index: 1, kind: input, shape index: {}]
  %s2 = inlined_call_operand.vmem [shape: f32[1,256], index: 2, kind: input, shape index: {}]
  %s3 = inlined_call_operand.vmem [shape: bf16[512,256], index: 3, kind: output, shape index: {}]
  %s4 = sld [smem:[#allocation0]]
  $region45: #{gcn_forward.16} parent=0
    _
  %s6 = ssub.s32 1, %s4
  %s7 = scalar_select 0, %s6, %s4
  loop: start=0, step=1, limit=4
  $region2: #{gcn_forward.16} parent=0 // loop_pre_header
    _
  $region3: #{gcn_forward.16} parent=0 // loop_header
    %s9 = sphi 0, %s13
    %p10 = scmp.ge.s32.totalorder %s9, 4
    %s19 = sphi 0, %s21
    %s22 = sphi 0, %s19
    %s23 = sphi 0, %s22
    %s39 = sphi 0, %s23
    %s43 = sphi 0, %s43
    %s45 = sphi 0, %s43
    %s46 = sphi 0, %s45
    %s60 = sphi 0, %s46
    %s64 = sphi 0, %s64
    %s66 = sphi 0, %s64
    %s67 = sphi 0, %s66
    %s81 = sphi 0, %s67
    %s87 = sphi 0, %s89
    %s90 = sphi 0, %s87
    %s91 = sphi 0, %s90
    %s107 = sphi 0, %s91
  $region4: #{gcn_forward.16} parent=0 // loop_header_branch
    %12 = sbr.rel (%p10) target = $region8
  $region5: #{gcn_forward.16} parent=0 // loop_body
    %s14 = ssub.s32 %s9, 1
    %s15 = ssub.s32 %s9, 2
    %s16 = sadd.s32 %s9, 1
    %s17 = ssub.s32 %s9, %s16
    %p18 = scmp.eq.s32.totalorder %s17, 0
    %s20 = sadd.s32 %s19, 1
    %s21 = scalar_select %p18, %s19, %s20
    %p24 = pneg %p18
    %p25 = scmp.eq.s32.totalorder %s9, 1
    %p26 = por %p24, %p25
    %p27 = scmp.ne.s32.totalorder %s19, %s22
    %p28 = scmp.eq.s32.totalorder %s9, 0
    %p29 = por %p27, %p28
    %p30 = scmp.ne.s32.totalorder %s19, %s22
    %p31 = scmp.eq.s32.totalorder %s14, 1
    %p32 = por %p30, %p31
    %p33 = scmp.ne.s32.totalorder %s22, %s23
    %p34 = scmp.eq.s32.totalorder %s14, 0
    %p35 = por %p33, %p34
    %p36 = scmp.ne.s32.totalorder %s22, %s23
    %p37 = scmp.eq.s32.totalorder %s15, 1
    %p38 = por %p36, %p37
    %p40 = scmp.ne.s32.totalorder %s23, %s39
    %p41 = scmp.eq.s32.totalorder %s15, 0
    %p42 = por %p40, %p41
    %s44 = sadd.s32 %s43, 1
    %p47 = scmp.eq.s32.totalorder %s9, 1
    %p48 = scmp.ne.s32.totalorder %s43, %s45
    %p49 = scmp.eq.s32.totalorder %s9, 0
    %p50 = por %p48, %p49
    %p51 = scmp.ne.s32.totalorder %s43, %s45
    %p52 = scmp.eq.s32.totalorder %s14, 1
    %p53 = por %p51, %p52
    %p54 = scmp.ne.s32.totalorder %s45, %s46
    %p55 = scmp.eq.s32.totalorder %s14, 0
    %p56 = por %p54, %p55
    %p57 = scmp.ne.s32.totalorder %s45, %s46
    %p58 = scmp.eq.s32.totalorder %s15, 1
    %p59 = por %p57, %p58
    %p61 = scmp.ne.s32.totalorder %s46, %s60
    %p62 = scmp.eq.s32.totalorder %s15, 0
    %p63 = por %p61, %p62
    %s65 = sadd.s32 %s64, 1
    %p68 = scmp.eq.s32.totalorder %s9, 1
    %p69 = scmp.ne.s32.totalorder %s64, %s66
    %p70 = scmp.eq.s32.totalorder %s9, 0
    %p71 = por %p69, %p70
    %p72 = scmp.ne.s32.totalorder %s64, %s66
    %p73 = scmp.eq.s32.totalorder %s14, 1
    %p74 = por %p72, %p73
    %p75 = scmp.ne.s32.totalorder %s66, %s67
    %p76 = scmp.eq.s32.totalorder %s14, 0
    %p77 = por %p75, %p76
    %p78 = scmp.ne.s32.totalorder %s66, %s67
    %p79 = scmp.eq.s32.totalorder %s15, 1
    %p80 = por %p78, %p79
    %p82 = scmp.ne.s32.totalorder %s67, %s81
    %p83 = scmp.eq.s32.totalorder %s15, 0
    %p84 = por %p82, %p83
    %s85 = ssub.s32 %s9, %s16
    %p86 = scmp.eq.s32.totalorder %s85, 0
    %s88 = sadd.s32 %s87, 1
    %s89 = scalar_select %p86, %s87, %s88
    %p92 = pneg %p86
    %p93 = scmp.eq.s32.totalorder %s9, 1
    %p94 = por %p92, %p93
    %p95 = scmp.ne.s32.totalorder %s87, %s90
    %p96 = scmp.eq.s32.totalorder %s9, 0
    %p97 = por %p95, %p96
    %p98 = scmp.ne.s32.totalorder %s87, %s90
    %p99 = scmp.eq.s32.totalorder %s14, 1
    %p100 = por %p98, %p99
    %p101 = scmp.ne.s32.totalorder %s90, %s91
    %p102 = scmp.eq.s32.totalorder %s14, 0
    %p103 = por %p101, %p102
    %p104 = scmp.ne.s32.totalorder %s90, %s91
    %p105 = scmp.eq.s32.totalorder %s15, 1
    %p106 = por %p104, %p105
    %p108 = scmp.ne.s32.totalorder %s91, %s107
    %p109 = scmp.eq.s32.totalorder %s15, 0
    %p110 = por %p108, %p109
    %p111 = scmp.le.s32.totalorder 1, %s9
    %p112 = scmp.lt.s32.totalorder %s9, 3
    %p113 = pnand %p111, %p112
    %p114 = pneg %p113
    // Predicated region
    $region9: #{gcn_forward.16} parent=5 // pred_check
      _
    $region10: #{gcn_forward.16} parent=5 // pred_check_branch
      %116 = sbr.rel (%p113) target = $region12
    $region11: #{gcn_forward.16} parent=5 // pred_region
      %s117 = ssub.s32 %s9, 1
      // Predicated region
      $region13: #{gcn_forward.16} parent=11 // pred_check
        %p118 = pneg %p56
      $region14: #{gcn_forward.16} parent=11 // pred_check_branch
        %120 = sbr.rel (%p118) target = $region16
      $region15: #{gcn_forward.16} parent=11 // pred_region
        _
      $region16: #{gcn_forward.16} parent=11 // pred_fallthru
        _
      // Predicated region
      $region17: #{gcn_forward.16} parent=11 // pred_check
        %p121 = pneg %p77
      $region18: #{gcn_forward.16} parent=11 // pred_check_branch
        %123 = sbr.rel (%p121) target = $region20
      $region19: #{gcn_forward.16} parent=11 // pred_region
        _
      $region20: #{gcn_forward.16} parent=11 // pred_fallthru
        _
    $region12: #{gcn_forward.16} parent=5 // pred_fallthru
      _
    %p124 = scmp.lt.s32.totalorder %s9, 2
    // Predicated region
    $region21: #{gcn_forward.16} parent=5 // pred_check
      %p125 = pneg %p124
    $region22: #{gcn_forward.16} parent=5 // pred_check_branch
      %127 = sbr.rel (%p125) target = $region24
    $region23: #{gcn_forward.16} parent=5 // pred_region
      // Predicated region
      $region25: #{gcn_forward.16} parent=23 // pred_check
        %p128 = pneg %p29
      $region26: #{gcn_forward.16} parent=23 // pred_check_branch
        %130 = sbr.rel (%p128) target = $region28
      $region27: #{gcn_forward.16} parent=23 // pred_region
        %s131 = smul.u32 32, %s9
        %p132 = scmp.lt.s32.totalorder %s131, 63
        %s133 = scalar_select %p132, %s131, 63
        %s134 = smul.addr %s133, 2
        %s135 = smul.addr %s134, 8
        %s136 = scalar_lea.vmem %s0, %s135
        %s137 = smul.u32 32, %s9
      $region28: #{gcn_forward.16} parent=23 // pred_fallthru
        _
    $region24: #{gcn_forward.16} parent=5 // pred_fallthru
      _
    %p138 = scmp.le.s32.totalorder 1, %s9
    %p139 = scmp.lt.s32.totalorder %s9, 3
    %p140 = pnand %p138, %p139
    %p141 = pneg %p140
    // Predicated region
    $region29: #{gcn_forward.16} parent=5 // pred_check
      _
    $region30: #{gcn_forward.16} parent=5 // pred_check_branch
      %143 = sbr.rel (%p140) target = $region32
    $region31: #{gcn_forward.16} parent=5 // pred_region
      %s144 = ssub.s32 %s9, 1
      %s145 = smul.u32 32, %s14
      %p146 = scmp.lt.s32.totalorder %s145, 63
      %s147 = scalar_select %p146, %s145, 63
      %s148 = smul.addr %s147, 2
      %s149 = smul.addr %s148, 8
      %s150 = scalar_lea.vmem %s0, %s149
      %p151 = pneg %p35
      %p152 = pneg %p32
      %p153 = pneg %p56
      %p154 = pneg %p53
      %p155 = pneg %p77
      %p156 = pneg %p74
      %p157 = pneg %p103
      %p158 = pneg %p100
      %s159 = smul.u32 32, %s14
      %p160 = scmp.lt.s32.totalorder %s159, 63
      %s161 = scalar_select %p160, %s159, 63
      %s162 = smul.addr %s161, 2
      %s163 = smul.addr %s162, 4
      %s164 = scalar_lea.vmem %s3, %s163
      %s165 = smul.u32 32, %s14
      %p166 = scmp.lt.s32.totalorder %s165, 63
      %s167 = scalar_select %p166, %s165, 63
      %s168 = smul.addr %s167, 2
      %s169 = smul.addr %s168, 8
      %s170 = scalar_lea.vmem %s0, %s169
      %s171 = smul.u32 32, %s14
      %s172 = smul.u32 32, %s14
      %p173 = scmp.lt.s32.totalorder %s172, 63
      %s174 = scalar_select %p173, %s172, 63
      %s175 = smul.addr %s174, 2
      %s176 = smul.addr %s175, 4
      %s177 = scalar_lea.vmem %s3, %s176
      %s178 = smul.u32 32, %s14
      %v179 = vld [vmem:[%s170] sm:$0xff]
      %v180 = vld [vmem:[%s170 + $0x8] sm:$0xff]
      %v181 = vld [vmem:[%s170 + $0x10] sm:$0xff]
      %v182 = vld [vmem:[%s170 + $0x18] sm:$0xff]
      %v183 = vld [vmem:[%s170 + $0x20] sm:$0xff]
      %v184 = vld [vmem:[%s170 + $0x28] sm:$0xff]
      %v185 = vld [vmem:[%s170 + $0x30] sm:$0xff]
      %v186 = vld [vmem:[%s170 + $0x38] sm:$0xff]
      %v187 = vld [vmem:[%s170 + $0x40] sm:$0xff]
      %v188 = vld [vmem:[%s170 + $0x48] sm:$0xff]
      %v189 = vld [vmem:[%s170 + $0x50] sm:$0xff]
      %v190 = vld [vmem:[%s170 + $0x58] sm:$0xff]
      %v191 = vld [vmem:[%s170 + $0x60] sm:$0xff]
      %v192 = vld [vmem:[%s170 + $0x68] sm:$0xff]
      %v193 = vld [vmem:[%s170 + $0x70] sm:$0xff]
      %v194 = vld [vmem:[%s170 + $0x78] sm:$0xff]
      %v195 = vld [vmem:[%s170 + $0x80] sm:$0xff]
      %v196 = vld [vmem:[%s170 + $0x88] sm:$0xff]
      %v197 = vld [vmem:[%s170 + $0x90] sm:$0xff]
      %v198 = vld [vmem:[%s170 + $0x98] sm:$0xff]
      %v199 = vld [vmem:[%s170 + $0xa0] sm:$0xff]
      %v200 = vld [vmem:[%s170 + $0xa8] sm:$0xff]
      %v201 = vld [vmem:[%s170 + $0xb0] sm:$0xff]
      %v202 = vld [vmem:[%s170 + $0xb8] sm:$0xff]
      %v203 = vld [vmem:[%s170 + $0xc0] sm:$0xff]
      %v204 = vld [vmem:[%s170 + $0xc8] sm:$0xff]
      %v205 = vld [vmem:[%s170 + $0xd0] sm:$0xff]
      %v206 = vld [vmem:[%s170 + $0xd8] sm:$0xff]
      %v207 = vld [vmem:[%s170 + $0xe0] sm:$0xff]
      %v208 = vld [vmem:[%s170 + $0xe8] sm:$0xff]
      %v209 = vld [vmem:[%s170 + $0xf0] sm:$0xff]
      %v210 = vld [vmem:[%s170 + $0xf8] sm:$0xff]
      %v211 = vld [vmem:[%s170 + $0x100] sm:$0xff]
      %v212 = vld [vmem:[%s170 + $0x108] sm:$0xff]
      %v213 = vld [vmem:[%s170 + $0x110] sm:$0xff]
      %v214 = vld [vmem:[%s170 + $0x118] sm:$0xff]
      %v215 = vld [vmem:[%s170 + $0x120] sm:$0xff]
      %v216 = vld [vmem:[%s170 + $0x128] sm:$0xff]
      %v217 = vld [vmem:[%s170 + $0x130] sm:$0xff]
      %v218 = vld [vmem:[%s170 + $0x138] sm:$0xff]
      %v219 = vld [vmem:[%s170 + $0x140] sm:$0xff]
      %v220 = vld [vmem:[%s170 + $0x148] sm:$0xff]
      %v221 = vld [vmem:[%s170 + $0x150] sm:$0xff]
      %v222 = vld [vmem:[%s170 + $0x158] sm:$0xff]
      %v223 = vld [vmem:[%s170 + $0x160] sm:$0xff]
      %v224 = vld [vmem:[%s170 + $0x168] sm:$0xff]
      %v225 = vld [vmem:[%s170 + $0x170] sm:$0xff]
      %v226 = vld [vmem:[%s170 + $0x178] sm:$0xff]
      %v227 = vld [vmem:[%s170 + $0x180] sm:$0xff]
      %v228 = vld [vmem:[%s170 + $0x188] sm:$0xff]
      %v229 = vld [vmem:[%s170 + $0x190] sm:$0xff]
      %v230 = vld [vmem:[%s170 + $0x198] sm:$0xff]
      %v231 = vld [vmem:[%s170 + $0x1a0] sm:$0xff]
      %v232 = vld [vmem:[%s170 + $0x1a8] sm:$0xff]
      %v233 = vld [vmem:[%s170 + $0x1b0] sm:$0xff]
      %v234 = vld [vmem:[%s170 + $0x1b8] sm:$0xff]
      %v235 = vld [vmem:[%s170 + $0x1c0] sm:$0xff]
      %v236 = vld [vmem:[%s170 + $0x1c8] sm:$0xff]
      %v237 = vld [vmem:[%s170 + $0x1d0] sm:$0xff]
      %v238 = vld [vmem:[%s170 + $0x1d8] sm:$0xff]
      %v239 = vld [vmem:[%s170 + $0x1e0] sm:$0xff]
      %v240 = vld [vmem:[%s170 + $0x1e8] sm:$0xff]
      %v241 = vld [vmem:[%s170 + $0x1f0] sm:$0xff]
      %v242 = vld [vmem:[%s170 + $0x1f8] sm:$0xff]
      %v243 = vld [vmem:[%s1] sm:$0x3]
      %v245 = vlaneseq
      %v246 = vshrl.u32 %v245, 7
      %v247 = vsub.s32 0, %v246
      %v248 = vrot.slane %v243, %v247
      %v249 = vlaneseq
      %v250 = vshrl.u32 %v249, 7
      %v251 = vsub.s32 1, %v250
      %v252 = vrot.slane %v243, %v251
      %v255 = vmul.f32 %v179, %v248
      %v256 = vmul.f32 %v180, %v252
      %v257 = vmul.f32 %v181, %v248
      %v258 = vmul.f32 %v182, %v252
      %v259 = vmul.f32 %v183, %v248
      %v260 = vmul.f32 %v184, %v252
      %v261 = vmul.f32 %v185, %v248
      %v262 = vmul.f32 %v186, %v252
      %v263 = vmul.f32 %v187, %v248
      %v264 = vmul.f32 %v188, %v252
      %v265 = vmul.f32 %v189, %v248
      %v266 = vmul.f32 %v190, %v252
      %v267 = vmul.f32 %v191, %v248
      %v268 = vmul.f32 %v192, %v252
      %v269 = vmul.f32 %v193, %v248
      %v270 = vmul.f32 %v194, %v252
      %v271 = vmul.f32 %v195, %v248
      %v272 = vmul.f32 %v196, %v252
      %v273 = vmul.f32 %v197, %v248
      %v274 = vmul.f32 %v198, %v252
      %v275 = vmul.f32 %v199, %v248
      %v276 = vmul.f32 %v200, %v252
      %v277 = vmul.f32 %v201, %v248
      %v278 = vmul.f32 %v202, %v252
      %v279 = vmul.f32 %v203, %v248
      %v280 = vmul.f32 %v204, %v252
      %v281 = vmul.f32 %v205, %v248
      %v282 = vmul.f32 %v206, %v252
      %v283 = vmul.f32 %v207, %v248
      %v284 = vmul.f32 %v208, %v252
      %v285 = vmul.f32 %v209, %v248
      %v286 = vmul.f32 %v210, %v252
      %v287 = vmul.f32 %v211, %v248
      %v288 = vmul.f32 %v212, %v252
      %v289 = vmul.f32 %v213, %v248
      %v290 = vmul.f32 %v214, %v252
      %v291 = vmul.f32 %v215, %v248
      %v292 = vmul.f32 %v216, %v252
      %v293 = vmul.f32 %v217, %v248
      %v294 = vmul.f32 %v218, %v252
      %v295 = vmul.f32 %v219, %v248
      %v296 = vmul.f32 %v220, %v252
      %v297 = vmul.f32 %v221, %v248
      %v298 = vmul.f32 %v222, %v252
      %v299 = vmul.f32 %v223, %v248
      %v300 = vmul.f32 %v224, %v252
      %v301 = vmul.f32 %v225, %v248
      %v302 = vmul.f32 %v226, %v252
      %v303 = vmul.f32 %v227, %v248
      %v304 = vmul.f32 %v228, %v252
      %v305 = vmul.f32 %v229, %v248
      %v306 = vmul.f32 %v230, %v252
      %v307 = vmul.f32 %v231, %v248
      %v308 = vmul.f32 %v232, %v252
      %v309 = vmul.f32 %v233, %v248
      %v310 = vmul.f32 %v234, %v252
      %v311 = vmul.f32 %v235, %v248
      %v312 = vmul.f32 %v236, %v252
      %v313 = vmul.f32 %v237, %v248
      %v314 = vmul.f32 %v238, %v252
      %v315 = vmul.f32 %v239, %v248
      %v316 = vmul.f32 %v240, %v252
      %v317 = vmul.f32 %v241, %v248
      %v318 = vmul.f32 %v242, %v252
      %v319 = vld [vmem:[%s2] sm:$0x3]
      %v321 = vlaneseq
      %v322 = vshrl.u32 %v321, 7
      %v323 = vsub.s32 0, %v322
      %v324 = vrot.slane %v319, %v323
      %v325 = vlaneseq
      %v326 = vshrl.u32 %v325, 7
      %v327 = vsub.s32 1, %v326
      %v328 = vrot.slane %v319, %v327
      %v331 = vadd.f32 %v255, %v324
      %v332 = vadd.f32 %v256, %v328
      %v333 = vadd.f32 %v257, %v324
      %v334 = vadd.f32 %v258, %v328
      %v335 = vadd.f32 %v259, %v324
      %v336 = vadd.f32 %v260, %v328
      %v337 = vadd.f32 %v261, %v324
      %v338 = vadd.f32 %v262, %v328
      %v339 = vadd.f32 %v263, %v324
      %v340 = vadd.f32 %v264, %v328
      %v341 = vadd.f32 %v265, %v324
      %v342 = vadd.f32 %v266, %v328
      %v343 = vadd.f32 %v267, %v324
      %v344 = vadd.f32 %v268, %v328
      %v345 = vadd.f32 %v269, %v324
      %v346 = vadd.f32 %v270, %v328
      %v347 = vadd.f32 %v271, %v324
      %v348 = vadd.f32 %v272, %v328
      %v349 = vadd.f32 %v273, %v324
      %v350 = vadd.f32 %v274, %v328
      %v351 = vadd.f32 %v275, %v324
      %v352 = vadd.f32 %v276, %v328
      %v353 = vadd.f32 %v277, %v324
      %v354 = vadd.f32 %v278, %v328
      %v355 = vadd.f32 %v279, %v324
      %v356 = vadd.f32 %v280, %v328
      %v357 = vadd.f32 %v281, %v324
      %v358 = vadd.f32 %v282, %v328
      %v359 = vadd.f32 %v283, %v324
      %v360 = vadd.f32 %v284, %v328
      %v361 = vadd.f32 %v285, %v324
      %v362 = vadd.f32 %v286, %v328
      %v363 = vadd.f32 %v287, %v324
      %v364 = vadd.f32 %v288, %v328
      %v365 = vadd.f32 %v289, %v324
      %v366 = vadd.f32 %v290, %v328
      %v367 = vadd.f32 %v291, %v324
      %v368 = vadd.f32 %v292, %v328
      %v369 = vadd.f32 %v293, %v324
      %v370 = vadd.f32 %v294, %v328
      %v371 = vadd.f32 %v295, %v324
      %v372 = vadd.f32 %v296, %v328
      %v373 = vadd.f32 %v297, %v324
      %v374 = vadd.f32 %v298, %v328
      %v375 = vadd.f32 %v299, %v324
      %v376 = vadd.f32 %v300, %v328
      %v377 = vadd.f32 %v301, %v324
      %v378 = vadd.f32 %v302, %v328
      %v379 = vadd.f32 %v303, %v324
      %v380 = vadd.f32 %v304, %v328
      %v381 = vadd.f32 %v305, %v324
      %v382 = vadd.f32 %v306, %v328
      %v383 = vadd.f32 %v307, %v324
      %v384 = vadd.f32 %v308, %v328
      %v385 = vadd.f32 %v309, %v324
      %v386 = vadd.f32 %v310, %v328
      %v387 = vadd.f32 %v311, %v324
      %v388 = vadd.f32 %v312, %v328
      %v389 = vadd.f32 %v313, %v324
      %v390 = vadd.f32 %v314, %v328
      %v391 = vadd.f32 %v315, %v324
      %v392 = vadd.f32 %v316, %v328
      %v393 = vadd.f32 %v317, %v324
      %v394 = vadd.f32 %v318, %v328
      %v395 = vmax.f32 %v331, 0.0
      %v396 = vmax.f32 %v332, 0.0
      %v397 = vmax.f32 %v333, 0.0
      %v398 = vmax.f32 %v334, 0.0
      %v399 = vmax.f32 %v335, 0.0
      %v400 = vmax.f32 %v336, 0.0
      %v401 = vmax.f32 %v337, 0.0
      %v402 = vmax.f32 %v338, 0.0
      %v403 = vmax.f32 %v339, 0.0
      %v404 = vmax.f32 %v340, 0.0
      %v405 = vmax.f32 %v341, 0.0
      %v406 = vmax.f32 %v342, 0.0
      %v407 = vmax.f32 %v343, 0.0
      %v408 = vmax.f32 %v344, 0.0
      %v409 = vmax.f32 %v345, 0.0
      %v410 = vmax.f32 %v346, 0.0
      %v411 = vmax.f32 %v347, 0.0
      %v412 = vmax.f32 %v348, 0.0
      %v413 = vmax.f32 %v349, 0.0
      %v414 = vmax.f32 %v350, 0.0
      %v415 = vmax.f32 %v351, 0.0
      %v416 = vmax.f32 %v352, 0.0
      %v417 = vmax.f32 %v353, 0.0
      %v418 = vmax.f32 %v354, 0.0
      %v419 = vmax.f32 %v355, 0.0
      %v420 = vmax.f32 %v356, 0.0
      %v421 = vmax.f32 %v357, 0.0
      %v422 = vmax.f32 %v358, 0.0
      %v423 = vmax.f32 %v359, 0.0
      %v424 = vmax.f32 %v360, 0.0
      %v425 = vmax.f32 %v361, 0.0
      %v426 = vmax.f32 %v362, 0.0
      %v427 = vmax.f32 %v363, 0.0
      %v428 = vmax.f32 %v364, 0.0
      %v429 = vmax.f32 %v365, 0.0
      %v430 = vmax.f32 %v366, 0.0
      %v431 = vmax.f32 %v367, 0.0
      %v432 = vmax.f32 %v368, 0.0
      %v433 = vmax.f32 %v369, 0.0
      %v434 = vmax.f32 %v370, 0.0
      %v435 = vmax.f32 %v371, 0.0
      %v436 = vmax.f32 %v372, 0.0
      %v437 = vmax.f32 %v373, 0.0
      %v438 = vmax.f32 %v374, 0.0
      %v439 = vmax.f32 %v375, 0.0
      %v440 = vmax.f32 %v376, 0.0
      %v441 = vmax.f32 %v377, 0.0
      %v442 = vmax.f32 %v378, 0.0
      %v443 = vmax.f32 %v379, 0.0
      %v444 = vmax.f32 %v380, 0.0
      %v445 = vmax.f32 %v381, 0.0
      %v446 = vmax.f32 %v382, 0.0
      %v447 = vmax.f32 %v383, 0.0
      %v448 = vmax.f32 %v384, 0.0
      %v449 = vmax.f32 %v385, 0.0
      %v450 = vmax.f32 %v386, 0.0
      %v451 = vmax.f32 %v387, 0.0
      %v452 = vmax.f32 %v388, 0.0
      %v453 = vmax.f32 %v389, 0.0
      %v454 = vmax.f32 %v390, 0.0
      %v455 = vmax.f32 %v391, 0.0
      %v456 = vmax.f32 %v392, 0.0
      %v457 = vmax.f32 %v393, 0.0
      %v458 = vmax.f32 %v394, 0.0
      %v459 = vpack.c.bf16 %v397, %v395
      %v460 = vpack.c.bf16 %v398, %v396
      %v461 = vpack.c.bf16 %v401, %v399
      %v462 = vpack.c.bf16 %v402, %v400
      %v463 = vpack.c.bf16 %v405, %v403
      %v464 = vpack.c.bf16 %v406, %v404
      %v465 = vpack.c.bf16 %v409, %v407
      %v466 = vpack.c.bf16 %v410, %v408
      %v467 = vpack.c.bf16 %v413, %v411
      %v468 = vpack.c.bf16 %v414, %v412
      %v469 = vpack.c.bf16 %v417, %v415
      %v470 = vpack.c.bf16 %v418, %v416
      %v471 = vpack.c.bf16 %v421, %v419
      %v472 = vpack.c.bf16 %v422, %v420
      %v473 = vpack.c.bf16 %v425, %v423
      %v474 = vpack.c.bf16 %v426, %v424
      %v475 = vpack.c.bf16 %v429, %v427
      %v476 = vpack.c.bf16 %v430, %v428
      %v477 = vpack.c.bf16 %v433, %v431
      %v478 = vpack.c.bf16 %v434, %v432
      %v479 = vpack.c.bf16 %v437, %v435
      %v480 = vpack.c.bf16 %v438, %v436
      %v481 = vpack.c.bf16 %v441, %v439
      %v482 = vpack.c.bf16 %v442, %v440
      %v483 = vpack.c.bf16 %v445, %v443
      %v484 = vpack.c.bf16 %v446, %v444
      %v485 = vpack.c.bf16 %v449, %v447
      %v486 = vpack.c.bf16 %v450, %v448
      %v487 = vpack.c.bf16 %v453, %v451
      %v488 = vpack.c.bf16 %v454, %v452
      %v489 = vpack.c.bf16 %v457, %v455
      %v490 = vpack.c.bf16 %v458, %v456
      %v523 = vunpack.c.l.b16 %v459
      %v524 = vunpack.c.l.b16 %v460
      %v525 = vunpack.c.h.b16 %v459
      %v526 = vunpack.c.h.b16 %v460
      %v527 = vunpack.c.l.b16 %v461
      %v528 = vunpack.c.l.b16 %v462
      %v529 = vunpack.c.h.b16 %v461
      %v530 = vunpack.c.h.b16 %v462
      %v531 = vunpack.c.l.b16 %v463
      %v532 = vunpack.c.l.b16 %v464
      %v533 = vunpack.c.h.b16 %v463
      %v534 = vunpack.c.h.b16 %v464
      %v535 = vunpack.c.l.b16 %v465
      %v536 = vunpack.c.l.b16 %v466
      %v537 = vunpack.c.h.b16 %v465
      %v538 = vunpack.c.h.b16 %v466
      %v539 = vunpack.c.l.b16 %v467
      %v540 = vunpack.c.l.b16 %v468
      %v541 = vunpack.c.h.b16 %v467
      %v542 = vunpack.c.h.b16 %v468
      %v543 = vunpack.c.l.b16 %v469
      %v544 = vunpack.c.l.b16 %v470
      %v545 = vunpack.c.h.b16 %v469
      %v546 = vunpack.c.h.b16 %v470
      %v547 = vunpack.c.l.b16 %v471
      %v548 = vunpack.c.l.b16 %v472
      %v549 = vunpack.c.h.b16 %v471
      %v550 = vunpack.c.h.b16 %v472
      %v551 = vunpack.c.l.b16 %v473
      %v552 = vunpack.c.l.b16 %v474
      %v553 = vunpack.c.h.b16 %v473
      %v554 = vunpack.c.h.b16 %v474
      %v555 = vunpack.c.l.b16 %v475
      %v556 = vunpack.c.l.b16 %v476
      %v557 = vunpack.c.h.b16 %v475
      %v558 = vunpack.c.h.b16 %v476
      %v559 = vunpack.c.l.b16 %v477
      %v560 = vunpack.c.l.b16 %v478
      %v561 = vunpack.c.h.b16 %v477
      %v562 = vunpack.c.h.b16 %v478
      %v563 = vunpack.c.l.b16 %v479
      %v564 = vunpack.c.l.b16 %v480
      %v565 = vunpack.c.h.b16 %v479
      %v566 = vunpack.c.h.b16 %v480
      %v567 = vunpack.c.l.b16 %v481
      %v568 = vunpack.c.l.b16 %v482
      %v569 = vunpack.c.h.b16 %v481
      %v570 = vunpack.c.h.b16 %v482
      %v571 = vunpack.c.l.b16 %v483
      %v572 = vunpack.c.l.b16 %v484
      %v573 = vunpack.c.h.b16 %v483
      %v574 = vunpack.c.h.b16 %v484
      %v575 = vunpack.c.l.b16 %v485
      %v576 = vunpack.c.l.b16 %v486
      %v577 = vunpack.c.h.b16 %v485
      %v578 = vunpack.c.h.b16 %v486
      %v579 = vunpack.c.l.b16 %v487
      %v580 = vunpack.c.l.b16 %v488
      %v581 = vunpack.c.h.b16 %v487
      %v582 = vunpack.c.h.b16 %v488
      %v583 = vunpack.c.l.b16 %v489
      %v584 = vunpack.c.l.b16 %v490
      %v585 = vunpack.c.h.b16 %v489
      %v586 = vunpack.c.h.b16 %v490
      %v587 = vpack.c.b16 %v524, %v523
      %v588 = vpack.c.b16 %v526, %v525
      %v589 = vpack.c.b16 %v528, %v527
      %v590 = vpack.c.b16 %v530, %v529
      %v591 = vpack.c.b16 %v532, %v531
      %v592 = vpack.c.b16 %v534, %v533
      %v593 = vpack.c.b16 %v536, %v535
      %v594 = vpack.c.b16 %v538, %v537
      %v595 = vpack.c.b16 %v540, %v539
      %v596 = vpack.c.b16 %v542, %v541
      %v597 = vpack.c.b16 %v544, %v543
      %v598 = vpack.c.b16 %v546, %v545
      %v599 = vpack.c.b16 %v548, %v547
      %v600 = vpack.c.b16 %v550, %v549
      %v601 = vpack.c.b16 %v552, %v551
      %v602 = vpack.c.b16 %v554, %v553
      %v603 = vpack.c.b16 %v556, %v555
      %v604 = vpack.c.b16 %v558, %v557
      %v605 = vpack.c.b16 %v560, %v559
      %v606 = vpack.c.b16 %v562, %v561
      %v607 = vpack.c.b16 %v564, %v563
      %v608 = vpack.c.b16 %v566, %v565
      %v609 = vpack.c.b16 %v568, %v567
      %v610 = vpack.c.b16 %v570, %v569
      %v611 = vpack.c.b16 %v572, %v571
      %v612 = vpack.c.b16 %v574, %v573
      %v613 = vpack.c.b16 %v576, %v575
      %v614 = vpack.c.b16 %v578, %v577
      %v615 = vpack.c.b16 %v580, %v579
      %v616 = vpack.c.b16 %v582, %v581
      %v617 = vpack.c.b16 %v584, %v583
      %v618 = vpack.c.b16 %v586, %v585
      %651 = vst [vmem:[%s177] sm:$0xff] %v587
      %652 = vst [vmem:[%s177 + $0x8] sm:$0xff] %v588
      %653 = vst [vmem:[%s177 + $0x10] sm:$0xff] %v589
      %654 = vst [vmem:[%s177 + $0x18] sm:$0xff] %v590
      %655 = vst [vmem:[%s177 + $0x20] sm:$0xff] %v591
      %656 = vst [vmem:[%s177 + $0x28] sm:$0xff] %v592
      %657 = vst [vmem:[%s177 + $0x30] sm:$0xff] %v593
      %658 = vst [vmem:[%s177 + $0x38] sm:$0xff] %v594
      %659 = vst [vmem:[%s177 + $0x40] sm:$0xff] %v595
      %660 = vst [vmem:[%s177 + $0x48] sm:$0xff] %v596
      %661 = vst [vmem:[%s177 + $0x50] sm:$0xff] %v597
      %662 = vst [vmem:[%s177 + $0x58] sm:$0xff] %v598
      %663 = vst [vmem:[%s177 + $0x60] sm:$0xff] %v599
      %664 = vst [vmem:[%s177 + $0x68] sm:$0xff] %v600
      %665 = vst [vmem:[%s177 + $0x70] sm:$0xff] %v601
      %666 = vst [vmem:[%s177 + $0x78] sm:$0xff] %v602
      %667 = vst [vmem:[%s177 + $0x80] sm:$0xff] %v603
      %668 = vst [vmem:[%s177 + $0x88] sm:$0xff] %v604
      %669 = vst [vmem:[%s177 + $0x90] sm:$0xff] %v605
      %670 = vst [vmem:[%s177 + $0x98] sm:$0xff] %v606
      %671 = vst [vmem:[%s177 + $0xa0] sm:$0xff] %v607
      %672 = vst [vmem:[%s177 + $0xa8] sm:$0xff] %v608
      %673 = vst [vmem:[%s177 + $0xb0] sm:$0xff] %v609
      %674 = vst [vmem:[%s177 + $0xb8] sm:$0xff] %v610
      %675 = vst [vmem:[%s177 + $0xc0] sm:$0xff] %v611
      %676 = vst [vmem:[%s177 + $0xc8] sm:$0xff] %v612
      %677 = vst [vmem:[%s177 + $0xd0] sm:$0xff] %v613
      %678 = vst [vmem:[%s177 + $0xd8] sm:$0xff] %v614
      %679 = vst [vmem:[%s177 + $0xe0] sm:$0xff] %v615
      %680 = vst [vmem:[%s177 + $0xe8] sm:$0xff] %v616
      %681 = vst [vmem:[%s177 + $0xf0] sm:$0xff] %v617
      %682 = vst [vmem:[%s177 + $0xf8] sm:$0xff] %v618
      %s683 = smul.u32 32, %s14
      %p684 = scmp.lt.s32.totalorder %s683, 63
      %s685 = scalar_select %p684, %s683, 63
      %s686 = smul.addr %s685, 2
      %s687 = smul.addr %s686, 4
      %s688 = scalar_lea.vmem %s3, %s687
      // Predicated region
      $region33: #{gcn_forward.16} parent=31 // pred_check
        %p689 = pneg %p100
      $region34: #{gcn_forward.16} parent=31 // pred_check_branch
        %691 = sbr.rel (%p689) target = $region36
      $region35: #{gcn_forward.16} parent=31 // pred_region
        %s692 = smul.u32 32, %s14
      $region36: #{gcn_forward.16} parent=31 // pred_fallthru
        _
    $region32: #{gcn_forward.16} parent=5 // pred_fallthru
      _
    %p693 = scmp.le.s32.totalorder 2, %s9
    // Predicated region
    $region37: #{gcn_forward.16} parent=5 // pred_check
      %p694 = pneg %p693
    $region38: #{gcn_forward.16} parent=5 // pred_check_branch
      %696 = sbr.rel (%p694) target = $region40
    $region39: #{gcn_forward.16} parent=5 // pred_region
      %s697 = ssub.s32 %s9, 2
      // Predicated region
      $region41: #{gcn_forward.16} parent=39 // pred_check
        %p698 = pneg %p106
      $region42: #{gcn_forward.16} parent=39 // pred_check_branch
        %700 = sbr.rel (%p698) target = $region44
      $region43: #{gcn_forward.16} parent=39 // pred_region
        %s701 = smul.u32 32, %s15
        %p702 = scmp.lt.s32.totalorder %s701, 63
        %s703 = scalar_select %p702, %s701, 63
        %s704 = smul.addr %s703, 2
        %s705 = smul.addr %s704, 4
        %s706 = scalar_lea.vmem %s3, %s705
      $region44: #{gcn_forward.16} parent=39 // pred_fallthru
        _
    $region40: #{gcn_forward.16} parent=5 // pred_fallthru
      _
  $region6: #{gcn_forward.16} parent=0 // loop_footer
    %s13 = sadd.s32 1, %s9
  $region7: #{gcn_forward.16} parent=0 // loop_footer_branch
    %8 = sbr.rel target = $region3
  $region8: #{gcn_forward.16} parent=0 // loop_exit
    _

// kernel: gcn_forward.19
$region0: #{gcn_forward.19}
  #allocation0 [shape = 'u32[]', space=smem, size = 0x4, offset = 0x4, fixed_abs, tag = 'smem constant byte address 0x4 - core index']
  #allocation1 [shape = 'u32[144,128]{1,0:T(1,128)}', space=vmem, size = 0x12000, scoped, tag = 'internal scratch']
  %s0 = inlined_call_operand.vmem [shape: bf16[512,256], index: 0, kind: input, shape index: {}]
  %s1 = inlined_call_operand.vmem [shape: bf16[256,128], index: 1, kind: input, shape index: {}]
  %s2 = inlined_call_operand.vmem [shape: bf16[512,128], index: 2, kind: output, shape index: {}]
  %s3 = sld [smem:[#allocation0]]
  $region41: #{gcn_forward.19} parent=0
    _
  %s5 = ssub.s32 1, %s3
  %s6 = scalar_select 0, %s5, %s3
  loop: start=0, step=1, limit=4
  $region2: #{gcn_forward.19} parent=0 // loop_pre_header
    _
  $region3: #{gcn_forward.19} parent=0 // loop_header
    %s8 = sphi 0, %s12
    %p9 = scmp.ge.s32.totalorder %s8, 4
    %s18 = sphi 0, %s20
    %s21 = sphi 0, %s18
    %s22 = sphi 0, %s21
    %s38 = sphi 0, %s22
    %s42 = sphi 0, %s42
    %s44 = sphi 0, %s42
    %s45 = sphi 0, %s44
    %s59 = sphi 0, %s45
    %s65 = sphi 0, %s67
    %s68 = sphi 0, %s65
    %s69 = sphi 0, %s68
    %s85 = sphi 0, %s69
  $region4: #{gcn_forward.19} parent=0 // loop_header_branch
    %11 = sbr.rel (%p9) target = $region8
  $region5: #{gcn_forward.19} parent=0 // loop_body
    %s13 = ssub.s32 %s8, 1
    %s14 = ssub.s32 %s8, 2
    %s15 = sadd.s32 %s8, 1
    %s16 = ssub.s32 %s8, %s15
    %p17 = scmp.eq.s32.totalorder %s16, 0
    %s19 = sadd.s32 %s18, 1
    %s20 = scalar_select %p17, %s18, %s19
    %p23 = pneg %p17
    %p24 = scmp.eq.s32.totalorder %s8, 1
    %p25 = por %p23, %p24
    %p26 = scmp.ne.s32.totalorder %s18, %s21
    %p27 = scmp.eq.s32.totalorder %s8, 0
    %p28 = por %p26, %p27
    %p29 = scmp.ne.s32.totalorder %s18, %s21
    %p30 = scmp.eq.s32.totalorder %s13, 1
    %p31 = por %p29, %p30
    %p32 = scmp.ne.s32.totalorder %s21, %s22
    %p33 = scmp.eq.s32.totalorder %s13, 0
    %p34 = por %p32, %p33
    %p35 = scmp.ne.s32.totalorder %s21, %s22
    %p36 = scmp.eq.s32.totalorder %s14, 1
    %p37 = por %p35, %p36
    %p39 = scmp.ne.s32.totalorder %s22, %s38
    %p40 = scmp.eq.s32.totalorder %s14, 0
    %p41 = por %p39, %p40
    %s43 = sadd.s32 %s42, 1
    %p46 = scmp.eq.s32.totalorder %s8, 1
    %p47 = scmp.ne.s32.totalorder %s42, %s44
    %p48 = scmp.eq.s32.totalorder %s8, 0
    %p49 = por %p47, %p48
    %p50 = scmp.ne.s32.totalorder %s42, %s44
    %p51 = scmp.eq.s32.totalorder %s13, 1
    %p52 = por %p50, %p51
    %p53 = scmp.ne.s32.totalorder %s44, %s45
    %p54 = scmp.eq.s32.totalorder %s13, 0
    %p55 = por %p53, %p54
    %p56 = scmp.ne.s32.totalorder %s44, %s45
    %p57 = scmp.eq.s32.totalorder %s14, 1
    %p58 = por %p56, %p57
    %p60 = scmp.ne.s32.totalorder %s45, %s59
    %p61 = scmp.eq.s32.totalorder %s14, 0
    %p62 = por %p60, %p61
    %s63 = ssub.s32 %s8, %s15
    %p64 = scmp.eq.s32.totalorder %s63, 0
    %s66 = sadd.s32 %s65, 1
    %s67 = scalar_select %p64, %s65, %s66
    %p70 = pneg %p64
    %p71 = scmp.eq.s32.totalorder %s8, 1
    %p72 = por %p70, %p71
    %p73 = scmp.ne.s32.totalorder %s65, %s68
    %p74 = scmp.eq.s32.totalorder %s8, 0
    %p75 = por %p73, %p74
    %p76 = scmp.ne.s32.totalorder %s65, %s68
    %p77 = scmp.eq.s32.totalorder %s13, 1
    %p78 = por %p76, %p77
    %p79 = scmp.ne.s32.totalorder %s68, %s69
    %p80 = scmp.eq.s32.totalorder %s13, 0
    %p81 = por %p79, %p80
    %p82 = scmp.ne.s32.totalorder %s68, %s69
    %p83 = scmp.eq.s32.totalorder %s14, 1
    %p84 = por %p82, %p83
    %p86 = scmp.ne.s32.totalorder %s69, %s85
    %p87 = scmp.eq.s32.totalorder %s14, 0
    %p88 = por %p86, %p87
    %p89 = scmp.le.s32.totalorder 1, %s8
    %p90 = scmp.lt.s32.totalorder %s8, 3
    %p91 = pnand %p89, %p90
    %p92 = pneg %p91
    // Predicated region
    $region9: #{gcn_forward.19} parent=5 // pred_check
      _
    $region10: #{gcn_forward.19} parent=5 // pred_check_branch
      %94 = sbr.rel (%p91) target = $region12
    $region11: #{gcn_forward.19} parent=5 // pred_region
      %s95 = ssub.s32 %s8, 1
      // Predicated region
      $region13: #{gcn_forward.19} parent=11 // pred_check
        %p96 = pneg %p55
      $region14: #{gcn_forward.19} parent=11 // pred_check_branch
        %98 = sbr.rel (%p96) target = $region16
      $region15: #{gcn_forward.19} parent=11 // pred_region
        _
      $region16: #{gcn_forward.19} parent=11 // pred_fallthru
        _
    $region12: #{gcn_forward.19} parent=5 // pred_fallthru
      _
    %p99 = scmp.lt.s32.totalorder %s8, 2
    // Predicated region
    $region17: #{gcn_forward.19} parent=5 // pred_check
      %p100 = pneg %p99
    $region18: #{gcn_forward.19} parent=5 // pred_check_branch
      %102 = sbr.rel (%p100) target = $region20
    $region19: #{gcn_forward.19} parent=5 // pred_region
      // Predicated region
      $region21: #{gcn_forward.19} parent=19 // pred_check
        %p103 = pneg %p28
      $region22: #{gcn_forward.19} parent=19 // pred_check_branch
        %105 = sbr.rel (%p103) target = $region24
      $region23: #{gcn_forward.19} parent=19 // pred_region
        %s106 = smul.u32 32, %s8
        %p107 = scmp.lt.s32.totalorder %s106, 63
        %s108 = scalar_select %p107, %s106, 63
        %s109 = smul.addr %s108, 2
        %s110 = smul.addr %s109, 4
        %s111 = scalar_lea.vmem %s0, %s110
        %s112 = smul.u32 32, %s8
      $region24: #{gcn_forward.19} parent=19 // pred_fallthru
        _
    $region20: #{gcn_forward.19} parent=5 // pred_fallthru
      _
    %p113 = scmp.le.s32.totalorder 1, %s8
    %p114 = scmp.lt.s32.totalorder %s8, 3
    %p115 = pnand %p113, %p114
    %p116 = pneg %p115
    // Predicated region
    $region25: #{gcn_forward.19} parent=5 // pred_check
      _
    $region26: #{gcn_forward.19} parent=5 // pred_check_branch
      %118 = sbr.rel (%p115) target = $region28
    $region27: #{gcn_forward.19} parent=5 // pred_region
      %s119 = ssub.s32 %s8, 1
      %s120 = smul.u32 32, %s13
      %p121 = scmp.lt.s32.totalorder %s120, 63
      %s122 = scalar_select %p121, %s120, 63
      %s123 = smul.addr %s122, 2
      %s124 = smul.addr %s123, 4
      %s125 = scalar_lea.vmem %s0, %s124
      %p126 = pneg %p34
      %p127 = pneg %p31
      %p128 = pneg %p55
      %p129 = pneg %p52
      %p130 = pneg %p81
      %p131 = pneg %p78
      %s132 = smul.u32 32, %s13
      %p133 = scmp.lt.s32.totalorder %s132, 63
      %s134 = scalar_select %p133, %s132, 63
      %s135 = smul.addr %s134, 4
      %s136 = scalar_lea.vmem %s2, %s135
      %s137 = smul.u32 32, %s13
      %p138 = scmp.lt.s32.totalorder %s137, 63
      %s139 = scalar_select %p138, %s137, 63
      %s140 = smul.addr %s139, 2
      %s141 = smul.addr %s140, 4
      %s142 = scalar_lea.vmem %s0, %s141
      %s143 = smul.u32 32, %s13
      %s144 = smul.u32 32, %s13
      %p145 = scmp.lt.s32.totalorder %s144, 63
      %s146 = scalar_select %p145, %s144, 63
      %s147 = smul.addr %s146, 4
      %s148 = scalar_lea.vmem %s2, %s147
      %s149 = smul.u32 32, %s13
      %v151 = vld [vmem:[%s142] sm:$0xff]
      %v152 = vld [vmem:[%s142 + $0x8] sm:$0xff]
      %v153 = vld [vmem:[%s142 + $0x10] sm:$0xff]
      %v154 = vld [vmem:[%s142 + $0x18] sm:$0xff]
      %v155 = vld [vmem:[%s142 + $0x20] sm:$0xff]
      %v156 = vld [vmem:[%s142 + $0x28] sm:$0xff]
      %v157 = vld [vmem:[%s142 + $0x30] sm:$0xff]
      %v158 = vld [vmem:[%s142 + $0x38] sm:$0xff]
      %v159 = vld [vmem:[%s142 + $0x40] sm:$0xff]
      %v160 = vld [vmem:[%s142 + $0x48] sm:$0xff]
      %v161 = vld [vmem:[%s142 + $0x50] sm:$0xff]
      %v162 = vld [vmem:[%s142 + $0x58] sm:$0xff]
      %v163 = vld [vmem:[%s142 + $0x60] sm:$0xff]
      %v164 = vld [vmem:[%s142 + $0x68] sm:$0xff]
      %v165 = vld [vmem:[%s142 + $0x70] sm:$0xff]
      %v166 = vld [vmem:[%s142 + $0x78] sm:$0xff]
      %v167 = vld [vmem:[%s142 + $0x80] sm:$0xff]
      %v168 = vld [vmem:[%s142 + $0x88] sm:$0xff]
      %v169 = vld [vmem:[%s142 + $0x90] sm:$0xff]
      %v170 = vld [vmem:[%s142 + $0x98] sm:$0xff]
      %v171 = vld [vmem:[%s142 + $0xa0] sm:$0xff]
      %v172 = vld [vmem:[%s142 + $0xa8] sm:$0xff]
      %v173 = vld [vmem:[%s142 + $0xb0] sm:$0xff]
      %v174 = vld [vmem:[%s142 + $0xb8] sm:$0xff]
      %v175 = vld [vmem:[%s142 + $0xc0] sm:$0xff]
      %v176 = vld [vmem:[%s142 + $0xc8] sm:$0xff]
      %v177 = vld [vmem:[%s142 + $0xd0] sm:$0xff]
      %v178 = vld [vmem:[%s142 + $0xd8] sm:$0xff]
      %v179 = vld [vmem:[%s142 + $0xe0] sm:$0xff]
      %v180 = vld [vmem:[%s142 + $0xe8] sm:$0xff]
      %v181 = vld [vmem:[%s142 + $0xf0] sm:$0xff]
      %v182 = vld [vmem:[%s142 + $0xf8] sm:$0xff]
      %v183 = vld [vmem:[%s1] sm:$0xf]
      %v184 = vld [vmem:[%s1 + $0x4] sm:$0xf]
      %v185 = vld [vmem:[%s1 + $0x8] sm:$0xf]
      %v186 = vld [vmem:[%s1 + $0xc] sm:$0xf]
      %v187 = vld [vmem:[%s1 + $0x10] sm:$0xf]
      %v188 = vld [vmem:[%s1 + $0x14] sm:$0xf]
      %v189 = vld [vmem:[%s1 + $0x18] sm:$0xf]
      %v190 = vld [vmem:[%s1 + $0x1c] sm:$0xf]
      %v191 = vld [vmem:[%s1 + $0x20] sm:$0xf]
      %v192 = vld [vmem:[%s1 + $0x24] sm:$0xf]
      %v193 = vld [vmem:[%s1 + $0x28] sm:$0xf]
      %v194 = vld [vmem:[%s1 + $0x2c] sm:$0xf]
      %v195 = vld [vmem:[%s1 + $0x30] sm:$0xf]
      %v196 = vld [vmem:[%s1 + $0x34] sm:$0xf]
      %v197 = vld [vmem:[%s1 + $0x38] sm:$0xf]
      %v198 = vld [vmem:[%s1 + $0x3c] sm:$0xf]
      %v199 = vld [vmem:[%s1 + $0x40] sm:$0xf]
      %v200 = vld [vmem:[%s1 + $0x44] sm:$0xf]
      %v201 = vld [vmem:[%s1 + $0x48] sm:$0xf]
      %v202 = vld [vmem:[%s1 + $0x4c] sm:$0xf]
      %v203 = vld [vmem:[%s1 + $0x50] sm:$0xf]
      %v204 = vld [vmem:[%s1 + $0x54] sm:$0xf]
      %v205 = vld [vmem:[%s1 + $0x58] sm:$0xf]
      %v206 = vld [vmem:[%s1 + $0x5c] sm:$0xf]
      %v207 = vld [vmem:[%s1 + $0x60] sm:$0xf]
      %v208 = vld [vmem:[%s1 + $0x64] sm:$0xf]
      %v209 = vld [vmem:[%s1 + $0x68] sm:$0xf]
      %v210 = vld [vmem:[%s1 + $0x6c] sm:$0xf]
      %v211 = vld [vmem:[%s1 + $0x70] sm:$0xf]
      %v212 = vld [vmem:[%s1 + $0x74] sm:$0xf]
      %v213 = vld [vmem:[%s1 + $0x78] sm:$0xf]
      %v214 = vld [vmem:[%s1 + $0x7c] sm:$0xf]
      %v247 = vunpack.c.l.b16 %v151
      %v248 = vunpack.c.h.b16 %v151
      %v249 = vunpack.c.l.b16 %v152
      %v250 = vunpack.c.h.b16 %v152
      %v251 = vunpack.c.l.b16 %v153
      %v252 = vunpack.c.h.b16 %v153
      %v253 = vunpack.c.l.b16 %v154
      %v254 = vunpack.c.h.b16 %v154
      %v255 = vunpack.c.l.b16 %v155
      %v256 = vunpack.c.h.b16 %v155
      %v257 = vunpack.c.l.b16 %v156
      %v258 = vunpack.c.h.b16 %v156
      %v259 = vunpack.c.l.b16 %v157
      %v260 = vunpack.c.h.b16 %v157
      %v261 = vunpack.c.l.b16 %v158
      %v262 = vunpack.c.h.b16 %v158
      %v263 = vunpack.c.l.b16 %v159
      %v264 = vunpack.c.h.b16 %v159
      %v265 = vunpack.c.l.b16 %v160
      %v266 = vunpack.c.h.b16 %v160
      %v267 = vunpack.c.l.b16 %v161
      %v268 = vunpack.c.h.b16 %v161
      %v269 = vunpack.c.l.b16 %v162
      %v270 = vunpack.c.h.b16 %v162
      %v271 = vunpack.c.l.b16 %v163
      %v272 = vunpack.c.h.b16 %v163
      %v273 = vunpack.c.l.b16 %v164
      %v274 = vunpack.c.h.b16 %v164
      %v275 = vunpack.c.l.b16 %v165
      %v276 = vunpack.c.h.b16 %v165
      %v277 = vunpack.c.l.b16 %v166
      %v278 = vunpack.c.h.b16 %v166
      %v279 = vunpack.c.l.b16 %v167
      %v280 = vunpack.c.h.b16 %v167
      %v281 = vunpack.c.l.b16 %v168
      %v282 = vunpack.c.h.b16 %v168
      %v283 = vunpack.c.l.b16 %v169
      %v284 = vunpack.c.h.b16 %v169
      %v285 = vunpack.c.l.b16 %v170
      %v286 = vunpack.c.h.b16 %v170
      %v287 = vunpack.c.l.b16 %v171
      %v288 = vunpack.c.h.b16 %v171
      %v289 = vunpack.c.l.b16 %v172
      %v290 = vunpack.c.h.b16 %v172
      %v291 = vunpack.c.l.b16 %v173
      %v292 = vunpack.c.h.b16 %v173
      %v293 = vunpack.c.l.b16 %v174
      %v294 = vunpack.c.h.b16 %v174
      %v295 = vunpack.c.l.b16 %v175
      %v296 = vunpack.c.h.b16 %v175
      %v297 = vunpack.c.l.b16 %v176
      %v298 = vunpack.c.h.b16 %v176
      %v299 = vunpack.c.l.b16 %v177
      %v300 = vunpack.c.h.b16 %v177
      %v301 = vunpack.c.l.b16 %v178
      %v302 = vunpack.c.h.b16 %v178
      %v303 = vunpack.c.l.b16 %v179
      %v304 = vunpack.c.h.b16 %v179
      %v305 = vunpack.c.l.b16 %v180
      %v306 = vunpack.c.h.b16 %v180
      %v307 = vunpack.c.l.b16 %v181
      %v308 = vunpack.c.h.b16 %v181
      %v309 = vunpack.c.l.b16 %v182
      %v310 = vunpack.c.h.b16 %v182
      %v311 = vpack.c.b16 %v249, %v247
      %v312 = vpack.c.b16 %v250, %v248
      %v313 = vpack.c.b16 %v253, %v251
      %v314 = vpack.c.b16 %v254, %v252
      %v315 = vpack.c.b16 %v257, %v255
      %v316 = vpack.c.b16 %v258, %v256
      %v317 = vpack.c.b16 %v261, %v259
      %v318 = vpack.c.b16 %v262, %v260
      %v319 = vpack.c.b16 %v265, %v263
      %v320 = vpack.c.b16 %v266, %v264
      %v321 = vpack.c.b16 %v269, %v267
      %v322 = vpack.c.b16 %v270, %v268
      %v323 = vpack.c.b16 %v273, %v271
      %v324 = vpack.c.b16 %v274, %v272
      %v325 = vpack.c.b16 %v277, %v275
      %v326 = vpack.c.b16 %v278, %v276
      %v327 = vpack.c.b16 %v281, %v279
      %v328 = vpack.c.b16 %v282, %v280
      %v329 = vpack.c.b16 %v285, %v283
      %v330 = vpack.c.b16 %v286, %v284
      %v331 = vpack.c.b16 %v289, %v287
      %v332 = vpack.c.b16 %v290, %v288
      %v333 = vpack.c.b16 %v293, %v291
      %v334 = vpack.c.b16 %v294, %v292
      %v335 = vpack.c.b16 %v297, %v295
      %v336 = vpack.c.b16 %v298, %v296
      %v337 = vpack.c.b16 %v301, %v299
      %v338 = vpack.c.b16 %v302, %v300
      %v339 = vpack.c.b16 %v305, %v303
      %v340 = vpack.c.b16 %v306, %v304
      %v341 = vpack.c.b16 %v309, %v307
      %v342 = vpack.c.b16 %v310, %v308
      %v407 = vunpack.c.l.b16 %v183
      %v408 = vunpack.c.l.b16 %v184
      %v409 = vunpack.c.l.b16 %v185
      %v410 = vunpack.c.l.b16 %v186
      %v411 = vunpack.c.l.b16 %v187
      %v412 = vunpack.c.l.b16 %v188
      %v413 = vunpack.c.l.b16 %v189
      %v414 = vunpack.c.l.b16 %v190
      %v415 = vunpack.c.l.b16 %v191
      %v416 = vunpack.c.l.b16 %v192
      %v417 = vunpack.c.l.b16 %v193
      %v418 = vunpack.c.l.b16 %v194
      %v419 = vunpack.c.l.b16 %v195
      %v420 = vunpack.c.l.b16 %v196
      %v421 = vunpack.c.l.b16 %v197
      %v422 = vunpack.c.l.b16 %v198
      %v423 = vunpack.c.l.b16 %v199
      %v424 = vunpack.c.l.b16 %v200
      %v425 = vunpack.c.l.b16 %v201
      %v426 = vunpack.c.l.b16 %v202
      %v427 = vunpack.c.l.b16 %v203
      %v428 = vunpack.c.l.b16 %v204
      %v429 = vunpack.c.l.b16 %v205
      %v430 = vunpack.c.l.b16 %v206
      %v431 = vunpack.c.l.b16 %v207
      %v432 = vunpack.c.l.b16 %v208
      %v433 = vunpack.c.l.b16 %v209
      %v434 = vunpack.c.l.b16 %v210
      %v435 = vunpack.c.l.b16 %v211
      %v436 = vunpack.c.l.b16 %v212
      %v437 = vunpack.c.l.b16 %v213
      %v438 = vunpack.c.l.b16 %v214
      %v439 = vpack.c.b16 %v408, %v407
      %v440 = vpack.c.b16 %v410, %v409
      %v441 = vpack.c.b16 %v412, %v411
      %v442 = vpack.c.b16 %v414, %v413
      %v443 = vpack.c.b16 %v416, %v415
      %v444 = vpack.c.b16 %v418, %v417
      %v445 = vpack.c.b16 %v420, %v419
      %v446 = vpack.c.b16 %v422, %v421
      %v447 = vpack.c.b16 %v424, %v423
      %v448 = vpack.c.b16 %v426, %v425
      %v449 = vpack.c.b16 %v428, %v427
      %v450 = vpack.c.b16 %v430, %v429
      %v451 = vpack.c.b16 %v432, %v431
      %v452 = vpack.c.b16 %v434, %v433
      %v453 = vpack.c.b16 %v436, %v435
      %v454 = vpack.c.b16 %v438, %v437
      %471 = vmatprep.subr.bf16.mxu0 0
      %472 = vmatpush1.bf16.msra.mxu0 %v446
      %473 = vmatprep.subr.bf16.mxu0 0
      %474 = vmatpush1.bf16.msra.mxu0 %v445
      %475 = vmatprep.subr.bf16.mxu0 0
      %476 = vmatpush1.bf16.msra.mxu0 %v444
      %477 = vmatprep.subr.bf16.mxu0 0
      %478 = vmatpush1.bf16.msra.mxu0 %v443
      %479 = vmatprep.subr.bf16.mxu0 0
      %480 = vmatpush1.bf16.msra.mxu0 %v442
      %481 = vmatprep.subr.bf16.mxu0 0
      %482 = vmatpush1.bf16.msra.mxu0 %v441
      %483 = vmatprep.subr.bf16.mxu0 0
      %484 = vmatpush1.bf16.msra.mxu0 %v440
      %485 = vmatprep.subr.bf16.mxu0 0
      %486 = vmatpush1.bf16.msra.mxu0 %v439
      %487 = vmatprep.subr.bf16.mxu0 0
      %488 = vmatpush2.bf16.msra.mxu0 %v454
      %489 = vmatprep.subr.bf16.mxu0 0
      %490 = vmatpush2.bf16.msra.mxu0 %v453
      %491 = vmatprep.subr.bf16.mxu0 0
      %492 = vmatpush2.bf16.msra.mxu0 %v452
      %493 = vmatprep.subr.bf16.mxu0 0
      %494 = vmatpush2.bf16.msra.mxu0 %v451
      %495 = vmatprep.subr.bf16.mxu0 0
      %496 = vmatpush2.bf16.msra.mxu0 %v450
      %497 = vmatprep.subr.bf16.mxu0 0
      %498 = vmatpush2.bf16.msra.mxu0 %v449
      %499 = vmatprep.subr.bf16.mxu0 0
      %500 = vmatpush2.bf16.msra.mxu0 %v448
      %501 = vmatprep.subr.bf16.mxu0 0
      %502 = vmatpush2.bf16.msra.mxu0 %v447
      %503 = vmatprep.mubr.bf16.mxu0 %v312
      %504 = vmatmul.mubr.bf16.gmra.mxu0 %v311
      %v505 = vpop.f32.mrf.mxu0
      %v506 = vadd.f32 0.0, %v505
      %v507 = vpop.f32.mrf.mxu0
      %v508 = vpop.f32.mrf.mxu0
      %v509 = vadd.f32 0.0, %v508
      %v510 = vpop.f32.mrf.mxu0
      %511 = vmatprep.mubr.bf16.mxu0 %v314
      %512 = vmatmul.mubr.bf16.gmra.mxu0 %v313
      %v513 = vpop.f32.mrf.mxu0
      %v514 = vadd.f32 0.0, %v513
      %v515 = vpop.f32.mrf.mxu0
      %v516 = vpop.f32.mrf.mxu0
      %v517 = vadd.f32 0.0, %v516
      %v518 = vpop.f32.mrf.mxu0
      %519 = vmatprep.mubr.bf16.mxu0 %v316
      %520 = vmatmul.mubr.bf16.gmra.mxu0 %v315
      %v521 = vpop.f32.mrf.mxu0
      %v522 = vadd.f32 0.0, %v521
      %v523 = vpop.f32.mrf.mxu0
      %v524 = vpop.f32.mrf.mxu0
      %v525 = vadd.f32 0.0, %v524
      %v526 = vpop.f32.mrf.mxu0
      %527 = vmatprep.mubr.bf16.mxu0 %v318
      %528 = vmatmul.mubr.bf16.gmra.mxu0 %v317
      %v529 = vpop.f32.mrf.mxu0
      %v530 = vadd.f32 0.0, %v529
      %v531 = vpop.f32.mrf.mxu0
      %v532 = vpop.f32.mrf.mxu0
      %v533 = vadd.f32 0.0, %v532
      %v534 = vpop.f32.mrf.mxu0
      %535 = vmatprep.mubr.bf16.mxu0 %v320
      %536 = vmatmul.mubr.bf16.gmra.mxu0 %v319
      %v537 = vpop.f32.mrf.mxu0
      %v538 = vadd.f32 0.0, %v537
      %v539 = vpop.f32.mrf.mxu0
      %v540 = vpop.f32.mrf.mxu0
      %v541 = vadd.f32 0.0, %v540
      %v542 = vpop.f32.mrf.mxu0
      %543 = vmatprep.mubr.bf16.mxu0 %v322
      %544 = vmatmul.mubr.bf16.gmra.mxu0 %v321
      %v545 = vpop.f32.mrf.mxu0
      %v546 = vadd.f32 0.0, %v545
      %v547 = vpop.f32.mrf.mxu0
      %v548 = vpop.f32.mrf.mxu0
      %v549 = vadd.f32 0.0, %v548
      %v550 = vpop.f32.mrf.mxu0
      %551 = vmatprep.mubr.bf16.mxu0 %v324
      %552 = vmatmul.mubr.bf16.gmra.mxu0 %v323
      %v553 = vpop.f32.mrf.mxu0
      %v554 = vadd.f32 0.0, %v553
      %v555 = vpop.f32.mrf.mxu0
      %v556 = vpop.f32.mrf.mxu0
      %v557 = vadd.f32 0.0, %v556
      %v558 = vpop.f32.mrf.mxu0
      %559 = vmatprep.mubr.bf16.mxu0 %v326
      %560 = vmatmul.mubr.bf16.gmra.mxu0 %v325
      %v561 = vpop.f32.mrf.mxu0
      %v562 = vadd.f32 0.0, %v561
      %v563 = vpop.f32.mrf.mxu0
      %v564 = vpop.f32.mrf.mxu0
      %v565 = vadd.f32 0.0, %v564
      %v566 = vpop.f32.mrf.mxu0
      %567 = vmatprep.mubr.bf16.mxu0 %v328
      %568 = vmatmul.mubr.bf16.gmra.mxu0 %v327
      %v569 = vpop.f32.mrf.mxu0
      %v570 = vadd.f32 0.0, %v569
      %v571 = vpop.f32.mrf.mxu0
      %v572 = vpop.f32.mrf.mxu0
      %v573 = vadd.f32 0.0, %v572
      %v574 = vpop.f32.mrf.mxu0
      %575 = vmatprep.mubr.bf16.mxu0 %v330
      %576 = vmatmul.mubr.bf16.gmra.mxu0 %v329
      %v577 = vpop.f32.mrf.mxu0
      %v578 = vadd.f32 0.0, %v577
      %v579 = vpop.f32.mrf.mxu0
      %v580 = vpop.f32.mrf.mxu0
      %v581 = vadd.f32 0.0, %v580
      %v582 = vpop.f32.mrf.mxu0
      %583 = vmatprep.mubr.bf16.mxu0 %v332
      %584 = vmatmul.mubr.bf16.gmra.mxu0 %v331
      %v585 = vpop.f32.mrf.mxu0
      %v586 = vadd.f32 0.0, %v585
      %v587 = vpop.f32.mrf.mxu0
      %v588 = vpop.f32.mrf.mxu0
      %v589 = vadd.f32 0.0, %v588
      %v590 = vpop.f32.mrf.mxu0
      %591 = vmatprep.mubr.bf16.mxu0 %v334
      %592 = vmatmul.mubr.bf16.gmra.mxu0 %v333
      %v593 = vpop.f32.mrf.mxu0
      %v594 = vadd.f32 0.0, %v593
      %v595 = vpop.f32.mrf.mxu0
      %v596 = vpop.f32.mrf.mxu0
      %v597 = vadd.f32 0.0, %v596
      %v598 = vpop.f32.mrf.mxu0
      %599 = vmatprep.mubr.bf16.mxu0 %v336
      %600 = vmatmul.mubr.bf16.gmra.mxu0 %v335
      %v601 = vpop.f32.mrf.mxu0
      %v602 = vadd.f32 0.0, %v601
      %v603 = vpop.f32.mrf.mxu0
      %v604 = vpop.f32.mrf.mxu0
      %v605 = vadd.f32 0.0, %v604
      %v606 = vpop.f32.mrf.mxu0
      %607 = vmatprep.mubr.bf16.mxu0 %v338
      %608 = vmatmul.mubr.bf16.gmra.mxu0 %v337
      %v609 = vpop.f32.mrf.mxu0
      %v610 = vadd.f32 0.0, %v609
      %v611 = vpop.f32.mrf.mxu0
      %v612 = vpop.f32.mrf.mxu0
      %v613 = vadd.f32 0.0, %v612
      %v614 = vpop.f32.mrf.mxu0
      %615 = vmatprep.mubr.bf16.mxu0 %v340
      %616 = vmatmul.mubr.bf16.gmra.mxu0 %v339
      %v617 = vpop.f32.mrf.mxu0
      %v618 = vadd.f32 0.0, %v617
      %v619 = vpop.f32.mrf.mxu0
      %v620 = vpop.f32.mrf.mxu0
      %v621 = vadd.f32 0.0, %v620
      %v622 = vpop.f32.mrf.mxu0
      %623 = vmatprep.mubr.bf16.mxu0 %v342
      %624 = vmatmul.mubr.bf16.gmra.mxu0 %v341
      %v625 = vpop.f32.mrf.mxu0
      %v626 = vadd.f32 0.0, %v625
      %v627 = vpop.f32.mrf.mxu0
      %v628 = vpop.f32.mrf.mxu0
      %v629 = vadd.f32 0.0, %v628
      %v630 = vpop.f32.mrf.mxu0
      %631 = vdwg.mxu0
      %v632 = vpack.c.bf16 %v509, %v506
      %v633 = vpack.c.bf16 %v517, %v514
      %v634 = vpack.c.bf16 %v525, %v522
      %v635 = vpack.c.bf16 %v533, %v530
      %v636 = vpack.c.bf16 %v541, %v538
      %v637 = vpack.c.bf16 %v549, %v546
      %v638 = vpack.c.bf16 %v557, %v554
      %v639 = vpack.c.bf16 %v565, %v562
      %v640 = vpack.c.bf16 %v573, %v570
      %v641 = vpack.c.bf16 %v581, %v578
      %v642 = vpack.c.bf16 %v589, %v586
      %v643 = vpack.c.bf16 %v597, %v594
      %v644 = vpack.c.bf16 %v605, %v602
      %v645 = vpack.c.bf16 %v613, %v610
      %v646 = vpack.c.bf16 %v621, %v618
      %v647 = vpack.c.bf16 %v629, %v626
      %v664 = vunpack.c.l.b16 %v632
      %v665 = vunpack.c.h.b16 %v632
      %v666 = vunpack.c.l.b16 %v633
      %v667 = vunpack.c.h.b16 %v633
      %v668 = vunpack.c.l.b16 %v634
      %v669 = vunpack.c.h.b16 %v634
      %v670 = vunpack.c.l.b16 %v635
      %v671 = vunpack.c.h.b16 %v635
      %v672 = vunpack.c.l.b16 %v636
      %v673 = vunpack.c.h.b16 %v636
      %v674 = vunpack.c.l.b16 %v637
      %v675 = vunpack.c.h.b16 %v637
      %v676 = vunpack.c.l.b16 %v638
      %v677 = vunpack.c.h.b16 %v638
      %v678 = vunpack.c.l.b16 %v639
      %v679 = vunpack.c.h.b16 %v639
      %v680 = vunpack.c.l.b16 %v640
      %v681 = vunpack.c.h.b16 %v640
      %v682 = vunpack.c.l.b16 %v641
      %v683 = vunpack.c.h.b16 %v641
      %v684 = vunpack.c.l.b16 %v642
      %v685 = vunpack.c.h.b16 %v642
      %v686 = vunpack.c.l.b16 %v643
      %v687 = vunpack.c.h.b16 %v643
      %v688 = vunpack.c.l.b16 %v644
      %v689 = vunpack.c.h.b16 %v644
      %v690 = vunpack.c.l.b16 %v645
      %v691 = vunpack.c.h.b16 %v645
      %v692 = vunpack.c.l.b16 %v646
      %v693 = vunpack.c.h.b16 %v646
      %v694 = vunpack.c.l.b16 %v647
      %v695 = vunpack.c.h.b16 %v647
      %v696 = vpack.c.b16 %v664, %v664
      %v697 = vpack.c.b16 %v665, %v665
      %v698 = vpack.c.b16 %v666, %v666
      %v699 = vpack.c.b16 %v667, %v667
      %v700 = vpack.c.b16 %v668, %v668
      %v701 = vpack.c.b16 %v669, %v669
      %v702 = vpack.c.b16 %v670, %v670
      %v703 = vpack.c.b16 %v671, %v671
      %v704 = vpack.c.b16 %v672, %v672
      %v705 = vpack.c.b16 %v673, %v673
      %v706 = vpack.c.b16 %v674, %v674
      %v707 = vpack.c.b16 %v675, %v675
      %v708 = vpack.c.b16 %v676, %v676
      %v709 = vpack.c.b16 %v677, %v677
      %v710 = vpack.c.b16 %v678, %v678
      %v711 = vpack.c.b16 %v679, %v679
      %v712 = vpack.c.b16 %v680, %v680
      %v713 = vpack.c.b16 %v681, %v681
      %v714 = vpack.c.b16 %v682, %v682
      %v715 = vpack.c.b16 %v683, %v683
      %v716 = vpack.c.b16 %v684, %v684
      %v717 = vpack.c.b16 %v685, %v685
      %v718 = vpack.c.b16 %v686, %v686
      %v719 = vpack.c.b16 %v687, %v687
      %v720 = vpack.c.b16 %v688, %v688
      %v721 = vpack.c.b16 %v689, %v689
      %v722 = vpack.c.b16 %v690, %v690
      %v723 = vpack.c.b16 %v691, %v691
      %v724 = vpack.c.b16 %v692, %v692
      %v725 = vpack.c.b16 %v693, %v693
      %v726 = vpack.c.b16 %v694, %v694
      %v727 = vpack.c.b16 %v695, %v695
      %760 = vst [vmem:[%s148] sm:$0xf] %v696
      %761 = vst [vmem:[%s148 + $0x4] sm:$0xf] %v697
      %762 = vst [vmem:[%s148 + $0x8] sm:$0xf] %v698
      %763 = vst [vmem:[%s148 + $0xc] sm:$0xf] %v699
      %764 = vst [vmem:[%s148 + $0x10] sm:$0xf] %v700
      %765 = vst [vmem:[%s148 + $0x14] sm:$0xf] %v701
      %766 = vst [vmem:[%s148 + $0x18] sm:$0xf] %v702
      %767 = vst [vmem:[%s148 + $0x1c] sm:$0xf] %v703
      %768 = vst [vmem:[%s148 + $0x20] sm:$0xf] %v704
      %769 = vst [vmem:[%s148 + $0x24] sm:$0xf] %v705
      %770 = vst [vmem:[%s148 + $0x28] sm:$0xf] %v706
      %771 = vst [vmem:[%s148 + $0x2c] sm:$0xf] %v707
      %772 = vst [vmem:[%s148 + $0x30] sm:$0xf] %v708
      %773 = vst [vmem:[%s148 + $0x34] sm:$0xf] %v709
      %774 = vst [vmem:[%s148 + $0x38] sm:$0xf] %v710
      %775 = vst [vmem:[%s148 + $0x3c] sm:$0xf] %v711
      %776 = vst [vmem:[%s148 + $0x40] sm:$0xf] %v712
      %777 = vst [vmem:[%s148 + $0x44] sm:$0xf] %v713
      %778 = vst [vmem:[%s148 + $0x48] sm:$0xf] %v714
      %779 = vst [vmem:[%s148 + $0x4c] sm:$0xf] %v715
      %780 = vst [vmem:[%s148 + $0x50] sm:$0xf] %v716
      %781 = vst [vmem:[%s148 + $0x54] sm:$0xf] %v717
      %782 = vst [vmem:[%s148 + $0x58] sm:$0xf] %v718
      %783 = vst [vmem:[%s148 + $0x5c] sm:$0xf] %v719
      %784 = vst [vmem:[%s148 + $0x60] sm:$0xf] %v720
      %785 = vst [vmem:[%s148 + $0x64] sm:$0xf] %v721
      %786 = vst [vmem:[%s148 + $0x68] sm:$0xf] %v722
      %787 = vst [vmem:[%s148 + $0x6c] sm:$0xf] %v723
      %788 = vst [vmem:[%s148 + $0x70] sm:$0xf] %v724
      %789 = vst [vmem:[%s148 + $0x74] sm:$0xf] %v725
      %790 = vst [vmem:[%s148 + $0x78] sm:$0xf] %v726
      %791 = vst [vmem:[%s148 + $0x7c] sm:$0xf] %v727
      %s792 = smul.u32 32, %s13
      %p793 = scmp.lt.s32.totalorder %s792, 63
      %s794 = scalar_select %p793, %s792, 63
      %s795 = smul.addr %s794, 4
      %s796 = scalar_lea.vmem %s2, %s795
      // Predicated region
      $region29: #{gcn_forward.19} parent=27 // pred_check
        %p797 = pneg %p78
      $region30: #{gcn_forward.19} parent=27 // pred_check_branch
        %799 = sbr.rel (%p797) target = $region32
      $region31: #{gcn_forward.19} parent=27 // pred_region
        %s800 = smul.u32 32, %s13
      $region32: #{gcn_forward.19} parent=27 // pred_fallthru
        _
    $region28: #{gcn_forward.19} parent=5 // pred_fallthru
      _
    %p801 = scmp.le.s32.totalorder 2, %s8
    // Predicated region
    $region33: #{gcn_forward.19} parent=5 // pred_check
      %p802 = pneg %p801
    $region34: #{gcn_forward.19} parent=5 // pred_check_branch
      %804 = sbr.rel (%p802) target = $region36
    $region35: #{gcn_forward.19} parent=5 // pred_region
      %s805 = ssub.s32 %s8, 2
      // Predicated region
      $region37: #{gcn_forward.19} parent=35 // pred_check
        %p806 = pneg %p84
      $region38: #{gcn_forward.19} parent=35 // pred_check_branch
        %808 = sbr.rel (%p806) target = $region40
      $region39: #{gcn_forward.19} parent=35 // pred_region
        %s809 = smul.u32 32, %s14
        %p810 = scmp.lt.s32.totalorder %s809, 63
        %s811 = scalar_select %p810, %s809, 63
        %s812 = smul.addr %s811, 4
        %s813 = scalar_lea.vmem %s2, %s812
      $region40: #{gcn_forward.19} parent=35 // pred_fallthru
        _
    $region36: #{gcn_forward.19} parent=5 // pred_fallthru
      _
  $region6: #{gcn_forward.19} parent=0 // loop_footer
    %s12 = sadd.s32 1, %s8
  $region7: #{gcn_forward.19} parent=0 // loop_footer_branch
    %7 = sbr.rel target = $region3
  $region8: #{gcn_forward.19} parent=0 // loop_exit
    _

// kernel: gcn_forward.15
$region0: #{gcn_forward.15}
  #allocation0 [shape = 'u32[]', space=smem, size = 0x4, offset = 0x4, fixed_abs, tag = 'smem constant byte address 0x4 - core index']
  #allocation1 [shape = 'u32[144,128]{1,0:T(1,128)}', space=vmem, size = 0x12000, scoped, tag = 'internal scratch']
  #allocation2 [shape = 'f32[256,128]{1,0:T(8,128)}', space=vmem, size = 0x20000, scoped, tag = 'scratch operand']
  %s0 = inlined_call_operand.vmem [shape: bf16[512,512], index: 0, kind: input, shape index: {}]
  %s1 = inlined_call_operand.vmem [shape: bf16[512,128], index: 1, kind: input, shape index: {}]
  %s2 = inlined_call_operand.vmem [shape: bf16[128,256], index: 2, kind: input, shape index: {}]
  %s3 = inlined_call_operand.vmem [shape: f32[512,256], index: 3, kind: output, shape index: {0}]
  %s4 = inlined_call_operand.vmem [shape: f32[2,8,256], index: 4, kind: output, shape index: {1}]
  %5 = xla_tuple %s3, %s4
  %s6 = sld [smem:[#allocation0]]
  $region99: #{gcn_forward.15} parent=0
    _
  %s8 = ssub.s32 1, %s6
  %s9 = scalar_select 0, %s8, %s6
  $region1: #{gcn_forward.15} parent=0
    #allocation3 [shape = 'u8[262144]{0}', space=vmem, size = 0x40000, scoped, tag = 'input window, operand 0']
    loop: start=0, step=1, limit=6
    $region2: #{gcn_forward.15} parent=1 // loop_pre_header
      _
    $region3: #{gcn_forward.15} parent=1 // loop_header
      %s11 = sphi 0, %s15
      %p12 = scmp.ge.s32.totalorder %s11, 6
      %s18 = sphi 0, %s30
      %s19 = sphi 0, %s26
      %s20 = sphi 0, %s18
      %s21 = sphi 0, %s19
      %s22 = sphi 0, %s20
      %s23 = sphi 0, %s21
      %s35 = sphi 0, %s37
      %s38 = sphi 0, %s35
      %s39 = sphi 0, %s38
      %s55 = sphi 0, %s39
      %s61 = sphi 0, %s63
      %s64 = sphi 0, %s61
      %s65 = sphi 0, %s64
      %s81 = sphi 0, %s65
      %s85 = sphi 0, %s85
      %s87 = sphi 0, %s85
      %s88 = sphi 0, %s87
      %s102 = sphi 0, %s88
      %s108 = sphi 0, %s110
      %s111 = sphi 0, %s108
      %s112 = sphi 0, %s111
      %s128 = sphi 0, %s112
      %s134 = sphi 0, %s136
      %s137 = sphi 0, %s134
      %s138 = sphi 0, %s137
      %s154 = sphi 0, %s138
    $region4: #{gcn_forward.15} parent=1 // loop_header_branch
      %14 = sbr.rel (%p12) target = $region8
    $region5: #{gcn_forward.15} parent=1 // loop_body
      %s16 = ssub.s32 %s11, 1
      %s17 = ssub.s32 %s11, 2
      %s24 = sadd.s32 1, %s19
      %p25 = scmp.ge.s32.totalorder %s24, 2
      %s26 = scalar_select %p25, 0, %s24
      %s27 = sadd.s32 1, %s18
      %s28 = scalar_select %p25, %s27, %s18
      %p29 = scmp.ge.s32.totalorder %s28, 2
      %s30 = scalar_select %p29, 0, %s28
      %s31 = ssub.s32 %s18, %s30
      %s32 = ssub.s32 %s19, %s26
      %s33 = sor.u32 %s31, %s32
      %p34 = scmp.eq.s32.totalorder %s33, 0
      %s36 = sadd.s32 %s35, 1
      %s37 = scalar_select %p34, %s35, %s36
      %p40 = pneg %p34
      %p41 = scmp.eq.s32.totalorder %s11, 3
      %p42 = por %p40, %p41
      %p43 = scmp.ne.s32.totalorder %s35, %s38
      %p44 = scmp.eq.s32.totalorder %s11, 0
      %p45 = por %p43, %p44
      %p46 = scmp.ne.s32.totalorder %s35, %s38
      %p47 = scmp.eq.s32.totalorder %s16, 3
      %p48 = por %p46, %p47
      %p49 = scmp.ne.s32.totalorder %s38, %s39
      %p50 = scmp.eq.s32.totalorder %s16, 0
      %p51 = por %p49, %p50
      %p52 = scmp.ne.s32.totalorder %s38, %s39
      %p53 = scmp.eq.s32.totalorder %s17, 3
      %p54 = por %p52, %p53
      %p56 = scmp.ne.s32.totalorder %s39, %s55
      %p57 = scmp.eq.s32.totalorder %s17, 0
      %p58 = por %p56, %p57
      %s59 = ssub.s32 %s19, %s26
      %p60 = scmp.eq.s32.totalorder %s59, 0
      %s62 = sadd.s32 %s61, 1
      %s63 = scalar_select %p60, %s61, %s62
      %p66 = pneg %p60
      %p67 = scmp.eq.s32.totalorder %s11, 3
      %p68 = por %p66, %p67
      %p69 = scmp.ne.s32.totalorder %s61, %s64
      %p70 = scmp.eq.s32.totalorder %s11, 0
      %p71 = por %p69, %p70
      %p72 = scmp.ne.s32.totalorder %s61, %s64
      %p73 = scmp.eq.s32.totalorder %s16, 3
      %p74 = por %p72, %p73
      %p75 = scmp.ne.s32.totalorder %s64, %s65
      %p76 = scmp.eq.s32.totalorder %s16, 0
      %p77 = por %p75, %p76
      %p78 = scmp.ne.s32.totalorder %s64, %s65
      %p79 = scmp.eq.s32.totalorder %s17, 3
      %p80 = por %p78, %p79
      %p82 = scmp.ne.s32.totalorder %s65, %s81
      %p83 = scmp.eq.s32.totalorder %s17, 0
      %p84 = por %p82, %p83
      %s86 = sadd.s32 %s85, 1
      %p89 = scmp.eq.s32.totalorder %s11, 3
      %p90 = scmp.ne.s32.totalorder %s85, %s87
      %p91 = scmp.eq.s32.totalorder %s11, 0
      %p92 = por %p90, %p91
      %p93 = scmp.ne.s32.totalorder %s85, %s87
      %p94 = scmp.eq.s32.totalorder %s16, 3
      %p95 = por %p93, %p94
      %p96 = scmp.ne.s32.totalorder %s87, %s88
      %p97 = scmp.eq.s32.totalorder %s16, 0
      %p98 = por %p96, %p97
      %p99 = scmp.ne.s32.totalorder %s87, %s88
      %p100 = scmp.eq.s32.totalorder %s17, 3
      %p101 = por %p99, %p100
      %p103 = scmp.ne.s32.totalorder %s88, %s102
      %p104 = scmp.eq.s32.totalorder %s17, 0
      %p105 = por %p103, %p104
      %s106 = ssub.s32 %s18, %s30
      %p107 = scmp.eq.s32.totalorder %s106, 0
      %s109 = sadd.s32 %s108, 1
      %s110 = scalar_select %p107, %s108, %s109
      %p113 = pneg %p107
      %p114 = scmp.eq.s32.totalorder %s11, 3
      %p115 = por %p113, %p114
      %p116 = scmp.ne.s32.totalorder %s108, %s111
      %p117 = scmp.eq.s32.totalorder %s11, 0
      %p118 = por %p116, %p117
      %p119 = scmp.ne.s32.totalorder %s108, %s111
      %p120 = scmp.eq.s32.totalorder %s16, 3
      %p121 = por %p119, %p120
      %p122 = scmp.ne.s32.totalorder %s111, %s112
      %p123 = scmp.eq.s32.totalorder %s16, 0
      %p124 = por %p122, %p123
      %p125 = scmp.ne.s32.totalorder %s111, %s112
      %p126 = scmp.eq.s32.totalorder %s17, 3
      %p127 = por %p125, %p126
      %p129 = scmp.ne.s32.totalorder %s112, %s128
      %p130 = scmp.eq.s32.totalorder %s17, 0
      %p131 = por %p129, %p130
      %s132 = ssub.s32 %s18, %s30
      %p133 = scmp.eq.s32.totalorder %s132, 0
      %s135 = sadd.s32 %s134, 1
      %s136 = scalar_select %p133, %s134, %s135
      %p139 = pneg %p133
      %p140 = scmp.eq.s32.totalorder %s11, 3
      %p141 = por %p139, %p140
      %p142 = scmp.ne.s32.totalorder %s134, %s137
      %p143 = scmp.eq.s32.totalorder %s11, 0
      %p144 = por %p142, %p143
      %p145 = scmp.ne.s32.totalorder %s134, %s137
      %p146 = scmp.eq.s32.totalorder %s16, 3
      %p147 = por %p145, %p146
      %p148 = scmp.ne.s32.totalorder %s137, %s138
      %p149 = scmp.eq.s32.totalorder %s16, 0
      %p150 = por %p148, %p149
      %p151 = scmp.ne.s32.totalorder %s137, %s138
      %p152 = scmp.eq.s32.totalorder %s17, 3
      %p153 = por %p151, %p152
      %p155 = scmp.ne.s32.totalorder %s138, %s154
      %p156 = scmp.eq.s32.totalorder %s17, 0
      %p157 = por %p155, %p156
      %p158 = scmp.le.s32.totalorder 1, %s11
      %p159 = scmp.lt.s32.totalorder %s11, 5
      %p160 = pnand %p158, %p159
      %p161 = pneg %p160
      // Predicated region
      $region9: #{gcn_forward.15} parent=5 // pred_check
        _
      $region10: #{gcn_forward.15} parent=5 // pred_check_branch
        %163 = sbr.rel (%p160) target = $region12
      $region11: #{gcn_forward.15} parent=5 // pred_region
        %s164 = ssub.s32 %s11, 1
        // Predicated region
        $region13: #{gcn_forward.15} parent=11 // pred_check
          %p165 = pneg %p98
        $region14: #{gcn_forward.15} parent=11 // pred_check_branch
          %167 = sbr.rel (%p165) target = $region16
        $region15: #{gcn_forward.15} parent=11 // pred_region
          _
        $region16: #{gcn_forward.15} parent=11 // pred_fallthru
          _
      $region12: #{gcn_forward.15} parent=5 // pred_fallthru
        _
      %p168 = scmp.lt.s32.totalorder %s11, 4
      // Predicated region
      $region17: #{gcn_forward.15} parent=5 // pred_check
        %p169 = pneg %p168
      $region18: #{gcn_forward.15} parent=5 // pred_check_branch
        %171 = sbr.rel (%p169) target = $region20
      $region19: #{gcn_forward.15} parent=5 // pred_region
        // Predicated region
        $region21: #{gcn_forward.15} parent=19 // pred_check
          %p172 = pneg %p45
        $region22: #{gcn_forward.15} parent=19 // pred_check_branch
          %174 = sbr.rel (%p172) target = $region24
        $region23: #{gcn_forward.15} parent=19 // pred_region
          %s175 = sand.u32 %s35, 1
          %s176 = sand.u32 %s35, 1
          %s177 = smul.addr %s176, 256
          %s178 = scalar_lea.vmem [#allocation3], %s177
          %s179 = smul.u32 32, %s18
          %s180 = smul.u32 2, %s19
          %s181 = smul.addr %s179, 4
          %s182 = sadd.s32 %s180, %s181
          %s183 = smul.addr %s182, 4
          %s184 = scalar_lea.vmem %s0, %s183
          // Predicated region
          $region25: #{gcn_forward.15} parent=23 // pred_check
            _
          $region26: #{gcn_forward.15} parent=23 // pred_check_branch
            %186 = sbr.rel (0) target = $region28
          $region27: #{gcn_forward.15} parent=23 // pred_region
            // Predicated region
            $region29: #{gcn_forward.15} parent=27 // pred_check
              _
            $region30: #{gcn_forward.15} parent=27 // pred_check_branch
              %188 = sbr.rel (0) target = $region32
            $region31: #{gcn_forward.15} parent=27 // pred_region
              // Predicated region
              $region44: #{gcn_forward.15} parent=31 // pred_check
                _
              $region45: #{gcn_forward.15} parent=31 // pred_check_branch
                %266 = sbr.rel (0) target = $region47
              $region46: #{gcn_forward.15} parent=31 // pred_region
                loop: start=0, step=1, limit=1
                $region48: #{gcn_forward.15} parent=46 // loop_pre_header
                  _
                $region49: #{gcn_forward.15} parent=46 // loop_header
                  %s268 = sphi 0, %s272
                  %p269 = scmp.ge.s32.totalorder %s268, 1
                  %s273 = sphi %s184, %s184
                  %s274 = sphi %s178, %s178
                $region50: #{gcn_forward.15} parent=46 // loop_header_branch
                  %271 = sbr.rel (%p269) target = $region54
                $region51: #{gcn_forward.15} parent=46 // loop_body
                  %v275 = vld [vmem:[%s273] sm:$0xff]
                  %276 = vst [vmem:[%s274] sm:$0xff] %v275
                  %v277 = vld [vmem:[%s273 + $0x10] sm:$0xff]
                  %278 = vst [vmem:[%s274 + $0x8] sm:$0xff] %v277
                  %v279 = vld [vmem:[%s273 + $0x20] sm:$0xff]
                  %280 = vst [vmem:[%s274 + $0x10] sm:$0xff] %v279
                  %v281 = vld [vmem:[%s273 + $0x30] sm:$0xff]
                  %282 = vst [vmem:[%s274 + $0x18] sm:$0xff] %v281
                  %v283 = vld [vmem:[%s273 + $0x40] sm:$0xff]
                  %284 = vst [vmem:[%s274 + $0x20] sm:$0xff] %v283
                  %v285 = vld [vmem:[%s273 + $0x50] sm:$0xff]
                  %286 = vst [vmem:[%s274 + $0x28] sm:$0xff] %v285
                  %v287 = vld [vmem:[%s273 + $0x60] sm:$0xff]
                  %288 = vst [vmem:[%s274 + $0x30] sm:$0xff] %v287
                  %v289 = vld [vmem:[%s273 + $0x70] sm:$0xff]
                  %290 = vst [vmem:[%s274 + $0x38] sm:$0xff] %v289
                  %v291 = vld [vmem:[%s273 + $0x80] sm:$0xff]
                  %292 = vst [vmem:[%s274 + $0x40] sm:$0xff] %v291
                  %v293 = vld [vmem:[%s273 + $0x90] sm:$0xff]
                  %294 = vst [vmem:[%s274 + $0x48] sm:$0xff] %v293
                  %v295 = vld [vmem:[%s273 + $0xa0] sm:$0xff]
                  %296 = vst [vmem:[%s274 + $0x50] sm:$0xff] %v295
                  %v297 = vld [vmem:[%s273 + $0xb0] sm:$0xff]
                  %298 = vst [vmem:[%s274 + $0x58] sm:$0xff] %v297
                  %v299 = vld [vmem:[%s273 + $0xc0] sm:$0xff]
                  %300 = vst [vmem:[%s274 + $0x60] sm:$0xff] %v299
                  %v301 = vld [vmem:[%s273 + $0xd0] sm:$0xff]
                  %302 = vst [vmem:[%s274 + $0x68] sm:$0xff] %v301
                  %v303 = vld [vmem:[%s273 + $0xe0] sm:$0xff]
                  %304 = vst [vmem:[%s274 + $0x70] sm:$0xff] %v303
                  %v305 = vld [vmem:[%s273 + $0xf0] sm:$0xff]
                  %306 = vst [vmem:[%s274 + $0x78] sm:$0xff] %v305
                  %v307 = vld [vmem:[%s273 + $0x100] sm:$0xff]
                  %308 = vst [vmem:[%s274 + $0x80] sm:$0xff] %v307
                  %v309 = vld [vmem:[%s273 + $0x110] sm:$0xff]
                  %310 = vst [vmem:[%s274 + $0x88] sm:$0xff] %v309
                  %v311 = vld [vmem:[%s273 + $0x120] sm:$0xff]
                  %312 = vst [vmem:[%s274 + $0x90] sm:$0xff] %v311
                  %v313 = vld [vmem:[%s273 + $0x130] sm:$0xff]
                  %314 = vst [vmem:[%s274 + $0x98] sm:$0xff] %v313
                  %v315 = vld [vmem:[%s273 + $0x140] sm:$0xff]
                  %316 = vst [vmem:[%s274 + $0xa0] sm:$0xff] %v315
                  %v317 = vld [vmem:[%s273 + $0x150] sm:$0xff]
                  %318 = vst [vmem:[%s274 + $0xa8] sm:$0xff] %v317
                  %v319 = vld [vmem:[%s273 + $0x160] sm:$0xff]
                  %320 = vst [vmem:[%s274 + $0xb0] sm:$0xff] %v319
                  %v321 = vld [vmem:[%s273 + $0x170] sm:$0xff]
                  %322 = vst [vmem:[%s274 + $0xb8] sm:$0xff] %v321
                  %v323 = vld [vmem:[%s273 + $0x180] sm:$0xff]
                  %324 = vst [vmem:[%s274 + $0xc0] sm:$0xff] %v323
                  %v325 = vld [vmem:[%s273 + $0x190] sm:$0xff]
                  %326 = vst [vmem:[%s274 + $0xc8] sm:$0xff] %v325
                  %v327 = vld [vmem:[%s273 + $0x1a0] sm:$0xff]
                  %328 = vst [vmem:[%s274 + $0xd0] sm:$0xff] %v327
                  %v329 = vld [vmem:[%s273 + $0x1b0] sm:$0xff]
                  %330 = vst [vmem:[%s274 + $0xd8] sm:$0xff] %v329
                  %v331 = vld [vmem:[%s273 + $0x1c0] sm:$0xff]
                  %332 = vst [vmem:[%s274 + $0xe0] sm:$0xff] %v331
                  %v333 = vld [vmem:[%s273 + $0x1d0] sm:$0xff]
                  %334 = vst [vmem:[%s274 + $0xe8] sm:$0xff] %v333
                  %v335 = vld [vmem:[%s273 + $0x1e0] sm:$0xff]
                  %336 = vst [vmem:[%s274 + $0xf0] sm:$0xff] %v335
                  %v337 = vld [vmem:[%s273 + $0x1f0] sm:$0xff]
                  %338 = vst [vmem:[%s274 + $0xf8] sm:$0xff] %v337
                $region52: #{gcn_forward.15} parent=46 // loop_footer
                  %s272 = sadd.s32 1, %s268
                $region53: #{gcn_forward.15} parent=46 // loop_footer_branch
                  %267 = sbr.rel target = $region49
                $region54: #{gcn_forward.15} parent=46 // loop_exit
                  _
              $region47: #{gcn_forward.15} parent=31 // pred_fallthru
                _
              // Predicated region
              $region55: #{gcn_forward.15} parent=31 // pred_check
                _
              $region56: #{gcn_forward.15} parent=31 // pred_check_branch
                %340 = sbr.rel target = $region58
              $region57: #{gcn_forward.15} parent=31 // pred_region
                _
              $region58: #{gcn_forward.15} parent=31 // pred_fallthru
                _
            $region32: #{gcn_forward.15} parent=27 // pred_fallthru
              _
            // Predicated region
            $region33: #{gcn_forward.15} parent=27 // pred_check
              _
            $region34: #{gcn_forward.15} parent=27 // pred_check_branch
              %190 = sbr.rel target = $region36
            $region35: #{gcn_forward.15} parent=27 // pred_region
              %s192 = ssub.s32 256, 1
              loop: start=0, step=1, limit=1
              $region37: #{gcn_forward.15} parent=35 // loop_pre_header
                _
              $region38: #{gcn_forward.15} parent=35 // loop_header
                %s194 = sphi 0, %s198
                %p195 = scmp.ge.s32.totalorder %s194, 1
                %s199 = sphi %s184, %s184
                %s200 = sphi %s178, %s178
              $region39: #{gcn_forward.15} parent=35 // loop_header_branch
                %197 = sbr.rel (%p195) target = $region43
              $region40: #{gcn_forward.15} parent=35 // loop_body
                %v201 = vld [vmem:[%s199] sm:%s192]
                %202 = vst [vmem:[%s200] sm:%s192] %v201
                %v203 = vld [vmem:[%s199 + $0x10] sm:%s192]
                %204 = vst [vmem:[%s200 + $0x8] sm:%s192] %v203
                %v205 = vld [vmem:[%s199 + $0x20] sm:%s192]
                %206 = vst [vmem:[%s200 + $0x10] sm:%s192] %v205
                %v207 = vld [vmem:[%s199 + $0x30] sm:%s192]
                %208 = vst [vmem:[%s200 + $0x18] sm:%s192] %v207
                %v209 = vld [vmem:[%s199 + $0x40] sm:%s192]
                %210 = vst [vmem:[%s200 + $0x20] sm:%s192] %v209
                %v211 = vld [vmem:[%s199 + $0x50] sm:%s192]
                %212 = vst [vmem:[%s200 + $0x28] sm:%s192] %v211
                %v213 = vld [vmem:[%s199 + $0x60] sm:%s192]
                %214 = vst [vmem:[%s200 + $0x30] sm:%s192] %v213
                %v215 = vld [vmem:[%s199 + $0x70] sm:%s192]
                %216 = vst [vmem:[%s200 + $0x38] sm:%s192] %v215
                %v217 = vld [vmem:[%s199 + $0x80] sm:%s192]
                %218 = vst [vmem:[%s200 + $0x40] sm:%s192] %v217
                %v219 = vld [vmem:[%s199 + $0x90] sm:%s192]
                %220 = vst [vmem:[%s200 + $0x48] sm:%s192] %v219
                %v221 = vld [vmem:[%s199 + $0xa0] sm:%s192]
                %222 = vst [vmem:[%s200 + $0x50] sm:%s192] %v221
                %v223 = vld [vmem:[%s199 + $0xb0] sm:%s192]
                %224 = vst [vmem:[%s200 + $0x58] sm:%s192] %v223
                %v225 = vld [vmem:[%s199 + $0xc0] sm:%s192]
                %226 = vst [vmem:[%s200 + $0x60] sm:%s192] %v225
                %v227 = vld [vmem:[%s199 + $0xd0] sm:%s192]
                %228 = vst [vmem:[%s200 + $0x68] sm:%s192] %v227
                %v229 = vld [vmem:[%s199 + $0xe0] sm:%s192]
                %230 = vst [vmem:[%s200 + $0x70] sm:%s192] %v229
                %v231 = vld [vmem:[%s199 + $0xf0] sm:%s192]
                %232 = vst [vmem:[%s200 + $0x78] sm:%s192] %v231
                %v233 = vld [vmem:[%s199 + $0x100] sm:%s192]
                %234 = vst [vmem:[%s200 + $0x80] sm:%s192] %v233
                %v235 = vld [vmem:[%s199 + $0x110] sm:%s192]
                %236 = vst [vmem:[%s200 + $0x88] sm:%s192] %v235
                %v237 = vld [vmem:[%s199 + $0x120] sm:%s192]
                %238 = vst [vmem:[%s200 + $0x90] sm:%s192] %v237
                %v239 = vld [vmem:[%s199 + $0x130] sm:%s192]
                %240 = vst [vmem:[%s200 + $0x98] sm:%s192] %v239
                %v241 = vld [vmem:[%s199 + $0x140] sm:%s192]
                %242 = vst [vmem:[%s200 + $0xa0] sm:%s192] %v241
                %v243 = vld [vmem:[%s199 + $0x150] sm:%s192]
                %244 = vst [vmem:[%s200 + $0xa8] sm:%s192] %v243
                %v245 = vld [vmem:[%s199 + $0x160] sm:%s192]
                %246 = vst [vmem:[%s200 + $0xb0] sm:%s192] %v245
                %v247 = vld [vmem:[%s199 + $0x170] sm:%s192]
                %248 = vst [vmem:[%s200 + $0xb8] sm:%s192] %v247
                %v249 = vld [vmem:[%s199 + $0x180] sm:%s192]
                %250 = vst [vmem:[%s200 + $0xc0] sm:%s192] %v249
                %v251 = vld [vmem:[%s199 + $0x190] sm:%s192]
                %252 = vst [vmem:[%s200 + $0xc8] sm:%s192] %v251
                %v253 = vld [vmem:[%s199 + $0x1a0] sm:%s192]
                %254 = vst [vmem:[%s200 + $0xd0] sm:%s192] %v253
                %v255 = vld [vmem:[%s199 + $0x1b0] sm:%s192]
                %256 = vst [vmem:[%s200 + $0xd8] sm:%s192] %v255
                %v257 = vld [vmem:[%s199 + $0x1c0] sm:%s192]
                %258 = vst [vmem:[%s200 + $0xe0] sm:%s192] %v257
                %v259 = vld [vmem:[%s199 + $0x1d0] sm:%s192]
                %260 = vst [vmem:[%s200 + $0xe8] sm:%s192] %v259
                %v261 = vld [vmem:[%s199 + $0x1e0] sm:%s192]
                %262 = vst [vmem:[%s200 + $0xf0] sm:%s192] %v261
                %v263 = vld [vmem:[%s199 + $0x1f0] sm:%s192]
                %264 = vst [vmem:[%s200 + $0xf8] sm:%s192] %v263
              $region41: #{gcn_forward.15} parent=35 // loop_footer
                %s198 = sadd.s32 1, %s194
              $region42: #{gcn_forward.15} parent=35 // loop_footer_branch
                %193 = sbr.rel target = $region38
              $region43: #{gcn_forward.15} parent=35 // loop_exit
                _
            $region36: #{gcn_forward.15} parent=27 // pred_fallthru
              _
          $region28: #{gcn_forward.15} parent=23 // pred_fallthru
            _
          %341 = vnop
        $region24: #{gcn_forward.15} parent=19 // pred_fallthru
          _
        // Predicated region
        $region59: #{gcn_forward.15} parent=19 // pred_check
          %p342 = pneg %p71
        $region60: #{gcn_forward.15} parent=19 // pred_check_branch
          %344 = sbr.rel (%p342) target = $region62
        $region61: #{gcn_forward.15} parent=19 // pred_region
          %s345 = smul.u32 32, %s19
          %p346 = scmp.lt.s32.totalorder %s345, 63
          %s347 = scalar_select %p346, %s345, 63
          %s348 = smul.addr %s347, 4
          %s349 = scalar_lea.vmem %s1, %s348
          %s350 = smul.u32 32, %s19
        $region62: #{gcn_forward.15} parent=19 // pred_fallthru
          _
      $region20: #{gcn_forward.15} parent=5 // pred_fallthru
        _
      %p351 = scmp.le.s32.totalorder 1, %s11
      %p352 = scmp.lt.s32.totalorder %s11, 5
      %p353 = pnand %p351, %p352
      %p354 = pneg %p353
      // Predicated region
      $region63: #{gcn_forward.15} parent=5 // pred_check
        _
      $region64: #{gcn_forward.15} parent=5 // pred_check_branch
        %356 = sbr.rel (%p353) target = $region66
      $region65: #{gcn_forward.15} parent=5 // pred_region
        %s357 = ssub.s32 %s11, 1
        %s358 = sand.u32 %s38, 1
        %s359 = sand.u32 %s38, 1
        %s360 = smul.addr %s359, 256
        %s361 = scalar_lea.vmem [#allocation3], %s360
        // Predicated region
        $region67: #{gcn_forward.15} parent=65 // pred_check
          %p362 = pneg %p51
        $region68: #{gcn_forward.15} parent=65 // pred_check_branch
          %364 = sbr.rel (%p362) target = $region70
        $region69: #{gcn_forward.15} parent=65 // pred_region
          _
        $region70: #{gcn_forward.15} parent=65 // pred_fallthru
          _
        %s365 = sand.u32 %s38, 1
        %s366 = sand.u32 %s38, 1
        %s367 = smul.addr %s366, 256
        %s368 = scalar_lea.vmem [#allocation3], %s367
        %p369 = pneg %p51
        %p370 = pneg %p48
        %s371 = smul.u32 32, %s21
        %p372 = scmp.lt.s32.totalorder %s371, 63
        %s373 = scalar_select %p372, %s371, 63
        %s374 = smul.addr %s373, 4
        %s375 = scalar_lea.vmem %s1, %s374
        %p376 = pneg %p77
        %p377 = pneg %p74
        %p378 = pneg %p98
        %p379 = pneg %p95
        %p380 = pneg %p124
        %p381 = pneg %p121
        %s382 = smul.u32 32, %s20
        %p383 = scmp.lt.s32.totalorder %s382, 63
        %s384 = scalar_select %p383, %s382, 63
        %s385 = smul.addr %s384, 2
        %s386 = smul.addr %s385, 8
        %s387 = scalar_lea.vmem %s3, %s386
        %p388 = pneg %p150
        %p389 = pneg %p147
        %p390 = scmp.lt.s32.totalorder %s20, 1
        %s391 = scalar_select %p390, %s20, 1
        %s392 = smul.addr %s391, 2
        %s393 = smul.addr %s392, 8
        %s394 = scalar_lea.vmem %s4, %s393
        %s395 = smul.u32 32, %s20
        %s396 = smul.u32 2, %s21
        %s397 = smul.u32 32, %s21
        %p398 = scmp.lt.s32.totalorder %s397, 63
        %s399 = scalar_select %p398, %s397, 63
        %s400 = smul.addr %s399, 4
        %s401 = scalar_lea.vmem %s1, %s400
        %s402 = smul.u32 32, %s21
        %s403 = smul.u32 32, %s20
        %p404 = scmp.lt.s32.totalorder %s403, 63
        %s405 = scalar_select %p404, %s403, 63
        %s406 = smul.addr %s405, 2
        %s407 = smul.addr %s406, 8
        %s408 = scalar_lea.vmem %s3, %s407
        %s409 = smul.u32 32, %s20
        %p410 = scmp.lt.s32.totalorder %s20, 1
        %s411 = scalar_select %p410, %s20, 1
        %s412 = smul.addr %s411, 2
        %s413 = smul.addr %s412, 8
        %s414 = scalar_lea.vmem %s4, %s413
        %p416 = scmp.eq.s32.totalorder %s21, 0
        // Predicated region
        $region71: #{gcn_forward.15} parent=65 // pred_check
          %p417 = pneg %p416
        $region72: #{gcn_forward.15} parent=65 // pred_check_branch
          %419 = sbr.rel (%p417) target = $region74
        $region73: #{gcn_forward.15} parent=65 // pred_region
          %420 = vst [vmem:[#allocation2] sm:$0xff] 0.0
          %421 = vst [vmem:[#allocation2 + $0x8] sm:$0xff] 0.0
          %422 = vst [vmem:[#allocation2 + $0x10] sm:$0xff] 0.0
          %423 = vst [vmem:[#allocation2 + $0x18] sm:$0xff] 0.0
          %424 = vst [vmem:[#allocation2 + $0x20] sm:$0xff] 0.0
          %425 = vst [vmem:[#allocation2 + $0x28] sm:$0xff] 0.0
          %426 = vst [vmem:[#allocation2 + $0x30] sm:$0xff] 0.0
          %427 = vst [vmem:[#allocation2 + $0x38] sm:$0xff] 0.0
          %428 = vst [vmem:[#allocation2 + $0x40] sm:$0xff] 0.0
          %429 = vst [vmem:[#allocation2 + $0x48] sm:$0xff] 0.0
          %430 = vst [vmem:[#allocation2 + $0x50] sm:$0xff] 0.0
          %431 = vst [vmem:[#allocation2 + $0x58] sm:$0xff] 0.0
          %432 = vst [vmem:[#allocation2 + $0x60] sm:$0xff] 0.0
          %433 = vst [vmem:[#allocation2 + $0x68] sm:$0xff] 0.0
          %434 = vst [vmem:[#allocation2 + $0x70] sm:$0xff] 0.0
          %435 = vst [vmem:[#allocation2 + $0x78] sm:$0xff] 0.0
          %436 = vst [vmem:[#allocation2 + $0x80] sm:$0xff] 0.0
          %437 = vst [vmem:[#allocation2 + $0x88] sm:$0xff] 0.0
          %438 = vst [vmem:[#allocation2 + $0x90] sm:$0xff] 0.0
          %439 = vst [vmem:[#allocation2 + $0x98] sm:$0xff] 0.0
          %440 = vst [vmem:[#allocation2 + $0xa0] sm:$0xff] 0.0
          %441 = vst [vmem:[#allocation2 + $0xa8] sm:$0xff] 0.0
          %442 = vst [vmem:[#allocation2 + $0xb0] sm:$0xff] 0.0
          %443 = vst [vmem:[#allocation2 + $0xb8] sm:$0xff] 0.0
          %444 = vst [vmem:[#allocation2 + $0xc0] sm:$0xff] 0.0
          %445 = vst [vmem:[#allocation2 + $0xc8] sm:$0xff] 0.0
          %446 = vst [vmem:[#allocation2 + $0xd0] sm:$0xff] 0.0
          %447 = vst [vmem:[#allocation2 + $0xd8] sm:$0xff] 0.0
          %448 = vst [vmem:[#allocation2 + $0xe0] sm:$0xff] 0.0
          %449 = vst [vmem:[#allocation2 + $0xe8] sm:$0xff] 0.0
          %450 = vst [vmem:[#allocation2 + $0xf0] sm:$0xff] 0.0
          %451 = vst [vmem:[#allocation2 + $0xf8] sm:$0xff] 0.0
        $region74: #{gcn_forward.15} parent=65 // pred_fallthru
          _
        %v452 = vld [vmem:[#allocation2] sm:$0xff]
        %v453 = vld [vmem:[#allocation2 + $0x8] sm:$0xff]
        %v454 = vld [vmem:[#allocation2 + $0x10] sm:$0xff]
        %v455 = vld [vmem:[#allocation2 + $0x18] sm:$0xff]
        %v456 = vld [vmem:[#allocation2 + $0x20] sm:$0xff]
        %v457 = vld [vmem:[#allocation2 + $0x28] sm:$0xff]
        %v458 = vld [vmem:[#allocation2 + $0x30] sm:$0xff]
        %v459 = vld [vmem:[#allocation2 + $0x38] sm:$0xff]
        %v460 = vld [vmem:[#allocation2 + $0x40] sm:$0xff]
        %v461 = vld [vmem:[#allocation2 + $0x48] sm:$0xff]
        %v462 = vld [vmem:[#allocation2 + $0x50] sm:$0xff]
        %v463 = vld [vmem:[#allocation2 + $0x58] sm:$0xff]
        %v464 = vld [vmem:[#allocation2 + $0x60] sm:$0xff]
        %v465 = vld [vmem:[#allocation2 + $0x68] sm:$0xff]
        %v466 = vld [vmem:[#allocation2 + $0x70] sm:$0xff]
        %v467 = vld [vmem:[#allocation2 + $0x78] sm:$0xff]
        %v468 = vld [vmem:[#allocation2 + $0x80] sm:$0xff]
        %v469 = vld [vmem:[#allocation2 + $0x88] sm:$0xff]
        %v470 = vld [vmem:[#allocation2 + $0x90] sm:$0xff]
        %v471 = vld [vmem:[#allocation2 + $0x98] sm:$0xff]
        %v472 = vld [vmem:[#allocation2 + $0xa0] sm:$0xff]
        %v473 = vld [vmem:[#allocation2 + $0xa8] sm:$0xff]
        %v474 = vld [vmem:[#allocation2 + $0xb0] sm:$0xff]
        %v475 = vld [vmem:[#allocation2 + $0xb8] sm:$0xff]
        %v476 = vld [vmem:[#allocation2 + $0xc0] sm:$0xff]
        %v477 = vld [vmem:[#allocation2 + $0xc8] sm:$0xff]
        %v478 = vld [vmem:[#allocation2 + $0xd0] sm:$0xff]
        %v479 = vld [vmem:[#allocation2 + $0xd8] sm:$0xff]
        %v480 = vld [vmem:[#allocation2 + $0xe0] sm:$0xff]
        %v481 = vld [vmem:[#allocation2 + $0xe8] sm:$0xff]
        %v482 = vld [vmem:[#allocation2 + $0xf0] sm:$0xff]
        %v483 = vld [vmem:[#allocation2 + $0xf8] sm:$0xff]
        %v484 = vld [vmem:[%s361] sm:$0xff]
        %v485 = vld [vmem:[%s361 + $0x8] sm:$0xff]
        %v486 = vld [vmem:[%s361 + $0x10] sm:$0xff]
        %v487 = vld [vmem:[%s361 + $0x18] sm:$0xff]
        %v488 = vld [vmem:[%s361 + $0x20] sm:$0xff]
        %v489 = vld [vmem:[%s361 + $0x28] sm:$0xff]
        %v490 = vld [vmem:[%s361 + $0x30] sm:$0xff]
        %v491 = vld [vmem:[%s361 + $0x38] sm:$0xff]
        %v492 = vld [vmem:[%s361 + $0x40] sm:$0xff]
        %v493 = vld [vmem:[%s361 + $0x48] sm:$0xff]
        %v494 = vld [vmem:[%s361 + $0x50] sm:$0xff]
        %v495 = vld [vmem:[%s361 + $0x58] sm:$0xff]
        %v496 = vld [vmem:[%s361 + $0x60] sm:$0xff]
        %v497 = vld [vmem:[%s361 + $0x68] sm:$0xff]
        %v498 = vld [vmem:[%s361 + $0x70] sm:$0xff]
        %v499 = vld [vmem:[%s361 + $0x78] sm:$0xff]
        %v500 = vld [vmem:[%s361 + $0x80] sm:$0xff]
        %v501 = vld [vmem:[%s361 + $0x88] sm:$0xff]
        %v502 = vld [vmem:[%s361 + $0x90] sm:$0xff]
        %v503 = vld [vmem:[%s361 + $0x98] sm:$0xff]
        %v504 = vld [vmem:[%s361 + $0xa0] sm:$0xff]
        %v505 = vld [vmem:[%s361 + $0xa8] sm:$0xff]
        %v506 = vld [vmem:[%s361 + $0xb0] sm:$0xff]
        %v507 = vld [vmem:[%s361 + $0xb8] sm:$0xff]
        %v508 = vld [vmem:[%s361 + $0xc0] sm:$0xff]
        %v509 = vld [vmem:[%s361 + $0xc8] sm:$0xff]
        %v510 = vld [vmem:[%s361 + $0xd0] sm:$0xff]
        %v511 = vld [vmem:[%s361 + $0xd8] sm:$0xff]
        %v512 = vld [vmem:[%s361 + $0xe0] sm:$0xff]
        %v513 = vld [vmem:[%s361 + $0xe8] sm:$0xff]
        %v514 = vld [vmem:[%s361 + $0xf0] sm:$0xff]
        %v515 = vld [vmem:[%s361 + $0xf8] sm:$0xff]
        %v516 = vld [vmem:[%s401] sm:$0xf]
        %v517 = vld [vmem:[%s401 + $0x4] sm:$0xf]
        %v518 = vld [vmem:[%s401 + $0x8] sm:$0xf]
        %v519 = vld [vmem:[%s401 + $0xc] sm:$0xf]
        %v520 = vld [vmem:[%s401 + $0x10] sm:$0xf]
        %v521 = vld [vmem:[%s401 + $0x14] sm:$0xf]
        %v522 = vld [vmem:[%s401 + $0x18] sm:$0xf]
        %v523 = vld [vmem:[%s401 + $0x1c] sm:$0xf]
        %v524 = vld [vmem:[%s401 + $0x20] sm:$0xf]
        %v525 = vld [vmem:[%s401 + $0x24] sm:$0xf]
        %v526 = vld [vmem:[%s401 + $0x28] sm:$0xf]
        %v527 = vld [vmem:[%s401 + $0x2c] sm:$0xf]
        %v528 = vld [vmem:[%s401 + $0x30] sm:$0xf]
        %v529 = vld [vmem:[%s401 + $0x34] sm:$0xf]
        %v530 = vld [vmem:[%s401 + $0x38] sm:$0xf]
        %v531 = vld [vmem:[%s401 + $0x3c] sm:$0xf]
        %v532 = vld [vmem:[%s401 + $0x40] sm:$0xf]
        %v533 = vld [vmem:[%s401 + $0x44] sm:$0xf]
        %v534 = vld [vmem:[%s401 + $0x48] sm:$0xf]
        %v535 = vld [vmem:[%s401 + $0x4c] sm:$0xf]
        %v536 = vld [vmem:[%s401 + $0x50] sm:$0xf]
        %v537 = vld [vmem:[%s401 + $0x54] sm:$0xf]
        %v538 = vld [vmem:[%s401 + $0x58] sm:$0xf]
        %v539 = vld [vmem:[%s401 + $0x5c] sm:$0xf]
        %v540 = vld [vmem:[%s401 + $0x60] sm:$0xf]
        %v541 = vld [vmem:[%s401 + $0x64] sm:$0xf]
        %v542 = vld [vmem:[%s401 + $0x68] sm:$0xf]
        %v543 = vld [vmem:[%s401 + $0x6c] sm:$0xf]
        %v544 = vld [vmem:[%s401 + $0x70] sm:$0xf]
        %v545 = vld [vmem:[%s401 + $0x74] sm:$0xf]
        %v546 = vld [vmem:[%s401 + $0x78] sm:$0xf]
        %v547 = vld [vmem:[%s401 + $0x7c] sm:$0xf]
        %v580 = vunpack.c.l.b16 %v484
        %v581 = vunpack.c.h.b16 %v484
        %v582 = vunpack.c.l.b16 %v485
        %v583 = vunpack.c.h.b16 %v485
        %v584 = vunpack.c.l.b16 %v486
        %v585 = vunpack.c.h.b16 %v486
        %v586 = vunpack.c.l.b16 %v487
        %v587 = vunpack.c.h.b16 %v487
        %v588 = vunpack.c.l.b16 %v488
        %v589 = vunpack.c.h.b16 %v488
        %v590 = vunpack.c.l.b16 %v489
        %v591 = vunpack.c.h.b16 %v489
        %v592 = vunpack.c.l.b16 %v490
        %v593 = vunpack.c.h.b16 %v490
        %v594 = vunpack.c.l.b16 %v491
        %v595 = vunpack.c.h.b16 %v491
        %v596 = vunpack.c.l.b16 %v492
        %v597 = vunpack.c.h.b16 %v492
        %v598 = vunpack.c.l.b16 %v493
        %v599 = vunpack.c.h.b16 %v493
        %v600 = vunpack.c.l.b16 %v494
        %v601 = vunpack.c.h.b16 %v494
        %v602 = vunpack.c.l.b16 %v495
        %v603 = vunpack.c.h.b16 %v495
        %v604 = vunpack.c.l.b16 %v496
        %v605 = vunpack.c.h.b16 %v496
        %v606 = vunpack.c.l.b16 %v497
        %v607 = vunpack.c.h.b16 %v497
        %v608 = vunpack.c.l.b16 %v498
        %v609 = vunpack.c.h.b16 %v498
        %v610 = vunpack.c.l.b16 %v499
        %v611 = vunpack.c.h.b16 %v499
        %v612 = vunpack.c.l.b16 %v500
        %v613 = vunpack.c.h.b16 %v500
        %v614 = vunpack.c.l.b16 %v501
        %v615 = vunpack.c.h.b16 %v501
        %v616 = vunpack.c.l.b16 %v502
        %v617 = vunpack.c.h.b16 %v502
        %v618 = vunpack.c.l.b16 %v503
        %v619 = vunpack.c.h.b16 %v503
        %v620 = vunpack.c.l.b16 %v504
        %v621 = vunpack.c.h.b16 %v504
        %v622 = vunpack.c.l.b16 %v505
        %v623 = vunpack.c.h.b16 %v505
        %v624 = vunpack.c.l.b16 %v506
        %v625 = vunpack.c.h.b16 %v506
        %v626 = vunpack.c.l.b16 %v507
        %v627 = vunpack.c.h.b16 %v507
        %v628 = vunpack.c.l.b16 %v508
        %v629 = vunpack.c.h.b16 %v508
        %v630 = vunpack.c.l.b16 %v509
        %v631 = vunpack.c.h.b16 %v509
        %v632 = vunpack.c.l.b16 %v510
        %v633 = vunpack.c.h.b16 %v510
        %v634 = vunpack.c.l.b16 %v511
        %v635 = vunpack.c.h.b16 %v511
        %v636 = vunpack.c.l.b16 %v512
        %v637 = vunpack.c.h.b16 %v512
        %v638 = vunpack.c.l.b16 %v513
        %v639 = vunpack.c.h.b16 %v513
        %v640 = vunpack.c.l.b16 %v514
        %v641 = vunpack.c.h.b16 %v514
        %v642 = vunpack.c.l.b16 %v515
        %v643 = vunpack.c.h.b16 %v515
        %v644 = vpack.c.b16 %v582, %v580
        %v645 = vpack.c.b16 %v583, %v581
        %v646 = vpack.c.b16 %v586, %v584
        %v647 = vpack.c.b16 %v587, %v585
        %v648 = vpack.c.b16 %v590, %v588
        %v649 = vpack.c.b16 %v591, %v589
        %v650 = vpack.c.b16 %v594, %v592
        %v651 = vpack.c.b16 %v595, %v593
        %v652 = vpack.c.b16 %v598, %v596
        %v653 = vpack.c.b16 %v599, %v597
        %v654 = vpack.c.b16 %v602, %v600
        %v655 = vpack.c.b16 %v603, %v601
        %v656 = vpack.c.b16 %v606, %v604
        %v657 = vpack.c.b16 %v607, %v605
        %v658 = vpack.c.b16 %v610, %v608
        %v659 = vpack.c.b16 %v611, %v609
        %v660 = vpack.c.b16 %v614, %v612
        %v661 = vpack.c.b16 %v615, %v613
        %v662 = vpack.c.b16 %v618, %v616
        %v663 = vpack.c.b16 %v619, %v617
        %v664 = vpack.c.b16 %v622, %v620
        %v665 = vpack.c.b16 %v623, %v621
        %v666 = vpack.c.b16 %v626, %v624
        %v667 = vpack.c.b16 %v627, %v625
        %v668 = vpack.c.b16 %v630, %v628
        %v669 = vpack.c.b16 %v631, %v629
        %v670 = vpack.c.b16 %v634, %v632
        %v671 = vpack.c.b16 %v635, %v633
        %v672 = vpack.c.b16 %v638, %v636
        %v673 = vpack.c.b16 %v639, %v637
        %v674 = vpack.c.b16 %v642, %v640
        %v675 = vpack.c.b16 %v643, %v641
        %v740 = vunpack.c.l.b16 %v516
        %v741 = vunpack.c.l.b16 %v517
        %v742 = vunpack.c.l.b16 %v518
        %v743 = vunpack.c.l.b16 %v519
        %v744 = vunpack.c.l.b16 %v520
        %v745 = vunpack.c.l.b16 %v521
        %v746 = vunpack.c.l.b16 %v522
        %v747 = vunpack.c.l.b16 %v523
        %v748 = vunpack.c.l.b16 %v524
        %v749 = vunpack.c.l.b16 %v525
        %v750 = vunpack.c.l.b16 %v526
        %v751 = vunpack.c.l.b16 %v527
        %v752 = vunpack.c.l.b16 %v528
        %v753 = vunpack.c.l.b16 %v529
        %v754 = vunpack.c.l.b16 %v530
        %v755 = vunpack.c.l.b16 %v531
        %v756 = vunpack.c.l.b16 %v532
        %v757 = vunpack.c.l.b16 %v533
        %v758 = vunpack.c.l.b16 %v534
        %v759 = vunpack.c.l.b16 %v535
        %v760 = vunpack.c.l.b16 %v536
        %v761 = vunpack.c.l.b16 %v537
        %v762 = vunpack.c.l.b16 %v538
        %v763 = vunpack.c.l.b16 %v539
        %v764 = vunpack.c.l.b16 %v540
        %v765 = vunpack.c.l.b16 %v541
        %v766 = vunpack.c.l.b16 %v542
        %v767 = vunpack.c.l.b16 %v543
        %v768 = vunpack.c.l.b16 %v544
        %v769 = vunpack.c.l.b16 %v545
        %v770 = vunpack.c.l.b16 %v546
        %v771 = vunpack.c.l.b16 %v547
        %v772 = vpack.c.b16 %v741, %v740
        %v773 = vpack.c.b16 %v743, %v742
        %v774 = vpack.c.b16 %v745, %v744
        %v775 = vpack.c.b16 %v747, %v746
        %v776 = vpack.c.b16 %v749, %v748
        %v777 = vpack.c.b16 %v751, %v750
        %v778 = vpack.c.b16 %v753, %v752
        %v779 = vpack.c.b16 %v755, %v754
        %v780 = vpack.c.b16 %v757, %v756
        %v781 = vpack.c.b16 %v759, %v758
        %v782 = vpack.c.b16 %v761, %v760
        %v783 = vpack.c.b16 %v763, %v762
        %v784 = vpack.c.b16 %v765, %v764
        %v785 = vpack.c.b16 %v767, %v766
        %v786 = vpack.c.b16 %v769, %v768
        %v787 = vpack.c.b16 %v771, %v770
        %804 = vmatprep.subr.bf16.mxu0 0
        %805 = vmatpush1.bf16.msra.mxu0 %v779
        %806 = vmatprep.subr.bf16.mxu0 0
        %807 = vmatpush1.bf16.msra.mxu0 %v778
        %808 = vmatprep.subr.bf16.mxu0 0
        %809 = vmatpush1.bf16.msra.mxu0 %v777
        %810 = vmatprep.subr.bf16.mxu0 0
        %811 = vmatpush1.bf16.msra.mxu0 %v776
        %812 = vmatprep.subr.bf16.mxu0 0
        %813 = vmatpush1.bf16.msra.mxu0 %v775
        %814 = vmatprep.subr.bf16.mxu0 0
        %815 = vmatpush1.bf16.msra.mxu0 %v774
        %816 = vmatprep.subr.bf16.mxu0 0
        %817 = vmatpush1.bf16.msra.mxu0 %v773
        %818 = vmatprep.subr.bf16.mxu0 0
        %819 = vmatpush1.bf16.msra.mxu0 %v772
        %820 = vmatprep.subr.bf16.mxu0 0
        %821 = vmatpush2.bf16.msra.mxu0 %v787
        %822 = vmatprep.subr.bf16.mxu0 0
        %823 = vmatpush2.bf16.msra.mxu0 %v786
        %824 = vmatprep.subr.bf16.mxu0 0
        %825 = vmatpush2.bf16.msra.mxu0 %v785
        %826 = vmatprep.subr.bf16.mxu0 0
        %827 = vmatpush2.bf16.msra.mxu0 %v784
        %828 = vmatprep.subr.bf16.mxu0 0
        %829 = vmatpush2.bf16.msra.mxu0 %v783
        %830 = vmatprep.subr.bf16.mxu0 0
        %831 = vmatpush2.bf16.msra.mxu0 %v782
        %832 = vmatprep.subr.bf16.mxu0 0
        %833 = vmatpush2.bf16.msra.mxu0 %v781
        %834 = vmatprep.subr.bf16.mxu0 0
        %835 = vmatpush2.bf16.msra.mxu0 %v780
        %836 = vmatprep.mubr.bf16.mxu0 %v645
        %837 = vmatmul.mubr.bf16.gmra.mxu0 %v644
        %v838 = vpop.f32.mrf.mxu0
        %v839 = vadd.f32 0.0, %v838
        %v840 = vpop.f32.mrf.mxu0
        %v841 = vpop.f32.mrf.mxu0
        %v842 = vadd.f32 0.0, %v841
        %v843 = vpop.f32.mrf.mxu0
        %844 = vmatprep.mubr.bf16.mxu0 %v647
        %845 = vmatmul.mubr.bf16.gmra.mxu0 %v646
        %v846 = vpop.f32.mrf.mxu0
        %v847 = vadd.f32 0.0, %v846
        %v848 = vpop.f32.mrf.mxu0
        %v849 = vpop.f32.mrf.mxu0
        %v850 = vadd.f32 0.0, %v849
        %v851 = vpop.f32.mrf.mxu0
        %852 = vmatprep.mubr.bf16.mxu0 %v649
        %853 = vmatmul.mubr.bf16.gmra.mxu0 %v648
        %v854 = vpop.f32.mrf.mxu0
        %v855 = vadd.f32 0.0, %v854
        %v856 = vpop.f32.mrf.mxu0
        %v857 = vpop.f32.mrf.mxu0
        %v858 = vadd.f32 0.0, %v857
        %v859 = vpop.f32.mrf.mxu0
        %860 = vmatprep.mubr.bf16.mxu0 %v651
        %861 = vmatmul.mubr.bf16.gmra.mxu0 %v650
        %v862 = vpop.f32.mrf.mxu0
        %v863 = vadd.f32 0.0, %v862
        %v864 = vpop.f32.mrf.mxu0
        %v865 = vpop.f32.mrf.mxu0
        %v866 = vadd.f32 0.0, %v865
        %v867 = vpop.f32.mrf.mxu0
        %868 = vmatprep.mubr.bf16.mxu0 %v653
        %869 = vmatmul.mubr.bf16.gmra.mxu0 %v652
        %v870 = vpop.f32.mrf.mxu0
        %v871 = vadd.f32 0.0, %v870
        %v872 = vpop.f32.mrf.mxu0
        %v873 = vpop.f32.mrf.mxu0
        %v874 = vadd.f32 0.0, %v873
        %v875 = vpop.f32.mrf.mxu0
        %876 = vmatprep.mubr.bf16.mxu0 %v655
        %877 = vmatmul.mubr.bf16.gmra.mxu0 %v654
        %v878 = vpop.f32.mrf.mxu0
        %v879 = vadd.f32 0.0, %v878
        %v880 = vpop.f32.mrf.mxu0
        %v881 = vpop.f32.mrf.mxu0
        %v882 = vadd.f32 0.0, %v881
        %v883 = vpop.f32.mrf.mxu0
        %884 = vmatprep.mubr.bf16.mxu0 %v657
        %885 = vmatmul.mubr.bf16.gmra.mxu0 %v656
        %v886 = vpop.f32.mrf.mxu0
        %v887 = vadd.f32 0.0, %v886
        %v888 = vpop.f32.mrf.mxu0
        %v889 = vpop.f32.mrf.mxu0
        %v890 = vadd.f32 0.0, %v889
        %v891 = vpop.f32.mrf.mxu0
        %892 = vmatprep.mubr.bf16.mxu0 %v659
        %893 = vmatmul.mubr.bf16.gmra.mxu0 %v658
        %v894 = vpop.f32.mrf.mxu0
        %v895 = vadd.f32 0.0, %v894
        %v896 = vpop.f32.mrf.mxu0
        %v897 = vpop.f32.mrf.mxu0
        %v898 = vadd.f32 0.0, %v897
        %v899 = vpop.f32.mrf.mxu0
        %900 = vmatprep.mubr.bf16.mxu0 %v661
        %901 = vmatmul.mubr.bf16.gmra.mxu0 %v660
        %v902 = vpop.f32.mrf.mxu0
        %v903 = vadd.f32 0.0, %v902
        %v904 = vpop.f32.mrf.mxu0
        %v905 = vpop.f32.mrf.mxu0
        %v906 = vadd.f32 0.0, %v905
        %v907 = vpop.f32.mrf.mxu0
        %908 = vmatprep.mubr.bf16.mxu0 %v663
        %909 = vmatmul.mubr.bf16.gmra.mxu0 %v662
        %v910 = vpop.f32.mrf.mxu0
        %v911 = vadd.f32 0.0, %v910
        %v912 = vpop.f32.mrf.mxu0
        %v913 = vpop.f32.mrf.mxu0
        %v914 = vadd.f32 0.0, %v913
        %v915 = vpop.f32.mrf.mxu0
        %916 = vmatprep.mubr.bf16.mxu0 %v665
        %917 = vmatmul.mubr.bf16.gmra.mxu0 %v664
        %v918 = vpop.f32.mrf.mxu0
        %v919 = vadd.f32 0.0, %v918
        %v920 = vpop.f32.mrf.mxu0
        %v921 = vpop.f32.mrf.mxu0
        %v922 = vadd.f32 0.0, %v921
        %v923 = vpop.f32.mrf.mxu0
        %924 = vmatprep.mubr.bf16.mxu0 %v667
        %925 = vmatmul.mubr.bf16.gmra.mxu0 %v666
        %v926 = vpop.f32.mrf.mxu0
        %v927 = vadd.f32 0.0, %v926
        %v928 = vpop.f32.mrf.mxu0
        %v929 = vpop.f32.mrf.mxu0
        %v930 = vadd.f32 0.0, %v929
        %v931 = vpop.f32.mrf.mxu0
        %932 = vmatprep.mubr.bf16.mxu0 %v669
        %933 = vmatmul.mubr.bf16.gmra.mxu0 %v668
        %v934 = vpop.f32.mrf.mxu0
        %v935 = vadd.f32 0.0, %v934
        %v936 = vpop.f32.mrf.mxu0
        %v937 = vpop.f32.mrf.mxu0
        %v938 = vadd.f32 0.0, %v937
        %v939 = vpop.f32.mrf.mxu0
        %940 = vmatprep.mubr.bf16.mxu0 %v671
        %941 = vmatmul.mubr.bf16.gmra.mxu0 %v670
        %v942 = vpop.f32.mrf.mxu0
        %v943 = vadd.f32 0.0, %v942
        %v944 = vpop.f32.mrf.mxu0
        %v945 = vpop.f32.mrf.mxu0
        %v946 = vadd.f32 0.0, %v945
        %v947 = vpop.f32.mrf.mxu0
        %948 = vmatprep.mubr.bf16.mxu0 %v673
        %949 = vmatmul.mubr.bf16.gmra.mxu0 %v672
        %v950 = vpop.f32.mrf.mxu0
        %v951 = vadd.f32 0.0, %v950
        %v952 = vpop.f32.mrf.mxu0
        %v953 = vpop.f32.mrf.mxu0
        %v954 = vadd.f32 0.0, %v953
        %v955 = vpop.f32.mrf.mxu0
        %956 = vmatprep.mubr.bf16.mxu0 %v675
        %957 = vmatmul.mubr.bf16.gmra.mxu0 %v674
        %v958 = vpop.f32.mrf.mxu0
        %v959 = vadd.f32 0.0, %v958
        %v960 = vpop.f32.mrf.mxu0
        %v961 = vpop.f32.mrf.mxu0
        %v962 = vadd.f32 0.0, %v961
        %v963 = vpop.f32.mrf.mxu0
        %964 = vdwg.mxu0
        %v965 = vadd.f32 %v452, %v839
        %v966 = vadd.f32 %v453, %v842
        %v967 = vadd.f32 %v454, %v847
        %v968 = vadd.f32 %v455, %v850
        %v969 = vadd.f32 %v456, %v855
        %v970 = vadd.f32 %v457, %v858
        %v971 = vadd.f32 %v458, %v863
        %v972 = vadd.f32 %v459, %v866
        %v973 = vadd.f32 %v460, %v871
        %v974 = vadd.f32 %v461, %v874
        %v975 = vadd.f32 %v462, %v879
        %v976 = vadd.f32 %v463, %v882
        %v977 = vadd.f32 %v464, %v887
        %v978 = vadd.f32 %v465, %v890
        %v979 = vadd.f32 %v466, %v895
        %v980 = vadd.f32 %v467, %v898
        %v981 = vadd.f32 %v468, %v903
        %v982 = vadd.f32 %v469, %v906
        %v983 = vadd.f32 %v470, %v911
        %v984 = vadd.f32 %v471, %v914
        %v985 = vadd.f32 %v472, %v919
        %v986 = vadd.f32 %v473, %v922
        %v987 = vadd.f32 %v474, %v927
        %v988 = vadd.f32 %v475, %v930
        %v989 = vadd.f32 %v476, %v935
        %v990 = vadd.f32 %v477, %v938
        %v991 = vadd.f32 %v478, %v943
        %v992 = vadd.f32 %v479, %v946
        %v993 = vadd.f32 %v480, %v951
        %v994 = vadd.f32 %v481, %v954
        %v995 = vadd.f32 %v482, %v959
        %v996 = vadd.f32 %v483, %v962
        %997 = vst [vmem:[#allocation2] sm:$0xff] %v965
        %998 = vst [vmem:[#allocation2 + $0x8] sm:$0xff] %v966
        %999 = vst [vmem:[#allocation2 + $0x10] sm:$0xff] %v967
        %1000 = vst [vmem:[#allocation2 + $0x18] sm:$0xff] %v968
        %1001 = vst [vmem:[#allocation2 + $0x20] sm:$0xff] %v969
        %1002 = vst [vmem:[#allocation2 + $0x28] sm:$0xff] %v970
        %1003 = vst [vmem:[#allocation2 + $0x30] sm:$0xff] %v971
        %1004 = vst [vmem:[#allocation2 + $0x38] sm:$0xff] %v972
        %1005 = vst [vmem:[#allocation2 + $0x40] sm:$0xff] %v973
        %1006 = vst [vmem:[#allocation2 + $0x48] sm:$0xff] %v974
        %1007 = vst [vmem:[#allocation2 + $0x50] sm:$0xff] %v975
        %1008 = vst [vmem:[#allocation2 + $0x58] sm:$0xff] %v976
        %1009 = vst [vmem:[#allocation2 + $0x60] sm:$0xff] %v977
        %1010 = vst [vmem:[#allocation2 + $0x68] sm:$0xff] %v978
        %1011 = vst [vmem:[#allocation2 + $0x70] sm:$0xff] %v979
        %1012 = vst [vmem:[#allocation2 + $0x78] sm:$0xff] %v980
        %1013 = vst [vmem:[#allocation2 + $0x80] sm:$0xff] %v981
        %1014 = vst [vmem:[#allocation2 + $0x88] sm:$0xff] %v982
        %1015 = vst [vmem:[#allocation2 + $0x90] sm:$0xff] %v983
        %1016 = vst [vmem:[#allocation2 + $0x98] sm:$0xff] %v984
        %1017 = vst [vmem:[#allocation2 + $0xa0] sm:$0xff] %v985
        %1018 = vst [vmem:[#allocation2 + $0xa8] sm:$0xff] %v986
        %1019 = vst [vmem:[#allocation2 + $0xb0] sm:$0xff] %v987
        %1020 = vst [vmem:[#allocation2 + $0xb8] sm:$0xff] %v988
        %1021 = vst [vmem:[#allocation2 + $0xc0] sm:$0xff] %v989
        %1022 = vst [vmem:[#allocation2 + $0xc8] sm:$0xff] %v990
        %1023 = vst [vmem:[#allocation2 + $0xd0] sm:$0xff] %v991
        %1024 = vst [vmem:[#allocation2 + $0xd8] sm:$0xff] %v992
        %1025 = vst [vmem:[#allocation2 + $0xe0] sm:$0xff] %v993
        %1026 = vst [vmem:[#allocation2 + $0xe8] sm:$0xff] %v994
        %1027 = vst [vmem:[#allocation2 + $0xf0] sm:$0xff] %v995
        %1028 = vst [vmem:[#allocation2 + $0xf8] sm:$0xff] %v996
        %p1029 = scmp.eq.s32.totalorder %s21, 1
        // Predicated region
        $region75: #{gcn_forward.15} parent=65 // pred_check
          %p1030 = pneg %p1029
        $region76: #{gcn_forward.15} parent=65 // pred_check_branch
          %1032 = sbr.rel (%p1030) target = $region78
        $region77: #{gcn_forward.15} parent=65 // pred_region
          %v1033 = vld [vmem:[#allocation2] sm:$0xff]
          %v1034 = vld [vmem:[#allocation2 + $0x8] sm:$0xff]
          %v1035 = vld [vmem:[#allocation2 + $0x10] sm:$0xff]
          %v1036 = vld [vmem:[#allocation2 + $0x18] sm:$0xff]
          %v1037 = vld [vmem:[#allocation2 + $0x20] sm:$0xff]
          %v1038 = vld [vmem:[#allocation2 + $0x28] sm:$0xff]
          %v1039 = vld [vmem:[#allocation2 + $0x30] sm:$0xff]
          %v1040 = vld [vmem:[#allocation2 + $0x38] sm:$0xff]
          %v1041 = vld [vmem:[#allocation2 + $0x40] sm:$0xff]
          %v1042 = vld [vmem:[#allocation2 + $0x48] sm:$0xff]
          %v1043 = vld [vmem:[#allocation2 + $0x50] sm:$0xff]
          %v1044 = vld [vmem:[#allocation2 + $0x58] sm:$0xff]
          %v1045 = vld [vmem:[#allocation2 + $0x60] sm:$0xff]
          %v1046 = vld [vmem:[#allocation2 + $0x68] sm:$0xff]
          %v1047 = vld [vmem:[#allocation2 + $0x70] sm:$0xff]
          %v1048 = vld [vmem:[#allocation2 + $0x78] sm:$0xff]
          %v1049 = vld [vmem:[#allocation2 + $0x80] sm:$0xff]
          %v1050 = vld [vmem:[#allocation2 + $0x88] sm:$0xff]
          %v1051 = vld [vmem:[#allocation2 + $0x90] sm:$0xff]
          %v1052 = vld [vmem:[#allocation2 + $0x98] sm:$0xff]
          %v1053 = vld [vmem:[#allocation2 + $0xa0] sm:$0xff]
          %v1054 = vld [vmem:[#allocation2 + $0xa8] sm:$0xff]
          %v1055 = vld [vmem:[#allocation2 + $0xb0] sm:$0xff]
          %v1056 = vld [vmem:[#allocation2 + $0xb8] sm:$0xff]
          %v1057 = vld [vmem:[#allocation2 + $0xc0] sm:$0xff]
          %v1058 = vld [vmem:[#allocation2 + $0xc8] sm:$0xff]
          %v1059 = vld [vmem:[#allocation2 + $0xd0] sm:$0xff]
          %v1060 = vld [vmem:[#allocation2 + $0xd8] sm:$0xff]
          %v1061 = vld [vmem:[#allocation2 + $0xe0] sm:$0xff]
          %v1062 = vld [vmem:[#allocation2 + $0xe8] sm:$0xff]
          %v1063 = vld [vmem:[#allocation2 + $0xf0] sm:$0xff]
          %v1064 = vld [vmem:[#allocation2 + $0xf8] sm:$0xff]
          %v1065 = vpack.c.bf16 %v1034, %v1033
          %v1066 = vpack.c.bf16 %v1036, %v1035
          %v1067 = vpack.c.bf16 %v1038, %v1037
          %v1068 = vpack.c.bf16 %v1040, %v1039
          %v1069 = vpack.c.bf16 %v1042, %v1041
          %v1070 = vpack.c.bf16 %v1044, %v1043
          %v1071 = vpack.c.bf16 %v1046, %v1045
          %v1072 = vpack.c.bf16 %v1048, %v1047
          %v1073 = vpack.c.bf16 %v1050, %v1049
          %v1074 = vpack.c.bf16 %v1052, %v1051
          %v1075 = vpack.c.bf16 %v1054, %v1053
          %v1076 = vpack.c.bf16 %v1056, %v1055
          %v1077 = vpack.c.bf16 %v1058, %v1057
          %v1078 = vpack.c.bf16 %v1060, %v1059
          %v1079 = vpack.c.bf16 %v1062, %v1061
          %v1080 = vpack.c.bf16 %v1064, %v1063
          %v1081 = vld [vmem:[%s2] sm:$0xff]
          %v1082 = vld [vmem:[%s2 + $0x8] sm:$0xff]
          %v1083 = vld [vmem:[%s2 + $0x10] sm:$0xff]
          %v1084 = vld [vmem:[%s2 + $0x18] sm:$0xff]
          %v1085 = vld [vmem:[%s2 + $0x20] sm:$0xff]
          %v1086 = vld [vmem:[%s2 + $0x28] sm:$0xff]
          %v1087 = vld [vmem:[%s2 + $0x30] sm:$0xff]
          %v1088 = vld [vmem:[%s2 + $0x38] sm:$0xff]
          %v1089 = vld [vmem:[%s2 + $0x40] sm:$0xff]
          %v1090 = vld [vmem:[%s2 + $0x48] sm:$0xff]
          %v1091 = vld [vmem:[%s2 + $0x50] sm:$0xff]
          %v1092 = vld [vmem:[%s2 + $0x58] sm:$0xff]
          %v1093 = vld [vmem:[%s2 + $0x60] sm:$0xff]
          %v1094 = vld [vmem:[%s2 + $0x68] sm:$0xff]
          %v1095 = vld [vmem:[%s2 + $0x70] sm:$0xff]
          %v1096 = vld [vmem:[%s2 + $0x78] sm:$0xff]
          %v1113 = vunpack.c.l.b16 %v1081
          %v1114 = vunpack.c.h.b16 %v1081
          %v1115 = vunpack.c.l.b16 %v1082
          %v1116 = vunpack.c.h.b16 %v1082
          %v1117 = vunpack.c.l.b16 %v1083
          %v1118 = vunpack.c.h.b16 %v1083
          %v1119 = vunpack.c.l.b16 %v1084
          %v1120 = vunpack.c.h.b16 %v1084
          %v1121 = vunpack.c.l.b16 %v1085
          %v1122 = vunpack.c.h.b16 %v1085
          %v1123 = vunpack.c.l.b16 %v1086
          %v1124 = vunpack.c.h.b16 %v1086
          %v1125 = vunpack.c.l.b16 %v1087
          %v1126 = vunpack.c.h.b16 %v1087
          %v1127 = vunpack.c.l.b16 %v1088
          %v1128 = vunpack.c.h.b16 %v1088
          %v1129 = vunpack.c.l.b16 %v1089
          %v1130 = vunpack.c.h.b16 %v1089
          %v1131 = vunpack.c.l.b16 %v1090
          %v1132 = vunpack.c.h.b16 %v1090
          %v1133 = vunpack.c.l.b16 %v1091
          %v1134 = vunpack.c.h.b16 %v1091
          %v1135 = vunpack.c.l.b16 %v1092
          %v1136 = vunpack.c.h.b16 %v1092
          %v1137 = vunpack.c.l.b16 %v1093
          %v1138 = vunpack.c.h.b16 %v1093
          %v1139 = vunpack.c.l.b16 %v1094
          %v1140 = vunpack.c.h.b16 %v1094
          %v1141 = vunpack.c.l.b16 %v1095
          %v1142 = vunpack.c.h.b16 %v1095
          %v1143 = vunpack.c.l.b16 %v1096
          %v1144 = vunpack.c.h.b16 %v1096
          %v1145 = vpack.c.b16 %v1115, %v1113
          %v1146 = vpack.c.b16 %v1116, %v1114
          %v1147 = vpack.c.b16 %v1119, %v1117
          %v1148 = vpack.c.b16 %v1120, %v1118
          %v1149 = vpack.c.b16 %v1123, %v1121
          %v1150 = vpack.c.b16 %v1124, %v1122
          %v1151 = vpack.c.b16 %v1127, %v1125
          %v1152 = vpack.c.b16 %v1128, %v1126
          %v1153 = vpack.c.b16 %v1131, %v1129
          %v1154 = vpack.c.b16 %v1132, %v1130
          %v1155 = vpack.c.b16 %v1135, %v1133
          %v1156 = vpack.c.b16 %v1136, %v1134
          %v1157 = vpack.c.b16 %v1139, %v1137
          %v1158 = vpack.c.b16 %v1140, %v1138
          %v1159 = vpack.c.b16 %v1143, %v1141
          %v1160 = vpack.c.b16 %v1144, %v1142
          %1177 = vmatprep.subr.bf16.mxu0 %v1160
          %1178 = vmatpush1.bf16.msra.mxu0 %v1159
          %1179 = vmatprep.subr.bf16.mxu0 %v1158
          %1180 = vmatpush1.bf16.msra.mxu0 %v1157
          %1181 = vmatprep.subr.bf16.mxu0 %v1156
          %1182 = vmatpush1.bf16.msra.mxu0 %v1155
          %1183 = vmatprep.subr.bf16.mxu0 %v1154
          %1184 = vmatpush1.bf16.msra.mxu0 %v1153
          %1185 = vmatprep.subr.bf16.mxu0 %v1152
          %1186 = vmatpush1.bf16.msra.mxu0 %v1151
          %1187 = vmatprep.subr.bf16.mxu0 %v1150
          %1188 = vmatpush1.bf16.msra.mxu0 %v1149
          %1189 = vmatprep.subr.bf16.mxu0 %v1148
          %1190 = vmatpush1.bf16.msra.mxu0 %v1147
          %1191 = vmatprep.subr.bf16.mxu0 %v1146
          %1192 = vmatpush1.bf16.msra.mxu0 %v1145
          %1193 = vmatprep.subr.bf16.mxu0 0
          %1194 = vmatpush2.bf16.msra.mxu0 0
          %1195 = vmatprep.subr.bf16.mxu0 0
          %1196 = vmatpush2.bf16.msra.mxu0 0
          %1197 = vmatprep.subr.bf16.mxu0 0
          %1198 = vmatpush2.bf16.msra.mxu0 0
          %1199 = vmatprep.subr.bf16.mxu0 0
          %1200 = vmatpush2.bf16.msra.mxu0 0
          %1201 = vmatprep.subr.bf16.mxu0 0
          %1202 = vmatpush2.bf16.msra.mxu0 0
          %1203 = vmatprep.subr.bf16.mxu0 0
          %1204 = vmatpush2.bf16.msra.mxu0 0
          %1205 = vmatprep.subr.bf16.mxu0 0
          %1206 = vmatpush2.bf16.msra.mxu0 0
          %1207 = vmatprep.subr.bf16.mxu0 0
          %1208 = vmatpush2.bf16.msra.mxu0 0
          %1209 = vmatprep.mubr.bf16.mxu0 0
          %1210 = vmatmul.mubr.bf16.gmra.mxu0 %v1065
          %v1211 = vpop.f32.mrf.mxu0
          %v1212 = vadd.f32 0.0, %v1211
          %v1213 = vpop.f32.mrf.mxu0
          %v1214 = vadd.f32 0.0, %v1213
          %v1215 = vpop.f32.mrf.mxu0
          %v1216 = vadd.f32 0.0, %v1215
          %v1217 = vpop.f32.mrf.mxu0
          %v1218 = vadd.f32 0.0, %v1217
          %1219 = vmatprep.mubr.bf16.mxu0 0
          %1220 = vmatmul.mubr.bf16.gmra.mxu0 %v1066
          %v1221 = vpop.f32.mrf.mxu0
          %v1222 = vadd.f32 0.0, %v1221
          %v1223 = vpop.f32.mrf.mxu0
          %v1224 = vadd.f32 0.0, %v1223
          %v1225 = vpop.f32.mrf.mxu0
          %v1226 = vadd.f32 0.0, %v1225
          %v1227 = vpop.f32.mrf.mxu0
          %v1228 = vadd.f32 0.0, %v1227
          %1229 = vmatprep.mubr.bf16.mxu0 0
          %1230 = vmatmul.mubr.bf16.gmra.mxu0 %v1067
          %v1231 = vpop.f32.mrf.mxu0
          %v1232 = vadd.f32 0.0, %v1231
          %v1233 = vpop.f32.mrf.mxu0
          %v1234 = vadd.f32 0.0, %v1233
          %v1235 = vpop.f32.mrf.mxu0
          %v1236 = vadd.f32 0.0, %v1235
          %v1237 = vpop.f32.mrf.mxu0
          %v1238 = vadd.f32 0.0, %v1237
          %1239 = vmatprep.mubr.bf16.mxu0 0
          %1240 = vmatmul.mubr.bf16.gmra.mxu0 %v1068
          %v1241 = vpop.f32.mrf.mxu0
          %v1242 = vadd.f32 0.0, %v1241
          %v1243 = vpop.f32.mrf.mxu0
          %v1244 = vadd.f32 0.0, %v1243
          %v1245 = vpop.f32.mrf.mxu0
          %v1246 = vadd.f32 0.0, %v1245
          %v1247 = vpop.f32.mrf.mxu0
          %v1248 = vadd.f32 0.0, %v1247
          %1249 = vmatprep.mubr.bf16.mxu0 0
          %1250 = vmatmul.mubr.bf16.gmra.mxu0 %v1069
          %v1251 = vpop.f32.mrf.mxu0
          %v1252 = vadd.f32 0.0, %v1251
          %v1253 = vpop.f32.mrf.mxu0
          %v1254 = vadd.f32 0.0, %v1253
          %v1255 = vpop.f32.mrf.mxu0
          %v1256 = vadd.f32 0.0, %v1255
          %v1257 = vpop.f32.mrf.mxu0
          %v1258 = vadd.f32 0.0, %v1257
          %1259 = vmatprep.mubr.bf16.mxu0 0
          %1260 = vmatmul.mubr.bf16.gmra.mxu0 %v1070
          %v1261 = vpop.f32.mrf.mxu0
          %v1262 = vadd.f32 0.0, %v1261
          %v1263 = vpop.f32.mrf.mxu0
          %v1264 = vadd.f32 0.0, %v1263
          %v1265 = vpop.f32.mrf.mxu0
          %v1266 = vadd.f32 0.0, %v1265
          %v1267 = vpop.f32.mrf.mxu0
          %v1268 = vadd.f32 0.0, %v1267
          %1269 = vmatprep.mubr.bf16.mxu0 0
          %1270 = vmatmul.mubr.bf16.gmra.mxu0 %v1071
          %v1271 = vpop.f32.mrf.mxu0
          %v1272 = vadd.f32 0.0, %v1271
          %v1273 = vpop.f32.mrf.mxu0
          %v1274 = vadd.f32 0.0, %v1273
          %v1275 = vpop.f32.mrf.mxu0
          %v1276 = vadd.f32 0.0, %v1275
          %v1277 = vpop.f32.mrf.mxu0
          %v1278 = vadd.f32 0.0, %v1277
          %1279 = vmatprep.mubr.bf16.mxu0 0
          %1280 = vmatmul.mubr.bf16.gmra.mxu0 %v1072
          %v1281 = vpop.f32.mrf.mxu0
          %v1282 = vadd.f32 0.0, %v1281
          %v1283 = vpop.f32.mrf.mxu0
          %v1284 = vadd.f32 0.0, %v1283
          %v1285 = vpop.f32.mrf.mxu0
          %v1286 = vadd.f32 0.0, %v1285
          %v1287 = vpop.f32.mrf.mxu0
          %v1288 = vadd.f32 0.0, %v1287
          %1289 = vmatprep.mubr.bf16.mxu0 0
          %1290 = vmatmul.mubr.bf16.gmra.mxu0 %v1073
          %v1291 = vpop.f32.mrf.mxu0
          %v1292 = vadd.f32 0.0, %v1291
          %v1293 = vpop.f32.mrf.mxu0
          %v1294 = vadd.f32 0.0, %v1293
          %v1295 = vpop.f32.mrf.mxu0
          %v1296 = vadd.f32 0.0, %v1295
          %v1297 = vpop.f32.mrf.mxu0
          %v1298 = vadd.f32 0.0, %v1297
          %1299 = vmatprep.mubr.bf16.mxu0 0
          %1300 = vmatmul.mubr.bf16.gmra.mxu0 %v1074
          %v1301 = vpop.f32.mrf.mxu0
          %v1302 = vadd.f32 0.0, %v1301
          %v1303 = vpop.f32.mrf.mxu0
          %v1304 = vadd.f32 0.0, %v1303
          %v1305 = vpop.f32.mrf.mxu0
          %v1306 = vadd.f32 0.0, %v1305
          %v1307 = vpop.f32.mrf.mxu0
          %v1308 = vadd.f32 0.0, %v1307
          %1309 = vmatprep.mubr.bf16.mxu0 0
          %1310 = vmatmul.mubr.bf16.gmra.mxu0 %v1075
          %v1311 = vpop.f32.mrf.mxu0
          %v1312 = vadd.f32 0.0, %v1311
          %v1313 = vpop.f32.mrf.mxu0
          %v1314 = vadd.f32 0.0, %v1313
          %v1315 = vpop.f32.mrf.mxu0
          %v1316 = vadd.f32 0.0, %v1315
          %v1317 = vpop.f32.mrf.mxu0
          %v1318 = vadd.f32 0.0, %v1317
          %1319 = vmatprep.mubr.bf16.mxu0 0
          %1320 = vmatmul.mubr.bf16.gmra.mxu0 %v1076
          %v1321 = vpop.f32.mrf.mxu0
          %v1322 = vadd.f32 0.0, %v1321
          %v1323 = vpop.f32.mrf.mxu0
          %v1324 = vadd.f32 0.0, %v1323
          %v1325 = vpop.f32.mrf.mxu0
          %v1326 = vadd.f32 0.0, %v1325
          %v1327 = vpop.f32.mrf.mxu0
          %v1328 = vadd.f32 0.0, %v1327
          %1329 = vmatprep.mubr.bf16.mxu0 0
          %1330 = vmatmul.mubr.bf16.gmra.mxu0 %v1077
          %v1331 = vpop.f32.mrf.mxu0
          %v1332 = vadd.f32 0.0, %v1331
          %v1333 = vpop.f32.mrf.mxu0
          %v1334 = vadd.f32 0.0, %v1333
          %v1335 = vpop.f32.mrf.mxu0
          %v1336 = vadd.f32 0.0, %v1335
          %v1337 = vpop.f32.mrf.mxu0
          %v1338 = vadd.f32 0.0, %v1337
          %1339 = vmatprep.mubr.bf16.mxu0 0
          %1340 = vmatmul.mubr.bf16.gmra.mxu0 %v1078
          %v1341 = vpop.f32.mrf.mxu0
          %v1342 = vadd.f32 0.0, %v1341
          %v1343 = vpop.f32.mrf.mxu0
          %v1344 = vadd.f32 0.0, %v1343
          %v1345 = vpop.f32.mrf.mxu0
          %v1346 = vadd.f32 0.0, %v1345
          %v1347 = vpop.f32.mrf.mxu0
          %v1348 = vadd.f32 0.0, %v1347
          %1349 = vmatprep.mubr.bf16.mxu0 0
          %1350 = vmatmul.mubr.bf16.gmra.mxu0 %v1079
          %v1351 = vpop.f32.mrf.mxu0
          %v1352 = vadd.f32 0.0, %v1351
          %v1353 = vpop.f32.mrf.mxu0
          %v1354 = vadd.f32 0.0, %v1353
          %v1355 = vpop.f32.mrf.mxu0
          %v1356 = vadd.f32 0.0, %v1355
          %v1357 = vpop.f32.mrf.mxu0
          %v1358 = vadd.f32 0.0, %v1357
          %1359 = vmatprep.mubr.bf16.mxu0 0
          %1360 = vmatmul.mubr.bf16.gmra.mxu0 %v1080
          %v1361 = vpop.f32.mrf.mxu0
          %v1362 = vadd.f32 0.0, %v1361
          %v1363 = vpop.f32.mrf.mxu0
          %v1364 = vadd.f32 0.0, %v1363
          %v1365 = vpop.f32.mrf.mxu0
          %v1366 = vadd.f32 0.0, %v1365
          %v1367 = vpop.f32.mrf.mxu0
          %v1368 = vadd.f32 0.0, %v1367
          %1369 = vdwg.mxu0
          %1370 = vst [vmem:[%s408] sm:$0xff] %v1212
          %1371 = vst [vmem:[%s408 + $0x8] sm:$0xff] %v1214
          %1372 = vst [vmem:[%s408 + $0x10] sm:$0xff] %v1216
          %1373 = vst [vmem:[%s408 + $0x18] sm:$0xff] %v1218
          %1374 = vst [vmem:[%s408 + $0x20] sm:$0xff] %v1222
          %1375 = vst [vmem:[%s408 + $0x28] sm:$0xff] %v1224
          %1376 = vst [vmem:[%s408 + $0x30] sm:$0xff] %v1226
          %1377 = vst [vmem:[%s408 + $0x38] sm:$0xff] %v1228
          %1378 = vst [vmem:[%s408 + $0x40] sm:$0xff] %v1232
          %1379 = vst [vmem:[%s408 + $0x48] sm:$0xff] %v1234
          %1380 = vst [vmem:[%s408 + $0x50] sm:$0xff] %v1236
          %1381 = vst [vmem:[%s408 + $0x58] sm:$0xff] %v1238
          %1382 = vst [vmem:[%s408 + $0x60] sm:$0xff] %v1242
          %1383 = vst [vmem:[%s408 + $0x68] sm:$0xff] %v1244
          %1384 = vst [vmem:[%s408 + $0x70] sm:$0xff] %v1246
          %1385 = vst [vmem:[%s408 + $0x78] sm:$0xff] %v1248
          %1386 = vst [vmem:[%s408 + $0x80] sm:$0xff] %v1252
          %1387 = vst [vmem:[%s408 + $0x88] sm:$0xff] %v1254
          %1388 = vst [vmem:[%s408 + $0x90] sm:$0xff] %v1256
          %1389 = vst [vmem:[%s408 + $0x98] sm:$0xff] %v1258
          %1390 = vst [vmem:[%s408 + $0xa0] sm:$0xff] %v1262
          %1391 = vst [vmem:[%s408 + $0xa8] sm:$0xff] %v1264
          %1392 = vst [vmem:[%s408 + $0xb0] sm:$0xff] %v1266
          %1393 = vst [vmem:[%s408 + $0xb8] sm:$0xff] %v1268
          %1394 = vst [vmem:[%s408 + $0xc0] sm:$0xff] %v1272
          %1395 = vst [vmem:[%s408 + $0xc8] sm:$0xff] %v1274
          %1396 = vst [vmem:[%s408 + $0xd0] sm:$0xff] %v1276
          %1397 = vst [vmem:[%s408 + $0xd8] sm:$0xff] %v1278
          %1398 = vst [vmem:[%s408 + $0xe0] sm:$0xff] %v1282
          %1399 = vst [vmem:[%s408 + $0xe8] sm:$0xff] %v1284
          %1400 = vst [vmem:[%s408 + $0xf0] sm:$0xff] %v1286
          %1401 = vst [vmem:[%s408 + $0xf8] sm:$0xff] %v1288
          %1402 = vst [vmem:[%s408 + $0x100] sm:$0xff] %v1292
          %1403 = vst [vmem:[%s408 + $0x108] sm:$0xff] %v1294
          %1404 = vst [vmem:[%s408 + $0x110] sm:$0xff] %v1296
          %1405 = vst [vmem:[%s408 + $0x118] sm:$0xff] %v1298
          %1406 = vst [vmem:[%s408 + $0x120] sm:$0xff] %v1302
          %1407 = vst [vmem:[%s408 + $0x128] sm:$0xff] %v1304
          %1408 = vst [vmem:[%s408 + $0x130] sm:$0xff] %v1306
          %1409 = vst [vmem:[%s408 + $0x138] sm:$0xff] %v1308
          %1410 = vst [vmem:[%s408 + $0x140] sm:$0xff] %v1312
          %1411 = vst [vmem:[%s408 + $0x148] sm:$0xff] %v1314
          %1412 = vst [vmem:[%s408 + $0x150] sm:$0xff] %v1316
          %1413 = vst [vmem:[%s408 + $0x158] sm:$0xff] %v1318
          %1414 = vst [vmem:[%s408 + $0x160] sm:$0xff] %v1322
          %1415 = vst [vmem:[%s408 + $0x168] sm:$0xff] %v1324
          %1416 = vst [vmem:[%s408 + $0x170] sm:$0xff] %v1326
          %1417 = vst [vmem:[%s408 + $0x178] sm:$0xff] %v1328
          %1418 = vst [vmem:[%s408 + $0x180] sm:$0xff] %v1332
          %1419 = vst [vmem:[%s408 + $0x188] sm:$0xff] %v1334
          %1420 = vst [vmem:[%s408 + $0x190] sm:$0xff] %v1336
          %1421 = vst [vmem:[%s408 + $0x198] sm:$0xff] %v1338
          %1422 = vst [vmem:[%s408 + $0x1a0] sm:$0xff] %v1342
          %1423 = vst [vmem:[%s408 + $0x1a8] sm:$0xff] %v1344
          %1424 = vst [vmem:[%s408 + $0x1b0] sm:$0xff] %v1346
          %1425 = vst [vmem:[%s408 + $0x1b8] sm:$0xff] %v1348
          %1426 = vst [vmem:[%s408 + $0x1c0] sm:$0xff] %v1352
          %1427 = vst [vmem:[%s408 + $0x1c8] sm:$0xff] %v1354
          %1428 = vst [vmem:[%s408 + $0x1d0] sm:$0xff] %v1356
          %1429 = vst [vmem:[%s408 + $0x1d8] sm:$0xff] %v1358
          %1430 = vst [vmem:[%s408 + $0x1e0] sm:$0xff] %v1362
          %1431 = vst [vmem:[%s408 + $0x1e8] sm:$0xff] %v1364
          %1432 = vst [vmem:[%s408 + $0x1f0] sm:$0xff] %v1366
          %1433 = vst [vmem:[%s408 + $0x1f8] sm:$0xff] %v1368
          %v1434 = vadd.f32 %v1212, %v1216
          %v1435 = vadd.f32 %v1434, %v1222
          %v1436 = vadd.f32 %v1435, %v1226
          %v1437 = vadd.f32 %v1436, %v1232
          %v1438 = vadd.f32 %v1437, %v1236
          %v1439 = vadd.f32 %v1438, %v1242
          %v1440 = vadd.f32 %v1439, %v1246
          %v1441 = vadd.f32 %v1440, %v1252
          %v1442 = vadd.f32 %v1441, %v1256
          %v1443 = vadd.f32 %v1442, %v1262
          %v1444 = vadd.f32 %v1443, %v1266
          %v1445 = vadd.f32 %v1444, %v1272
          %v1446 = vadd.f32 %v1445, %v1276
          %v1447 = vadd.f32 %v1446, %v1282
          %v1448 = vadd.f32 %v1447, %v1286
          %v1449 = vadd.f32 %v1448, %v1292
          %v1450 = vadd.f32 %v1449, %v1296
          %v1451 = vadd.f32 %v1450, %v1302
          %v1452 = vadd.f32 %v1451, %v1306
          %v1453 = vadd.f32 %v1452, %v1312
          %v1454 = vadd.f32 %v1453, %v1316
          %v1455 = vadd.f32 %v1454, %v1322
          %v1456 = vadd.f32 %v1455, %v1326
          %v1457 = vadd.f32 %v1456, %v1332
          %v1458 = vadd.f32 %v1457, %v1336
          %v1459 = vadd.f32 %v1458, %v1342
          %v1460 = vadd.f32 %v1459, %v1346
          %v1461 = vadd.f32 %v1460, %v1352
          %v1462 = vadd.f32 %v1461, %v1356
          %v1463 = vadd.f32 %v1462, %v1362
          %v1464 = vadd.f32 %v1463, %v1366
          %v1465 = vrot.slane %v1464, 4
          %v1466 = vadd.f32 %v1464, %v1465
          %v1467 = vrot.slane %v1466, 2
          %v1468 = vadd.f32 %v1466, %v1467
          %v1469 = vrot.slane %v1468, 1
          %v1470 = vadd.f32 %v1468, %v1469
          %v1471 = vadd.f32 %v1214, %v1218
          %v1472 = vadd.f32 %v1471, %v1224
          %v1473 = vadd.f32 %v1472, %v1228
          %v1474 = vadd.f32 %v1473, %v1234
          %v1475 = vadd.f32 %v1474, %v1238
          %v1476 = vadd.f32 %v1475, %v1244
          %v1477 = vadd.f32 %v1476, %v1248
          %v1478 = vadd.f32 %v1477, %v1254
          %v1479 = vadd.f32 %v1478, %v1258
          %v1480 = vadd.f32 %v1479, %v1264
          %v1481 = vadd.f32 %v1480, %v1268
          %v1482 = vadd.f32 %v1481, %v1274
          %v1483 = vadd.f32 %v1482, %v1278
          %v1484 = vadd.f32 %v1483, %v1284
          %v1485 = vadd.f32 %v1484, %v1288
          %v1486 = vadd.f32 %v1485, %v1294
          %v1487 = vadd.f32 %v1486, %v1298
          %v1488 = vadd.f32 %v1487, %v1304
          %v1489 = vadd.f32 %v1488, %v1308
          %v1490 = vadd.f32 %v1489, %v1314
          %v1491 = vadd.f32 %v1490, %v1318
          %v1492 = vadd.f32 %v1491, %v1324
          %v1493 = vadd.f32 %v1492, %v1328
          %v1494 = vadd.f32 %v1493, %v1334
          %v1495 = vadd.f32 %v1494, %v1338
          %v1496 = vadd.f32 %v1495, %v1344
          %v1497 = vadd.f32 %v1496, %v1348
          %v1498 = vadd.f32 %v1497, %v1354
          %v1499 = vadd.f32 %v1498, %v1358
          %v1500 = vadd.f32 %v1499, %v1364
          %v1501 = vadd.f32 %v1500, %v1368
          %v1502 = vrot.slane %v1501, 4
          %v1503 = vadd.f32 %v1501, %v1502
          %v1504 = vrot.slane %v1503, 2
          %v1505 = vadd.f32 %v1503, %v1504
          %v1506 = vrot.slane %v1505, 1
          %v1507 = vadd.f32 %v1505, %v1506
          %v1508 = vmul.f32 %v1212, %v1212
          %v1509 = vmul.f32 %v1214, %v1214
          %v1510 = vmul.f32 %v1216, %v1216
          %v1511 = vmul.f32 %v1218, %v1218
          %v1512 = vmul.f32 %v1222, %v1222
          %v1513 = vmul.f32 %v1224, %v1224
          %v1514 = vmul.f32 %v1226, %v1226
          %v1515 = vmul.f32 %v1228, %v1228
          %v1516 = vmul.f32 %v1232, %v1232
          %v1517 = vmul.f32 %v1234, %v1234
          %v1518 = vmul.f32 %v1236, %v1236
          %v1519 = vmul.f32 %v1238, %v1238
          %v1520 = vmul.f32 %v1242, %v1242
          %v1521 = vmul.f32 %v1244, %v1244
          %v1522 = vmul.f32 %v1246, %v1246
          %v1523 = vmul.f32 %v1248, %v1248
          %v1524 = vmul.f32 %v1252, %v1252
          %v1525 = vmul.f32 %v1254, %v1254
          %v1526 = vmul.f32 %v1256, %v1256
          %v1527 = vmul.f32 %v1258, %v1258
          %v1528 = vmul.f32 %v1262, %v1262
          %v1529 = vmul.f32 %v1264, %v1264
          %v1530 = vmul.f32 %v1266, %v1266
          %v1531 = vmul.f32 %v1268, %v1268
          %v1532 = vmul.f32 %v1272, %v1272
          %v1533 = vmul.f32 %v1274, %v1274
          %v1534 = vmul.f32 %v1276, %v1276
          %v1535 = vmul.f32 %v1278, %v1278
          %v1536 = vmul.f32 %v1282, %v1282
          %v1537 = vmul.f32 %v1284, %v1284
          %v1538 = vmul.f32 %v1286, %v1286
          %v1539 = vmul.f32 %v1288, %v1288
          %v1540 = vmul.f32 %v1292, %v1292
          %v1541 = vmul.f32 %v1294, %v1294
          %v1542 = vmul.f32 %v1296, %v1296
          %v1543 = vmul.f32 %v1298, %v1298
          %v1544 = vmul.f32 %v1302, %v1302
          %v1545 = vmul.f32 %v1304, %v1304
          %v1546 = vmul.f32 %v1306, %v1306
          %v1547 = vmul.f32 %v1308, %v1308
          %v1548 = vmul.f32 %v1312, %v1312
          %v1549 = vmul.f32 %v1314, %v1314
          %v1550 = vmul.f32 %v1316, %v1316
          %v1551 = vmul.f32 %v1318, %v1318
          %v1552 = vmul.f32 %v1322, %v1322
          %v1553 = vmul.f32 %v1324, %v1324
          %v1554 = vmul.f32 %v1326, %v1326
          %v1555 = vmul.f32 %v1328, %v1328
          %v1556 = vmul.f32 %v1332, %v1332
          %v1557 = vmul.f32 %v1334, %v1334
          %v1558 = vmul.f32 %v1336, %v1336
          %v1559 = vmul.f32 %v1338, %v1338
          %v1560 = vmul.f32 %v1342, %v1342
          %v1561 = vmul.f32 %v1344, %v1344
          %v1562 = vmul.f32 %v1346, %v1346
          %v1563 = vmul.f32 %v1348, %v1348
          %v1564 = vmul.f32 %v1352, %v1352
          %v1565 = vmul.f32 %v1354, %v1354
          %v1566 = vmul.f32 %v1356, %v1356
          %v1567 = vmul.f32 %v1358, %v1358
          %v1568 = vmul.f32 %v1362, %v1362
          %v1569 = vmul.f32 %v1364, %v1364
          %v1570 = vmul.f32 %v1366, %v1366
          %v1571 = vmul.f32 %v1368, %v1368
          %v1572 = vadd.f32 %v1508, %v1510
          %v1573 = vadd.f32 %v1572, %v1512
          %v1574 = vadd.f32 %v1573, %v1514
          %v1575 = vadd.f32 %v1574, %v1516
          %v1576 = vadd.f32 %v1575, %v1518
          %v1577 = vadd.f32 %v1576, %v1520
          %v1578 = vadd.f32 %v1577, %v1522
          %v1579 = vadd.f32 %v1578, %v1524
          %v1580 = vadd.f32 %v1579, %v1526
          %v1581 = vadd.f32 %v1580, %v1528
          %v1582 = vadd.f32 %v1581, %v1530
          %v1583 = vadd.f32 %v1582, %v1532
          %v1584 = vadd.f32 %v1583, %v1534
          %v1585 = vadd.f32 %v1584, %v1536
          %v1586 = vadd.f32 %v1585, %v1538
          %v1587 = vadd.f32 %v1586, %v1540
          %v1588 = vadd.f32 %v1587, %v1542
          %v1589 = vadd.f32 %v1588, %v1544
          %v1590 = vadd.f32 %v1589, %v1546
          %v1591 = vadd.f32 %v1590, %v1548
          %v1592 = vadd.f32 %v1591, %v1550
          %v1593 = vadd.f32 %v1592, %v1552
          %v1594 = vadd.f32 %v1593, %v1554
          %v1595 = vadd.f32 %v1594, %v1556
          %v1596 = vadd.f32 %v1595, %v1558
          %v1597 = vadd.f32 %v1596, %v1560
          %v1598 = vadd.f32 %v1597, %v1562
          %v1599 = vadd.f32 %v1598, %v1564
          %v1600 = vadd.f32 %v1599, %v1566
          %v1601 = vadd.f32 %v1600, %v1568
          %v1602 = vadd.f32 %v1601, %v1570
          %v1603 = vrot.slane %v1602, 4
          %v1604 = vadd.f32 %v1602, %v1603
          %v1605 = vrot.slane %v1604, 2
          %v1606 = vadd.f32 %v1604, %v1605
          %v1607 = vrot.slane %v1606, 1
          %v1608 = vadd.f32 %v1606, %v1607
          %v1609 = vadd.f32 %v1509, %v1511
          %v1610 = vadd.f32 %v1609, %v1513
          %v1611 = vadd.f32 %v1610, %v1515
          %v1612 = vadd.f32 %v1611, %v1517
          %v1613 = vadd.f32 %v1612, %v1519
          %v1614 = vadd.f32 %v1613, %v1521
          %v1615 = vadd.f32 %v1614, %v1523
          %v1616 = vadd.f32 %v1615, %v1525
          %v1617 = vadd.f32 %v1616, %v1527
          %v1618 = vadd.f32 %v1617, %v1529
          %v1619 = vadd.f32 %v1618, %v1531
          %v1620 = vadd.f32 %v1619, %v1533
          %v1621 = vadd.f32 %v1620, %v1535
          %v1622 = vadd.f32 %v1621, %v1537
          %v1623 = vadd.f32 %v1622, %v1539
          %v1624 = vadd.f32 %v1623, %v1541
          %v1625 = vadd.f32 %v1624, %v1543
          %v1626 = vadd.f32 %v1625, %v1545
          %v1627 = vadd.f32 %v1626, %v1547
          %v1628 = vadd.f32 %v1627, %v1549
          %v1629 = vadd.f32 %v1628, %v1551
          %v1630 = vadd.f32 %v1629, %v1553
          %v1631 = vadd.f32 %v1630, %v1555
          %v1632 = vadd.f32 %v1631, %v1557
          %v1633 = vadd.f32 %v1632, %v1559
          %v1634 = vadd.f32 %v1633, %v1561
          %v1635 = vadd.f32 %v1634, %v1563
          %v1636 = vadd.f32 %v1635, %v1565
          %v1637 = vadd.f32 %v1636, %v1567
          %v1638 = vadd.f32 %v1637, %v1569
          %v1639 = vadd.f32 %v1638, %v1571
          %v1640 = vrot.slane %v1639, 4
          %v1641 = vadd.f32 %v1639, %v1640
          %v1642 = vrot.slane %v1641, 2
          %v1643 = vadd.f32 %v1641, %v1642
          %v1644 = vrot.slane %v1643, 1
          %v1645 = vadd.f32 %v1643, %v1644
          %v1646 = vlaneseq
          %v1647 = vshrl.u32 %v1646, 7
          %vm1648 = vcmp.eq.s32.totalorder %v1647, 0
          %vm1649 = vcmp.eq.s32.totalorder %v1647, 1
          %v1650 = vsel %vm1649, %v1608, 0.0
          %v1651 = vsel %vm1649, %v1645, 0.0
          %v1652 = vsel %vm1648, %v1470, %v1650
          %v1653 = vsel %vm1648, %v1507, %v1651
          %1654 = vst [vmem:[%s414] sm:$0xff] %v1652
          %1655 = vst [vmem:[%s414 + $0x8] sm:$0xff] %v1653
        $region78: #{gcn_forward.15} parent=65 // pred_fallthru
          _
        %s1656 = smul.u32 32, %s20
        %p1657 = scmp.lt.s32.totalorder %s1656, 63
        %s1658 = scalar_select %p1657, %s1656, 63
        %s1659 = smul.addr %s1658, 2
        %s1660 = smul.addr %s1659, 8
        %s1661 = scalar_lea.vmem %s3, %s1660
        %p1662 = scmp.lt.s32.totalorder %s20, 1
        %s1663 = scalar_select %p1662, %s20, 1
        %s1664 = smul.addr %s1663, 2
        %s1665 = smul.addr %s1664, 8
        %s1666 = scalar_lea.vmem %s4, %s1665
        // Predicated region
        $region79: #{gcn_forward.15} parent=65 // pred_check
          %p1667 = pneg %p121
        $region80: #{gcn_forward.15} parent=65 // pred_check_branch
          %1669 = sbr.rel (%p1667) target = $region82
        $region81: #{gcn_forward.15} parent=65 // pred_region
          %s1670 = smul.u32 32, %s20
        $region82: #{gcn_forward.15} parent=65 // pred_fallthru
          _
        // Predicated region
        $region83: #{gcn_forward.15} parent=65 // pred_check
          %p1671 = pneg %p147
        $region84: #{gcn_forward.15} parent=65 // pred_check_branch
          %1673 = sbr.rel (%p1671) target = $region86
        $region85: #{gcn_forward.15} parent=65 // pred_region
          _
        $region86: #{gcn_forward.15} parent=65 // pred_fallthru
          _
      $region66: #{gcn_forward.15} parent=5 // pred_fallthru
        _
      %p1674 = scmp.le.s32.totalorder 2, %s11
      // Predicated region
      $region87: #{gcn_forward.15} parent=5 // pred_check
        %p1675 = pneg %p1674
      $region88: #{gcn_forward.15} parent=5 // pred_check_branch
        %1677 = sbr.rel (%p1675) target = $region90
      $region89: #{gcn_forward.15} parent=5 // pred_region
        %s1678 = ssub.s32 %s11, 2
        // Predicated region
        $region91: #{gcn_forward.15} parent=89 // pred_check
          %p1679 = pneg %p127
        $region92: #{gcn_forward.15} parent=89 // pred_check_branch
          %1681 = sbr.rel (%p1679) target = $region94
        $region93: #{gcn_forward.15} parent=89 // pred_region
          %s1682 = smul.u32 32, %s22
          %p1683 = scmp.lt.s32.totalorder %s1682, 63
          %s1684 = scalar_select %p1683, %s1682, 63
          %s1685 = smul.addr %s1684, 2
          %s1686 = smul.addr %s1685, 8
          %s1687 = scalar_lea.vmem %s3, %s1686
        $region94: #{gcn_forward.15} parent=89 // pred_fallthru
          _
        // Predicated region
        $region95: #{gcn_forward.15} parent=89 // pred_check
          %p1688 = pneg %p153
        $region96: #{gcn_forward.15} parent=89 // pred_check_branch
          %1690 = sbr.rel (%p1688) target = $region98
        $region97: #{gcn_forward.15} parent=89 // pred_region
          %p1691 = scmp.lt.s32.totalorder %s22, 1
          %s1692 = scalar_select %p1691, %s22, 1
          %s1693 = smul.addr %s1692, 2
          %s1694 = smul.addr %s1693, 8
          %s1695 = scalar_lea.vmem %s4, %s1694
        $region98: #{gcn_forward.15} parent=89 // pred_fallthru
          _
      $region90: #{gcn_forward.15} parent=5 // pred_fallthru
        _
    $region6: #{gcn_forward.15} parent=1 // loop_footer
      %s15 = sadd.s32 1, %s11
    $region7: #{gcn_forward.15} parent=1 // loop_footer_branch
      %10 = sbr.rel target = $region3
    $region8: #{gcn_forward.15} parent=1 // loop_exit
      _

// kernel: gcn_forward.20
$region0: #{gcn_forward.20}
  #allocation0 [shape = 'u32[]', space=smem, size = 0x4, offset = 0x4, fixed_abs, tag = 'smem constant byte address 0x4 - core index']
  #allocation1 [shape = 'u32[144,128]{1,0:T(1,128)}', space=vmem, size = 0x12000, scoped, tag = 'internal scratch']
  #allocation2 [shape = 'f32[256,128]{1,0:T(8,128)}', space=vmem, size = 0x20000, scoped, tag = 'scratch operand']
  %s0 = inlined_call_operand.vmem [shape: bf16[512,512], index: 0, kind: input, shape index: {}]
  %s1 = inlined_call_operand.vmem [shape: bf16[512,128], index: 1, kind: input, shape index: {}]
  %s2 = inlined_call_operand.vmem [shape: f32[512,128], index: 2, kind: output, shape index: {0}]
  %s3 = inlined_call_operand.vmem [shape: f32[2,8,128], index: 3, kind: output, shape index: {1}]
  %4 = xla_tuple %s2, %s3
  %s5 = sld [smem:[#allocation0]]
  $region95: #{gcn_forward.20} parent=0
    _
  %s7 = ssub.s32 1, %s5
  %s8 = scalar_select 0, %s7, %s5
  $region1: #{gcn_forward.20} parent=0
    #allocation3 [shape = 'u8[262144]{0}', space=vmem, size = 0x40000, scoped, tag = 'input window, operand 0']
    loop: start=0, step=1, limit=6
    $region2: #{gcn_forward.20} parent=1 // loop_pre_header
      _
    $region3: #{gcn_forward.20} parent=1 // loop_header
      %s10 = sphi 0, %s14
      %p11 = scmp.ge.s32.totalorder %s10, 6
      %s17 = sphi 0, %s29
      %s18 = sphi 0, %s25
      %s19 = sphi 0, %s17
      %s20 = sphi 0, %s18
      %s21 = sphi 0, %s19
      %s22 = sphi 0, %s20
      %s34 = sphi 0, %s36
      %s37 = sphi 0, %s34
      %s38 = sphi 0, %s37
      %s54 = sphi 0, %s38
      %s60 = sphi 0, %s62
      %s63 = sphi 0, %s60
      %s64 = sphi 0, %s63
      %s80 = sphi 0, %s64
      %s86 = sphi 0, %s88
      %s89 = sphi 0, %s86
      %s90 = sphi 0, %s89
      %s106 = sphi 0, %s90
      %s112 = sphi 0, %s114
      %s115 = sphi 0, %s112
      %s116 = sphi 0, %s115
      %s132 = sphi 0, %s116
    $region4: #{gcn_forward.20} parent=1 // loop_header_branch
      %13 = sbr.rel (%p11) target = $region8
    $region5: #{gcn_forward.20} parent=1 // loop_body
      %s15 = ssub.s32 %s10, 1
      %s16 = ssub.s32 %s10, 2
      %s23 = sadd.s32 1, %s18
      %p24 = scmp.ge.s32.totalorder %s23, 2
      %s25 = scalar_select %p24, 0, %s23
      %s26 = sadd.s32 1, %s17
      %s27 = scalar_select %p24, %s26, %s17
      %p28 = scmp.ge.s32.totalorder %s27, 2
      %s29 = scalar_select %p28, 0, %s27
      %s30 = ssub.s32 %s17, %s29
      %s31 = ssub.s32 %s18, %s25
      %s32 = sor.u32 %s30, %s31
      %p33 = scmp.eq.s32.totalorder %s32, 0
      %s35 = sadd.s32 %s34, 1
      %s36 = scalar_select %p33, %s34, %s35
      %p39 = pneg %p33
      %p40 = scmp.eq.s32.totalorder %s10, 3
      %p41 = por %p39, %p40
      %p42 = scmp.ne.s32.totalorder %s34, %s37
      %p43 = scmp.eq.s32.totalorder %s10, 0
      %p44 = por %p42, %p43
      %p45 = scmp.ne.s32.totalorder %s34, %s37
      %p46 = scmp.eq.s32.totalorder %s15, 3
      %p47 = por %p45, %p46
      %p48 = scmp.ne.s32.totalorder %s37, %s38
      %p49 = scmp.eq.s32.totalorder %s15, 0
      %p50 = por %p48, %p49
      %p51 = scmp.ne.s32.totalorder %s37, %s38
      %p52 = scmp.eq.s32.totalorder %s16, 3
      %p53 = por %p51, %p52
      %p55 = scmp.ne.s32.totalorder %s38, %s54
      %p56 = scmp.eq.s32.totalorder %s16, 0
      %p57 = por %p55, %p56
      %s58 = ssub.s32 %s18, %s25
      %p59 = scmp.eq.s32.totalorder %s58, 0
      %s61 = sadd.s32 %s60, 1
      %s62 = scalar_select %p59, %s60, %s61
      %p65 = pneg %p59
      %p66 = scmp.eq.s32.totalorder %s10, 3
      %p67 = por %p65, %p66
      %p68 = scmp.ne.s32.totalorder %s60, %s63
      %p69 = scmp.eq.s32.totalorder %s10, 0
      %p70 = por %p68, %p69
      %p71 = scmp.ne.s32.totalorder %s60, %s63
      %p72 = scmp.eq.s32.totalorder %s15, 3
      %p73 = por %p71, %p72
      %p74 = scmp.ne.s32.totalorder %s63, %s64
      %p75 = scmp.eq.s32.totalorder %s15, 0
      %p76 = por %p74, %p75
      %p77 = scmp.ne.s32.totalorder %s63, %s64
      %p78 = scmp.eq.s32.totalorder %s16, 3
      %p79 = por %p77, %p78
      %p81 = scmp.ne.s32.totalorder %s64, %s80
      %p82 = scmp.eq.s32.totalorder %s16, 0
      %p83 = por %p81, %p82
      %s84 = ssub.s32 %s17, %s29
      %p85 = scmp.eq.s32.totalorder %s84, 0
      %s87 = sadd.s32 %s86, 1
      %s88 = scalar_select %p85, %s86, %s87
      %p91 = pneg %p85
      %p92 = scmp.eq.s32.totalorder %s10, 3
      %p93 = por %p91, %p92
      %p94 = scmp.ne.s32.totalorder %s86, %s89
      %p95 = scmp.eq.s32.totalorder %s10, 0
      %p96 = por %p94, %p95
      %p97 = scmp.ne.s32.totalorder %s86, %s89
      %p98 = scmp.eq.s32.totalorder %s15, 3
      %p99 = por %p97, %p98
      %p100 = scmp.ne.s32.totalorder %s89, %s90
      %p101 = scmp.eq.s32.totalorder %s15, 0
      %p102 = por %p100, %p101
      %p103 = scmp.ne.s32.totalorder %s89, %s90
      %p104 = scmp.eq.s32.totalorder %s16, 3
      %p105 = por %p103, %p104
      %p107 = scmp.ne.s32.totalorder %s90, %s106
      %p108 = scmp.eq.s32.totalorder %s16, 0
      %p109 = por %p107, %p108
      %s110 = ssub.s32 %s17, %s29
      %p111 = scmp.eq.s32.totalorder %s110, 0
      %s113 = sadd.s32 %s112, 1
      %s114 = scalar_select %p111, %s112, %s113
      %p117 = pneg %p111
      %p118 = scmp.eq.s32.totalorder %s10, 3
      %p119 = por %p117, %p118
      %p120 = scmp.ne.s32.totalorder %s112, %s115
      %p121 = scmp.eq.s32.totalorder %s10, 0
      %p122 = por %p120, %p121
      %p123 = scmp.ne.s32.totalorder %s112, %s115
      %p124 = scmp.eq.s32.totalorder %s15, 3
      %p125 = por %p123, %p124
      %p126 = scmp.ne.s32.totalorder %s115, %s116
      %p127 = scmp.eq.s32.totalorder %s15, 0
      %p128 = por %p126, %p127
      %p129 = scmp.ne.s32.totalorder %s115, %s116
      %p130 = scmp.eq.s32.totalorder %s16, 3
      %p131 = por %p129, %p130
      %p133 = scmp.ne.s32.totalorder %s116, %s132
      %p134 = scmp.eq.s32.totalorder %s16, 0
      %p135 = por %p133, %p134
      %p136 = scmp.le.s32.totalorder 1, %s10
      %p137 = scmp.lt.s32.totalorder %s10, 5
      %p138 = pnand %p136, %p137
      %p139 = pneg %p138
      // Predicated region
      $region9: #{gcn_forward.20} parent=5 // pred_check
        _
      $region10: #{gcn_forward.20} parent=5 // pred_check_branch
        %141 = sbr.rel (%p138) target = $region12
      $region11: #{gcn_forward.20} parent=5 // pred_region
        %s142 = ssub.s32 %s10, 1
      $region12: #{gcn_forward.20} parent=5 // pred_fallthru
        _
      %p143 = scmp.lt.s32.totalorder %s10, 4
      // Predicated region
      $region13: #{gcn_forward.20} parent=5 // pred_check
        %p144 = pneg %p143
      $region14: #{gcn_forward.20} parent=5 // pred_check_branch
        %146 = sbr.rel (%p144) target = $region16
      $region15: #{gcn_forward.20} parent=5 // pred_region
        // Predicated region
        $region17: #{gcn_forward.20} parent=15 // pred_check
          %p147 = pneg %p44
        $region18: #{gcn_forward.20} parent=15 // pred_check_branch
          %149 = sbr.rel (%p147) target = $region20
        $region19: #{gcn_forward.20} parent=15 // pred_region
          %s150 = sand.u32 %s34, 1
          %s151 = sand.u32 %s34, 1
          %s152 = smul.addr %s151, 256
          %s153 = scalar_lea.vmem [#allocation3], %s152
          %s154 = smul.u32 32, %s17
          %s155 = smul.u32 2, %s18
          %s156 = smul.addr %s154, 4
          %s157 = sadd.s32 %s155, %s156
          %s158 = smul.addr %s157, 4
          %s159 = scalar_lea.vmem %s0, %s158
          // Predicated region
          $region21: #{gcn_forward.20} parent=19 // pred_check
            _
          $region22: #{gcn_forward.20} parent=19 // pred_check_branch
            %161 = sbr.rel (0) target = $region24
          $region23: #{gcn_forward.20} parent=19 // pred_region
            // Predicated region
            $region25: #{gcn_forward.20} parent=23 // pred_check
              _
            $region26: #{gcn_forward.20} parent=23 // pred_check_branch
              %163 = sbr.rel (0) target = $region28
            $region27: #{gcn_forward.20} parent=23 // pred_region
              // Predicated region
              $region40: #{gcn_forward.20} parent=27 // pred_check
                _
              $region41: #{gcn_forward.20} parent=27 // pred_check_branch
                %241 = sbr.rel (0) target = $region43
              $region42: #{gcn_forward.20} parent=27 // pred_region
                loop: start=0, step=1, limit=1
                $region44: #{gcn_forward.20} parent=42 // loop_pre_header
                  _
                $region45: #{gcn_forward.20} parent=42 // loop_header
                  %s243 = sphi 0, %s247
                  %p244 = scmp.ge.s32.totalorder %s243, 1
                  %s248 = sphi %s159, %s159
                  %s249 = sphi %s153, %s153
                $region46: #{gcn_forward.20} parent=42 // loop_header_branch
                  %246 = sbr.rel (%p244) target = $region50
                $region47: #{gcn_forward.20} parent=42 // loop_body
                  %v250 = vld [vmem:[%s248] sm:$0xff]
                  %251 = vst [vmem:[%s249] sm:$0xff] %v250
                  %v252 = vld [vmem:[%s248 + $0x10] sm:$0xff]
                  %253 = vst [vmem:[%s249 + $0x8] sm:$0xff] %v252
                  %v254 = vld [vmem:[%s248 + $0x20] sm:$0xff]
                  %255 = vst [vmem:[%s249 + $0x10] sm:$0xff] %v254
                  %v256 = vld [vmem:[%s248 + $0x30] sm:$0xff]
                  %257 = vst [vmem:[%s249 + $0x18] sm:$0xff] %v256
                  %v258 = vld [vmem:[%s248 + $0x40] sm:$0xff]
                  %259 = vst [vmem:[%s249 + $0x20] sm:$0xff] %v258
                  %v260 = vld [vmem:[%s248 + $0x50] sm:$0xff]
                  %261 = vst [vmem:[%s249 + $0x28] sm:$0xff] %v260
                  %v262 = vld [vmem:[%s248 + $0x60] sm:$0xff]
                  %263 = vst [vmem:[%s249 + $0x30] sm:$0xff] %v262
                  %v264 = vld [vmem:[%s248 + $0x70] sm:$0xff]
                  %265 = vst [vmem:[%s249 + $0x38] sm:$0xff] %v264
                  %v266 = vld [vmem:[%s248 + $0x80] sm:$0xff]
                  %267 = vst [vmem:[%s249 + $0x40] sm:$0xff] %v266
                  %v268 = vld [vmem:[%s248 + $0x90] sm:$0xff]
                  %269 = vst [vmem:[%s249 + $0x48] sm:$0xff] %v268
                  %v270 = vld [vmem:[%s248 + $0xa0] sm:$0xff]
                  %271 = vst [vmem:[%s249 + $0x50] sm:$0xff] %v270
                  %v272 = vld [vmem:[%s248 + $0xb0] sm:$0xff]
                  %273 = vst [vmem:[%s249 + $0x58] sm:$0xff] %v272
                  %v274 = vld [vmem:[%s248 + $0xc0] sm:$0xff]
                  %275 = vst [vmem:[%s249 + $0x60] sm:$0xff] %v274
                  %v276 = vld [vmem:[%s248 + $0xd0] sm:$0xff]
                  %277 = vst [vmem:[%s249 + $0x68] sm:$0xff] %v276
                  %v278 = vld [vmem:[%s248 + $0xe0] sm:$0xff]
                  %279 = vst [vmem:[%s249 + $0x70] sm:$0xff] %v278
                  %v280 = vld [vmem:[%s248 + $0xf0] sm:$0xff]
                  %281 = vst [vmem:[%s249 + $0x78] sm:$0xff] %v280
                  %v282 = vld [vmem:[%s248 + $0x100] sm:$0xff]
                  %283 = vst [vmem:[%s249 + $0x80] sm:$0xff] %v282
                  %v284 = vld [vmem:[%s248 + $0x110] sm:$0xff]
                  %285 = vst [vmem:[%s249 + $0x88] sm:$0xff] %v284
                  %v286 = vld [vmem:[%s248 + $0x120] sm:$0xff]
                  %287 = vst [vmem:[%s249 + $0x90] sm:$0xff] %v286
                  %v288 = vld [vmem:[%s248 + $0x130] sm:$0xff]
                  %289 = vst [vmem:[%s249 + $0x98] sm:$0xff] %v288
                  %v290 = vld [vmem:[%s248 + $0x140] sm:$0xff]
                  %291 = vst [vmem:[%s249 + $0xa0] sm:$0xff] %v290
                  %v292 = vld [vmem:[%s248 + $0x150] sm:$0xff]
                  %293 = vst [vmem:[%s249 + $0xa8] sm:$0xff] %v292
                  %v294 = vld [vmem:[%s248 + $0x160] sm:$0xff]
                  %295 = vst [vmem:[%s249 + $0xb0] sm:$0xff] %v294
                  %v296 = vld [vmem:[%s248 + $0x170] sm:$0xff]
                  %297 = vst [vmem:[%s249 + $0xb8] sm:$0xff] %v296
                  %v298 = vld [vmem:[%s248 + $0x180] sm:$0xff]
                  %299 = vst [vmem:[%s249 + $0xc0] sm:$0xff] %v298
                  %v300 = vld [vmem:[%s248 + $0x190] sm:$0xff]
                  %301 = vst [vmem:[%s249 + $0xc8] sm:$0xff] %v300
                  %v302 = vld [vmem:[%s248 + $0x1a0] sm:$0xff]
                  %303 = vst [vmem:[%s249 + $0xd0] sm:$0xff] %v302
                  %v304 = vld [vmem:[%s248 + $0x1b0] sm:$0xff]
                  %305 = vst [vmem:[%s249 + $0xd8] sm:$0xff] %v304
                  %v306 = vld [vmem:[%s248 + $0x1c0] sm:$0xff]
                  %307 = vst [vmem:[%s249 + $0xe0] sm:$0xff] %v306
                  %v308 = vld [vmem:[%s248 + $0x1d0] sm:$0xff]
                  %309 = vst [vmem:[%s249 + $0xe8] sm:$0xff] %v308
                  %v310 = vld [vmem:[%s248 + $0x1e0] sm:$0xff]
                  %311 = vst [vmem:[%s249 + $0xf0] sm:$0xff] %v310
                  %v312 = vld [vmem:[%s248 + $0x1f0] sm:$0xff]
                  %313 = vst [vmem:[%s249 + $0xf8] sm:$0xff] %v312
                $region48: #{gcn_forward.20} parent=42 // loop_footer
                  %s247 = sadd.s32 1, %s243
                $region49: #{gcn_forward.20} parent=42 // loop_footer_branch
                  %242 = sbr.rel target = $region45
                $region50: #{gcn_forward.20} parent=42 // loop_exit
                  _
              $region43: #{gcn_forward.20} parent=27 // pred_fallthru
                _
              // Predicated region
              $region51: #{gcn_forward.20} parent=27 // pred_check
                _
              $region52: #{gcn_forward.20} parent=27 // pred_check_branch
                %315 = sbr.rel target = $region54
              $region53: #{gcn_forward.20} parent=27 // pred_region
                _
              $region54: #{gcn_forward.20} parent=27 // pred_fallthru
                _
            $region28: #{gcn_forward.20} parent=23 // pred_fallthru
              _
            // Predicated region
            $region29: #{gcn_forward.20} parent=23 // pred_check
              _
            $region30: #{gcn_forward.20} parent=23 // pred_check_branch
              %165 = sbr.rel target = $region32
            $region31: #{gcn_forward.20} parent=23 // pred_region
              %s167 = ssub.s32 256, 1
              loop: start=0, step=1, limit=1
              $region33: #{gcn_forward.20} parent=31 // loop_pre_header
                _
              $region34: #{gcn_forward.20} parent=31 // loop_header
                %s169 = sphi 0, %s173
                %p170 = scmp.ge.s32.totalorder %s169, 1
                %s174 = sphi %s159, %s159
                %s175 = sphi %s153, %s153
              $region35: #{gcn_forward.20} parent=31 // loop_header_branch
                %172 = sbr.rel (%p170) target = $region39
              $region36: #{gcn_forward.20} parent=31 // loop_body
                %v176 = vld [vmem:[%s174] sm:%s167]
                %177 = vst [vmem:[%s175] sm:%s167] %v176
                %v178 = vld [vmem:[%s174 + $0x10] sm:%s167]
                %179 = vst [vmem:[%s175 + $0x8] sm:%s167] %v178
                %v180 = vld [vmem:[%s174 + $0x20] sm:%s167]
                %181 = vst [vmem:[%s175 + $0x10] sm:%s167] %v180
                %v182 = vld [vmem:[%s174 + $0x30] sm:%s167]
                %183 = vst [vmem:[%s175 + $0x18] sm:%s167] %v182
                %v184 = vld [vmem:[%s174 + $0x40] sm:%s167]
                %185 = vst [vmem:[%s175 + $0x20] sm:%s167] %v184
                %v186 = vld [vmem:[%s174 + $0x50] sm:%s167]
                %187 = vst [vmem:[%s175 + $0x28] sm:%s167] %v186
                %v188 = vld [vmem:[%s174 + $0x60] sm:%s167]
                %189 = vst [vmem:[%s175 + $0x30] sm:%s167] %v188
                %v190 = vld [vmem:[%s174 + $0x70] sm:%s167]
                %191 = vst [vmem:[%s175 + $0x38] sm:%s167] %v190
                %v192 = vld [vmem:[%s174 + $0x80] sm:%s167]
                %193 = vst [vmem:[%s175 + $0x40] sm:%s167] %v192
                %v194 = vld [vmem:[%s174 + $0x90] sm:%s167]
                %195 = vst [vmem:[%s175 + $0x48] sm:%s167] %v194
                %v196 = vld [vmem:[%s174 + $0xa0] sm:%s167]
                %197 = vst [vmem:[%s175 + $0x50] sm:%s167] %v196
                %v198 = vld [vmem:[%s174 + $0xb0] sm:%s167]
                %199 = vst [vmem:[%s175 + $0x58] sm:%s167] %v198
                %v200 = vld [vmem:[%s174 + $0xc0] sm:%s167]
                %201 = vst [vmem:[%s175 + $0x60] sm:%s167] %v200
                %v202 = vld [vmem:[%s174 + $0xd0] sm:%s167]
                %203 = vst [vmem:[%s175 + $0x68] sm:%s167] %v202
                %v204 = vld [vmem:[%s174 + $0xe0] sm:%s167]
                %205 = vst [vmem:[%s175 + $0x70] sm:%s167] %v204
                %v206 = vld [vmem:[%s174 + $0xf0] sm:%s167]
                %207 = vst [vmem:[%s175 + $0x78] sm:%s167] %v206
                %v208 = vld [vmem:[%s174 + $0x100] sm:%s167]
                %209 = vst [vmem:[%s175 + $0x80] sm:%s167] %v208
                %v210 = vld [vmem:[%s174 + $0x110] sm:%s167]
                %211 = vst [vmem:[%s175 + $0x88] sm:%s167] %v210
                %v212 = vld [vmem:[%s174 + $0x120] sm:%s167]
                %213 = vst [vmem:[%s175 + $0x90] sm:%s167] %v212
                %v214 = vld [vmem:[%s174 + $0x130] sm:%s167]
                %215 = vst [vmem:[%s175 + $0x98] sm:%s167] %v214
                %v216 = vld [vmem:[%s174 + $0x140] sm:%s167]
                %217 = vst [vmem:[%s175 + $0xa0] sm:%s167] %v216
                %v218 = vld [vmem:[%s174 + $0x150] sm:%s167]
                %219 = vst [vmem:[%s175 + $0xa8] sm:%s167] %v218
                %v220 = vld [vmem:[%s174 + $0x160] sm:%s167]
                %221 = vst [vmem:[%s175 + $0xb0] sm:%s167] %v220
                %v222 = vld [vmem:[%s174 + $0x170] sm:%s167]
                %223 = vst [vmem:[%s175 + $0xb8] sm:%s167] %v222
                %v224 = vld [vmem:[%s174 + $0x180] sm:%s167]
                %225 = vst [vmem:[%s175 + $0xc0] sm:%s167] %v224
                %v226 = vld [vmem:[%s174 + $0x190] sm:%s167]
                %227 = vst [vmem:[%s175 + $0xc8] sm:%s167] %v226
                %v228 = vld [vmem:[%s174 + $0x1a0] sm:%s167]
                %229 = vst [vmem:[%s175 + $0xd0] sm:%s167] %v228
                %v230 = vld [vmem:[%s174 + $0x1b0] sm:%s167]
                %231 = vst [vmem:[%s175 + $0xd8] sm:%s167] %v230
                %v232 = vld [vmem:[%s174 + $0x1c0] sm:%s167]
                %233 = vst [vmem:[%s175 + $0xe0] sm:%s167] %v232
                %v234 = vld [vmem:[%s174 + $0x1d0] sm:%s167]
                %235 = vst [vmem:[%s175 + $0xe8] sm:%s167] %v234
                %v236 = vld [vmem:[%s174 + $0x1e0] sm:%s167]
                %237 = vst [vmem:[%s175 + $0xf0] sm:%s167] %v236
                %v238 = vld [vmem:[%s174 + $0x1f0] sm:%s167]
                %239 = vst [vmem:[%s175 + $0xf8] sm:%s167] %v238
              $region37: #{gcn_forward.20} parent=31 // loop_footer
                %s173 = sadd.s32 1, %s169
              $region38: #{gcn_forward.20} parent=31 // loop_footer_branch
                %168 = sbr.rel target = $region34
              $region39: #{gcn_forward.20} parent=31 // loop_exit
                _
            $region32: #{gcn_forward.20} parent=23 // pred_fallthru
              _
          $region24: #{gcn_forward.20} parent=19 // pred_fallthru
            _
          %316 = vnop
        $region20: #{gcn_forward.20} parent=15 // pred_fallthru
          _
        // Predicated region
        $region55: #{gcn_forward.20} parent=15 // pred_check
          %p317 = pneg %p70
        $region56: #{gcn_forward.20} parent=15 // pred_check_branch
          %319 = sbr.rel (%p317) target = $region58
        $region57: #{gcn_forward.20} parent=15 // pred_region
          %s320 = smul.u32 32, %s18
          %p321 = scmp.lt.s32.totalorder %s320, 63
          %s322 = scalar_select %p321, %s320, 63
          %s323 = smul.addr %s322, 4
          %s324 = scalar_lea.vmem %s1, %s323
          %s325 = smul.u32 32, %s18
        $region58: #{gcn_forward.20} parent=15 // pred_fallthru
          _
      $region16: #{gcn_forward.20} parent=5 // pred_fallthru
        _
      %p326 = scmp.le.s32.totalorder 1, %s10
      %p327 = scmp.lt.s32.totalorder %s10, 5
      %p328 = pnand %p326, %p327
      %p329 = pneg %p328
      // Predicated region
      $region59: #{gcn_forward.20} parent=5 // pred_check
        _
      $region60: #{gcn_forward.20} parent=5 // pred_check_branch
        %331 = sbr.rel (%p328) target = $region62
      $region61: #{gcn_forward.20} parent=5 // pred_region
        %s332 = ssub.s32 %s10, 1
        %s333 = sand.u32 %s37, 1
        %s334 = sand.u32 %s37, 1
        %s335 = smul.addr %s334, 256
        %s336 = scalar_lea.vmem [#allocation3], %s335
        // Predicated region
        $region63: #{gcn_forward.20} parent=61 // pred_check
          %p337 = pneg %p50
        $region64: #{gcn_forward.20} parent=61 // pred_check_branch
          %339 = sbr.rel (%p337) target = $region66
        $region65: #{gcn_forward.20} parent=61 // pred_region
          _
        $region66: #{gcn_forward.20} parent=61 // pred_fallthru
          _
        %s340 = sand.u32 %s37, 1
        %s341 = sand.u32 %s37, 1
        %s342 = smul.addr %s341, 256
        %s343 = scalar_lea.vmem [#allocation3], %s342
        %p344 = pneg %p50
        %p345 = pneg %p47
        %s346 = smul.u32 32, %s20
        %p347 = scmp.lt.s32.totalorder %s346, 63
        %s348 = scalar_select %p347, %s346, 63
        %s349 = smul.addr %s348, 4
        %s350 = scalar_lea.vmem %s1, %s349
        %p351 = pneg %p76
        %p352 = pneg %p73
        %p353 = pneg %p102
        %p354 = pneg %p99
        %s355 = smul.u32 32, %s19
        %p356 = scmp.lt.s32.totalorder %s355, 63
        %s357 = scalar_select %p356, %s355, 63
        %s358 = smul.addr %s357, 8
        %s359 = scalar_lea.vmem %s2, %s358
        %p360 = pneg %p128
        %p361 = pneg %p125
        %p362 = scmp.lt.s32.totalorder %s19, 1
        %s363 = scalar_select %p362, %s19, 1
        %s364 = smul.addr %s363, 8
        %s365 = scalar_lea.vmem %s3, %s364
        %s366 = smul.u32 32, %s19
        %s367 = smul.u32 2, %s20
        %s368 = smul.u32 32, %s20
        %p369 = scmp.lt.s32.totalorder %s368, 63
        %s370 = scalar_select %p369, %s368, 63
        %s371 = smul.addr %s370, 4
        %s372 = scalar_lea.vmem %s1, %s371
        %s373 = smul.u32 32, %s20
        %s374 = smul.u32 32, %s19
        %p375 = scmp.lt.s32.totalorder %s374, 63
        %s376 = scalar_select %p375, %s374, 63
        %s377 = smul.addr %s376, 8
        %s378 = scalar_lea.vmem %s2, %s377
        %s379 = smul.u32 32, %s19
        %p380 = scmp.lt.s32.totalorder %s19, 1
        %s381 = scalar_select %p380, %s19, 1
        %s382 = smul.addr %s381, 8
        %s383 = scalar_lea.vmem %s3, %s382
        %p385 = scmp.eq.s32.totalorder %s20, 0
        // Predicated region
        $region67: #{gcn_forward.20} parent=61 // pred_check
          %p386 = pneg %p385
        $region68: #{gcn_forward.20} parent=61 // pred_check_branch
          %388 = sbr.rel (%p386) target = $region70
        $region69: #{gcn_forward.20} parent=61 // pred_region
          %389 = vst [vmem:[#allocation2] sm:$0xff] 0.0
          %390 = vst [vmem:[#allocation2 + $0x8] sm:$0xff] 0.0
          %391 = vst [vmem:[#allocation2 + $0x10] sm:$0xff] 0.0
          %392 = vst [vmem:[#allocation2 + $0x18] sm:$0xff] 0.0
          %393 = vst [vmem:[#allocation2 + $0x20] sm:$0xff] 0.0
          %394 = vst [vmem:[#allocation2 + $0x28] sm:$0xff] 0.0
          %395 = vst [vmem:[#allocation2 + $0x30] sm:$0xff] 0.0
          %396 = vst [vmem:[#allocation2 + $0x38] sm:$0xff] 0.0
          %397 = vst [vmem:[#allocation2 + $0x40] sm:$0xff] 0.0
          %398 = vst [vmem:[#allocation2 + $0x48] sm:$0xff] 0.0
          %399 = vst [vmem:[#allocation2 + $0x50] sm:$0xff] 0.0
          %400 = vst [vmem:[#allocation2 + $0x58] sm:$0xff] 0.0
          %401 = vst [vmem:[#allocation2 + $0x60] sm:$0xff] 0.0
          %402 = vst [vmem:[#allocation2 + $0x68] sm:$0xff] 0.0
          %403 = vst [vmem:[#allocation2 + $0x70] sm:$0xff] 0.0
          %404 = vst [vmem:[#allocation2 + $0x78] sm:$0xff] 0.0
          %405 = vst [vmem:[#allocation2 + $0x80] sm:$0xff] 0.0
          %406 = vst [vmem:[#allocation2 + $0x88] sm:$0xff] 0.0
          %407 = vst [vmem:[#allocation2 + $0x90] sm:$0xff] 0.0
          %408 = vst [vmem:[#allocation2 + $0x98] sm:$0xff] 0.0
          %409 = vst [vmem:[#allocation2 + $0xa0] sm:$0xff] 0.0
          %410 = vst [vmem:[#allocation2 + $0xa8] sm:$0xff] 0.0
          %411 = vst [vmem:[#allocation2 + $0xb0] sm:$0xff] 0.0
          %412 = vst [vmem:[#allocation2 + $0xb8] sm:$0xff] 0.0
          %413 = vst [vmem:[#allocation2 + $0xc0] sm:$0xff] 0.0
          %414 = vst [vmem:[#allocation2 + $0xc8] sm:$0xff] 0.0
          %415 = vst [vmem:[#allocation2 + $0xd0] sm:$0xff] 0.0
          %416 = vst [vmem:[#allocation2 + $0xd8] sm:$0xff] 0.0
          %417 = vst [vmem:[#allocation2 + $0xe0] sm:$0xff] 0.0
          %418 = vst [vmem:[#allocation2 + $0xe8] sm:$0xff] 0.0
          %419 = vst [vmem:[#allocation2 + $0xf0] sm:$0xff] 0.0
          %420 = vst [vmem:[#allocation2 + $0xf8] sm:$0xff] 0.0
        $region70: #{gcn_forward.20} parent=61 // pred_fallthru
          _
        %v421 = vld [vmem:[#allocation2] sm:$0xff]
        %v422 = vld [vmem:[#allocation2 + $0x8] sm:$0xff]
        %v423 = vld [vmem:[#allocation2 + $0x10] sm:$0xff]
        %v424 = vld [vmem:[#allocation2 + $0x18] sm:$0xff]
        %v425 = vld [vmem:[#allocation2 + $0x20] sm:$0xff]
        %v426 = vld [vmem:[#allocation2 + $0x28] sm:$0xff]
        %v427 = vld [vmem:[#allocation2 + $0x30] sm:$0xff]
        %v428 = vld [vmem:[#allocation2 + $0x38] sm:$0xff]
        %v429 = vld [vmem:[#allocation2 + $0x40] sm:$0xff]
        %v430 = vld [vmem:[#allocation2 + $0x48] sm:$0xff]
        %v431 = vld [vmem:[#allocation2 + $0x50] sm:$0xff]
        %v432 = vld [vmem:[#allocation2 + $0x58] sm:$0xff]
        %v433 = vld [vmem:[#allocation2 + $0x60] sm:$0xff]
        %v434 = vld [vmem:[#allocation2 + $0x68] sm:$0xff]
        %v435 = vld [vmem:[#allocation2 + $0x70] sm:$0xff]
        %v436 = vld [vmem:[#allocation2 + $0x78] sm:$0xff]
        %v437 = vld [vmem:[#allocation2 + $0x80] sm:$0xff]
        %v438 = vld [vmem:[#allocation2 + $0x88] sm:$0xff]
        %v439 = vld [vmem:[#allocation2 + $0x90] sm:$0xff]
        %v440 = vld [vmem:[#allocation2 + $0x98] sm:$0xff]
        %v441 = vld [vmem:[#allocation2 + $0xa0] sm:$0xff]
        %v442 = vld [vmem:[#allocation2 + $0xa8] sm:$0xff]
        %v443 = vld [vmem:[#allocation2 + $0xb0] sm:$0xff]
        %v444 = vld [vmem:[#allocation2 + $0xb8] sm:$0xff]
        %v445 = vld [vmem:[#allocation2 + $0xc0] sm:$0xff]
        %v446 = vld [vmem:[#allocation2 + $0xc8] sm:$0xff]
        %v447 = vld [vmem:[#allocation2 + $0xd0] sm:$0xff]
        %v448 = vld [vmem:[#allocation2 + $0xd8] sm:$0xff]
        %v449 = vld [vmem:[#allocation2 + $0xe0] sm:$0xff]
        %v450 = vld [vmem:[#allocation2 + $0xe8] sm:$0xff]
        %v451 = vld [vmem:[#allocation2 + $0xf0] sm:$0xff]
        %v452 = vld [vmem:[#allocation2 + $0xf8] sm:$0xff]
        %v453 = vld [vmem:[%s336] sm:$0xff]
        %v454 = vld [vmem:[%s336 + $0x8] sm:$0xff]
        %v455 = vld [vmem:[%s336 + $0x10] sm:$0xff]
        %v456 = vld [vmem:[%s336 + $0x18] sm:$0xff]
        %v457 = vld [vmem:[%s336 + $0x20] sm:$0xff]
        %v458 = vld [vmem:[%s336 + $0x28] sm:$0xff]
        %v459 = vld [vmem:[%s336 + $0x30] sm:$0xff]
        %v460 = vld [vmem:[%s336 + $0x38] sm:$0xff]
        %v461 = vld [vmem:[%s336 + $0x40] sm:$0xff]
        %v462 = vld [vmem:[%s336 + $0x48] sm:$0xff]
        %v463 = vld [vmem:[%s336 + $0x50] sm:$0xff]
        %v464 = vld [vmem:[%s336 + $0x58] sm:$0xff]
        %v465 = vld [vmem:[%s336 + $0x60] sm:$0xff]
        %v466 = vld [vmem:[%s336 + $0x68] sm:$0xff]
        %v467 = vld [vmem:[%s336 + $0x70] sm:$0xff]
        %v468 = vld [vmem:[%s336 + $0x78] sm:$0xff]
        %v469 = vld [vmem:[%s336 + $0x80] sm:$0xff]
        %v470 = vld [vmem:[%s336 + $0x88] sm:$0xff]
        %v471 = vld [vmem:[%s336 + $0x90] sm:$0xff]
        %v472 = vld [vmem:[%s336 + $0x98] sm:$0xff]
        %v473 = vld [vmem:[%s336 + $0xa0] sm:$0xff]
        %v474 = vld [vmem:[%s336 + $0xa8] sm:$0xff]
        %v475 = vld [vmem:[%s336 + $0xb0] sm:$0xff]
        %v476 = vld [vmem:[%s336 + $0xb8] sm:$0xff]
        %v477 = vld [vmem:[%s336 + $0xc0] sm:$0xff]
        %v478 = vld [vmem:[%s336 + $0xc8] sm:$0xff]
        %v479 = vld [vmem:[%s336 + $0xd0] sm:$0xff]
        %v480 = vld [vmem:[%s336 + $0xd8] sm:$0xff]
        %v481 = vld [vmem:[%s336 + $0xe0] sm:$0xff]
        %v482 = vld [vmem:[%s336 + $0xe8] sm:$0xff]
        %v483 = vld [vmem:[%s336 + $0xf0] sm:$0xff]
        %v484 = vld [vmem:[%s336 + $0xf8] sm:$0xff]
        %v485 = vld [vmem:[%s372] sm:$0xf]
        %v486 = vld [vmem:[%s372 + $0x4] sm:$0xf]
        %v487 = vld [vmem:[%s372 + $0x8] sm:$0xf]
        %v488 = vld [vmem:[%s372 + $0xc] sm:$0xf]
        %v489 = vld [vmem:[%s372 + $0x10] sm:$0xf]
        %v490 = vld [vmem:[%s372 + $0x14] sm:$0xf]
        %v491 = vld [vmem:[%s372 + $0x18] sm:$0xf]
        %v492 = vld [vmem:[%s372 + $0x1c] sm:$0xf]
        %v493 = vld [vmem:[%s372 + $0x20] sm:$0xf]
        %v494 = vld [vmem:[%s372 + $0x24] sm:$0xf]
        %v495 = vld [vmem:[%s372 + $0x28] sm:$0xf]
        %v496 = vld [vmem:[%s372 + $0x2c] sm:$0xf]
        %v497 = vld [vmem:[%s372 + $0x30] sm:$0xf]
        %v498 = vld [vmem:[%s372 + $0x34] sm:$0xf]
        %v499 = vld [vmem:[%s372 + $0x38] sm:$0xf]
        %v500 = vld [vmem:[%s372 + $0x3c] sm:$0xf]
        %v501 = vld [vmem:[%s372 + $0x40] sm:$0xf]
        %v502 = vld [vmem:[%s372 + $0x44] sm:$0xf]
        %v503 = vld [vmem:[%s372 + $0x48] sm:$0xf]
        %v504 = vld [vmem:[%s372 + $0x4c] sm:$0xf]
        %v505 = vld [vmem:[%s372 + $0x50] sm:$0xf]
        %v506 = vld [vmem:[%s372 + $0x54] sm:$0xf]
        %v507 = vld [vmem:[%s372 + $0x58] sm:$0xf]
        %v508 = vld [vmem:[%s372 + $0x5c] sm:$0xf]
        %v509 = vld [vmem:[%s372 + $0x60] sm:$0xf]
        %v510 = vld [vmem:[%s372 + $0x64] sm:$0xf]
        %v511 = vld [vmem:[%s372 + $0x68] sm:$0xf]
        %v512 = vld [vmem:[%s372 + $0x6c] sm:$0xf]
        %v513 = vld [vmem:[%s372 + $0x70] sm:$0xf]
        %v514 = vld [vmem:[%s372 + $0x74] sm:$0xf]
        %v515 = vld [vmem:[%s372 + $0x78] sm:$0xf]
        %v516 = vld [vmem:[%s372 + $0x7c] sm:$0xf]
        %v549 = vunpack.c.l.b16 %v453
        %v550 = vunpack.c.h.b16 %v453
        %v551 = vunpack.c.l.b16 %v454
        %v552 = vunpack.c.h.b16 %v454
        %v553 = vunpack.c.l.b16 %v455
        %v554 = vunpack.c.h.b16 %v455
        %v555 = vunpack.c.l.b16 %v456
        %v556 = vunpack.c.h.b16 %v456
        %v557 = vunpack.c.l.b16 %v457
        %v558 = vunpack.c.h.b16 %v457
        %v559 = vunpack.c.l.b16 %v458
        %v560 = vunpack.c.h.b16 %v458
        %v561 = vunpack.c.l.b16 %v459
        %v562 = vunpack.c.h.b16 %v459
        %v563 = vunpack.c.l.b16 %v460
        %v564 = vunpack.c.h.b16 %v460
        %v565 = vunpack.c.l.b16 %v461
        %v566 = vunpack.c.h.b16 %v461
        %v567 = vunpack.c.l.b16 %v462
        %v568 = vunpack.c.h.b16 %v462
        %v569 = vunpack.c.l.b16 %v463
        %v570 = vunpack.c.h.b16 %v463
        %v571 = vunpack.c.l.b16 %v464
        %v572 = vunpack.c.h.b16 %v464
        %v573 = vunpack.c.l.b16 %v465
        %v574 = vunpack.c.h.b16 %v465
        %v575 = vunpack.c.l.b16 %v466
        %v576 = vunpack.c.h.b16 %v466
        %v577 = vunpack.c.l.b16 %v467
        %v578 = vunpack.c.h.b16 %v467
        %v579 = vunpack.c.l.b16 %v468
        %v580 = vunpack.c.h.b16 %v468
        %v581 = vunpack.c.l.b16 %v469
        %v582 = vunpack.c.h.b16 %v469
        %v583 = vunpack.c.l.b16 %v470
        %v584 = vunpack.c.h.b16 %v470
        %v585 = vunpack.c.l.b16 %v471
        %v586 = vunpack.c.h.b16 %v471
        %v587 = vunpack.c.l.b16 %v472
        %v588 = vunpack.c.h.b16 %v472
        %v589 = vunpack.c.l.b16 %v473
        %v590 = vunpack.c.h.b16 %v473
        %v591 = vunpack.c.l.b16 %v474
        %v592 = vunpack.c.h.b16 %v474
        %v593 = vunpack.c.l.b16 %v475
        %v594 = vunpack.c.h.b16 %v475
        %v595 = vunpack.c.l.b16 %v476
        %v596 = vunpack.c.h.b16 %v476
        %v597 = vunpack.c.l.b16 %v477
        %v598 = vunpack.c.h.b16 %v477
        %v599 = vunpack.c.l.b16 %v478
        %v600 = vunpack.c.h.b16 %v478
        %v601 = vunpack.c.l.b16 %v479
        %v602 = vunpack.c.h.b16 %v479
        %v603 = vunpack.c.l.b16 %v480
        %v604 = vunpack.c.h.b16 %v480
        %v605 = vunpack.c.l.b16 %v481
        %v606 = vunpack.c.h.b16 %v481
        %v607 = vunpack.c.l.b16 %v482
        %v608 = vunpack.c.h.b16 %v482
        %v609 = vunpack.c.l.b16 %v483
        %v610 = vunpack.c.h.b16 %v483
        %v611 = vunpack.c.l.b16 %v484
        %v612 = vunpack.c.h.b16 %v484
        %v613 = vpack.c.b16 %v551, %v549
        %v614 = vpack.c.b16 %v552, %v550
        %v615 = vpack.c.b16 %v555, %v553
        %v616 = vpack.c.b16 %v556, %v554
        %v617 = vpack.c.b16 %v559, %v557
        %v618 = vpack.c.b16 %v560, %v558
        %v619 = vpack.c.b16 %v563, %v561
        %v620 = vpack.c.b16 %v564, %v562
        %v621 = vpack.c.b16 %v567, %v565
        %v622 = vpack.c.b16 %v568, %v566
        %v623 = vpack.c.b16 %v571, %v569
        %v624 = vpack.c.b16 %v572, %v570
        %v625 = vpack.c.b16 %v575, %v573
        %v626 = vpack.c.b16 %v576, %v574
        %v627 = vpack.c.b16 %v579, %v577
        %v628 = vpack.c.b16 %v580, %v578
        %v629 = vpack.c.b16 %v583, %v581
        %v630 = vpack.c.b16 %v584, %v582
        %v631 = vpack.c.b16 %v587, %v585
        %v632 = vpack.c.b16 %v588, %v586
        %v633 = vpack.c.b16 %v591, %v589
        %v634 = vpack.c.b16 %v592, %v590
        %v635 = vpack.c.b16 %v595, %v593
        %v636 = vpack.c.b16 %v596, %v594
        %v637 = vpack.c.b16 %v599, %v597
        %v638 = vpack.c.b16 %v600, %v598
        %v639 = vpack.c.b16 %v603, %v601
        %v640 = vpack.c.b16 %v604, %v602
        %v641 = vpack.c.b16 %v607, %v605
        %v642 = vpack.c.b16 %v608, %v606
        %v643 = vpack.c.b16 %v611, %v609
        %v644 = vpack.c.b16 %v612, %v610
        %v709 = vunpack.c.l.b16 %v485
        %v710 = vunpack.c.l.b16 %v486
        %v711 = vunpack.c.l.b16 %v487
        %v712 = vunpack.c.l.b16 %v488
        %v713 = vunpack.c.l.b16 %v489
        %v714 = vunpack.c.l.b16 %v490
        %v715 = vunpack.c.l.b16 %v491
        %v716 = vunpack.c.l.b16 %v492
        %v717 = vunpack.c.l.b16 %v493
        %v718 = vunpack.c.l.b16 %v494
        %v719 = vunpack.c.l.b16 %v495
        %v720 = vunpack.c.l.b16 %v496
        %v721 = vunpack.c.l.b16 %v497
        %v722 = vunpack.c.l.b16 %v498
        %v723 = vunpack.c.l.b16 %v499
        %v724 = vunpack.c.l.b16 %v500
        %v725 = vunpack.c.l.b16 %v501
        %v726 = vunpack.c.l.b16 %v502
        %v727 = vunpack.c.l.b16 %v503
        %v728 = vunpack.c.l.b16 %v504
        %v729 = vunpack.c.l.b16 %v505
        %v730 = vunpack.c.l.b16 %v506
        %v731 = vunpack.c.l.b16 %v507
        %v732 = vunpack.c.l.b16 %v508
        %v733 = vunpack.c.l.b16 %v509
        %v734 = vunpack.c.l.b16 %v510
        %v735 = vunpack.c.l.b16 %v511
        %v736 = vunpack.c.l.b16 %v512
        %v737 = vunpack.c.l.b16 %v513
        %v738 = vunpack.c.l.b16 %v514
        %v739 = vunpack.c.l.b16 %v515
        %v740 = vunpack.c.l.b16 %v516
        %v741 = vpack.c.b16 %v710, %v709
        %v742 = vpack.c.b16 %v712, %v711
        %v743 = vpack.c.b16 %v714, %v713
        %v744 = vpack.c.b16 %v716, %v715
        %v745 = vpack.c.b16 %v718, %v717
        %v746 = vpack.c.b16 %v720, %v719
        %v747 = vpack.c.b16 %v722, %v721
        %v748 = vpack.c.b16 %v724, %v723
        %v749 = vpack.c.b16 %v726, %v725
        %v750 = vpack.c.b16 %v728, %v727
        %v751 = vpack.c.b16 %v730, %v729
        %v752 = vpack.c.b16 %v732, %v731
        %v753 = vpack.c.b16 %v734, %v733
        %v754 = vpack.c.b16 %v736, %v735
        %v755 = vpack.c.b16 %v738, %v737
        %v756 = vpack.c.b16 %v740, %v739
        %773 = vmatprep.subr.bf16.mxu0 0
        %774 = vmatpush1.bf16.msra.mxu0 %v748
        %775 = vmatprep.subr.bf16.mxu0 0
        %776 = vmatpush1.bf16.msra.mxu0 %v747
        %777 = vmatprep.subr.bf16.mxu0 0
        %778 = vmatpush1.bf16.msra.mxu0 %v746
        %779 = vmatprep.subr.bf16.mxu0 0
        %780 = vmatpush1.bf16.msra.mxu0 %v745
        %781 = vmatprep.subr.bf16.mxu0 0
        %782 = vmatpush1.bf16.msra.mxu0 %v744
        %783 = vmatprep.subr.bf16.mxu0 0
        %784 = vmatpush1.bf16.msra.mxu0 %v743
        %785 = vmatprep.subr.bf16.mxu0 0
        %786 = vmatpush1.bf16.msra.mxu0 %v742
        %787 = vmatprep.subr.bf16.mxu0 0
        %788 = vmatpush1.bf16.msra.mxu0 %v741
        %789 = vmatprep.subr.bf16.mxu0 0
        %790 = vmatpush2.bf16.msra.mxu0 %v756
        %791 = vmatprep.subr.bf16.mxu0 0
        %792 = vmatpush2.bf16.msra.mxu0 %v755
        %793 = vmatprep.subr.bf16.mxu0 0
        %794 = vmatpush2.bf16.msra.mxu0 %v754
        %795 = vmatprep.subr.bf16.mxu0 0
        %796 = vmatpush2.bf16.msra.mxu0 %v753
        %797 = vmatprep.subr.bf16.mxu0 0
        %798 = vmatpush2.bf16.msra.mxu0 %v752
        %799 = vmatprep.subr.bf16.mxu0 0
        %800 = vmatpush2.bf16.msra.mxu0 %v751
        %801 = vmatprep.subr.bf16.mxu0 0
        %802 = vmatpush2.bf16.msra.mxu0 %v750
        %803 = vmatprep.subr.bf16.mxu0 0
        %804 = vmatpush2.bf16.msra.mxu0 %v749
        %805 = vmatprep.mubr.bf16.mxu0 %v614
        %806 = vmatmul.mubr.bf16.gmra.mxu0 %v613
        %v807 = vpop.f32.mrf.mxu0
        %v808 = vadd.f32 0.0, %v807
        %v809 = vpop.f32.mrf.mxu0
        %v810 = vpop.f32.mrf.mxu0
        %v811 = vadd.f32 0.0, %v810
        %v812 = vpop.f32.mrf.mxu0
        %813 = vmatprep.mubr.bf16.mxu0 %v616
        %814 = vmatmul.mubr.bf16.gmra.mxu0 %v615
        %v815 = vpop.f32.mrf.mxu0
        %v816 = vadd.f32 0.0, %v815
        %v817 = vpop.f32.mrf.mxu0
        %v818 = vpop.f32.mrf.mxu0
        %v819 = vadd.f32 0.0, %v818
        %v820 = vpop.f32.mrf.mxu0
        %821 = vmatprep.mubr.bf16.mxu0 %v618
        %822 = vmatmul.mubr.bf16.gmra.mxu0 %v617
        %v823 = vpop.f32.mrf.mxu0
        %v824 = vadd.f32 0.0, %v823
        %v825 = vpop.f32.mrf.mxu0
        %v826 = vpop.f32.mrf.mxu0
        %v827 = vadd.f32 0.0, %v826
        %v828 = vpop.f32.mrf.mxu0
        %829 = vmatprep.mubr.bf16.mxu0 %v620
        %830 = vmatmul.mubr.bf16.gmra.mxu0 %v619
        %v831 = vpop.f32.mrf.mxu0
        %v832 = vadd.f32 0.0, %v831
        %v833 = vpop.f32.mrf.mxu0
        %v834 = vpop.f32.mrf.mxu0
        %v835 = vadd.f32 0.0, %v834
        %v836 = vpop.f32.mrf.mxu0
        %837 = vmatprep.mubr.bf16.mxu0 %v622
        %838 = vmatmul.mubr.bf16.gmra.mxu0 %v621
        %v839 = vpop.f32.mrf.mxu0
        %v840 = vadd.f32 0.0, %v839
        %v841 = vpop.f32.mrf.mxu0
        %v842 = vpop.f32.mrf.mxu0
        %v843 = vadd.f32 0.0, %v842
        %v844 = vpop.f32.mrf.mxu0
        %845 = vmatprep.mubr.bf16.mxu0 %v624
        %846 = vmatmul.mubr.bf16.gmra.mxu0 %v623
        %v847 = vpop.f32.mrf.mxu0
        %v848 = vadd.f32 0.0, %v847
        %v849 = vpop.f32.mrf.mxu0
        %v850 = vpop.f32.mrf.mxu0
        %v851 = vadd.f32 0.0, %v850
        %v852 = vpop.f32.mrf.mxu0
        %853 = vmatprep.mubr.bf16.mxu0 %v626
        %854 = vmatmul.mubr.bf16.gmra.mxu0 %v625
        %v855 = vpop.f32.mrf.mxu0
        %v856 = vadd.f32 0.0, %v855
        %v857 = vpop.f32.mrf.mxu0
        %v858 = vpop.f32.mrf.mxu0
        %v859 = vadd.f32 0.0, %v858
        %v860 = vpop.f32.mrf.mxu0
        %861 = vmatprep.mubr.bf16.mxu0 %v628
        %862 = vmatmul.mubr.bf16.gmra.mxu0 %v627
        %v863 = vpop.f32.mrf.mxu0
        %v864 = vadd.f32 0.0, %v863
        %v865 = vpop.f32.mrf.mxu0
        %v866 = vpop.f32.mrf.mxu0
        %v867 = vadd.f32 0.0, %v866
        %v868 = vpop.f32.mrf.mxu0
        %869 = vmatprep.mubr.bf16.mxu0 %v630
        %870 = vmatmul.mubr.bf16.gmra.mxu0 %v629
        %v871 = vpop.f32.mrf.mxu0
        %v872 = vadd.f32 0.0, %v871
        %v873 = vpop.f32.mrf.mxu0
        %v874 = vpop.f32.mrf.mxu0
        %v875 = vadd.f32 0.0, %v874
        %v876 = vpop.f32.mrf.mxu0
        %877 = vmatprep.mubr.bf16.mxu0 %v632
        %878 = vmatmul.mubr.bf16.gmra.mxu0 %v631
        %v879 = vpop.f32.mrf.mxu0
        %v880 = vadd.f32 0.0, %v879
        %v881 = vpop.f32.mrf.mxu0
        %v882 = vpop.f32.mrf.mxu0
        %v883 = vadd.f32 0.0, %v882
        %v884 = vpop.f32.mrf.mxu0
        %885 = vmatprep.mubr.bf16.mxu0 %v634
        %886 = vmatmul.mubr.bf16.gmra.mxu0 %v633
        %v887 = vpop.f32.mrf.mxu0
        %v888 = vadd.f32 0.0, %v887
        %v889 = vpop.f32.mrf.mxu0
        %v890 = vpop.f32.mrf.mxu0
        %v891 = vadd.f32 0.0, %v890
        %v892 = vpop.f32.mrf.mxu0
        %893 = vmatprep.mubr.bf16.mxu0 %v636
        %894 = vmatmul.mubr.bf16.gmra.mxu0 %v635
        %v895 = vpop.f32.mrf.mxu0
        %v896 = vadd.f32 0.0, %v895
        %v897 = vpop.f32.mrf.mxu0
        %v898 = vpop.f32.mrf.mxu0
        %v899 = vadd.f32 0.0, %v898
        %v900 = vpop.f32.mrf.mxu0
        %901 = vmatprep.mubr.bf16.mxu0 %v638
        %902 = vmatmul.mubr.bf16.gmra.mxu0 %v637
        %v903 = vpop.f32.mrf.mxu0
        %v904 = vadd.f32 0.0, %v903
        %v905 = vpop.f32.mrf.mxu0
        %v906 = vpop.f32.mrf.mxu0
        %v907 = vadd.f32 0.0, %v906
        %v908 = vpop.f32.mrf.mxu0
        %909 = vmatprep.mubr.bf16.mxu0 %v640
        %910 = vmatmul.mubr.bf16.gmra.mxu0 %v639
        %v911 = vpop.f32.mrf.mxu0
        %v912 = vadd.f32 0.0, %v911
        %v913 = vpop.f32.mrf.mxu0
        %v914 = vpop.f32.mrf.mxu0
        %v915 = vadd.f32 0.0, %v914
        %v916 = vpop.f32.mrf.mxu0
        %917 = vmatprep.mubr.bf16.mxu0 %v642
        %918 = vmatmul.mubr.bf16.gmra.mxu0 %v641
        %v919 = vpop.f32.mrf.mxu0
        %v920 = vadd.f32 0.0, %v919
        %v921 = vpop.f32.mrf.mxu0
        %v922 = vpop.f32.mrf.mxu0
        %v923 = vadd.f32 0.0, %v922
        %v924 = vpop.f32.mrf.mxu0
        %925 = vmatprep.mubr.bf16.mxu0 %v644
        %926 = vmatmul.mubr.bf16.gmra.mxu0 %v643
        %v927 = vpop.f32.mrf.mxu0
        %v928 = vadd.f32 0.0, %v927
        %v929 = vpop.f32.mrf.mxu0
        %v930 = vpop.f32.mrf.mxu0
        %v931 = vadd.f32 0.0, %v930
        %v932 = vpop.f32.mrf.mxu0
        %933 = vdwg.mxu0
        %v934 = vadd.f32 %v421, %v808
        %v935 = vadd.f32 %v422, %v811
        %v936 = vadd.f32 %v423, %v816
        %v937 = vadd.f32 %v424, %v819
        %v938 = vadd.f32 %v425, %v824
        %v939 = vadd.f32 %v426, %v827
        %v940 = vadd.f32 %v427, %v832
        %v941 = vadd.f32 %v428, %v835
        %v942 = vadd.f32 %v429, %v840
        %v943 = vadd.f32 %v430, %v843
        %v944 = vadd.f32 %v431, %v848
        %v945 = vadd.f32 %v432, %v851
        %v946 = vadd.f32 %v433, %v856
        %v947 = vadd.f32 %v434, %v859
        %v948 = vadd.f32 %v435, %v864
        %v949 = vadd.f32 %v436, %v867
        %v950 = vadd.f32 %v437, %v872
        %v951 = vadd.f32 %v438, %v875
        %v952 = vadd.f32 %v439, %v880
        %v953 = vadd.f32 %v440, %v883
        %v954 = vadd.f32 %v441, %v888
        %v955 = vadd.f32 %v442, %v891
        %v956 = vadd.f32 %v443, %v896
        %v957 = vadd.f32 %v444, %v899
        %v958 = vadd.f32 %v445, %v904
        %v959 = vadd.f32 %v446, %v907
        %v960 = vadd.f32 %v447, %v912
        %v961 = vadd.f32 %v448, %v915
        %v962 = vadd.f32 %v449, %v920
        %v963 = vadd.f32 %v450, %v923
        %v964 = vadd.f32 %v451, %v928
        %v965 = vadd.f32 %v452, %v931
        %966 = vst [vmem:[#allocation2] sm:$0xff] %v934
        %967 = vst [vmem:[#allocation2 + $0x8] sm:$0xff] %v935
        %968 = vst [vmem:[#allocation2 + $0x10] sm:$0xff] %v936
        %969 = vst [vmem:[#allocation2 + $0x18] sm:$0xff] %v937
        %970 = vst [vmem:[#allocation2 + $0x20] sm:$0xff] %v938
        %971 = vst [vmem:[#allocation2 + $0x28] sm:$0xff] %v939
        %972 = vst [vmem:[#allocation2 + $0x30] sm:$0xff] %v940
        %973 = vst [vmem:[#allocation2 + $0x38] sm:$0xff] %v941
        %974 = vst [vmem:[#allocation2 + $0x40] sm:$0xff] %v942
        %975 = vst [vmem:[#allocation2 + $0x48] sm:$0xff] %v943
        %976 = vst [vmem:[#allocation2 + $0x50] sm:$0xff] %v944
        %977 = vst [vmem:[#allocation2 + $0x58] sm:$0xff] %v945
        %978 = vst [vmem:[#allocation2 + $0x60] sm:$0xff] %v946
        %979 = vst [vmem:[#allocation2 + $0x68] sm:$0xff] %v947
        %980 = vst [vmem:[#allocation2 + $0x70] sm:$0xff] %v948
        %981 = vst [vmem:[#allocation2 + $0x78] sm:$0xff] %v949
        %982 = vst [vmem:[#allocation2 + $0x80] sm:$0xff] %v950
        %983 = vst [vmem:[#allocation2 + $0x88] sm:$0xff] %v951
        %984 = vst [vmem:[#allocation2 + $0x90] sm:$0xff] %v952
        %985 = vst [vmem:[#allocation2 + $0x98] sm:$0xff] %v953
        %986 = vst [vmem:[#allocation2 + $0xa0] sm:$0xff] %v954
        %987 = vst [vmem:[#allocation2 + $0xa8] sm:$0xff] %v955
        %988 = vst [vmem:[#allocation2 + $0xb0] sm:$0xff] %v956
        %989 = vst [vmem:[#allocation2 + $0xb8] sm:$0xff] %v957
        %990 = vst [vmem:[#allocation2 + $0xc0] sm:$0xff] %v958
        %991 = vst [vmem:[#allocation2 + $0xc8] sm:$0xff] %v959
        %992 = vst [vmem:[#allocation2 + $0xd0] sm:$0xff] %v960
        %993 = vst [vmem:[#allocation2 + $0xd8] sm:$0xff] %v961
        %994 = vst [vmem:[#allocation2 + $0xe0] sm:$0xff] %v962
        %995 = vst [vmem:[#allocation2 + $0xe8] sm:$0xff] %v963
        %996 = vst [vmem:[#allocation2 + $0xf0] sm:$0xff] %v964
        %997 = vst [vmem:[#allocation2 + $0xf8] sm:$0xff] %v965
        %p998 = scmp.eq.s32.totalorder %s20, 1
        // Predicated region
        $region71: #{gcn_forward.20} parent=61 // pred_check
          %p999 = pneg %p998
        $region72: #{gcn_forward.20} parent=61 // pred_check_branch
          %1001 = sbr.rel (%p999) target = $region74
        $region73: #{gcn_forward.20} parent=61 // pred_region
          %v1002 = vld [vmem:[#allocation2] sm:$0xff]
          %v1003 = vld [vmem:[#allocation2 + $0x8] sm:$0xff]
          %v1004 = vld [vmem:[#allocation2 + $0x10] sm:$0xff]
          %v1005 = vld [vmem:[#allocation2 + $0x18] sm:$0xff]
          %v1006 = vld [vmem:[#allocation2 + $0x20] sm:$0xff]
          %v1007 = vld [vmem:[#allocation2 + $0x28] sm:$0xff]
          %v1008 = vld [vmem:[#allocation2 + $0x30] sm:$0xff]
          %v1009 = vld [vmem:[#allocation2 + $0x38] sm:$0xff]
          %v1010 = vld [vmem:[#allocation2 + $0x40] sm:$0xff]
          %v1011 = vld [vmem:[#allocation2 + $0x48] sm:$0xff]
          %v1012 = vld [vmem:[#allocation2 + $0x50] sm:$0xff]
          %v1013 = vld [vmem:[#allocation2 + $0x58] sm:$0xff]
          %v1014 = vld [vmem:[#allocation2 + $0x60] sm:$0xff]
          %v1015 = vld [vmem:[#allocation2 + $0x68] sm:$0xff]
          %v1016 = vld [vmem:[#allocation2 + $0x70] sm:$0xff]
          %v1017 = vld [vmem:[#allocation2 + $0x78] sm:$0xff]
          %v1018 = vld [vmem:[#allocation2 + $0x80] sm:$0xff]
          %v1019 = vld [vmem:[#allocation2 + $0x88] sm:$0xff]
          %v1020 = vld [vmem:[#allocation2 + $0x90] sm:$0xff]
          %v1021 = vld [vmem:[#allocation2 + $0x98] sm:$0xff]
          %v1022 = vld [vmem:[#allocation2 + $0xa0] sm:$0xff]
          %v1023 = vld [vmem:[#allocation2 + $0xa8] sm:$0xff]
          %v1024 = vld [vmem:[#allocation2 + $0xb0] sm:$0xff]
          %v1025 = vld [vmem:[#allocation2 + $0xb8] sm:$0xff]
          %v1026 = vld [vmem:[#allocation2 + $0xc0] sm:$0xff]
          %v1027 = vld [vmem:[#allocation2 + $0xc8] sm:$0xff]
          %v1028 = vld [vmem:[#allocation2 + $0xd0] sm:$0xff]
          %v1029 = vld [vmem:[#allocation2 + $0xd8] sm:$0xff]
          %v1030 = vld [vmem:[#allocation2 + $0xe0] sm:$0xff]
          %v1031 = vld [vmem:[#allocation2 + $0xe8] sm:$0xff]
          %v1032 = vld [vmem:[#allocation2 + $0xf0] sm:$0xff]
          %v1033 = vld [vmem:[#allocation2 + $0xf8] sm:$0xff]
          %1034 = vst [vmem:[%s378] sm:$0xff] %v1002
          %1035 = vst [vmem:[%s378 + $0x8] sm:$0xff] %v1003
          %1036 = vst [vmem:[%s378 + $0x10] sm:$0xff] %v1004
          %1037 = vst [vmem:[%s378 + $0x18] sm:$0xff] %v1005
          %1038 = vst [vmem:[%s378 + $0x20] sm:$0xff] %v1006
          %1039 = vst [vmem:[%s378 + $0x28] sm:$0xff] %v1007
          %1040 = vst [vmem:[%s378 + $0x30] sm:$0xff] %v1008
          %1041 = vst [vmem:[%s378 + $0x38] sm:$0xff] %v1009
          %1042 = vst [vmem:[%s378 + $0x40] sm:$0xff] %v1010
          %1043 = vst [vmem:[%s378 + $0x48] sm:$0xff] %v1011
          %1044 = vst [vmem:[%s378 + $0x50] sm:$0xff] %v1012
          %1045 = vst [vmem:[%s378 + $0x58] sm:$0xff] %v1013
          %1046 = vst [vmem:[%s378 + $0x60] sm:$0xff] %v1014
          %1047 = vst [vmem:[%s378 + $0x68] sm:$0xff] %v1015
          %1048 = vst [vmem:[%s378 + $0x70] sm:$0xff] %v1016
          %1049 = vst [vmem:[%s378 + $0x78] sm:$0xff] %v1017
          %1050 = vst [vmem:[%s378 + $0x80] sm:$0xff] %v1018
          %1051 = vst [vmem:[%s378 + $0x88] sm:$0xff] %v1019
          %1052 = vst [vmem:[%s378 + $0x90] sm:$0xff] %v1020
          %1053 = vst [vmem:[%s378 + $0x98] sm:$0xff] %v1021
          %1054 = vst [vmem:[%s378 + $0xa0] sm:$0xff] %v1022
          %1055 = vst [vmem:[%s378 + $0xa8] sm:$0xff] %v1023
          %1056 = vst [vmem:[%s378 + $0xb0] sm:$0xff] %v1024
          %1057 = vst [vmem:[%s378 + $0xb8] sm:$0xff] %v1025
          %1058 = vst [vmem:[%s378 + $0xc0] sm:$0xff] %v1026
          %1059 = vst [vmem:[%s378 + $0xc8] sm:$0xff] %v1027
          %1060 = vst [vmem:[%s378 + $0xd0] sm:$0xff] %v1028
          %1061 = vst [vmem:[%s378 + $0xd8] sm:$0xff] %v1029
          %1062 = vst [vmem:[%s378 + $0xe0] sm:$0xff] %v1030
          %1063 = vst [vmem:[%s378 + $0xe8] sm:$0xff] %v1031
          %1064 = vst [vmem:[%s378 + $0xf0] sm:$0xff] %v1032
          %1065 = vst [vmem:[%s378 + $0xf8] sm:$0xff] %v1033
          %v1066 = vadd.f32 %v1002, %v1003
          %v1067 = vadd.f32 %v1066, %v1004
          %v1068 = vadd.f32 %v1067, %v1005
          %v1069 = vadd.f32 %v1068, %v1006
          %v1070 = vadd.f32 %v1069, %v1007
          %v1071 = vadd.f32 %v1070, %v1008
          %v1072 = vadd.f32 %v1071, %v1009
          %v1073 = vadd.f32 %v1072, %v1010
          %v1074 = vadd.f32 %v1073, %v1011
          %v1075 = vadd.f32 %v1074, %v1012
          %v1076 = vadd.f32 %v1075, %v1013
          %v1077 = vadd.f32 %v1076, %v1014
          %v1078 = vadd.f32 %v1077, %v1015
          %v1079 = vadd.f32 %v1078, %v1016
          %v1080 = vadd.f32 %v1079, %v1017
          %v1081 = vadd.f32 %v1080, %v1018
          %v1082 = vadd.f32 %v1081, %v1019
          %v1083 = vadd.f32 %v1082, %v1020
          %v1084 = vadd.f32 %v1083, %v1021
          %v1085 = vadd.f32 %v1084, %v1022
          %v1086 = vadd.f32 %v1085, %v1023
          %v1087 = vadd.f32 %v1086, %v1024
          %v1088 = vadd.f32 %v1087, %v1025
          %v1089 = vadd.f32 %v1088, %v1026
          %v1090 = vadd.f32 %v1089, %v1027
          %v1091 = vadd.f32 %v1090, %v1028
          %v1092 = vadd.f32 %v1091, %v1029
          %v1093 = vadd.f32 %v1092, %v1030
          %v1094 = vadd.f32 %v1093, %v1031
          %v1095 = vadd.f32 %v1094, %v1032
          %v1096 = vadd.f32 %v1095, %v1033
          %v1097 = vrot.slane %v1096, 4
          %v1098 = vadd.f32 %v1096, %v1097
          %v1099 = vrot.slane %v1098, 2
          %v1100 = vadd.f32 %v1098, %v1099
          %v1101 = vrot.slane %v1100, 1
          %v1102 = vadd.f32 %v1100, %v1101
          %v1103 = vmul.f32 %v1002, %v1002
          %v1104 = vmul.f32 %v1003, %v1003
          %v1105 = vmul.f32 %v1004, %v1004
          %v1106 = vmul.f32 %v1005, %v1005
          %v1107 = vmul.f32 %v1006, %v1006
          %v1108 = vmul.f32 %v1007, %v1007
          %v1109 = vmul.f32 %v1008, %v1008
          %v1110 = vmul.f32 %v1009, %v1009
          %v1111 = vmul.f32 %v1010, %v1010
          %v1112 = vmul.f32 %v1011, %v1011
          %v1113 = vmul.f32 %v1012, %v1012
          %v1114 = vmul.f32 %v1013, %v1013
          %v1115 = vmul.f32 %v1014, %v1014
          %v1116 = vmul.f32 %v1015, %v1015
          %v1117 = vmul.f32 %v1016, %v1016
          %v1118 = vmul.f32 %v1017, %v1017
          %v1119 = vmul.f32 %v1018, %v1018
          %v1120 = vmul.f32 %v1019, %v1019
          %v1121 = vmul.f32 %v1020, %v1020
          %v1122 = vmul.f32 %v1021, %v1021
          %v1123 = vmul.f32 %v1022, %v1022
          %v1124 = vmul.f32 %v1023, %v1023
          %v1125 = vmul.f32 %v1024, %v1024
          %v1126 = vmul.f32 %v1025, %v1025
          %v1127 = vmul.f32 %v1026, %v1026
          %v1128 = vmul.f32 %v1027, %v1027
          %v1129 = vmul.f32 %v1028, %v1028
          %v1130 = vmul.f32 %v1029, %v1029
          %v1131 = vmul.f32 %v1030, %v1030
          %v1132 = vmul.f32 %v1031, %v1031
          %v1133 = vmul.f32 %v1032, %v1032
          %v1134 = vmul.f32 %v1033, %v1033
          %v1135 = vadd.f32 %v1103, %v1104
          %v1136 = vadd.f32 %v1135, %v1105
          %v1137 = vadd.f32 %v1136, %v1106
          %v1138 = vadd.f32 %v1137, %v1107
          %v1139 = vadd.f32 %v1138, %v1108
          %v1140 = vadd.f32 %v1139, %v1109
          %v1141 = vadd.f32 %v1140, %v1110
          %v1142 = vadd.f32 %v1141, %v1111
          %v1143 = vadd.f32 %v1142, %v1112
          %v1144 = vadd.f32 %v1143, %v1113
          %v1145 = vadd.f32 %v1144, %v1114
          %v1146 = vadd.f32 %v1145, %v1115
          %v1147 = vadd.f32 %v1146, %v1116
          %v1148 = vadd.f32 %v1147, %v1117
          %v1149 = vadd.f32 %v1148, %v1118
          %v1150 = vadd.f32 %v1149, %v1119
          %v1151 = vadd.f32 %v1150, %v1120
          %v1152 = vadd.f32 %v1151, %v1121
          %v1153 = vadd.f32 %v1152, %v1122
          %v1154 = vadd.f32 %v1153, %v1123
          %v1155 = vadd.f32 %v1154, %v1124
          %v1156 = vadd.f32 %v1155, %v1125
          %v1157 = vadd.f32 %v1156, %v1126
          %v1158 = vadd.f32 %v1157, %v1127
          %v1159 = vadd.f32 %v1158, %v1128
          %v1160 = vadd.f32 %v1159, %v1129
          %v1161 = vadd.f32 %v1160, %v1130
          %v1162 = vadd.f32 %v1161, %v1131
          %v1163 = vadd.f32 %v1162, %v1132
          %v1164 = vadd.f32 %v1163, %v1133
          %v1165 = vadd.f32 %v1164, %v1134
          %v1166 = vrot.slane %v1165, 4
          %v1167 = vadd.f32 %v1165, %v1166
          %v1168 = vrot.slane %v1167, 2
          %v1169 = vadd.f32 %v1167, %v1168
          %v1170 = vrot.slane %v1169, 1
          %v1171 = vadd.f32 %v1169, %v1170
          %v1172 = vlaneseq
          %v1173 = vshrl.u32 %v1172, 7
          %vm1174 = vcmp.eq.s32.totalorder %v1173, 0
          %vm1175 = vcmp.eq.s32.totalorder %v1173, 1
          %v1176 = vsel %vm1175, %v1171, 0.0
          %v1177 = vsel %vm1174, %v1102, %v1176
          %1178 = vst [vmem:[%s383] sm:$0xff] %v1177
        $region74: #{gcn_forward.20} parent=61 // pred_fallthru
          _
        %s1179 = smul.u32 32, %s19
        %p1180 = scmp.lt.s32.totalorder %s1179, 63
        %s1181 = scalar_select %p1180, %s1179, 63
        %s1182 = smul.addr %s1181, 8
        %s1183 = scalar_lea.vmem %s2, %s1182
        %p1184 = scmp.lt.s32.totalorder %s19, 1
        %s1185 = scalar_select %p1184, %s19, 1
        %s1186 = smul.addr %s1185, 8
        %s1187 = scalar_lea.vmem %s3, %s1186
        // Predicated region
        $region75: #{gcn_forward.20} parent=61 // pred_check
          %p1188 = pneg %p99
        $region76: #{gcn_forward.20} parent=61 // pred_check_branch
          %1190 = sbr.rel (%p1188) target = $region78
        $region77: #{gcn_forward.20} parent=61 // pred_region
          %s1191 = smul.u32 32, %s19
        $region78: #{gcn_forward.20} parent=61 // pred_fallthru
          _
        // Predicated region
        $region79: #{gcn_forward.20} parent=61 // pred_check
          %p1192 = pneg %p125
        $region80: #{gcn_forward.20} parent=61 // pred_check_branch
          %1194 = sbr.rel (%p1192) target = $region82
        $region81: #{gcn_forward.20} parent=61 // pred_region
          _
        $region82: #{gcn_forward.20} parent=61 // pred_fallthru
          _
      $region62: #{gcn_forward.20} parent=5 // pred_fallthru
        _
      %p1195 = scmp.le.s32.totalorder 2, %s10
      // Predicated region
      $region83: #{gcn_forward.20} parent=5 // pred_check
        %p1196 = pneg %p1195
      $region84: #{gcn_forward.20} parent=5 // pred_check_branch
        %1198 = sbr.rel (%p1196) target = $region86
      $region85: #{gcn_forward.20} parent=5 // pred_region
        %s1199 = ssub.s32 %s10, 2
        // Predicated region
        $region87: #{gcn_forward.20} parent=85 // pred_check
          %p1200 = pneg %p105
        $region88: #{gcn_forward.20} parent=85 // pred_check_branch
          %1202 = sbr.rel (%p1200) target = $region90
        $region89: #{gcn_forward.20} parent=85 // pred_region
          %s1203 = smul.u32 32, %s21
          %p1204 = scmp.lt.s32.totalorder %s1203, 63
          %s1205 = scalar_select %p1204, %s1203, 63
          %s1206 = smul.addr %s1205, 8
          %s1207 = scalar_lea.vmem %s2, %s1206
        $region90: #{gcn_forward.20} parent=85 // pred_fallthru
          _
        // Predicated region
        $region91: #{gcn_forward.20} parent=85 // pred_check
          %p1208 = pneg %p131
        $region92: #{gcn_forward.20} parent=85 // pred_check_branch
          %1210 = sbr.rel (%p1208) target = $region94
        $region93: #{gcn_forward.20} parent=85 // pred_region
          %p1211 = scmp.lt.s32.totalorder %s21, 1
          %s1212 = scalar_select %p1211, %s21, 1
          %s1213 = smul.addr %s1212, 8
          %s1214 = scalar_lea.vmem %s3, %s1213
        $region94: #{gcn_forward.20} parent=85 // pred_fallthru
          _
      $region86: #{gcn_forward.20} parent=5 // pred_fallthru
        _
    $region6: #{gcn_forward.20} parent=1 // loop_footer
      %s14 = sadd.s32 1, %s10
    $region7: #{gcn_forward.20} parent=1 // loop_footer_branch
      %9 = sbr.rel target = $region3
    $region8: #{gcn_forward.20} parent=1 // loop_exit
      _

// kernel: gcn_forward.21
$region0: #{gcn_forward.21}
  #allocation0 [shape = 'u32[]', space=smem, size = 0x4, offset = 0x4, fixed_abs, tag = 'smem constant byte address 0x4 - core index']
  #allocation1 [shape = 'u32[144,128]{1,0:T(1,128)}', space=vmem, size = 0x12000, scoped, tag = 'internal scratch']
  %s0 = inlined_call_operand.vmem [shape: f32[512,128], index: 0, kind: input, shape index: {}]
  %s1 = inlined_call_operand.vmem [shape: f32[1,128], index: 1, kind: input, shape index: {}]
  %s2 = inlined_call_operand.vmem [shape: f32[1,128], index: 2, kind: input, shape index: {}]
  %s3 = inlined_call_operand.vmem [shape: f32[512,128], index: 3, kind: output, shape index: {}]
  %s4 = sld [smem:[#allocation0]]
  $region45: #{gcn_forward.21} parent=0
    _
  %s6 = ssub.s32 1, %s4
  %s7 = scalar_select 0, %s6, %s4
  loop: start=0, step=1, limit=4
  $region2: #{gcn_forward.21} parent=0 // loop_pre_header
    _
  $region3: #{gcn_forward.21} parent=0 // loop_header
    %s9 = sphi 0, %s13
    %p10 = scmp.ge.s32.totalorder %s9, 4
    %s19 = sphi 0, %s21
    %s22 = sphi 0, %s19
    %s23 = sphi 0, %s22
    %s39 = sphi 0, %s23
    %s43 = sphi 0, %s43
    %s45 = sphi 0, %s43
    %s46 = sphi 0, %s45
    %s60 = sphi 0, %s46
    %s64 = sphi 0, %s64
    %s66 = sphi 0, %s64
    %s67 = sphi 0, %s66
    %s81 = sphi 0, %s67
    %s87 = sphi 0, %s89
    %s90 = sphi 0, %s87
    %s91 = sphi 0, %s90
    %s107 = sphi 0, %s91
  $region4: #{gcn_forward.21} parent=0 // loop_header_branch
    %12 = sbr.rel (%p10) target = $region8
  $region5: #{gcn_forward.21} parent=0 // loop_body
    %s14 = ssub.s32 %s9, 1
    %s15 = ssub.s32 %s9, 2
    %s16 = sadd.s32 %s9, 1
    %s17 = ssub.s32 %s9, %s16
    %p18 = scmp.eq.s32.totalorder %s17, 0
    %s20 = sadd.s32 %s19, 1
    %s21 = scalar_select %p18, %s19, %s20
    %p24 = pneg %p18
    %p25 = scmp.eq.s32.totalorder %s9, 1
    %p26 = por %p24, %p25
    %p27 = scmp.ne.s32.totalorder %s19, %s22
    %p28 = scmp.eq.s32.totalorder %s9, 0
    %p29 = por %p27, %p28
    %p30 = scmp.ne.s32.totalorder %s19, %s22
    %p31 = scmp.eq.s32.totalorder %s14, 1
    %p32 = por %p30, %p31
    %p33 = scmp.ne.s32.totalorder %s22, %s23
    %p34 = scmp.eq.s32.totalorder %s14, 0
    %p35 = por %p33, %p34
    %p36 = scmp.ne.s32.totalorder %s22, %s23
    %p37 = scmp.eq.s32.totalorder %s15, 1
    %p38 = por %p36, %p37
    %p40 = scmp.ne.s32.totalorder %s23, %s39
    %p41 = scmp.eq.s32.totalorder %s15, 0
    %p42 = por %p40, %p41
    %s44 = sadd.s32 %s43, 1
    %p47 = scmp.eq.s32.totalorder %s9, 1
    %p48 = scmp.ne.s32.totalorder %s43, %s45
    %p49 = scmp.eq.s32.totalorder %s9, 0
    %p50 = por %p48, %p49
    %p51 = scmp.ne.s32.totalorder %s43, %s45
    %p52 = scmp.eq.s32.totalorder %s14, 1
    %p53 = por %p51, %p52
    %p54 = scmp.ne.s32.totalorder %s45, %s46
    %p55 = scmp.eq.s32.totalorder %s14, 0
    %p56 = por %p54, %p55
    %p57 = scmp.ne.s32.totalorder %s45, %s46
    %p58 = scmp.eq.s32.totalorder %s15, 1
    %p59 = por %p57, %p58
    %p61 = scmp.ne.s32.totalorder %s46, %s60
    %p62 = scmp.eq.s32.totalorder %s15, 0
    %p63 = por %p61, %p62
    %s65 = sadd.s32 %s64, 1
    %p68 = scmp.eq.s32.totalorder %s9, 1
    %p69 = scmp.ne.s32.totalorder %s64, %s66
    %p70 = scmp.eq.s32.totalorder %s9, 0
    %p71 = por %p69, %p70
    %p72 = scmp.ne.s32.totalorder %s64, %s66
    %p73 = scmp.eq.s32.totalorder %s14, 1
    %p74 = por %p72, %p73
    %p75 = scmp.ne.s32.totalorder %s66, %s67
    %p76 = scmp.eq.s32.totalorder %s14, 0
    %p77 = por %p75, %p76
    %p78 = scmp.ne.s32.totalorder %s66, %s67
    %p79 = scmp.eq.s32.totalorder %s15, 1
    %p80 = por %p78, %p79
    %p82 = scmp.ne.s32.totalorder %s67, %s81
    %p83 = scmp.eq.s32.totalorder %s15, 0
    %p84 = por %p82, %p83
    %s85 = ssub.s32 %s9, %s16
    %p86 = scmp.eq.s32.totalorder %s85, 0
    %s88 = sadd.s32 %s87, 1
    %s89 = scalar_select %p86, %s87, %s88
    %p92 = pneg %p86
    %p93 = scmp.eq.s32.totalorder %s9, 1
    %p94 = por %p92, %p93
    %p95 = scmp.ne.s32.totalorder %s87, %s90
    %p96 = scmp.eq.s32.totalorder %s9, 0
    %p97 = por %p95, %p96
    %p98 = scmp.ne.s32.totalorder %s87, %s90
    %p99 = scmp.eq.s32.totalorder %s14, 1
    %p100 = por %p98, %p99
    %p101 = scmp.ne.s32.totalorder %s90, %s91
    %p102 = scmp.eq.s32.totalorder %s14, 0
    %p103 = por %p101, %p102
    %p104 = scmp.ne.s32.totalorder %s90, %s91
    %p105 = scmp.eq.s32.totalorder %s15, 1
    %p106 = por %p104, %p105
    %p108 = scmp.ne.s32.totalorder %s91, %s107
    %p109 = scmp.eq.s32.totalorder %s15, 0
    %p110 = por %p108, %p109
    %p111 = scmp.le.s32.totalorder 1, %s9
    %p112 = scmp.lt.s32.totalorder %s9, 3
    %p113 = pnand %p111, %p112
    %p114 = pneg %p113
    // Predicated region
    $region9: #{gcn_forward.21} parent=5 // pred_check
      _
    $region10: #{gcn_forward.21} parent=5 // pred_check_branch
      %116 = sbr.rel (%p113) target = $region12
    $region11: #{gcn_forward.21} parent=5 // pred_region
      %s117 = ssub.s32 %s9, 1
      // Predicated region
      $region13: #{gcn_forward.21} parent=11 // pred_check
        %p118 = pneg %p56
      $region14: #{gcn_forward.21} parent=11 // pred_check_branch
        %120 = sbr.rel (%p118) target = $region16
      $region15: #{gcn_forward.21} parent=11 // pred_region
        _
      $region16: #{gcn_forward.21} parent=11 // pred_fallthru
        _
      // Predicated region
      $region17: #{gcn_forward.21} parent=11 // pred_check
        %p121 = pneg %p77
      $region18: #{gcn_forward.21} parent=11 // pred_check_branch
        %123 = sbr.rel (%p121) target = $region20
      $region19: #{gcn_forward.21} parent=11 // pred_region
        _
      $region20: #{gcn_forward.21} parent=11 // pred_fallthru
        _
    $region12: #{gcn_forward.21} parent=5 // pred_fallthru
      _
    %p124 = scmp.lt.s32.totalorder %s9, 2
    // Predicated region
    $region21: #{gcn_forward.21} parent=5 // pred_check
      %p125 = pneg %p124
    $region22: #{gcn_forward.21} parent=5 // pred_check_branch
      %127 = sbr.rel (%p125) target = $region24
    $region23: #{gcn_forward.21} parent=5 // pred_region
      // Predicated region
      $region25: #{gcn_forward.21} parent=23 // pred_check
        %p128 = pneg %p29
      $region26: #{gcn_forward.21} parent=23 // pred_check_branch
        %130 = sbr.rel (%p128) target = $region28
      $region27: #{gcn_forward.21} parent=23 // pred_region
        %s131 = smul.u32 32, %s9
        %p132 = scmp.lt.s32.totalorder %s131, 63
        %s133 = scalar_select %p132, %s131, 63
        %s134 = smul.addr %s133, 8
        %s135 = scalar_lea.vmem %s0, %s134
        %s136 = smul.u32 32, %s9
      $region28: #{gcn_forward.21} parent=23 // pred_fallthru
        _
    $region24: #{gcn_forward.21} parent=5 // pred_fallthru
      _
    %p137 = scmp.le.s32.totalorder 1, %s9
    %p138 = scmp.lt.s32.totalorder %s9, 3
    %p139 = pnand %p137, %p138
    %p140 = pneg %p139
    // Predicated region
    $region29: #{gcn_forward.21} parent=5 // pred_check
      _
    $region30: #{gcn_forward.21} parent=5 // pred_check_branch
      %142 = sbr.rel (%p139) target = $region32
    $region31: #{gcn_forward.21} parent=5 // pred_region
      %s143 = ssub.s32 %s9, 1
      %s144 = smul.u32 32, %s14
      %p145 = scmp.lt.s32.totalorder %s144, 63
      %s146 = scalar_select %p145, %s144, 63
      %s147 = smul.addr %s146, 8
      %s148 = scalar_lea.vmem %s0, %s147
      %p149 = pneg %p35
      %p150 = pneg %p32
      %p151 = pneg %p56
      %p152 = pneg %p53
      %p153 = pneg %p77
      %p154 = pneg %p74
      %p155 = pneg %p103
      %p156 = pneg %p100
      %s157 = smul.u32 32, %s14
      %p158 = scmp.lt.s32.totalorder %s157, 63
      %s159 = scalar_select %p158, %s157, 63
      %s160 = smul.addr %s159, 8
      %s161 = scalar_lea.vmem %s3, %s160
      %s162 = smul.u32 32, %s14
      %p163 = scmp.lt.s32.totalorder %s162, 63
      %s164 = scalar_select %p163, %s162, 63
      %s165 = smul.addr %s164, 8
      %s166 = scalar_lea.vmem %s0, %s165
      %s167 = smul.u32 32, %s14
      %s168 = smul.u32 32, %s14
      %p169 = scmp.lt.s32.totalorder %s168, 63
      %s170 = scalar_select %p169, %s168, 63
      %s171 = smul.addr %s170, 8
      %s172 = scalar_lea.vmem %s3, %s171
      %s173 = smul.u32 32, %s14
      %v174 = vld [vmem:[%s166] sm:$0xff]
      %v175 = vld [vmem:[%s166 + $0x8] sm:$0xff]
      %v176 = vld [vmem:[%s166 + $0x10] sm:$0xff]
      %v177 = vld [vmem:[%s166 + $0x18] sm:$0xff]
      %v178 = vld [vmem:[%s166 + $0x20] sm:$0xff]
      %v179 = vld [vmem:[%s166 + $0x28] sm:$0xff]
      %v180 = vld [vmem:[%s166 + $0x30] sm:$0xff]
      %v181 = vld [vmem:[%s166 + $0x38] sm:$0xff]
      %v182 = vld [vmem:[%s166 + $0x40] sm:$0xff]
      %v183 = vld [vmem:[%s166 + $0x48] sm:$0xff]
      %v184 = vld [vmem:[%s166 + $0x50] sm:$0xff]
      %v185 = vld [vmem:[%s166 + $0x58] sm:$0xff]
      %v186 = vld [vmem:[%s166 + $0x60] sm:$0xff]
      %v187 = vld [vmem:[%s166 + $0x68] sm:$0xff]
      %v188 = vld [vmem:[%s166 + $0x70] sm:$0xff]
      %v189 = vld [vmem:[%s166 + $0x78] sm:$0xff]
      %v190 = vld [vmem:[%s166 + $0x80] sm:$0xff]
      %v191 = vld [vmem:[%s166 + $0x88] sm:$0xff]
      %v192 = vld [vmem:[%s166 + $0x90] sm:$0xff]
      %v193 = vld [vmem:[%s166 + $0x98] sm:$0xff]
      %v194 = vld [vmem:[%s166 + $0xa0] sm:$0xff]
      %v195 = vld [vmem:[%s166 + $0xa8] sm:$0xff]
      %v196 = vld [vmem:[%s166 + $0xb0] sm:$0xff]
      %v197 = vld [vmem:[%s166 + $0xb8] sm:$0xff]
      %v198 = vld [vmem:[%s166 + $0xc0] sm:$0xff]
      %v199 = vld [vmem:[%s166 + $0xc8] sm:$0xff]
      %v200 = vld [vmem:[%s166 + $0xd0] sm:$0xff]
      %v201 = vld [vmem:[%s166 + $0xd8] sm:$0xff]
      %v202 = vld [vmem:[%s166 + $0xe0] sm:$0xff]
      %v203 = vld [vmem:[%s166 + $0xe8] sm:$0xff]
      %v204 = vld [vmem:[%s166 + $0xf0] sm:$0xff]
      %v205 = vld [vmem:[%s166 + $0xf8] sm:$0xff]
      %v206 = vld [vmem:[%s1] sm:$0x1]
      %v208 = vlaneseq
      %v209 = vshrl.u32 %v208, 7
      %v210 = vsub.s32 0, %v209
      %v211 = vrot.slane %v206, %v210
      %v213 = vmul.f32 %v174, %v211
      %v214 = vmul.f32 %v175, %v211
      %v215 = vmul.f32 %v176, %v211
      %v216 = vmul.f32 %v177, %v211
      %v217 = vmul.f32 %v178, %v211
      %v218 = vmul.f32 %v179, %v211
      %v219 = vmul.f32 %v180, %v211
      %v220 = vmul.f32 %v181, %v211
      %v221 = vmul.f32 %v182, %v211
      %v222 = vmul.f32 %v183, %v211
      %v223 = vmul.f32 %v184, %v211
      %v224 = vmul.f32 %v185, %v211
      %v225 = vmul.f32 %v186, %v211
      %v226 = vmul.f32 %v187, %v211
      %v227 = vmul.f32 %v188, %v211
      %v228 = vmul.f32 %v189, %v211
      %v229 = vmul.f32 %v190, %v211
      %v230 = vmul.f32 %v191, %v211
      %v231 = vmul.f32 %v192, %v211
      %v232 = vmul.f32 %v193, %v211
      %v233 = vmul.f32 %v194, %v211
      %v234 = vmul.f32 %v195, %v211
      %v235 = vmul.f32 %v196, %v211
      %v236 = vmul.f32 %v197, %v211
      %v237 = vmul.f32 %v198, %v211
      %v238 = vmul.f32 %v199, %v211
      %v239 = vmul.f32 %v200, %v211
      %v240 = vmul.f32 %v201, %v211
      %v241 = vmul.f32 %v202, %v211
      %v242 = vmul.f32 %v203, %v211
      %v243 = vmul.f32 %v204, %v211
      %v244 = vmul.f32 %v205, %v211
      %v245 = vld [vmem:[%s2] sm:$0x1]
      %v247 = vlaneseq
      %v248 = vshrl.u32 %v247, 7
      %v249 = vsub.s32 0, %v248
      %v250 = vrot.slane %v245, %v249
      %v252 = vadd.f32 %v213, %v250
      %v253 = vadd.f32 %v214, %v250
      %v254 = vadd.f32 %v215, %v250
      %v255 = vadd.f32 %v216, %v250
      %v256 = vadd.f32 %v217, %v250
      %v257 = vadd.f32 %v218, %v250
      %v258 = vadd.f32 %v219, %v250
      %v259 = vadd.f32 %v220, %v250
      %v260 = vadd.f32 %v221, %v250
      %v261 = vadd.f32 %v222, %v250
      %v262 = vadd.f32 %v223, %v250
      %v263 = vadd.f32 %v224, %v250
      %v264 = vadd.f32 %v225, %v250
      %v265 = vadd.f32 %v226, %v250
      %v266 = vadd.f32 %v227, %v250
      %v267 = vadd.f32 %v228, %v250
      %v268 = vadd.f32 %v229, %v250
      %v269 = vadd.f32 %v230, %v250
      %v270 = vadd.f32 %v231, %v250
      %v271 = vadd.f32 %v232, %v250
      %v272 = vadd.f32 %v233, %v250
      %v273 = vadd.f32 %v234, %v250
      %v274 = vadd.f32 %v235, %v250
      %v275 = vadd.f32 %v236, %v250
      %v276 = vadd.f32 %v237, %v250
      %v277 = vadd.f32 %v238, %v250
      %v278 = vadd.f32 %v239, %v250
      %v279 = vadd.f32 %v240, %v250
      %v280 = vadd.f32 %v241, %v250
      %v281 = vadd.f32 %v242, %v250
      %v282 = vadd.f32 %v243, %v250
      %v283 = vadd.f32 %v244, %v250
      %284 = vst [vmem:[%s172] sm:$0xff] %v252
      %285 = vst [vmem:[%s172 + $0x8] sm:$0xff] %v253
      %286 = vst [vmem:[%s172 + $0x10] sm:$0xff] %v254
      %287 = vst [vmem:[%s172 + $0x18] sm:$0xff] %v255
      %288 = vst [vmem:[%s172 + $0x20] sm:$0xff] %v256
      %289 = vst [vmem:[%s172 + $0x28] sm:$0xff] %v257
      %290 = vst [vmem:[%s172 + $0x30] sm:$0xff] %v258
      %291 = vst [vmem:[%s172 + $0x38] sm:$0xff] %v259
      %292 = vst [vmem:[%s172 + $0x40] sm:$0xff] %v260
      %293 = vst [vmem:[%s172 + $0x48] sm:$0xff] %v261
      %294 = vst [vmem:[%s172 + $0x50] sm:$0xff] %v262
      %295 = vst [vmem:[%s172 + $0x58] sm:$0xff] %v263
      %296 = vst [vmem:[%s172 + $0x60] sm:$0xff] %v264
      %297 = vst [vmem:[%s172 + $0x68] sm:$0xff] %v265
      %298 = vst [vmem:[%s172 + $0x70] sm:$0xff] %v266
      %299 = vst [vmem:[%s172 + $0x78] sm:$0xff] %v267
      %300 = vst [vmem:[%s172 + $0x80] sm:$0xff] %v268
      %301 = vst [vmem:[%s172 + $0x88] sm:$0xff] %v269
      %302 = vst [vmem:[%s172 + $0x90] sm:$0xff] %v270
      %303 = vst [vmem:[%s172 + $0x98] sm:$0xff] %v271
      %304 = vst [vmem:[%s172 + $0xa0] sm:$0xff] %v272
      %305 = vst [vmem:[%s172 + $0xa8] sm:$0xff] %v273
      %306 = vst [vmem:[%s172 + $0xb0] sm:$0xff] %v274
      %307 = vst [vmem:[%s172 + $0xb8] sm:$0xff] %v275
      %308 = vst [vmem:[%s172 + $0xc0] sm:$0xff] %v276
      %309 = vst [vmem:[%s172 + $0xc8] sm:$0xff] %v277
      %310 = vst [vmem:[%s172 + $0xd0] sm:$0xff] %v278
      %311 = vst [vmem:[%s172 + $0xd8] sm:$0xff] %v279
      %312 = vst [vmem:[%s172 + $0xe0] sm:$0xff] %v280
      %313 = vst [vmem:[%s172 + $0xe8] sm:$0xff] %v281
      %314 = vst [vmem:[%s172 + $0xf0] sm:$0xff] %v282
      %315 = vst [vmem:[%s172 + $0xf8] sm:$0xff] %v283
      %s316 = smul.u32 32, %s14
      %p317 = scmp.lt.s32.totalorder %s316, 63
      %s318 = scalar_select %p317, %s316, 63
      %s319 = smul.addr %s318, 8
      %s320 = scalar_lea.vmem %s3, %s319
      // Predicated region
      $region33: #{gcn_forward.21} parent=31 // pred_check
        %p321 = pneg %p100
      $region34: #{gcn_forward.21} parent=31 // pred_check_branch
        %323 = sbr.rel (%p321) target = $region36
      $region35: #{gcn_forward.21} parent=31 // pred_region
        %s324 = smul.u32 32, %s14
      $region36: #{gcn_forward.21} parent=31 // pred_fallthru
        _
    $region32: #{gcn_forward.21} parent=5 // pred_fallthru
      _
    %p325 = scmp.le.s32.totalorder 2, %s9
    // Predicated region
    $region37: #{gcn_forward.21} parent=5 // pred_check
      %p326 = pneg %p325
    $region38: #{gcn_forward.21} parent=5 // pred_check_branch
      %328 = sbr.rel (%p326) target = $region40
    $region39: #{gcn_forward.21} parent=5 // pred_region
      %s329 = ssub.s32 %s9, 2
      // Predicated region
      $region41: #{gcn_forward.21} parent=39 // pred_check
        %p330 = pneg %p106
      $region42: #{gcn_forward.21} parent=39 // pred_check_branch
        %332 = sbr.rel (%p330) target = $region44
      $region43: #{gcn_forward.21} parent=39 // pred_region
        %s333 = smul.u32 32, %s15
        %p334 = scmp.lt.s32.totalorder %s333, 63
        %s335 = scalar_select %p334, %s333, 63
        %s336 = smul.addr %s335, 8
        %s337 = scalar_lea.vmem %s3, %s336
      $region44: #{gcn_forward.21} parent=39 // pred_fallthru
        _
    $region40: #{gcn_forward.21} parent=5 // pred_fallthru
      _
  $region6: #{gcn_forward.21} parent=0 // loop_footer
    %s13 = sadd.s32 1, %s9
  $region7: #{gcn_forward.21} parent=0 // loop_footer_branch
    %8 = sbr.rel target = $region3
  $region8: #{gcn_forward.21} parent=0 // loop_exit
    _

// kernel: gcn_forward.17
$region0: #{gcn_forward.17}
  #allocation0 [shape = 'u32[]', space=smem, size = 0x4, offset = 0x4, fixed_abs, tag = 'smem constant byte address 0x4 - core index']
  #allocation1 [shape = 'u32[144,128]{1,0:T(1,128)}', space=vmem, size = 0x12000, scoped, tag = 'internal scratch']
  #allocation2 [shape = 'f32[256,256]{1,0:T(8,128)}', space=vmem, size = 0x40000, scoped, tag = 'scratch operand']
  %s0 = inlined_call_operand.vmem [shape: bf16[512,512], index: 0, kind: input, shape index: {}]
  %s1 = inlined_call_operand.vmem [shape: bf16[512,256], index: 1, kind: input, shape index: {}]
  %s2 = inlined_call_operand.vmem [shape: bf16[256,256], index: 2, kind: input, shape index: {}]
  %s3 = inlined_call_operand.vmem [shape: f32[512,256], index: 3, kind: output, shape index: {0}]
  %s4 = inlined_call_operand.vmem [shape: f32[2,8,256], index: 4, kind: output, shape index: {1}]
  %5 = xla_tuple %s3, %s4
  %s6 = sld [smem:[#allocation0]]
  $region99: #{gcn_forward.17} parent=0
    _
  %s8 = ssub.s32 1, %s6
  %s9 = scalar_select 0, %s8, %s6
  $region1: #{gcn_forward.17} parent=0
    #allocation3 [shape = 'u8[262144]{0}', space=vmem, size = 0x40000, scoped, tag = 'input window, operand 0']
    loop: start=0, step=1, limit=6
    $region2: #{gcn_forward.17} parent=1 // loop_pre_header
      _
    $region3: #{gcn_forward.17} parent=1 // loop_header
      %s11 = sphi 0, %s15
      %p12 = scmp.ge.s32.totalorder %s11, 6
      %s18 = sphi 0, %s30
      %s19 = sphi 0, %s26
      %s20 = sphi 0, %s18
      %s21 = sphi 0, %s19
      %s22 = sphi 0, %s20
      %s23 = sphi 0, %s21
      %s35 = sphi 0, %s37
      %s38 = sphi 0, %s35
      %s39 = sphi 0, %s38
      %s55 = sphi 0, %s39
      %s61 = sphi 0, %s63
      %s64 = sphi 0, %s61
      %s65 = sphi 0, %s64
      %s81 = sphi 0, %s65
      %s85 = sphi 0, %s85
      %s87 = sphi 0, %s85
      %s88 = sphi 0, %s87
      %s102 = sphi 0, %s88
      %s108 = sphi 0, %s110
      %s111 = sphi 0, %s108
      %s112 = sphi 0, %s111
      %s128 = sphi 0, %s112
      %s134 = sphi 0, %s136
      %s137 = sphi 0, %s134
      %s138 = sphi 0, %s137
      %s154 = sphi 0, %s138
    $region4: #{gcn_forward.17} parent=1 // loop_header_branch
      %14 = sbr.rel (%p12) target = $region8
    $region5: #{gcn_forward.17} parent=1 // loop_body
      %s16 = ssub.s32 %s11, 1
      %s17 = ssub.s32 %s11, 2
      %s24 = sadd.s32 1, %s19
      %p25 = scmp.ge.s32.totalorder %s24, 2
      %s26 = scalar_select %p25, 0, %s24
      %s27 = sadd.s32 1, %s18
      %s28 = scalar_select %p25, %s27, %s18
      %p29 = scmp.ge.s32.totalorder %s28, 2
      %s30 = scalar_select %p29, 0, %s28
      %s31 = ssub.s32 %s18, %s30
      %s32 = ssub.s32 %s19, %s26
      %s33 = sor.u32 %s31, %s32
      %p34 = scmp.eq.s32.totalorder %s33, 0
      %s36 = sadd.s32 %s35, 1
      %s37 = scalar_select %p34, %s35, %s36
      %p40 = pneg %p34
      %p41 = scmp.eq.s32.totalorder %s11, 3
      %p42 = por %p40, %p41
      %p43 = scmp.ne.s32.totalorder %s35, %s38
      %p44 = scmp.eq.s32.totalorder %s11, 0
      %p45 = por %p43, %p44
      %p46 = scmp.ne.s32.totalorder %s35, %s38
      %p47 = scmp.eq.s32.totalorder %s16, 3
      %p48 = por %p46, %p47
      %p49 = scmp.ne.s32.totalorder %s38, %s39
      %p50 = scmp.eq.s32.totalorder %s16, 0
      %p51 = por %p49, %p50
      %p52 = scmp.ne.s32.totalorder %s38, %s39
      %p53 = scmp.eq.s32.totalorder %s17, 3
      %p54 = por %p52, %p53
      %p56 = scmp.ne.s32.totalorder %s39, %s55
      %p57 = scmp.eq.s32.totalorder %s17, 0
      %p58 = por %p56, %p57
      %s59 = ssub.s32 %s19, %s26
      %p60 = scmp.eq.s32.totalorder %s59, 0
      %s62 = sadd.s32 %s61, 1
      %s63 = scalar_select %p60, %s61, %s62
      %p66 = pneg %p60
      %p67 = scmp.eq.s32.totalorder %s11, 3
      %p68 = por %p66, %p67
      %p69 = scmp.ne.s32.totalorder %s61, %s64
      %p70 = scmp.eq.s32.totalorder %s11, 0
      %p71 = por %p69, %p70
      %p72 = scmp.ne.s32.totalorder %s61, %s64
      %p73 = scmp.eq.s32.totalorder %s16, 3
      %p74 = por %p72, %p73
      %p75 = scmp.ne.s32.totalorder %s64, %s65
      %p76 = scmp.eq.s32.totalorder %s16, 0
      %p77 = por %p75, %p76
      %p78 = scmp.ne.s32.totalorder %s64, %s65
      %p79 = scmp.eq.s32.totalorder %s17, 3
      %p80 = por %p78, %p79
      %p82 = scmp.ne.s32.totalorder %s65, %s81
      %p83 = scmp.eq.s32.totalorder %s17, 0
      %p84 = por %p82, %p83
      %s86 = sadd.s32 %s85, 1
      %p89 = scmp.eq.s32.totalorder %s11, 3
      %p90 = scmp.ne.s32.totalorder %s85, %s87
      %p91 = scmp.eq.s32.totalorder %s11, 0
      %p92 = por %p90, %p91
      %p93 = scmp.ne.s32.totalorder %s85, %s87
      %p94 = scmp.eq.s32.totalorder %s16, 3
      %p95 = por %p93, %p94
      %p96 = scmp.ne.s32.totalorder %s87, %s88
      %p97 = scmp.eq.s32.totalorder %s16, 0
      %p98 = por %p96, %p97
      %p99 = scmp.ne.s32.totalorder %s87, %s88
      %p100 = scmp.eq.s32.totalorder %s17, 3
      %p101 = por %p99, %p100
      %p103 = scmp.ne.s32.totalorder %s88, %s102
      %p104 = scmp.eq.s32.totalorder %s17, 0
      %p105 = por %p103, %p104
      %s106 = ssub.s32 %s18, %s30
      %p107 = scmp.eq.s32.totalorder %s106, 0
      %s109 = sadd.s32 %s108, 1
      %s110 = scalar_select %p107, %s108, %s109
      %p113 = pneg %p107
      %p114 = scmp.eq.s32.totalorder %s11, 3
      %p115 = por %p113, %p114
      %p116 = scmp.ne.s32.totalorder %s108, %s111
      %p117 = scmp.eq.s32.totalorder %s11, 0
      %p118 = por %p116, %p117
      %p119 = scmp.ne.s32.totalorder %s108, %s111
      %p120 = scmp.eq.s32.totalorder %s16, 3
      %p121 = por %p119, %p120
      %p122 = scmp.ne.s32.totalorder %s111, %s112
      %p123 = scmp.eq.s32.totalorder %s16, 0
      %p124 = por %p122, %p123
      %p125 = scmp.ne.s32.totalorder %s111, %s112
      %p126 = scmp.eq.s32.totalorder %s17, 3
      %p127 = por %p125, %p126
      %p129 = scmp.ne.s32.totalorder %s112, %s128
      %p130 = scmp.eq.s32.totalorder %s17, 0
      %p131 = por %p129, %p130
      %s132 = ssub.s32 %s18, %s30
      %p133 = scmp.eq.s32.totalorder %s132, 0
      %s135 = sadd.s32 %s134, 1
      %s136 = scalar_select %p133, %s134, %s135
      %p139 = pneg %p133
      %p140 = scmp.eq.s32.totalorder %s11, 3
      %p141 = por %p139, %p140
      %p142 = scmp.ne.s32.totalorder %s134, %s137
      %p143 = scmp.eq.s32.totalorder %s11, 0
      %p144 = por %p142, %p143
      %p145 = scmp.ne.s32.totalorder %s134, %s137
      %p146 = scmp.eq.s32.totalorder %s16, 3
      %p147 = por %p145, %p146
      %p148 = scmp.ne.s32.totalorder %s137, %s138
      %p149 = scmp.eq.s32.totalorder %s16, 0
      %p150 = por %p148, %p149
      %p151 = scmp.ne.s32.totalorder %s137, %s138
      %p152 = scmp.eq.s32.totalorder %s17, 3
      %p153 = por %p151, %p152
      %p155 = scmp.ne.s32.totalorder %s138, %s154
      %p156 = scmp.eq.s32.totalorder %s17, 0
      %p157 = por %p155, %p156
      %p158 = scmp.le.s32.totalorder 1, %s11
      %p159 = scmp.lt.s32.totalorder %s11, 5
      %p160 = pnand %p158, %p159
      %p161 = pneg %p160
      // Predicated region
      $region9: #{gcn_forward.17} parent=5 // pred_check
        _
      $region10: #{gcn_forward.17} parent=5 // pred_check_branch
        %163 = sbr.rel (%p160) target = $region12
      $region11: #{gcn_forward.17} parent=5 // pred_region
        %s164 = ssub.s32 %s11, 1
        // Predicated region
        $region13: #{gcn_forward.17} parent=11 // pred_check
          %p165 = pneg %p98
        $region14: #{gcn_forward.17} parent=11 // pred_check_branch
          %167 = sbr.rel (%p165) target = $region16
        $region15: #{gcn_forward.17} parent=11 // pred_region
          _
        $region16: #{gcn_forward.17} parent=11 // pred_fallthru
          _
      $region12: #{gcn_forward.17} parent=5 // pred_fallthru
        _
      %p168 = scmp.lt.s32.totalorder %s11, 4
      // Predicated region
      $region17: #{gcn_forward.17} parent=5 // pred_check
        %p169 = pneg %p168
      $region18: #{gcn_forward.17} parent=5 // pred_check_branch
        %171 = sbr.rel (%p169) target = $region20
      $region19: #{gcn_forward.17} parent=5 // pred_region
        // Predicated region
        $region21: #{gcn_forward.17} parent=19 // pred_check
          %p172 = pneg %p45
        $region22: #{gcn_forward.17} parent=19 // pred_check_branch
          %174 = sbr.rel (%p172) target = $region24
        $region23: #{gcn_forward.17} parent=19 // pred_region
          %s175 = sand.u32 %s35, 1
          %s176 = sand.u32 %s35, 1
          %s177 = smul.addr %s176, 256
          %s178 = scalar_lea.vmem [#allocation3], %s177
          %s179 = smul.u32 32, %s18
          %s180 = smul.u32 2, %s19
          %s181 = smul.addr %s179, 4
          %s182 = sadd.s32 %s180, %s181
          %s183 = smul.addr %s182, 4
          %s184 = scalar_lea.vmem %s0, %s183
          // Predicated region
          $region25: #{gcn_forward.17} parent=23 // pred_check
            _
          $region26: #{gcn_forward.17} parent=23 // pred_check_branch
            %186 = sbr.rel (0) target = $region28
          $region27: #{gcn_forward.17} parent=23 // pred_region
            // Predicated region
            $region29: #{gcn_forward.17} parent=27 // pred_check
              _
            $region30: #{gcn_forward.17} parent=27 // pred_check_branch
              %188 = sbr.rel (0) target = $region32
            $region31: #{gcn_forward.17} parent=27 // pred_region
              // Predicated region
              $region44: #{gcn_forward.17} parent=31 // pred_check
                _
              $region45: #{gcn_forward.17} parent=31 // pred_check_branch
                %266 = sbr.rel (0) target = $region47
              $region46: #{gcn_forward.17} parent=31 // pred_region
                loop: start=0, step=1, limit=1
                $region48: #{gcn_forward.17} parent=46 // loop_pre_header
                  _
                $region49: #{gcn_forward.17} parent=46 // loop_header
                  %s268 = sphi 0, %s272
                  %p269 = scmp.ge.s32.totalorder %s268, 1
                  %s273 = sphi %s184, %s184
                  %s274 = sphi %s178, %s178
                $region50: #{gcn_forward.17} parent=46 // loop_header_branch
                  %271 = sbr.rel (%p269) target = $region54
                $region51: #{gcn_forward.17} parent=46 // loop_body
                  %v275 = vld [vmem:[%s273] sm:$0xff]
                  %276 = vst [vmem:[%s274] sm:$0xff] %v275
                  %v277 = vld [vmem:[%s273 + $0x10] sm:$0xff]
                  %278 = vst [vmem:[%s274 + $0x8] sm:$0xff] %v277
                  %v279 = vld [vmem:[%s273 + $0x20] sm:$0xff]
                  %280 = vst [vmem:[%s274 + $0x10] sm:$0xff] %v279
                  %v281 = vld [vmem:[%s273 + $0x30] sm:$0xff]
                  %282 = vst [vmem:[%s274 + $0x18] sm:$0xff] %v281
                  %v283 = vld [vmem:[%s273 + $0x40] sm:$0xff]
                  %284 = vst [vmem:[%s274 + $0x20] sm:$0xff] %v283
                  %v285 = vld [vmem:[%s273 + $0x50] sm:$0xff]
                  %286 = vst [vmem:[%s274 + $0x28] sm:$0xff] %v285
                  %v287 = vld [vmem:[%s273 + $0x60] sm:$0xff]
                  %288 = vst [vmem:[%s274 + $0x30] sm:$0xff] %v287
                  %v289 = vld [vmem:[%s273 + $0x70] sm:$0xff]
                  %290 = vst [vmem:[%s274 + $0x38] sm:$0xff] %v289
                  %v291 = vld [vmem:[%s273 + $0x80] sm:$0xff]
                  %292 = vst [vmem:[%s274 + $0x40] sm:$0xff] %v291
                  %v293 = vld [vmem:[%s273 + $0x90] sm:$0xff]
                  %294 = vst [vmem:[%s274 + $0x48] sm:$0xff] %v293
                  %v295 = vld [vmem:[%s273 + $0xa0] sm:$0xff]
                  %296 = vst [vmem:[%s274 + $0x50] sm:$0xff] %v295
                  %v297 = vld [vmem:[%s273 + $0xb0] sm:$0xff]
                  %298 = vst [vmem:[%s274 + $0x58] sm:$0xff] %v297
                  %v299 = vld [vmem:[%s273 + $0xc0] sm:$0xff]
                  %300 = vst [vmem:[%s274 + $0x60] sm:$0xff] %v299
                  %v301 = vld [vmem:[%s273 + $0xd0] sm:$0xff]
                  %302 = vst [vmem:[%s274 + $0x68] sm:$0xff] %v301
                  %v303 = vld [vmem:[%s273 + $0xe0] sm:$0xff]
                  %304 = vst [vmem:[%s274 + $0x70] sm:$0xff] %v303
                  %v305 = vld [vmem:[%s273 + $0xf0] sm:$0xff]
                  %306 = vst [vmem:[%s274 + $0x78] sm:$0xff] %v305
                  %v307 = vld [vmem:[%s273 + $0x100] sm:$0xff]
                  %308 = vst [vmem:[%s274 + $0x80] sm:$0xff] %v307
                  %v309 = vld [vmem:[%s273 + $0x110] sm:$0xff]
                  %310 = vst [vmem:[%s274 + $0x88] sm:$0xff] %v309
                  %v311 = vld [vmem:[%s273 + $0x120] sm:$0xff]
                  %312 = vst [vmem:[%s274 + $0x90] sm:$0xff] %v311
                  %v313 = vld [vmem:[%s273 + $0x130] sm:$0xff]
                  %314 = vst [vmem:[%s274 + $0x98] sm:$0xff] %v313
                  %v315 = vld [vmem:[%s273 + $0x140] sm:$0xff]
                  %316 = vst [vmem:[%s274 + $0xa0] sm:$0xff] %v315
                  %v317 = vld [vmem:[%s273 + $0x150] sm:$0xff]
                  %318 = vst [vmem:[%s274 + $0xa8] sm:$0xff] %v317
                  %v319 = vld [vmem:[%s273 + $0x160] sm:$0xff]
                  %320 = vst [vmem:[%s274 + $0xb0] sm:$0xff] %v319
                  %v321 = vld [vmem:[%s273 + $0x170] sm:$0xff]
                  %322 = vst [vmem:[%s274 + $0xb8] sm:$0xff] %v321
                  %v323 = vld [vmem:[%s273 + $0x180] sm:$0xff]
                  %324 = vst [vmem:[%s274 + $0xc0] sm:$0xff] %v323
                  %v325 = vld [vmem:[%s273 + $0x190] sm:$0xff]
                  %326 = vst [vmem:[%s274 + $0xc8] sm:$0xff] %v325
                  %v327 = vld [vmem:[%s273 + $0x1a0] sm:$0xff]
                  %328 = vst [vmem:[%s274 + $0xd0] sm:$0xff] %v327
                  %v329 = vld [vmem:[%s273 + $0x1b0] sm:$0xff]
                  %330 = vst [vmem:[%s274 + $0xd8] sm:$0xff] %v329
                  %v331 = vld [vmem:[%s273 + $0x1c0] sm:$0xff]
                  %332 = vst [vmem:[%s274 + $0xe0] sm:$0xff] %v331
                  %v333 = vld [vmem:[%s273 + $0x1d0] sm:$0xff]
                  %334 = vst [vmem:[%s274 + $0xe8] sm:$0xff] %v333
                  %v335 = vld [vmem:[%s273 + $0x1e0] sm:$0xff]
                  %336 = vst [vmem:[%s274 + $0xf0] sm:$0xff] %v335
                  %v337 = vld [vmem:[%s273 + $0x1f0] sm:$0xff]
                  %338 = vst [vmem:[%s274 + $0xf8] sm:$0xff] %v337
                $region52: #{gcn_forward.17} parent=46 // loop_footer
                  %s272 = sadd.s32 1, %s268
                $region53: #{gcn_forward.17} parent=46 // loop_footer_branch
                  %267 = sbr.rel target = $region49
                $region54: #{gcn_forward.17} parent=46 // loop_exit
                  _
              $region47: #{gcn_forward.17} parent=31 // pred_fallthru
                _
              // Predicated region
              $region55: #{gcn_forward.17} parent=31 // pred_check
                _
              $region56: #{gcn_forward.17} parent=31 // pred_check_branch
                %340 = sbr.rel target = $region58
              $region57: #{gcn_forward.17} parent=31 // pred_region
                _
              $region58: #{gcn_forward.17} parent=31 // pred_fallthru
                _
            $region32: #{gcn_forward.17} parent=27 // pred_fallthru
              _
            // Predicated region
            $region33: #{gcn_forward.17} parent=27 // pred_check
              _
            $region34: #{gcn_forward.17} parent=27 // pred_check_branch
              %190 = sbr.rel target = $region36
            $region35: #{gcn_forward.17} parent=27 // pred_region
              %s192 = ssub.s32 256, 1
              loop: start=0, step=1, limit=1
              $region37: #{gcn_forward.17} parent=35 // loop_pre_header
                _
              $region38: #{gcn_forward.17} parent=35 // loop_header
                %s194 = sphi 0, %s198
                %p195 = scmp.ge.s32.totalorder %s194, 1
                %s199 = sphi %s184, %s184
                %s200 = sphi %s178, %s178
              $region39: #{gcn_forward.17} parent=35 // loop_header_branch
                %197 = sbr.rel (%p195) target = $region43
              $region40: #{gcn_forward.17} parent=35 // loop_body
                %v201 = vld [vmem:[%s199] sm:%s192]
                %202 = vst [vmem:[%s200] sm:%s192] %v201
                %v203 = vld [vmem:[%s199 + $0x10] sm:%s192]
                %204 = vst [vmem:[%s200 + $0x8] sm:%s192] %v203
                %v205 = vld [vmem:[%s199 + $0x20] sm:%s192]
                %206 = vst [vmem:[%s200 + $0x10] sm:%s192] %v205
                %v207 = vld [vmem:[%s199 + $0x30] sm:%s192]
                %208 = vst [vmem:[%s200 + $0x18] sm:%s192] %v207
                %v209 = vld [vmem:[%s199 + $0x40] sm:%s192]
                %210 = vst [vmem:[%s200 + $0x20] sm:%s192] %v209
                %v211 = vld [vmem:[%s199 + $0x50] sm:%s192]
                %212 = vst [vmem:[%s200 + $0x28] sm:%s192] %v211
                %v213 = vld [vmem:[%s199 + $0x60] sm:%s192]
                %214 = vst [vmem:[%s200 + $0x30] sm:%s192] %v213
                %v215 = vld [vmem:[%s199 + $0x70] sm:%s192]
                %216 = vst [vmem:[%s200 + $0x38] sm:%s192] %v215
                %v217 = vld [vmem:[%s199 + $0x80] sm:%s192]
                %218 = vst [vmem:[%s200 + $0x40] sm:%s192] %v217
                %v219 = vld [vmem:[%s199 + $0x90] sm:%s192]
                %220 = vst [vmem:[%s200 + $0x48] sm:%s192] %v219
                %v221 = vld [vmem:[%s199 + $0xa0] sm:%s192]
                %222 = vst [vmem:[%s200 + $0x50] sm:%s192] %v221
                %v223 = vld [vmem:[%s199 + $0xb0] sm:%s192]
                %224 = vst [vmem:[%s200 + $0x58] sm:%s192] %v223
                %v225 = vld [vmem:[%s199 + $0xc0] sm:%s192]
                %226 = vst [vmem:[%s200 + $0x60] sm:%s192] %v225
                %v227 = vld [vmem:[%s199 + $0xd0] sm:%s192]
                %228 = vst [vmem:[%s200 + $0x68] sm:%s192] %v227
                %v229 = vld [vmem:[%s199 + $0xe0] sm:%s192]
                %230 = vst [vmem:[%s200 + $0x70] sm:%s192] %v229
                %v231 = vld [vmem:[%s199 + $0xf0] sm:%s192]
                %232 = vst [vmem:[%s200 + $0x78] sm:%s192] %v231
                %v233 = vld [vmem:[%s199 + $0x100] sm:%s192]
                %234 = vst [vmem:[%s200 + $0x80] sm:%s192] %v233
                %v235 = vld [vmem:[%s199 + $0x110] sm:%s192]
                %236 = vst [vmem:[%s200 + $0x88] sm:%s192] %v235
                %v237 = vld [vmem:[%s199 + $0x120] sm:%s192]
                %238 = vst [vmem:[%s200 + $0x90] sm:%s192] %v237
                %v239 = vld [vmem:[%s199 + $0x130] sm:%s192]
                %240 = vst [vmem:[%s200 + $0x98] sm:%s192] %v239
                %v241 = vld [vmem:[%s199 + $0x140] sm:%s192]
                %242 = vst [vmem:[%s200 + $0xa0] sm:%s192] %v241
                %v243 = vld [vmem:[%s199 + $0x150] sm:%s192]
                %244 = vst [vmem:[%s200 + $0xa8] sm:%s192] %v243
                %v245 = vld [vmem:[%s199 + $0x160] sm:%s192]
                %246 = vst [vmem:[%s200 + $0xb0] sm:%s192] %v245
                %v247 = vld [vmem:[%s199 + $0x170] sm:%s192]
                %248 = vst [vmem:[%s200 + $0xb8] sm:%s192] %v247
                %v249 = vld [vmem:[%s199 + $0x180] sm:%s192]
                %250 = vst [vmem:[%s200 + $0xc0] sm:%s192] %v249
                %v251 = vld [vmem:[%s199 + $0x190] sm:%s192]
                %252 = vst [vmem:[%s200 + $0xc8] sm:%s192] %v251
                %v253 = vld [vmem:[%s199 + $0x1a0] sm:%s192]
                %254 = vst [vmem:[%s200 + $0xd0] sm:%s192] %v253
                %v255 = vld [vmem:[%s199 + $0x1b0] sm:%s192]
                %256 = vst [vmem:[%s200 + $0xd8] sm:%s192] %v255
                %v257 = vld [vmem:[%s199 + $0x1c0] sm:%s192]
                %258 = vst [vmem:[%s200 + $0xe0] sm:%s192] %v257
                %v259 = vld [vmem:[%s199 + $0x1d0] sm:%s192]
                %260 = vst [vmem:[%s200 + $0xe8] sm:%s192] %v259
                %v261 = vld [vmem:[%s199 + $0x1e0] sm:%s192]
                %262 = vst [vmem:[%s200 + $0xf0] sm:%s192] %v261
                %v263 = vld [vmem:[%s199 + $0x1f0] sm:%s192]
                %264 = vst [vmem:[%s200 + $0xf8] sm:%s192] %v263
              $region41: #{gcn_forward.17} parent=35 // loop_footer
                %s198 = sadd.s32 1, %s194
              $region42: #{gcn_forward.17} parent=35 // loop_footer_branch
                %193 = sbr.rel target = $region38
              $region43: #{gcn_forward.17} parent=35 // loop_exit
                _
            $region36: #{gcn_forward.17} parent=27 // pred_fallthru
              _
          $region28: #{gcn_forward.17} parent=23 // pred_fallthru
            _
          %341 = vnop
        $region24: #{gcn_forward.17} parent=19 // pred_fallthru
          _
        // Predicated region
        $region59: #{gcn_forward.17} parent=19 // pred_check
          %p342 = pneg %p71
        $region60: #{gcn_forward.17} parent=19 // pred_check_branch
          %344 = sbr.rel (%p342) target = $region62
        $region61: #{gcn_forward.17} parent=19 // pred_region
          %s345 = smul.u32 32, %s19
          %p346 = scmp.lt.s32.totalorder %s345, 63
          %s347 = scalar_select %p346, %s345, 63
          %s348 = smul.addr %s347, 2
          %s349 = smul.addr %s348, 4
          %s350 = scalar_lea.vmem %s1, %s349
          %s351 = smul.u32 32, %s19
        $region62: #{gcn_forward.17} parent=19 // pred_fallthru
          _
      $region20: #{gcn_forward.17} parent=5 // pred_fallthru
        _
      %p352 = scmp.le.s32.totalorder 1, %s11
      %p353 = scmp.lt.s32.totalorder %s11, 5
      %p354 = pnand %p352, %p353
      %p355 = pneg %p354
      // Predicated region
      $region63: #{gcn_forward.17} parent=5 // pred_check
        _
      $region64: #{gcn_forward.17} parent=5 // pred_check_branch
        %357 = sbr.rel (%p354) target = $region66
      $region65: #{gcn_forward.17} parent=5 // pred_region
        %s358 = ssub.s32 %s11, 1
        %s359 = sand.u32 %s38, 1
        %s360 = sand.u32 %s38, 1
        %s361 = smul.addr %s360, 256
        %s362 = scalar_lea.vmem [#allocation3], %s361
        // Predicated region
        $region67: #{gcn_forward.17} parent=65 // pred_check
          %p363 = pneg %p51
        $region68: #{gcn_forward.17} parent=65 // pred_check_branch
          %365 = sbr.rel (%p363) target = $region70
        $region69: #{gcn_forward.17} parent=65 // pred_region
          _
        $region70: #{gcn_forward.17} parent=65 // pred_fallthru
          _
        %s366 = sand.u32 %s38, 1
        %s367 = sand.u32 %s38, 1
        %s368 = smul.addr %s367, 256
        %s369 = scalar_lea.vmem [#allocation3], %s368
        %p370 = pneg %p51
        %p371 = pneg %p48
        %s372 = smul.u32 32, %s21
        %p373 = scmp.lt.s32.totalorder %s372, 63
        %s374 = scalar_select %p373, %s372, 63
        %s375 = smul.addr %s374, 2
        %s376 = smul.addr %s375, 4
        %s377 = scalar_lea.vmem %s1, %s376
        %p378 = pneg %p77
        %p379 = pneg %p74
        %p380 = pneg %p98
        %p381 = pneg %p95
        %p382 = pneg %p124
        %p383 = pneg %p121
        %s384 = smul.u32 32, %s20
        %p385 = scmp.lt.s32.totalorder %s384, 63
        %s386 = scalar_select %p385, %s384, 63
        %s387 = smul.addr %s386, 2
        %s388 = smul.addr %s387, 8
        %s389 = scalar_lea.vmem %s3, %s388
        %p390 = pneg %p150
        %p391 = pneg %p147
        %p392 = scmp.lt.s32.totalorder %s20, 1
        %s393 = scalar_select %p392, %s20, 1
        %s394 = smul.addr %s393, 2
        %s395 = smul.addr %s394, 8
        %s396 = scalar_lea.vmem %s4, %s395
        %s397 = smul.u32 32, %s20
        %s398 = smul.u32 2, %s21
        %s399 = smul.u32 32, %s21
        %p400 = scmp.lt.s32.totalorder %s399, 63
        %s401 = scalar_select %p400, %s399, 63
        %s402 = smul.addr %s401, 2
        %s403 = smul.addr %s402, 4
        %s404 = scalar_lea.vmem %s1, %s403
        %s405 = smul.u32 32, %s21
        %s406 = smul.u32 32, %s20
        %p407 = scmp.lt.s32.totalorder %s406, 63
        %s408 = scalar_select %p407, %s406, 63
        %s409 = smul.addr %s408, 2
        %s410 = smul.addr %s409, 8
        %s411 = scalar_lea.vmem %s3, %s410
        %s412 = smul.u32 32, %s20
        %p413 = scmp.lt.s32.totalorder %s20, 1
        %s414 = scalar_select %p413, %s20, 1
        %s415 = smul.addr %s414, 2
        %s416 = smul.addr %s415, 8
        %s417 = scalar_lea.vmem %s4, %s416
        %p418 = scmp.eq.s32.totalorder %s21, 0
        // Predicated region
        $region71: #{gcn_forward.17} parent=65 // pred_check
          %p419 = pneg %p418
        $region72: #{gcn_forward.17} parent=65 // pred_check_branch
          %421 = sbr.rel (%p419) target = $region74
        $region73: #{gcn_forward.17} parent=65 // pred_region
          %422 = vst [vmem:[#allocation2] sm:$0xff] 0.0
          %423 = vst [vmem:[#allocation2 + $0x8] sm:$0xff] 0.0
          %424 = vst [vmem:[#allocation2 + $0x10] sm:$0xff] 0.0
          %425 = vst [vmem:[#allocation2 + $0x18] sm:$0xff] 0.0
          %426 = vst [vmem:[#allocation2 + $0x20] sm:$0xff] 0.0
          %427 = vst [vmem:[#allocation2 + $0x28] sm:$0xff] 0.0
          %428 = vst [vmem:[#allocation2 + $0x30] sm:$0xff] 0.0
          %429 = vst [vmem:[#allocation2 + $0x38] sm:$0xff] 0.0
          %430 = vst [vmem:[#allocation2 + $0x40] sm:$0xff] 0.0
          %431 = vst [vmem:[#allocation2 + $0x48] sm:$0xff] 0.0
          %432 = vst [vmem:[#allocation2 + $0x50] sm:$0xff] 0.0
          %433 = vst [vmem:[#allocation2 + $0x58] sm:$0xff] 0.0
          %434 = vst [vmem:[#allocation2 + $0x60] sm:$0xff] 0.0
          %435 = vst [vmem:[#allocation2 + $0x68] sm:$0xff] 0.0
          %436 = vst [vmem:[#allocation2 + $0x70] sm:$0xff] 0.0
          %437 = vst [vmem:[#allocation2 + $0x78] sm:$0xff] 0.0
          %438 = vst [vmem:[#allocation2 + $0x80] sm:$0xff] 0.0
          %439 = vst [vmem:[#allocation2 + $0x88] sm:$0xff] 0.0
          %440 = vst [vmem:[#allocation2 + $0x90] sm:$0xff] 0.0
          %441 = vst [vmem:[#allocation2 + $0x98] sm:$0xff] 0.0
          %442 = vst [vmem:[#allocation2 + $0xa0] sm:$0xff] 0.0
          %443 = vst [vmem:[#allocation2 + $0xa8] sm:$0xff] 0.0
          %444 = vst [vmem:[#allocation2 + $0xb0] sm:$0xff] 0.0
          %445 = vst [vmem:[#allocation2 + $0xb8] sm:$0xff] 0.0
          %446 = vst [vmem:[#allocation2 + $0xc0] sm:$0xff] 0.0
          %447 = vst [vmem:[#allocation2 + $0xc8] sm:$0xff] 0.0
          %448 = vst [vmem:[#allocation2 + $0xd0] sm:$0xff] 0.0
          %449 = vst [vmem:[#allocation2 + $0xd8] sm:$0xff] 0.0
          %450 = vst [vmem:[#allocation2 + $0xe0] sm:$0xff] 0.0
          %451 = vst [vmem:[#allocation2 + $0xe8] sm:$0xff] 0.0
          %452 = vst [vmem:[#allocation2 + $0xf0] sm:$0xff] 0.0
          %453 = vst [vmem:[#allocation2 + $0xf8] sm:$0xff] 0.0
          %454 = vst [vmem:[#allocation2 + $0x100] sm:$0xff] 0.0
          %455 = vst [vmem:[#allocation2 + $0x108] sm:$0xff] 0.0
          %456 = vst [vmem:[#allocation2 + $0x110] sm:$0xff] 0.0
          %457 = vst [vmem:[#allocation2 + $0x118] sm:$0xff] 0.0
          %458 = vst [vmem:[#allocation2 + $0x120] sm:$0xff] 0.0
          %459 = vst [vmem:[#allocation2 + $0x128] sm:$0xff] 0.0
          %460 = vst [vmem:[#allocation2 + $0x130] sm:$0xff] 0.0
          %461 = vst [vmem:[#allocation2 + $0x138] sm:$0xff] 0.0
          %462 = vst [vmem:[#allocation2 + $0x140] sm:$0xff] 0.0
          %463 = vst [vmem:[#allocation2 + $0x148] sm:$0xff] 0.0
          %464 = vst [vmem:[#allocation2 + $0x150] sm:$0xff] 0.0
          %465 = vst [vmem:[#allocation2 + $0x158] sm:$0xff] 0.0
          %466 = vst [vmem:[#allocation2 + $0x160] sm:$0xff] 0.0
          %467 = vst [vmem:[#allocation2 + $0x168] sm:$0xff] 0.0
          %468 = vst [vmem:[#allocation2 + $0x170] sm:$0xff] 0.0
          %469 = vst [vmem:[#allocation2 + $0x178] sm:$0xff] 0.0
          %470 = vst [vmem:[#allocation2 + $0x180] sm:$0xff] 0.0
          %471 = vst [vmem:[#allocation2 + $0x188] sm:$0xff] 0.0
          %472 = vst [vmem:[#allocation2 + $0x190] sm:$0xff] 0.0
          %473 = vst [vmem:[#allocation2 + $0x198] sm:$0xff] 0.0
          %474 = vst [vmem:[#allocation2 + $0x1a0] sm:$0xff] 0.0
          %475 = vst [vmem:[#allocation2 + $0x1a8] sm:$0xff] 0.0
          %476 = vst [vmem:[#allocation2 + $0x1b0] sm:$0xff] 0.0
          %477 = vst [vmem:[#allocation2 + $0x1b8] sm:$0xff] 0.0
          %478 = vst [vmem:[#allocation2 + $0x1c0] sm:$0xff] 0.0
          %479 = vst [vmem:[#allocation2 + $0x1c8] sm:$0xff] 0.0
          %480 = vst [vmem:[#allocation2 + $0x1d0] sm:$0xff] 0.0
          %481 = vst [vmem:[#allocation2 + $0x1d8] sm:$0xff] 0.0
          %482 = vst [vmem:[#allocation2 + $0x1e0] sm:$0xff] 0.0
          %483 = vst [vmem:[#allocation2 + $0x1e8] sm:$0xff] 0.0
          %484 = vst [vmem:[#allocation2 + $0x1f0] sm:$0xff] 0.0
          %485 = vst [vmem:[#allocation2 + $0x1f8] sm:$0xff] 0.0
        $region74: #{gcn_forward.17} parent=65 // pred_fallthru
          _
        %v486 = vld [vmem:[#allocation2] sm:$0xff]
        %v487 = vld [vmem:[#allocation2 + $0x8] sm:$0xff]
        %v488 = vld [vmem:[#allocation2 + $0x10] sm:$0xff]
        %v489 = vld [vmem:[#allocation2 + $0x18] sm:$0xff]
        %v490 = vld [vmem:[#allocation2 + $0x20] sm:$0xff]
        %v491 = vld [vmem:[#allocation2 + $0x28] sm:$0xff]
        %v492 = vld [vmem:[#allocation2 + $0x30] sm:$0xff]
        %v493 = vld [vmem:[#allocation2 + $0x38] sm:$0xff]
        %v494 = vld [vmem:[#allocation2 + $0x40] sm:$0xff]
        %v495 = vld [vmem:[#allocation2 + $0x48] sm:$0xff]
        %v496 = vld [vmem:[#allocation2 + $0x50] sm:$0xff]
        %v497 = vld [vmem:[#allocation2 + $0x58] sm:$0xff]
        %v498 = vld [vmem:[#allocation2 + $0x60] sm:$0xff]
        %v499 = vld [vmem:[#allocation2 + $0x68] sm:$0xff]
        %v500 = vld [vmem:[#allocation2 + $0x70] sm:$0xff]
        %v501 = vld [vmem:[#allocation2 + $0x78] sm:$0xff]
        %v502 = vld [vmem:[#allocation2 + $0x80] sm:$0xff]
        %v503 = vld [vmem:[#allocation2 + $0x88] sm:$0xff]
        %v504 = vld [vmem:[#allocation2 + $0x90] sm:$0xff]
        %v505 = vld [vmem:[#allocation2 + $0x98] sm:$0xff]
        %v506 = vld [vmem:[#allocation2 + $0xa0] sm:$0xff]
        %v507 = vld [vmem:[#allocation2 + $0xa8] sm:$0xff]
        %v508 = vld [vmem:[#allocation2 + $0xb0] sm:$0xff]
        %v509 = vld [vmem:[#allocation2 + $0xb8] sm:$0xff]
        %v510 = vld [vmem:[#allocation2 + $0xc0] sm:$0xff]
        %v511 = vld [vmem:[#allocation2 + $0xc8] sm:$0xff]
        %v512 = vld [vmem:[#allocation2 + $0xd0] sm:$0xff]
        %v513 = vld [vmem:[#allocation2 + $0xd8] sm:$0xff]
        %v514 = vld [vmem:[#allocation2 + $0xe0] sm:$0xff]
        %v515 = vld [vmem:[#allocation2 + $0xe8] sm:$0xff]
        %v516 = vld [vmem:[#allocation2 + $0xf0] sm:$0xff]
        %v517 = vld [vmem:[#allocation2 + $0xf8] sm:$0xff]
        %v518 = vld [vmem:[#allocation2 + $0x100] sm:$0xff]
        %v519 = vld [vmem:[#allocation2 + $0x108] sm:$0xff]
        %v520 = vld [vmem:[#allocation2 + $0x110] sm:$0xff]
        %v521 = vld [vmem:[#allocation2 + $0x118] sm:$0xff]
        %v522 = vld [vmem:[#allocation2 + $0x120] sm:$0xff]
        %v523 = vld [vmem:[#allocation2 + $0x128] sm:$0xff]
        %v524 = vld [vmem:[#allocation2 + $0x130] sm:$0xff]
        %v525 = vld [vmem:[#allocation2 + $0x138] sm:$0xff]
        %v526 = vld [vmem:[#allocation2 + $0x140] sm:$0xff]
        %v527 = vld [vmem:[#allocation2 + $0x148] sm:$0xff]
        %v528 = vld [vmem:[#allocation2 + $0x150] sm:$0xff]
        %v529 = vld [vmem:[#allocation2 + $0x158] sm:$0xff]
        %v530 = vld [vmem:[#allocation2 + $0x160] sm:$0xff]
        %v531 = vld [vmem:[#allocation2 + $0x168] sm:$0xff]
        %v532 = vld [vmem:[#allocation2 + $0x170] sm:$0xff]
        %v533 = vld [vmem:[#allocation2 + $0x178] sm:$0xff]
        %v534 = vld [vmem:[#allocation2 + $0x180] sm:$0xff]
        %v535 = vld [vmem:[#allocation2 + $0x188] sm:$0xff]
        %v536 = vld [vmem:[#allocation2 + $0x190] sm:$0xff]
        %v537 = vld [vmem:[#allocation2 + $0x198] sm:$0xff]
        %v538 = vld [vmem:[#allocation2 + $0x1a0] sm:$0xff]
        %v539 = vld [vmem:[#allocation2 + $0x1a8] sm:$0xff]
        %v540 = vld [vmem:[#allocation2 + $0x1b0] sm:$0xff]
        %v541 = vld [vmem:[#allocation2 + $0x1b8] sm:$0xff]
        %v542 = vld [vmem:[#allocation2 + $0x1c0] sm:$0xff]
        %v543 = vld [vmem:[#allocation2 + $0x1c8] sm:$0xff]
        %v544 = vld [vmem:[#allocation2 + $0x1d0] sm:$0xff]
        %v545 = vld [vmem:[#allocation2 + $0x1d8] sm:$0xff]
        %v546 = vld [vmem:[#allocation2 + $0x1e0] sm:$0xff]
        %v547 = vld [vmem:[#allocation2 + $0x1e8] sm:$0xff]
        %v548 = vld [vmem:[#allocation2 + $0x1f0] sm:$0xff]
        %v549 = vld [vmem:[#allocation2 + $0x1f8] sm:$0xff]
        %v550 = vld [vmem:[%s362] sm:$0xff]
        %v551 = vld [vmem:[%s362 + $0x8] sm:$0xff]
        %v552 = vld [vmem:[%s362 + $0x10] sm:$0xff]
        %v553 = vld [vmem:[%s362 + $0x18] sm:$0xff]
        %v554 = vld [vmem:[%s362 + $0x20] sm:$0xff]
        %v555 = vld [vmem:[%s362 + $0x28] sm:$0xff]
        %v556 = vld [vmem:[%s362 + $0x30] sm:$0xff]
        %v557 = vld [vmem:[%s362 + $0x38] sm:$0xff]
        %v558 = vld [vmem:[%s362 + $0x40] sm:$0xff]
        %v559 = vld [vmem:[%s362 + $0x48] sm:$0xff]
        %v560 = vld [vmem:[%s362 + $0x50] sm:$0xff]
        %v561 = vld [vmem:[%s362 + $0x58] sm:$0xff]
        %v562 = vld [vmem:[%s362 + $0x60] sm:$0xff]
        %v563 = vld [vmem:[%s362 + $0x68] sm:$0xff]
        %v564 = vld [vmem:[%s362 + $0x70] sm:$0xff]
        %v565 = vld [vmem:[%s362 + $0x78] sm:$0xff]
        %v566 = vld [vmem:[%s362 + $0x80] sm:$0xff]
        %v567 = vld [vmem:[%s362 + $0x88] sm:$0xff]
        %v568 = vld [vmem:[%s362 + $0x90] sm:$0xff]
        %v569 = vld [vmem:[%s362 + $0x98] sm:$0xff]
        %v570 = vld [vmem:[%s362 + $0xa0] sm:$0xff]
        %v571 = vld [vmem:[%s362 + $0xa8] sm:$0xff]
        %v572 = vld [vmem:[%s362 + $0xb0] sm:$0xff]
        %v573 = vld [vmem:[%s362 + $0xb8] sm:$0xff]
        %v574 = vld [vmem:[%s362 + $0xc0] sm:$0xff]
        %v575 = vld [vmem:[%s362 + $0xc8] sm:$0xff]
        %v576 = vld [vmem:[%s362 + $0xd0] sm:$0xff]
        %v577 = vld [vmem:[%s362 + $0xd8] sm:$0xff]
        %v578 = vld [vmem:[%s362 + $0xe0] sm:$0xff]
        %v579 = vld [vmem:[%s362 + $0xe8] sm:$0xff]
        %v580 = vld [vmem:[%s362 + $0xf0] sm:$0xff]
        %v581 = vld [vmem:[%s362 + $0xf8] sm:$0xff]
        %v582 = vld [vmem:[%s404] sm:$0xff]
        %v583 = vld [vmem:[%s404 + $0x8] sm:$0xff]
        %v584 = vld [vmem:[%s404 + $0x10] sm:$0xff]
        %v585 = vld [vmem:[%s404 + $0x18] sm:$0xff]
        %v586 = vld [vmem:[%s404 + $0x20] sm:$0xff]
        %v587 = vld [vmem:[%s404 + $0x28] sm:$0xff]
        %v588 = vld [vmem:[%s404 + $0x30] sm:$0xff]
        %v589 = vld [vmem:[%s404 + $0x38] sm:$0xff]
        %v590 = vld [vmem:[%s404 + $0x40] sm:$0xff]
        %v591 = vld [vmem:[%s404 + $0x48] sm:$0xff]
        %v592 = vld [vmem:[%s404 + $0x50] sm:$0xff]
        %v593 = vld [vmem:[%s404 + $0x58] sm:$0xff]
        %v594 = vld [vmem:[%s404 + $0x60] sm:$0xff]
        %v595 = vld [vmem:[%s404 + $0x68] sm:$0xff]
        %v596 = vld [vmem:[%s404 + $0x70] sm:$0xff]
        %v597 = vld [vmem:[%s404 + $0x78] sm:$0xff]
        %v598 = vld [vmem:[%s404 + $0x80] sm:$0xff]
        %v599 = vld [vmem:[%s404 + $0x88] sm:$0xff]
        %v600 = vld [vmem:[%s404 + $0x90] sm:$0xff]
        %v601 = vld [vmem:[%s404 + $0x98] sm:$0xff]
        %v602 = vld [vmem:[%s404 + $0xa0] sm:$0xff]
        %v603 = vld [vmem:[%s404 + $0xa8] sm:$0xff]
        %v604 = vld [vmem:[%s404 + $0xb0] sm:$0xff]
        %v605 = vld [vmem:[%s404 + $0xb8] sm:$0xff]
        %v606 = vld [vmem:[%s404 + $0xc0] sm:$0xff]
        %v607 = vld [vmem:[%s404 + $0xc8] sm:$0xff]
        %v608 = vld [vmem:[%s404 + $0xd0] sm:$0xff]
        %v609 = vld [vmem:[%s404 + $0xd8] sm:$0xff]
        %v610 = vld [vmem:[%s404 + $0xe0] sm:$0xff]
        %v611 = vld [vmem:[%s404 + $0xe8] sm:$0xff]
        %v612 = vld [vmem:[%s404 + $0xf0] sm:$0xff]
        %v613 = vld [vmem:[%s404 + $0xf8] sm:$0xff]
        %v646 = vunpack.c.l.b16 %v550
        %v647 = vunpack.c.h.b16 %v550
        %v648 = vunpack.c.l.b16 %v551
        %v649 = vunpack.c.h.b16 %v551
        %v650 = vunpack.c.l.b16 %v552
        %v651 = vunpack.c.h.b16 %v552
        %v652 = vunpack.c.l.b16 %v553
        %v653 = vunpack.c.h.b16 %v553
        %v654 = vunpack.c.l.b16 %v554
        %v655 = vunpack.c.h.b16 %v554
        %v656 = vunpack.c.l.b16 %v555
        %v657 = vunpack.c.h.b16 %v555
        %v658 = vunpack.c.l.b16 %v556
        %v659 = vunpack.c.h.b16 %v556
        %v660 = vunpack.c.l.b16 %v557
        %v661 = vunpack.c.h.b16 %v557
        %v662 = vunpack.c.l.b16 %v558
        %v663 = vunpack.c.h.b16 %v558
        %v664 = vunpack.c.l.b16 %v559
        %v665 = vunpack.c.h.b16 %v559
        %v666 = vunpack.c.l.b16 %v560
        %v667 = vunpack.c.h.b16 %v560
        %v668 = vunpack.c.l.b16 %v561
        %v669 = vunpack.c.h.b16 %v561
        %v670 = vunpack.c.l.b16 %v562
        %v671 = vunpack.c.h.b16 %v562
        %v672 = vunpack.c.l.b16 %v563
        %v673 = vunpack.c.h.b16 %v563
        %v674 = vunpack.c.l.b16 %v564
        %v675 = vunpack.c.h.b16 %v564
        %v676 = vunpack.c.l.b16 %v565
        %v677 = vunpack.c.h.b16 %v565
        %v678 = vunpack.c.l.b16 %v566
        %v679 = vunpack.c.h.b16 %v566
        %v680 = vunpack.c.l.b16 %v567
        %v681 = vunpack.c.h.b16 %v567
        %v682 = vunpack.c.l.b16 %v568
        %v683 = vunpack.c.h.b16 %v568
        %v684 = vunpack.c.l.b16 %v569
        %v685 = vunpack.c.h.b16 %v569
        %v686 = vunpack.c.l.b16 %v570
        %v687 = vunpack.c.h.b16 %v570
        %v688 = vunpack.c.l.b16 %v571
        %v689 = vunpack.c.h.b16 %v571
        %v690 = vunpack.c.l.b16 %v572
        %v691 = vunpack.c.h.b16 %v572
        %v692 = vunpack.c.l.b16 %v573
        %v693 = vunpack.c.h.b16 %v573
        %v694 = vunpack.c.l.b16 %v574
        %v695 = vunpack.c.h.b16 %v574
        %v696 = vunpack.c.l.b16 %v575
        %v697 = vunpack.c.h.b16 %v575
        %v698 = vunpack.c.l.b16 %v576
        %v699 = vunpack.c.h.b16 %v576
        %v700 = vunpack.c.l.b16 %v577
        %v701 = vunpack.c.h.b16 %v577
        %v702 = vunpack.c.l.b16 %v578
        %v703 = vunpack.c.h.b16 %v578
        %v704 = vunpack.c.l.b16 %v579
        %v705 = vunpack.c.h.b16 %v579
        %v706 = vunpack.c.l.b16 %v580
        %v707 = vunpack.c.h.b16 %v580
        %v708 = vunpack.c.l.b16 %v581
        %v709 = vunpack.c.h.b16 %v581
        %v710 = vpack.c.b16 %v648, %v646
        %v711 = vpack.c.b16 %v649, %v647
        %v712 = vpack.c.b16 %v652, %v650
        %v713 = vpack.c.b16 %v653, %v651
        %v714 = vpack.c.b16 %v656, %v654
        %v715 = vpack.c.b16 %v657, %v655
        %v716 = vpack.c.b16 %v660, %v658
        %v717 = vpack.c.b16 %v661, %v659
        %v718 = vpack.c.b16 %v664, %v662
        %v719 = vpack.c.b16 %v665, %v663
        %v720 = vpack.c.b16 %v668, %v666
        %v721 = vpack.c.b16 %v669, %v667
        %v722 = vpack.c.b16 %v672, %v670
        %v723 = vpack.c.b16 %v673, %v671
        %v724 = vpack.c.b16 %v676, %v674
        %v725 = vpack.c.b16 %v677, %v675
        %v726 = vpack.c.b16 %v680, %v678
        %v727 = vpack.c.b16 %v681, %v679
        %v728 = vpack.c.b16 %v684, %v682
        %v729 = vpack.c.b16 %v685, %v683
        %v730 = vpack.c.b16 %v688, %v686
        %v731 = vpack.c.b16 %v689, %v687
        %v732 = vpack.c.b16 %v692, %v690
        %v733 = vpack.c.b16 %v693, %v691
        %v734 = vpack.c.b16 %v696, %v694
        %v735 = vpack.c.b16 %v697, %v695
        %v736 = vpack.c.b16 %v700, %v698
        %v737 = vpack.c.b16 %v701, %v699
        %v738 = vpack.c.b16 %v704, %v702
        %v739 = vpack.c.b16 %v705, %v703
        %v740 = vpack.c.b16 %v708, %v706
        %v741 = vpack.c.b16 %v709, %v707
        %v806 = vunpack.c.l.b16 %v582
        %v807 = vunpack.c.h.b16 %v582
        %v808 = vunpack.c.l.b16 %v583
        %v809 = vunpack.c.h.b16 %v583
        %v810 = vunpack.c.l.b16 %v584
        %v811 = vunpack.c.h.b16 %v584
        %v812 = vunpack.c.l.b16 %v585
        %v813 = vunpack.c.h.b16 %v585
        %v814 = vunpack.c.l.b16 %v586
        %v815 = vunpack.c.h.b16 %v586
        %v816 = vunpack.c.l.b16 %v587
        %v817 = vunpack.c.h.b16 %v587
        %v818 = vunpack.c.l.b16 %v588
        %v819 = vunpack.c.h.b16 %v588
        %v820 = vunpack.c.l.b16 %v589
        %v821 = vunpack.c.h.b16 %v589
        %v822 = vunpack.c.l.b16 %v590
        %v823 = vunpack.c.h.b16 %v590
        %v824 = vunpack.c.l.b16 %v591
        %v825 = vunpack.c.h.b16 %v591
        %v826 = vunpack.c.l.b16 %v592
        %v827 = vunpack.c.h.b16 %v592
        %v828 = vunpack.c.l.b16 %v593
        %v829 = vunpack.c.h.b16 %v593
        %v830 = vunpack.c.l.b16 %v594
        %v831 = vunpack.c.h.b16 %v594
        %v832 = vunpack.c.l.b16 %v595
        %v833 = vunpack.c.h.b16 %v595
        %v834 = vunpack.c.l.b16 %v596
        %v835 = vunpack.c.h.b16 %v596
        %v836 = vunpack.c.l.b16 %v597
        %v837 = vunpack.c.h.b16 %v597
        %v838 = vunpack.c.l.b16 %v598
        %v839 = vunpack.c.h.b16 %v598
        %v840 = vunpack.c.l.b16 %v599
        %v841 = vunpack.c.h.b16 %v599
        %v842 = vunpack.c.l.b16 %v600
        %v843 = vunpack.c.h.b16 %v600
        %v844 = vunpack.c.l.b16 %v601
        %v845 = vunpack.c.h.b16 %v601
        %v846 = vunpack.c.l.b16 %v602
        %v847 = vunpack.c.h.b16 %v602
        %v848 = vunpack.c.l.b16 %v603
        %v849 = vunpack.c.h.b16 %v603
        %v850 = vunpack.c.l.b16 %v604
        %v851 = vunpack.c.h.b16 %v604
        %v852 = vunpack.c.l.b16 %v605
        %v853 = vunpack.c.h.b16 %v605
        %v854 = vunpack.c.l.b16 %v606
        %v855 = vunpack.c.h.b16 %v606
        %v856 = vunpack.c.l.b16 %v607
        %v857 = vunpack.c.h.b16 %v607
        %v858 = vunpack.c.l.b16 %v608
        %v859 = vunpack.c.h.b16 %v608
        %v860 = vunpack.c.l.b16 %v609
        %v861 = vunpack.c.h.b16 %v609
        %v862 = vunpack.c.l.b16 %v610
        %v863 = vunpack.c.h.b16 %v610
        %v864 = vunpack.c.l.b16 %v611
        %v865 = vunpack.c.h.b16 %v611
        %v866 = vunpack.c.l.b16 %v612
        %v867 = vunpack.c.h.b16 %v612
        %v868 = vunpack.c.l.b16 %v613
        %v869 = vunpack.c.h.b16 %v613
        %v870 = vpack.c.b16 %v808, %v806
        %v871 = vpack.c.b16 %v809, %v807
        %v872 = vpack.c.b16 %v812, %v810
        %v873 = vpack.c.b16 %v813, %v811
        %v874 = vpack.c.b16 %v816, %v814
        %v875 = vpack.c.b16 %v817, %v815
        %v876 = vpack.c.b16 %v820, %v818
        %v877 = vpack.c.b16 %v821, %v819
        %v878 = vpack.c.b16 %v824, %v822
        %v879 = vpack.c.b16 %v825, %v823
        %v880 = vpack.c.b16 %v828, %v826
        %v881 = vpack.c.b16 %v829, %v827
        %v882 = vpack.c.b16 %v832, %v830
        %v883 = vpack.c.b16 %v833, %v831
        %v884 = vpack.c.b16 %v836, %v834
        %v885 = vpack.c.b16 %v837, %v835
        %v886 = vpack.c.b16 %v840, %v838
        %v887 = vpack.c.b16 %v841, %v839
        %v888 = vpack.c.b16 %v844, %v842
        %v889 = vpack.c.b16 %v845, %v843
        %v890 = vpack.c.b16 %v848, %v846
        %v891 = vpack.c.b16 %v849, %v847
        %v892 = vpack.c.b16 %v852, %v850
        %v893 = vpack.c.b16 %v853, %v851
        %v894 = vpack.c.b16 %v856, %v854
        %v895 = vpack.c.b16 %v857, %v855
        %v896 = vpack.c.b16 %v860, %v858
        %v897 = vpack.c.b16 %v861, %v859
        %v898 = vpack.c.b16 %v864, %v862
        %v899 = vpack.c.b16 %v865, %v863
        %v900 = vpack.c.b16 %v868, %v866
        %v901 = vpack.c.b16 %v869, %v867
        %934 = vmatprep.subr.bf16.mxu0 %v885
        %935 = vmatpush1.bf16.msra.mxu0 %v884
        %936 = vmatprep.subr.bf16.mxu0 %v883
        %937 = vmatpush1.bf16.msra.mxu0 %v882
        %938 = vmatprep.subr.bf16.mxu0 %v881
        %939 = vmatpush1.bf16.msra.mxu0 %v880
        %940 = vmatprep.subr.bf16.mxu0 %v879
        %941 = vmatpush1.bf16.msra.mxu0 %v878
        %942 = vmatprep.subr.bf16.mxu0 %v877
        %943 = vmatpush1.bf16.msra.mxu0 %v876
        %944 = vmatprep.subr.bf16.mxu0 %v875
        %945 = vmatpush1.bf16.msra.mxu0 %v874
        %946 = vmatprep.subr.bf16.mxu0 %v873
        %947 = vmatpush1.bf16.msra.mxu0 %v872
        %948 = vmatprep.subr.bf16.mxu0 %v871
        %949 = vmatpush1.bf16.msra.mxu0 %v870
        %950 = vmatprep.subr.bf16.mxu0 %v901
        %951 = vmatpush2.bf16.msra.mxu0 %v900
        %952 = vmatprep.subr.bf16.mxu0 %v899
        %953 = vmatpush2.bf16.msra.mxu0 %v898
        %954 = vmatprep.subr.bf16.mxu0 %v897
        %955 = vmatpush2.bf16.msra.mxu0 %v896
        %956 = vmatprep.subr.bf16.mxu0 %v895
        %957 = vmatpush2.bf16.msra.mxu0 %v894
        %958 = vmatprep.subr.bf16.mxu0 %v893
        %959 = vmatpush2.bf16.msra.mxu0 %v892
        %960 = vmatprep.subr.bf16.mxu0 %v891
        %961 = vmatpush2.bf16.msra.mxu0 %v890
        %962 = vmatprep.subr.bf16.mxu0 %v889
        %963 = vmatpush2.bf16.msra.mxu0 %v888
        %964 = vmatprep.subr.bf16.mxu0 %v887
        %965 = vmatpush2.bf16.msra.mxu0 %v886
        %966 = vmatprep.mubr.bf16.mxu0 %v711
        %967 = vmatmul.mubr.bf16.gmra.mxu0 %v710
        %v968 = vpop.f32.mrf.mxu0
        %v969 = vadd.f32 0.0, %v968
        %v970 = vpop.f32.mrf.mxu0
        %v971 = vadd.f32 0.0, %v970
        %v972 = vpop.f32.mrf.mxu0
        %v973 = vadd.f32 0.0, %v972
        %v974 = vpop.f32.mrf.mxu0
        %v975 = vadd.f32 0.0, %v974
        %976 = vmatprep.mubr.bf16.mxu0 %v713
        %977 = vmatmul.mubr.bf16.gmra.mxu0 %v712
        %v978 = vpop.f32.mrf.mxu0
        %v979 = vadd.f32 0.0, %v978
        %v980 = vpop.f32.mrf.mxu0
        %v981 = vadd.f32 0.0, %v980
        %v982 = vpop.f32.mrf.mxu0
        %v983 = vadd.f32 0.0, %v982
        %v984 = vpop.f32.mrf.mxu0
        %v985 = vadd.f32 0.0, %v984
        %986 = vmatprep.mubr.bf16.mxu0 %v715
        %987 = vmatmul.mubr.bf16.gmra.mxu0 %v714
        %v988 = vpop.f32.mrf.mxu0
        %v989 = vadd.f32 0.0, %v988
        %v990 = vpop.f32.mrf.mxu0
        %v991 = vadd.f32 0.0, %v990
        %v992 = vpop.f32.mrf.mxu0
        %v993 = vadd.f32 0.0, %v992
        %v994 = vpop.f32.mrf.mxu0
        %v995 = vadd.f32 0.0, %v994
        %996 = vmatprep.mubr.bf16.mxu0 %v717
        %997 = vmatmul.mubr.bf16.gmra.mxu0 %v716
        %v998 = vpop.f32.mrf.mxu0
        %v999 = vadd.f32 0.0, %v998
        %v1000 = vpop.f32.mrf.mxu0
        %v1001 = vadd.f32 0.0, %v1000
        %v1002 = vpop.f32.mrf.mxu0
        %v1003 = vadd.f32 0.0, %v1002
        %v1004 = vpop.f32.mrf.mxu0
        %v1005 = vadd.f32 0.0, %v1004
        %1006 = vmatprep.mubr.bf16.mxu0 %v719
        %1007 = vmatmul.mubr.bf16.gmra.mxu0 %v718
        %v1008 = vpop.f32.mrf.mxu0
        %v1009 = vadd.f32 0.0, %v1008
        %v1010 = vpop.f32.mrf.mxu0
        %v1011 = vadd.f32 0.0, %v1010
        %v1012 = vpop.f32.mrf.mxu0
        %v1013 = vadd.f32 0.0, %v1012
        %v1014 = vpop.f32.mrf.mxu0
        %v1015 = vadd.f32 0.0, %v1014
        %1016 = vmatprep.mubr.bf16.mxu0 %v721
        %1017 = vmatmul.mubr.bf16.gmra.mxu0 %v720
        %v1018 = vpop.f32.mrf.mxu0
        %v1019 = vadd.f32 0.0, %v1018
        %v1020 = vpop.f32.mrf.mxu0
        %v1021 = vadd.f32 0.0, %v1020
        %v1022 = vpop.f32.mrf.mxu0
        %v1023 = vadd.f32 0.0, %v1022
        %v1024 = vpop.f32.mrf.mxu0
        %v1025 = vadd.f32 0.0, %v1024
        %1026 = vmatprep.mubr.bf16.mxu0 %v723
        %1027 = vmatmul.mubr.bf16.gmra.mxu0 %v722
        %v1028 = vpop.f32.mrf.mxu0
        %v1029 = vadd.f32 0.0, %v1028
        %v1030 = vpop.f32.mrf.mxu0
        %v1031 = vadd.f32 0.0, %v1030
        %v1032 = vpop.f32.mrf.mxu0
        %v1033 = vadd.f32 0.0, %v1032
        %v1034 = vpop.f32.mrf.mxu0
        %v1035 = vadd.f32 0.0, %v1034
        %1036 = vmatprep.mubr.bf16.mxu0 %v725
        %1037 = vmatmul.mubr.bf16.gmra.mxu0 %v724
        %v1038 = vpop.f32.mrf.mxu0
        %v1039 = vadd.f32 0.0, %v1038
        %v1040 = vpop.f32.mrf.mxu0
        %v1041 = vadd.f32 0.0, %v1040
        %v1042 = vpop.f32.mrf.mxu0
        %v1043 = vadd.f32 0.0, %v1042
        %v1044 = vpop.f32.mrf.mxu0
        %v1045 = vadd.f32 0.0, %v1044
        %1046 = vmatprep.mubr.bf16.mxu0 %v727
        %1047 = vmatmul.mubr.bf16.gmra.mxu0 %v726
        %v1048 = vpop.f32.mrf.mxu0
        %v1049 = vadd.f32 0.0, %v1048
        %v1050 = vpop.f32.mrf.mxu0
        %v1051 = vadd.f32 0.0, %v1050
        %v1052 = vpop.f32.mrf.mxu0
        %v1053 = vadd.f32 0.0, %v1052
        %v1054 = vpop.f32.mrf.mxu0
        %v1055 = vadd.f32 0.0, %v1054
        %1056 = vmatprep.mubr.bf16.mxu0 %v729
        %1057 = vmatmul.mubr.bf16.gmra.mxu0 %v728
        %v1058 = vpop.f32.mrf.mxu0
        %v1059 = vadd.f32 0.0, %v1058
        %v1060 = vpop.f32.mrf.mxu0
        %v1061 = vadd.f32 0.0, %v1060
        %v1062 = vpop.f32.mrf.mxu0
        %v1063 = vadd.f32 0.0, %v1062
        %v1064 = vpop.f32.mrf.mxu0
        %v1065 = vadd.f32 0.0, %v1064
        %1066 = vmatprep.mubr.bf16.mxu0 %v731
        %1067 = vmatmul.mubr.bf16.gmra.mxu0 %v730
        %v1068 = vpop.f32.mrf.mxu0
        %v1069 = vadd.f32 0.0, %v1068
        %v1070 = vpop.f32.mrf.mxu0
        %v1071 = vadd.f32 0.0, %v1070
        %v1072 = vpop.f32.mrf.mxu0
        %v1073 = vadd.f32 0.0, %v1072
        %v1074 = vpop.f32.mrf.mxu0
        %v1075 = vadd.f32 0.0, %v1074
        %1076 = vmatprep.mubr.bf16.mxu0 %v733
        %1077 = vmatmul.mubr.bf16.gmra.mxu0 %v732
        %v1078 = vpop.f32.mrf.mxu0
        %v1079 = vadd.f32 0.0, %v1078
        %v1080 = vpop.f32.mrf.mxu0
        %v1081 = vadd.f32 0.0, %v1080
        %v1082 = vpop.f32.mrf.mxu0
        %v1083 = vadd.f32 0.0, %v1082
        %v1084 = vpop.f32.mrf.mxu0
        %v1085 = vadd.f32 0.0, %v1084
        %1086 = vmatprep.mubr.bf16.mxu0 %v735
        %1087 = vmatmul.mubr.bf16.gmra.mxu0 %v734
        %v1088 = vpop.f32.mrf.mxu0
        %v1089 = vadd.f32 0.0, %v1088
        %v1090 = vpop.f32.mrf.mxu0
        %v1091 = vadd.f32 0.0, %v1090
        %v1092 = vpop.f32.mrf.mxu0
        %v1093 = vadd.f32 0.0, %v1092
        %v1094 = vpop.f32.mrf.mxu0
        %v1095 = vadd.f32 0.0, %v1094
        %1096 = vmatprep.mubr.bf16.mxu0 %v737
        %1097 = vmatmul.mubr.bf16.gmra.mxu0 %v736
        %v1098 = vpop.f32.mrf.mxu0
        %v1099 = vadd.f32 0.0, %v1098
        %v1100 = vpop.f32.mrf.mxu0
        %v1101 = vadd.f32 0.0, %v1100
        %v1102 = vpop.f32.mrf.mxu0
        %v1103 = vadd.f32 0.0, %v1102
        %v1104 = vpop.f32.mrf.mxu0
        %v1105 = vadd.f32 0.0, %v1104
        %1106 = vmatprep.mubr.bf16.mxu0 %v739
        %1107 = vmatmul.mubr.bf16.gmra.mxu0 %v738
        %v1108 = vpop.f32.mrf.mxu0
        %v1109 = vadd.f32 0.0, %v1108
        %v1110 = vpop.f32.mrf.mxu0
        %v1111 = vadd.f32 0.0, %v1110
        %v1112 = vpop.f32.mrf.mxu0
        %v1113 = vadd.f32 0.0, %v1112
        %v1114 = vpop.f32.mrf.mxu0
        %v1115 = vadd.f32 0.0, %v1114
        %1116 = vmatprep.mubr.bf16.mxu0 %v741
        %1117 = vmatmul.mubr.bf16.gmra.mxu0 %v740
        %v1118 = vpop.f32.mrf.mxu0
        %v1119 = vadd.f32 0.0, %v1118
        %v1120 = vpop.f32.mrf.mxu0
        %v1121 = vadd.f32 0.0, %v1120
        %v1122 = vpop.f32.mrf.mxu0
        %v1123 = vadd.f32 0.0, %v1122
        %v1124 = vpop.f32.mrf.mxu0
        %v1125 = vadd.f32 0.0, %v1124
        %1126 = vdwg.mxu0
        %v1127 = vadd.f32 %v486, %v969
        %v1128 = vadd.f32 %v487, %v971
        %v1129 = vadd.f32 %v488, %v973
        %v1130 = vadd.f32 %v489, %v975
        %v1131 = vadd.f32 %v490, %v979
        %v1132 = vadd.f32 %v491, %v981
        %v1133 = vadd.f32 %v492, %v983
        %v1134 = vadd.f32 %v493, %v985
        %v1135 = vadd.f32 %v494, %v989
        %v1136 = vadd.f32 %v495, %v991
        %v1137 = vadd.f32 %v496, %v993
        %v1138 = vadd.f32 %v497, %v995
        %v1139 = vadd.f32 %v498, %v999
        %v1140 = vadd.f32 %v499, %v1001
        %v1141 = vadd.f32 %v500, %v1003
        %v1142 = vadd.f32 %v501, %v1005
        %v1143 = vadd.f32 %v502, %v1009
        %v1144 = vadd.f32 %v503, %v1011
        %v1145 = vadd.f32 %v504, %v1013
        %v1146 = vadd.f32 %v505, %v1015
        %v1147 = vadd.f32 %v506, %v1019
        %v1148 = vadd.f32 %v507, %v1021
        %v1149 = vadd.f32 %v508, %v1023
        %v1150 = vadd.f32 %v509, %v1025
        %v1151 = vadd.f32 %v510, %v1029
        %v1152 = vadd.f32 %v511, %v1031
        %v1153 = vadd.f32 %v512, %v1033
        %v1154 = vadd.f32 %v513, %v1035
        %v1155 = vadd.f32 %v514, %v1039
        %v1156 = vadd.f32 %v515, %v1041
        %v1157 = vadd.f32 %v516, %v1043
        %v1158 = vadd.f32 %v517, %v1045
        %v1159 = vadd.f32 %v518, %v1049
        %v1160 = vadd.f32 %v519, %v1051
        %v1161 = vadd.f32 %v520, %v1053
        %v1162 = vadd.f32 %v521, %v1055
        %v1163 = vadd.f32 %v522, %v1059
        %v1164 = vadd.f32 %v523, %v1061
        %v1165 = vadd.f32 %v524, %v1063
        %v1166 = vadd.f32 %v525, %v1065
        %v1167 = vadd.f32 %v526, %v1069
        %v1168 = vadd.f32 %v527, %v1071
        %v1169 = vadd.f32 %v528, %v1073
        %v1170 = vadd.f32 %v529, %v1075
        %v1171 = vadd.f32 %v530, %v1079
        %v1172 = vadd.f32 %v531, %v1081
        %v1173 = vadd.f32 %v532, %v1083
        %v1174 = vadd.f32 %v533, %v1085
        %v1175 = vadd.f32 %v534, %v1089
        %v1176 = vadd.f32 %v535, %v1091
        %v1177 = vadd.f32 %v536, %v1093
        %v1178 = vadd.f32 %v537, %v1095
        %v1179 = vadd.f32 %v538, %v1099
        %v1180 = vadd.f32 %v539, %v1101
        %v1181 = vadd.f32 %v540, %v1103
        %v1182 = vadd.f32 %v541, %v1105
        %v1183 = vadd.f32 %v542, %v1109
        %v1184 = vadd.f32 %v543, %v1111
        %v1185 = vadd.f32 %v544, %v1113
        %v1186 = vadd.f32 %v545, %v1115
        %v1187 = vadd.f32 %v546, %v1119
        %v1188 = vadd.f32 %v547, %v1121
        %v1189 = vadd.f32 %v548, %v1123
        %v1190 = vadd.f32 %v549, %v1125
        %1191 = vst [vmem:[#allocation2] sm:$0xff] %v1127
        %1192 = vst [vmem:[#allocation2 + $0x8] sm:$0xff] %v1128
        %1193 = vst [vmem:[#allocation2 + $0x10] sm:$0xff] %v1129
        %1194 = vst [vmem:[#allocation2 + $0x18] sm:$0xff] %v1130
        %1195 = vst [vmem:[#allocation2 + $0x20] sm:$0xff] %v1131
        %1196 = vst [vmem:[#allocation2 + $0x28] sm:$0xff] %v1132
        %1197 = vst [vmem:[#allocation2 + $0x30] sm:$0xff] %v1133
        %1198 = vst [vmem:[#allocation2 + $0x38] sm:$0xff] %v1134
        %1199 = vst [vmem:[#allocation2 + $0x40] sm:$0xff] %v1135
        %1200 = vst [vmem:[#allocation2 + $0x48] sm:$0xff] %v1136
        %1201 = vst [vmem:[#allocation2 + $0x50] sm:$0xff] %v1137
        %1202 = vst [vmem:[#allocation2 + $0x58] sm:$0xff] %v1138
        %1203 = vst [vmem:[#allocation2 + $0x60] sm:$0xff] %v1139
        %1204 = vst [vmem:[#allocation2 + $0x68] sm:$0xff] %v1140
        %1205 = vst [vmem:[#allocation2 + $0x70] sm:$0xff] %v1141
        %1206 = vst [vmem:[#allocation2 + $0x78] sm:$0xff] %v1142
        %1207 = vst [vmem:[#allocation2 + $0x80] sm:$0xff] %v1143
        %1208 = vst [vmem:[#allocation2 + $0x88] sm:$0xff] %v1144
        %1209 = vst [vmem:[#allocation2 + $0x90] sm:$0xff] %v1145
        %1210 = vst [vmem:[#allocation2 + $0x98] sm:$0xff] %v1146
        %1211 = vst [vmem:[#allocation2 + $0xa0] sm:$0xff] %v1147
        %1212 = vst [vmem:[#allocation2 + $0xa8] sm:$0xff] %v1148
        %1213 = vst [vmem:[#allocation2 + $0xb0] sm:$0xff] %v1149
        %1214 = vst [vmem:[#allocation2 + $0xb8] sm:$0xff] %v1150
        %1215 = vst [vmem:[#allocation2 + $0xc0] sm:$0xff] %v1151
        %1216 = vst [vmem:[#allocation2 + $0xc8] sm:$0xff] %v1152
        %1217 = vst [vmem:[#allocation2 + $0xd0] sm:$0xff] %v1153
        %1218 = vst [vmem:[#allocation2 + $0xd8] sm:$0xff] %v1154
        %1219 = vst [vmem:[#allocation2 + $0xe0] sm:$0xff] %v1155
        %1220 = vst [vmem:[#allocation2 + $0xe8] sm:$0xff] %v1156
        %1221 = vst [vmem:[#allocation2 + $0xf0] sm:$0xff] %v1157
        %1222 = vst [vmem:[#allocation2 + $0xf8] sm:$0xff] %v1158
        %1223 = vst [vmem:[#allocation2 + $0x100] sm:$0xff] %v1159
        %1224 = vst [vmem:[#allocation2 + $0x108] sm:$0xff] %v1160
        %1225 = vst [vmem:[#allocation2 + $0x110] sm:$0xff] %v1161
        %1226 = vst [vmem:[#allocation2 + $0x118] sm:$0xff] %v1162
        %1227 = vst [vmem:[#allocation2 + $0x120] sm:$0xff] %v1163
        %1228 = vst [vmem:[#allocation2 + $0x128] sm:$0xff] %v1164
        %1229 = vst [vmem:[#allocation2 + $0x130] sm:$0xff] %v1165
        %1230 = vst [vmem:[#allocation2 + $0x138] sm:$0xff] %v1166
        %1231 = vst [vmem:[#allocation2 + $0x140] sm:$0xff] %v1167
        %1232 = vst [vmem:[#allocation2 + $0x148] sm:$0xff] %v1168
        %1233 = vst [vmem:[#allocation2 + $0x150] sm:$0xff] %v1169
        %1234 = vst [vmem:[#allocation2 + $0x158] sm:$0xff] %v1170
        %1235 = vst [vmem:[#allocation2 + $0x160] sm:$0xff] %v1171
        %1236 = vst [vmem:[#allocation2 + $0x168] sm:$0xff] %v1172
        %1237 = vst [vmem:[#allocation2 + $0x170] sm:$0xff] %v1173
        %1238 = vst [vmem:[#allocation2 + $0x178] sm:$0xff] %v1174
        %1239 = vst [vmem:[#allocation2 + $0x180] sm:$0xff] %v1175
        %1240 = vst [vmem:[#allocation2 + $0x188] sm:$0xff] %v1176
        %1241 = vst [vmem:[#allocation2 + $0x190] sm:$0xff] %v1177
        %1242 = vst [vmem:[#allocation2 + $0x198] sm:$0xff] %v1178
        %1243 = vst [vmem:[#allocation2 + $0x1a0] sm:$0xff] %v1179
        %1244 = vst [vmem:[#allocation2 + $0x1a8] sm:$0xff] %v1180
        %1245 = vst [vmem:[#allocation2 + $0x1b0] sm:$0xff] %v1181
        %1246 = vst [vmem:[#allocation2 + $0x1b8] sm:$0xff] %v1182
        %1247 = vst [vmem:[#allocation2 + $0x1c0] sm:$0xff] %v1183
        %1248 = vst [vmem:[#allocation2 + $0x1c8] sm:$0xff] %v1184
        %1249 = vst [vmem:[#allocation2 + $0x1d0] sm:$0xff] %v1185
        %1250 = vst [vmem:[#allocation2 + $0x1d8] sm:$0xff] %v1186
        %1251 = vst [vmem:[#allocation2 + $0x1e0] sm:$0xff] %v1187
        %1252 = vst [vmem:[#allocation2 + $0x1e8] sm:$0xff] %v1188
        %1253 = vst [vmem:[#allocation2 + $0x1f0] sm:$0xff] %v1189
        %1254 = vst [vmem:[#allocation2 + $0x1f8] sm:$0xff] %v1190
        %p1255 = scmp.eq.s32.totalorder %s21, 1
        // Predicated region
        $region75: #{gcn_forward.17} parent=65 // pred_check
          %p1256 = pneg %p1255
        $region76: #{gcn_forward.17} parent=65 // pred_check_branch
          %1258 = sbr.rel (%p1256) target = $region78
        $region77: #{gcn_forward.17} parent=65 // pred_region
          %v1259 = vld [vmem:[#allocation2] sm:$0xff]
          %v1260 = vld [vmem:[#allocation2 + $0x8] sm:$0xff]
          %v1261 = vld [vmem:[#allocation2 + $0x10] sm:$0xff]
          %v1262 = vld [vmem:[#allocation2 + $0x18] sm:$0xff]
          %v1263 = vld [vmem:[#allocation2 + $0x20] sm:$0xff]
          %v1264 = vld [vmem:[#allocation2 + $0x28] sm:$0xff]
          %v1265 = vld [vmem:[#allocation2 + $0x30] sm:$0xff]
          %v1266 = vld [vmem:[#allocation2 + $0x38] sm:$0xff]
          %v1267 = vld [vmem:[#allocation2 + $0x40] sm:$0xff]
          %v1268 = vld [vmem:[#allocation2 + $0x48] sm:$0xff]
          %v1269 = vld [vmem:[#allocation2 + $0x50] sm:$0xff]
          %v1270 = vld [vmem:[#allocation2 + $0x58] sm:$0xff]
          %v1271 = vld [vmem:[#allocation2 + $0x60] sm:$0xff]
          %v1272 = vld [vmem:[#allocation2 + $0x68] sm:$0xff]
          %v1273 = vld [vmem:[#allocation2 + $0x70] sm:$0xff]
          %v1274 = vld [vmem:[#allocation2 + $0x78] sm:$0xff]
          %v1275 = vld [vmem:[#allocation2 + $0x80] sm:$0xff]
          %v1276 = vld [vmem:[#allocation2 + $0x88] sm:$0xff]
          %v1277 = vld [vmem:[#allocation2 + $0x90] sm:$0xff]
          %v1278 = vld [vmem:[#allocation2 + $0x98] sm:$0xff]
          %v1279 = vld [vmem:[#allocation2 + $0xa0] sm:$0xff]
          %v1280 = vld [vmem:[#allocation2 + $0xa8] sm:$0xff]
          %v1281 = vld [vmem:[#allocation2 + $0xb0] sm:$0xff]
          %v1282 = vld [vmem:[#allocation2 + $0xb8] sm:$0xff]
          %v1283 = vld [vmem:[#allocation2 + $0xc0] sm:$0xff]
          %v1284 = vld [vmem:[#allocation2 + $0xc8] sm:$0xff]
          %v1285 = vld [vmem:[#allocation2 + $0xd0] sm:$0xff]
          %v1286 = vld [vmem:[#allocation2 + $0xd8] sm:$0xff]
          %v1287 = vld [vmem:[#allocation2 + $0xe0] sm:$0xff]
          %v1288 = vld [vmem:[#allocation2 + $0xe8] sm:$0xff]
          %v1289 = vld [vmem:[#allocation2 + $0xf0] sm:$0xff]
          %v1290 = vld [vmem:[#allocation2 + $0xf8] sm:$0xff]
          %v1291 = vld [vmem:[#allocation2 + $0x100] sm:$0xff]
          %v1292 = vld [vmem:[#allocation2 + $0x108] sm:$0xff]
          %v1293 = vld [vmem:[#allocation2 + $0x110] sm:$0xff]
          %v1294 = vld [vmem:[#allocation2 + $0x118] sm:$0xff]
          %v1295 = vld [vmem:[#allocation2 + $0x120] sm:$0xff]
          %v1296 = vld [vmem:[#allocation2 + $0x128] sm:$0xff]
          %v1297 = vld [vmem:[#allocation2 + $0x130] sm:$0xff]
          %v1298 = vld [vmem:[#allocation2 + $0x138] sm:$0xff]
          %v1299 = vld [vmem:[#allocation2 + $0x140] sm:$0xff]
          %v1300 = vld [vmem:[#allocation2 + $0x148] sm:$0xff]
          %v1301 = vld [vmem:[#allocation2 + $0x150] sm:$0xff]
          %v1302 = vld [vmem:[#allocation2 + $0x158] sm:$0xff]
          %v1303 = vld [vmem:[#allocation2 + $0x160] sm:$0xff]
          %v1304 = vld [vmem:[#allocation2 + $0x168] sm:$0xff]
          %v1305 = vld [vmem:[#allocation2 + $0x170] sm:$0xff]
          %v1306 = vld [vmem:[#allocation2 + $0x178] sm:$0xff]
          %v1307 = vld [vmem:[#allocation2 + $0x180] sm:$0xff]
          %v1308 = vld [vmem:[#allocation2 + $0x188] sm:$0xff]
          %v1309 = vld [vmem:[#allocation2 + $0x190] sm:$0xff]
          %v1310 = vld [vmem:[#allocation2 + $0x198] sm:$0xff]
          %v1311 = vld [vmem:[#allocation2 + $0x1a0] sm:$0xff]
          %v1312 = vld [vmem:[#allocation2 + $0x1a8] sm:$0xff]
          %v1313 = vld [vmem:[#allocation2 + $0x1b0] sm:$0xff]
          %v1314 = vld [vmem:[#allocation2 + $0x1b8] sm:$0xff]
          %v1315 = vld [vmem:[#allocation2 + $0x1c0] sm:$0xff]
          %v1316 = vld [vmem:[#allocation2 + $0x1c8] sm:$0xff]
          %v1317 = vld [vmem:[#allocation2 + $0x1d0] sm:$0xff]
          %v1318 = vld [vmem:[#allocation2 + $0x1d8] sm:$0xff]
          %v1319 = vld [vmem:[#allocation2 + $0x1e0] sm:$0xff]
          %v1320 = vld [vmem:[#allocation2 + $0x1e8] sm:$0xff]
          %v1321 = vld [vmem:[#allocation2 + $0x1f0] sm:$0xff]
          %v1322 = vld [vmem:[#allocation2 + $0x1f8] sm:$0xff]
          %v1323 = vpack.c.bf16 %v1261, %v1259
          %v1324 = vpack.c.bf16 %v1262, %v1260
          %v1325 = vpack.c.bf16 %v1265, %v1263
          %v1326 = vpack.c.bf16 %v1266, %v1264
          %v1327 = vpack.c.bf16 %v1269, %v1267
          %v1328 = vpack.c.bf16 %v1270, %v1268
          %v1329 = vpack.c.bf16 %v1273, %v1271
          %v1330 = vpack.c.bf16 %v1274, %v1272
          %v1331 = vpack.c.bf16 %v1277, %v1275
          %v1332 = vpack.c.bf16 %v1278, %v1276
          %v1333 = vpack.c.bf16 %v1281, %v1279
          %v1334 = vpack.c.bf16 %v1282, %v1280
          %v1335 = vpack.c.bf16 %v1285, %v1283
          %v1336 = vpack.c.bf16 %v1286, %v1284
          %v1337 = vpack.c.bf16 %v1289, %v1287
          %v1338 = vpack.c.bf16 %v1290, %v1288
          %v1339 = vpack.c.bf16 %v1293, %v1291
          %v1340 = vpack.c.bf16 %v1294, %v1292
          %v1341 = vpack.c.bf16 %v1297, %v1295
          %v1342 = vpack.c.bf16 %v1298, %v1296
          %v1343 = vpack.c.bf16 %v1301, %v1299
          %v1344 = vpack.c.bf16 %v1302, %v1300
          %v1345 = vpack.c.bf16 %v1305, %v1303
          %v1346 = vpack.c.bf16 %v1306, %v1304
          %v1347 = vpack.c.bf16 %v1309, %v1307
          %v1348 = vpack.c.bf16 %v1310, %v1308
          %v1349 = vpack.c.bf16 %v1313, %v1311
          %v1350 = vpack.c.bf16 %v1314, %v1312
          %v1351 = vpack.c.bf16 %v1317, %v1315
          %v1352 = vpack.c.bf16 %v1318, %v1316
          %v1353 = vpack.c.bf16 %v1321, %v1319
          %v1354 = vpack.c.bf16 %v1322, %v1320
          %v1355 = vld [vmem:[%s2] sm:$0xff]
          %v1356 = vld [vmem:[%s2 + $0x8] sm:$0xff]
          %v1357 = vld [vmem:[%s2 + $0x10] sm:$0xff]
          %v1358 = vld [vmem:[%s2 + $0x18] sm:$0xff]
          %v1359 = vld [vmem:[%s2 + $0x20] sm:$0xff]
          %v1360 = vld [vmem:[%s2 + $0x28] sm:$0xff]
          %v1361 = vld [vmem:[%s2 + $0x30] sm:$0xff]
          %v1362 = vld [vmem:[%s2 + $0x38] sm:$0xff]
          %v1363 = vld [vmem:[%s2 + $0x40] sm:$0xff]
          %v1364 = vld [vmem:[%s2 + $0x48] sm:$0xff]
          %v1365 = vld [vmem:[%s2 + $0x50] sm:$0xff]
          %v1366 = vld [vmem:[%s2 + $0x58] sm:$0xff]
          %v1367 = vld [vmem:[%s2 + $0x60] sm:$0xff]
          %v1368 = vld [vmem:[%s2 + $0x68] sm:$0xff]
          %v1369 = vld [vmem:[%s2 + $0x70] sm:$0xff]
          %v1370 = vld [vmem:[%s2 + $0x78] sm:$0xff]
          %v1371 = vld [vmem:[%s2 + $0x80] sm:$0xff]
          %v1372 = vld [vmem:[%s2 + $0x88] sm:$0xff]
          %v1373 = vld [vmem:[%s2 + $0x90] sm:$0xff]
          %v1374 = vld [vmem:[%s2 + $0x98] sm:$0xff]
          %v1375 = vld [vmem:[%s2 + $0xa0] sm:$0xff]
          %v1376 = vld [vmem:[%s2 + $0xa8] sm:$0xff]
          %v1377 = vld [vmem:[%s2 + $0xb0] sm:$0xff]
          %v1378 = vld [vmem:[%s2 + $0xb8] sm:$0xff]
          %v1379 = vld [vmem:[%s2 + $0xc0] sm:$0xff]
          %v1380 = vld [vmem:[%s2 + $0xc8] sm:$0xff]
          %v1381 = vld [vmem:[%s2 + $0xd0] sm:$0xff]
          %v1382 = vld [vmem:[%s2 + $0xd8] sm:$0xff]
          %v1383 = vld [vmem:[%s2 + $0xe0] sm:$0xff]
          %v1384 = vld [vmem:[%s2 + $0xe8] sm:$0xff]
          %v1385 = vld [vmem:[%s2 + $0xf0] sm:$0xff]
          %v1386 = vld [vmem:[%s2 + $0xf8] sm:$0xff]
          %v1419 = vunpack.c.l.b16 %v1355
          %v1420 = vunpack.c.h.b16 %v1355
          %v1421 = vunpack.c.l.b16 %v1356
          %v1422 = vunpack.c.h.b16 %v1356
          %v1423 = vunpack.c.l.b16 %v1357
          %v1424 = vunpack.c.h.b16 %v1357
          %v1425 = vunpack.c.l.b16 %v1358
          %v1426 = vunpack.c.h.b16 %v1358
          %v1427 = vunpack.c.l.b16 %v1359
          %v1428 = vunpack.c.h.b16 %v1359
          %v1429 = vunpack.c.l.b16 %v1360
          %v1430 = vunpack.c.h.b16 %v1360
          %v1431 = vunpack.c.l.b16 %v1361
          %v1432 = vunpack.c.h.b16 %v1361
          %v1433 = vunpack.c.l.b16 %v1362
          %v1434 = vunpack.c.h.b16 %v1362
          %v1435 = vunpack.c.l.b16 %v1363
          %v1436 = vunpack.c.h.b16 %v1363
          %v1437 = vunpack.c.l.b16 %v1364
          %v1438 = vunpack.c.h.b16 %v1364
          %v1439 = vunpack.c.l.b16 %v1365
          %v1440 = vunpack.c.h.b16 %v1365
          %v1441 = vunpack.c.l.b16 %v1366
          %v1442 = vunpack.c.h.b16 %v1366
          %v1443 = vunpack.c.l.b16 %v1367
          %v1444 = vunpack.c.h.b16 %v1367
          %v1445 = vunpack.c.l.b16 %v1368
          %v1446 = vunpack.c.h.b16 %v1368
          %v1447 = vunpack.c.l.b16 %v1369
          %v1448 = vunpack.c.h.b16 %v1369
          %v1449 = vunpack.c.l.b16 %v1370
          %v1450 = vunpack.c.h.b16 %v1370
          %v1451 = vunpack.c.l.b16 %v1371
          %v1452 = vunpack.c.h.b16 %v1371
          %v1453 = vunpack.c.l.b16 %v1372
          %v1454 = vunpack.c.h.b16 %v1372
          %v1455 = vunpack.c.l.b16 %v1373
          %v1456 = vunpack.c.h.b16 %v1373
          %v1457 = vunpack.c.l.b16 %v1374
          %v1458 = vunpack.c.h.b16 %v1374
          %v1459 = vunpack.c.l.b16 %v1375
          %v1460 = vunpack.c.h.b16 %v1375
          %v1461 = vunpack.c.l.b16 %v1376
          %v1462 = vunpack.c.h.b16 %v1376
          %v1463 = vunpack.c.l.b16 %v1377
          %v1464 = vunpack.c.h.b16 %v1377
          %v1465 = vunpack.c.l.b16 %v1378
          %v1466 = vunpack.c.h.b16 %v1378
          %v1467 = vunpack.c.l.b16 %v1379
          %v1468 = vunpack.c.h.b16 %v1379
          %v1469 = vunpack.c.l.b16 %v1380
          %v1470 = vunpack.c.h.b16 %v1380
          %v1471 = vunpack.c.l.b16 %v1381
          %v1472 = vunpack.c.h.b16 %v1381
          %v1473 = vunpack.c.l.b16 %v1382
          %v1474 = vunpack.c.h.b16 %v1382
          %v1475 = vunpack.c.l.b16 %v1383
          %v1476 = vunpack.c.h.b16 %v1383
          %v1477 = vunpack.c.l.b16 %v1384
          %v1478 = vunpack.c.h.b16 %v1384
          %v1479 = vunpack.c.l.b16 %v1385
          %v1480 = vunpack.c.h.b16 %v1385
          %v1481 = vunpack.c.l.b16 %v1386
          %v1482 = vunpack.c.h.b16 %v1386
          %v1483 = vpack.c.b16 %v1421, %v1419
          %v1484 = vpack.c.b16 %v1422, %v1420
          %v1485 = vpack.c.b16 %v1425, %v1423
          %v1486 = vpack.c.b16 %v1426, %v1424
          %v1487 = vpack.c.b16 %v1429, %v1427
          %v1488 = vpack.c.b16 %v1430, %v1428
          %v1489 = vpack.c.b16 %v1433, %v1431
          %v1490 = vpack.c.b16 %v1434, %v1432
          %v1491 = vpack.c.b16 %v1437, %v1435
          %v1492 = vpack.c.b16 %v1438, %v1436
          %v1493 = vpack.c.b16 %v1441, %v1439
          %v1494 = vpack.c.b16 %v1442, %v1440
          %v1495 = vpack.c.b16 %v1445, %v1443
          %v1496 = vpack.c.b16 %v1446, %v1444
          %v1497 = vpack.c.b16 %v1449, %v1447
          %v1498 = vpack.c.b16 %v1450, %v1448
          %v1499 = vpack.c.b16 %v1453, %v1451
          %v1500 = vpack.c.b16 %v1454, %v1452
          %v1501 = vpack.c.b16 %v1457, %v1455
          %v1502 = vpack.c.b16 %v1458, %v1456
          %v1503 = vpack.c.b16 %v1461, %v1459
          %v1504 = vpack.c.b16 %v1462, %v1460
          %v1505 = vpack.c.b16 %v1465, %v1463
          %v1506 = vpack.c.b16 %v1466, %v1464
          %v1507 = vpack.c.b16 %v1469, %v1467
          %v1508 = vpack.c.b16 %v1470, %v1468
          %v1509 = vpack.c.b16 %v1473, %v1471
          %v1510 = vpack.c.b16 %v1474, %v1472
          %v1511 = vpack.c.b16 %v1477, %v1475
          %v1512 = vpack.c.b16 %v1478, %v1476
          %v1513 = vpack.c.b16 %v1481, %v1479
          %v1514 = vpack.c.b16 %v1482, %v1480
          %1547 = vmatprep.subr.bf16.mxu0 %v1498
          %1548 = vmatpush1.bf16.msra.mxu0 %v1497
          %1549 = vmatprep.subr.bf16.mxu0 %v1496
          %1550 = vmatpush1.bf16.msra.mxu0 %v1495
          %1551 = vmatprep.subr.bf16.mxu0 %v1494
          %1552 = vmatpush1.bf16.msra.mxu0 %v1493
          %1553 = vmatprep.subr.bf16.mxu0 %v1492
          %1554 = vmatpush1.bf16.msra.mxu0 %v1491
          %1555 = vmatprep.subr.bf16.mxu0 %v1490
          %1556 = vmatpush1.bf16.msra.mxu0 %v1489
          %1557 = vmatprep.subr.bf16.mxu0 %v1488
          %1558 = vmatpush1.bf16.msra.mxu0 %v1487
          %1559 = vmatprep.subr.bf16.mxu0 %v1486
          %1560 = vmatpush1.bf16.msra.mxu0 %v1485
          %1561 = vmatprep.subr.bf16.mxu0 %v1484
          %1562 = vmatpush1.bf16.msra.mxu0 %v1483
          %1563 = vmatprep.subr.bf16.mxu0 %v1514
          %1564 = vmatpush2.bf16.msra.mxu0 %v1513
          %1565 = vmatprep.subr.bf16.mxu0 %v1512
          %1566 = vmatpush2.bf16.msra.mxu0 %v1511
          %1567 = vmatprep.subr.bf16.mxu0 %v1510
          %1568 = vmatpush2.bf16.msra.mxu0 %v1509
          %1569 = vmatprep.subr.bf16.mxu0 %v1508
          %1570 = vmatpush2.bf16.msra.mxu0 %v1507
          %1571 = vmatprep.subr.bf16.mxu0 %v1506
          %1572 = vmatpush2.bf16.msra.mxu0 %v1505
          %1573 = vmatprep.subr.bf16.mxu0 %v1504
          %1574 = vmatpush2.bf16.msra.mxu0 %v1503
          %1575 = vmatprep.subr.bf16.mxu0 %v1502
          %1576 = vmatpush2.bf16.msra.mxu0 %v1501
          %1577 = vmatprep.subr.bf16.mxu0 %v1500
          %1578 = vmatpush2.bf16.msra.mxu0 %v1499
          %1579 = vmatprep.mubr.bf16.mxu0 %v1324
          %1580 = vmatmul.mubr.bf16.gmra.mxu0 %v1323
          %v1581 = vpop.f32.mrf.mxu0
          %v1582 = vadd.f32 0.0, %v1581
          %v1583 = vpop.f32.mrf.mxu0
          %v1584 = vadd.f32 0.0, %v1583
          %v1585 = vpop.f32.mrf.mxu0
          %v1586 = vadd.f32 0.0, %v1585
          %v1587 = vpop.f32.mrf.mxu0
          %v1588 = vadd.f32 0.0, %v1587
          %1589 = vmatprep.mubr.bf16.mxu0 %v1326
          %1590 = vmatmul.mubr.bf16.gmra.mxu0 %v1325
          %v1591 = vpop.f32.mrf.mxu0
          %v1592 = vadd.f32 0.0, %v1591
          %v1593 = vpop.f32.mrf.mxu0
          %v1594 = vadd.f32 0.0, %v1593
          %v1595 = vpop.f32.mrf.mxu0
          %v1596 = vadd.f32 0.0, %v1595
          %v1597 = vpop.f32.mrf.mxu0
          %v1598 = vadd.f32 0.0, %v1597
          %1599 = vmatprep.mubr.bf16.mxu0 %v1328
          %1600 = vmatmul.mubr.bf16.gmra.mxu0 %v1327
          %v1601 = vpop.f32.mrf.mxu0
          %v1602 = vadd.f32 0.0, %v1601
          %v1603 = vpop.f32.mrf.mxu0
          %v1604 = vadd.f32 0.0, %v1603
          %v1605 = vpop.f32.mrf.mxu0
          %v1606 = vadd.f32 0.0, %v1605
          %v1607 = vpop.f32.mrf.mxu0
          %v1608 = vadd.f32 0.0, %v1607
          %1609 = vmatprep.mubr.bf16.mxu0 %v1330
          %1610 = vmatmul.mubr.bf16.gmra.mxu0 %v1329
          %v1611 = vpop.f32.mrf.mxu0
          %v1612 = vadd.f32 0.0, %v1611
          %v1613 = vpop.f32.mrf.mxu0
          %v1614 = vadd.f32 0.0, %v1613
          %v1615 = vpop.f32.mrf.mxu0
          %v1616 = vadd.f32 0.0, %v1615
          %v1617 = vpop.f32.mrf.mxu0
          %v1618 = vadd.f32 0.0, %v1617
          %1619 = vmatprep.mubr.bf16.mxu0 %v1332
          %1620 = vmatmul.mubr.bf16.gmra.mxu0 %v1331
          %v1621 = vpop.f32.mrf.mxu0
          %v1622 = vadd.f32 0.0, %v1621
          %v1623 = vpop.f32.mrf.mxu0
          %v1624 = vadd.f32 0.0, %v1623
          %v1625 = vpop.f32.mrf.mxu0
          %v1626 = vadd.f32 0.0, %v1625
          %v1627 = vpop.f32.mrf.mxu0
          %v1628 = vadd.f32 0.0, %v1627
          %1629 = vmatprep.mubr.bf16.mxu0 %v1334
          %1630 = vmatmul.mubr.bf16.gmra.mxu0 %v1333
          %v1631 = vpop.f32.mrf.mxu0
          %v1632 = vadd.f32 0.0, %v1631
          %v1633 = vpop.f32.mrf.mxu0
          %v1634 = vadd.f32 0.0, %v1633
          %v1635 = vpop.f32.mrf.mxu0
          %v1636 = vadd.f32 0.0, %v1635
          %v1637 = vpop.f32.mrf.mxu0
          %v1638 = vadd.f32 0.0, %v1637
          %1639 = vmatprep.mubr.bf16.mxu0 %v1336
          %1640 = vmatmul.mubr.bf16.gmra.mxu0 %v1335
          %v1641 = vpop.f32.mrf.mxu0
          %v1642 = vadd.f32 0.0, %v1641
          %v1643 = vpop.f32.mrf.mxu0
          %v1644 = vadd.f32 0.0, %v1643
          %v1645 = vpop.f32.mrf.mxu0
          %v1646 = vadd.f32 0.0, %v1645
          %v1647 = vpop.f32.mrf.mxu0
          %v1648 = vadd.f32 0.0, %v1647
          %1649 = vmatprep.mubr.bf16.mxu0 %v1338
          %1650 = vmatmul.mubr.bf16.gmra.mxu0 %v1337
          %v1651 = vpop.f32.mrf.mxu0
          %v1652 = vadd.f32 0.0, %v1651
          %v1653 = vpop.f32.mrf.mxu0
          %v1654 = vadd.f32 0.0, %v1653
          %v1655 = vpop.f32.mrf.mxu0
          %v1656 = vadd.f32 0.0, %v1655
          %v1657 = vpop.f32.mrf.mxu0
          %v1658 = vadd.f32 0.0, %v1657
          %1659 = vmatprep.mubr.bf16.mxu0 %v1340
          %1660 = vmatmul.mubr.bf16.gmra.mxu0 %v1339
          %v1661 = vpop.f32.mrf.mxu0
          %v1662 = vadd.f32 0.0, %v1661
          %v1663 = vpop.f32.mrf.mxu0
          %v1664 = vadd.f32 0.0, %v1663
          %v1665 = vpop.f32.mrf.mxu0
          %v1666 = vadd.f32 0.0, %v1665
          %v1667 = vpop.f32.mrf.mxu0
          %v1668 = vadd.f32 0.0, %v1667
          %1669 = vmatprep.mubr.bf16.mxu0 %v1342
          %1670 = vmatmul.mubr.bf16.gmra.mxu0 %v1341
          %v1671 = vpop.f32.mrf.mxu0
          %v1672 = vadd.f32 0.0, %v1671
          %v1673 = vpop.f32.mrf.mxu0
          %v1674 = vadd.f32 0.0, %v1673
          %v1675 = vpop.f32.mrf.mxu0
          %v1676 = vadd.f32 0.0, %v1675
          %v1677 = vpop.f32.mrf.mxu0
          %v1678 = vadd.f32 0.0, %v1677
          %1679 = vmatprep.mubr.bf16.mxu0 %v1344
          %1680 = vmatmul.mubr.bf16.gmra.mxu0 %v1343
          %v1681 = vpop.f32.mrf.mxu0
          %v1682 = vadd.f32 0.0, %v1681
          %v1683 = vpop.f32.mrf.mxu0
          %v1684 = vadd.f32 0.0, %v1683
          %v1685 = vpop.f32.mrf.mxu0
          %v1686 = vadd.f32 0.0, %v1685
          %v1687 = vpop.f32.mrf.mxu0
          %v1688 = vadd.f32 0.0, %v1687
          %1689 = vmatprep.mubr.bf16.mxu0 %v1346
          %1690 = vmatmul.mubr.bf16.gmra.mxu0 %v1345
          %v1691 = vpop.f32.mrf.mxu0
          %v1692 = vadd.f32 0.0, %v1691
          %v1693 = vpop.f32.mrf.mxu0
          %v1694 = vadd.f32 0.0, %v1693
          %v1695 = vpop.f32.mrf.mxu0
          %v1696 = vadd.f32 0.0, %v1695
          %v1697 = vpop.f32.mrf.mxu0
          %v1698 = vadd.f32 0.0, %v1697
          %1699 = vmatprep.mubr.bf16.mxu0 %v1348
          %1700 = vmatmul.mubr.bf16.gmra.mxu0 %v1347
          %v1701 = vpop.f32.mrf.mxu0
          %v1702 = vadd.f32 0.0, %v1701
          %v1703 = vpop.f32.mrf.mxu0
          %v1704 = vadd.f32 0.0, %v1703
          %v1705 = vpop.f32.mrf.mxu0
          %v1706 = vadd.f32 0.0, %v1705
          %v1707 = vpop.f32.mrf.mxu0
          %v1708 = vadd.f32 0.0, %v1707
          %1709 = vmatprep.mubr.bf16.mxu0 %v1350
          %1710 = vmatmul.mubr.bf16.gmra.mxu0 %v1349
          %v1711 = vpop.f32.mrf.mxu0
          %v1712 = vadd.f32 0.0, %v1711
          %v1713 = vpop.f32.mrf.mxu0
          %v1714 = vadd.f32 0.0, %v1713
          %v1715 = vpop.f32.mrf.mxu0
          %v1716 = vadd.f32 0.0, %v1715
          %v1717 = vpop.f32.mrf.mxu0
          %v1718 = vadd.f32 0.0, %v1717
          %1719 = vmatprep.mubr.bf16.mxu0 %v1352
          %1720 = vmatmul.mubr.bf16.gmra.mxu0 %v1351
          %v1721 = vpop.f32.mrf.mxu0
          %v1722 = vadd.f32 0.0, %v1721
          %v1723 = vpop.f32.mrf.mxu0
          %v1724 = vadd.f32 0.0, %v1723
          %v1725 = vpop.f32.mrf.mxu0
          %v1726 = vadd.f32 0.0, %v1725
          %v1727 = vpop.f32.mrf.mxu0
          %v1728 = vadd.f32 0.0, %v1727
          %1729 = vmatprep.mubr.bf16.mxu0 %v1354
          %1730 = vmatmul.mubr.bf16.gmra.mxu0 %v1353
          %v1731 = vpop.f32.mrf.mxu0
          %v1732 = vadd.f32 0.0, %v1731
          %v1733 = vpop.f32.mrf.mxu0
          %v1734 = vadd.f32 0.0, %v1733
          %v1735 = vpop.f32.mrf.mxu0
          %v1736 = vadd.f32 0.0, %v1735
          %v1737 = vpop.f32.mrf.mxu0
          %v1738 = vadd.f32 0.0, %v1737
          %1739 = vdwg.mxu0
          %1740 = vst [vmem:[%s411] sm:$0xff] %v1582
          %1741 = vst [vmem:[%s411 + $0x8] sm:$0xff] %v1584
          %1742 = vst [vmem:[%s411 + $0x10] sm:$0xff] %v1586
          %1743 = vst [vmem:[%s411 + $0x18] sm:$0xff] %v1588
          %1744 = vst [vmem:[%s411 + $0x20] sm:$0xff] %v1592
          %1745 = vst [vmem:[%s411 + $0x28] sm:$0xff] %v1594
          %1746 = vst [vmem:[%s411 + $0x30] sm:$0xff] %v1596
          %1747 = vst [vmem:[%s411 + $0x38] sm:$0xff] %v1598
          %1748 = vst [vmem:[%s411 + $0x40] sm:$0xff] %v1602
          %1749 = vst [vmem:[%s411 + $0x48] sm:$0xff] %v1604
          %1750 = vst [vmem:[%s411 + $0x50] sm:$0xff] %v1606
          %1751 = vst [vmem:[%s411 + $0x58] sm:$0xff] %v1608
          %1752 = vst [vmem:[%s411 + $0x60] sm:$0xff] %v1612
          %1753 = vst [vmem:[%s411 + $0x68] sm:$0xff] %v1614
          %1754 = vst [vmem:[%s411 + $0x70] sm:$0xff] %v1616
          %1755 = vst [vmem:[%s411 + $0x78] sm:$0xff] %v1618
          %1756 = vst [vmem:[%s411 + $0x80] sm:$0xff] %v1622
          %1757 = vst [vmem:[%s411 + $0x88] sm:$0xff] %v1624
          %1758 = vst [vmem:[%s411 + $0x90] sm:$0xff] %v1626
          %1759 = vst [vmem:[%s411 + $0x98] sm:$0xff] %v1628
          %1760 = vst [vmem:[%s411 + $0xa0] sm:$0xff] %v1632
          %1761 = vst [vmem:[%s411 + $0xa8] sm:$0xff] %v1634
          %1762 = vst [vmem:[%s411 + $0xb0] sm:$0xff] %v1636
          %1763 = vst [vmem:[%s411 + $0xb8] sm:$0xff] %v1638
          %1764 = vst [vmem:[%s411 + $0xc0] sm:$0xff] %v1642
          %1765 = vst [vmem:[%s411 + $0xc8] sm:$0xff] %v1644
          %1766 = vst [vmem:[%s411 + $0xd0] sm:$0xff] %v1646
          %1767 = vst [vmem:[%s411 + $0xd8] sm:$0xff] %v1648
          %1768 = vst [vmem:[%s411 + $0xe0] sm:$0xff] %v1652
          %1769 = vst [vmem:[%s411 + $0xe8] sm:$0xff] %v1654
          %1770 = vst [vmem:[%s411 + $0xf0] sm:$0xff] %v1656
          %1771 = vst [vmem:[%s411 + $0xf8] sm:$0xff] %v1658
          %1772 = vst [vmem:[%s411 + $0x100] sm:$0xff] %v1662
          %1773 = vst [vmem:[%s411 + $0x108] sm:$0xff] %v1664
          %1774 = vst [vmem:[%s411 + $0x110] sm:$0xff] %v1666
          %1775 = vst [vmem:[%s411 + $0x118] sm:$0xff] %v1668
          %1776 = vst [vmem:[%s411 + $0x120] sm:$0xff] %v1672
          %1777 = vst [vmem:[%s411 + $0x128] sm:$0xff] %v1674
          %1778 = vst [vmem:[%s411 + $0x130] sm:$0xff] %v1676
          %1779 = vst [vmem:[%s411 + $0x138] sm:$0xff] %v1678
          %1780 = vst [vmem:[%s411 + $0x140] sm:$0xff] %v1682
          %1781 = vst [vmem:[%s411 + $0x148] sm:$0xff] %v1684
          %1782 = vst [vmem:[%s411 + $0x150] sm:$0xff] %v1686
          %1783 = vst [vmem:[%s411 + $0x158] sm:$0xff] %v1688
          %1784 = vst [vmem:[%s411 + $0x160] sm:$0xff] %v1692
          %1785 = vst [vmem:[%s411 + $0x168] sm:$0xff] %v1694
          %1786 = vst [vmem:[%s411 + $0x170] sm:$0xff] %v1696
          %1787 = vst [vmem:[%s411 + $0x178] sm:$0xff] %v1698
          %1788 = vst [vmem:[%s411 + $0x180] sm:$0xff] %v1702
          %1789 = vst [vmem:[%s411 + $0x188] sm:$0xff] %v1704
          %1790 = vst [vmem:[%s411 + $0x190] sm:$0xff] %v1706
          %1791 = vst [vmem:[%s411 + $0x198] sm:$0xff] %v1708
          %1792 = vst [vmem:[%s411 + $0x1a0] sm:$0xff] %v1712
          %1793 = vst [vmem:[%s411 + $0x1a8] sm:$0xff] %v1714
          %1794 = vst [vmem:[%s411 + $0x1b0] sm:$0xff] %v1716
          %1795 = vst [vmem:[%s411 + $0x1b8] sm:$0xff] %v1718
          %1796 = vst [vmem:[%s411 + $0x1c0] sm:$0xff] %v1722
          %1797 = vst [vmem:[%s411 + $0x1c8] sm:$0xff] %v1724
          %1798 = vst [vmem:[%s411 + $0x1d0] sm:$0xff] %v1726
          %1799 = vst [vmem:[%s411 + $0x1d8] sm:$0xff] %v1728
          %1800 = vst [vmem:[%s411 + $0x1e0] sm:$0xff] %v1732
          %1801 = vst [vmem:[%s411 + $0x1e8] sm:$0xff] %v1734
          %1802 = vst [vmem:[%s411 + $0x1f0] sm:$0xff] %v1736
          %1803 = vst [vmem:[%s411 + $0x1f8] sm:$0xff] %v1738
          %v1804 = vadd.f32 %v1582, %v1586
          %v1805 = vadd.f32 %v1804, %v1592
          %v1806 = vadd.f32 %v1805, %v1596
          %v1807 = vadd.f32 %v1806, %v1602
          %v1808 = vadd.f32 %v1807, %v1606
          %v1809 = vadd.f32 %v1808, %v1612
          %v1810 = vadd.f32 %v1809, %v1616
          %v1811 = vadd.f32 %v1810, %v1622
          %v1812 = vadd.f32 %v1811, %v1626
          %v1813 = vadd.f32 %v1812, %v1632
          %v1814 = vadd.f32 %v1813, %v1636
          %v1815 = vadd.f32 %v1814, %v1642
          %v1816 = vadd.f32 %v1815, %v1646
          %v1817 = vadd.f32 %v1816, %v1652
          %v1818 = vadd.f32 %v1817, %v1656
          %v1819 = vadd.f32 %v1818, %v1662
          %v1820 = vadd.f32 %v1819, %v1666
          %v1821 = vadd.f32 %v1820, %v1672
          %v1822 = vadd.f32 %v1821, %v1676
          %v1823 = vadd.f32 %v1822, %v1682
          %v1824 = vadd.f32 %v1823, %v1686
          %v1825 = vadd.f32 %v1824, %v1692
          %v1826 = vadd.f32 %v1825, %v1696
          %v1827 = vadd.f32 %v1826, %v1702
          %v1828 = vadd.f32 %v1827, %v1706
          %v1829 = vadd.f32 %v1828, %v1712
          %v1830 = vadd.f32 %v1829, %v1716
          %v1831 = vadd.f32 %v1830, %v1722
          %v1832 = vadd.f32 %v1831, %v1726
          %v1833 = vadd.f32 %v1832, %v1732
          %v1834 = vadd.f32 %v1833, %v1736
          %v1835 = vrot.slane %v1834, 4
          %v1836 = vadd.f32 %v1834, %v1835
          %v1837 = vrot.slane %v1836, 2
          %v1838 = vadd.f32 %v1836, %v1837
          %v1839 = vrot.slane %v1838, 1
          %v1840 = vadd.f32 %v1838, %v1839
          %v1841 = vadd.f32 %v1584, %v1588
          %v1842 = vadd.f32 %v1841, %v1594
          %v1843 = vadd.f32 %v1842, %v1598
          %v1844 = vadd.f32 %v1843, %v1604
          %v1845 = vadd.f32 %v1844, %v1608
          %v1846 = vadd.f32 %v1845, %v1614
          %v1847 = vadd.f32 %v1846, %v1618
          %v1848 = vadd.f32 %v1847, %v1624
          %v1849 = vadd.f32 %v1848, %v1628
          %v1850 = vadd.f32 %v1849, %v1634
          %v1851 = vadd.f32 %v1850, %v1638
          %v1852 = vadd.f32 %v1851, %v1644
          %v1853 = vadd.f32 %v1852, %v1648
          %v1854 = vadd.f32 %v1853, %v1654
          %v1855 = vadd.f32 %v1854, %v1658
          %v1856 = vadd.f32 %v1855, %v1664
          %v1857 = vadd.f32 %v1856, %v1668
          %v1858 = vadd.f32 %v1857, %v1674
          %v1859 = vadd.f32 %v1858, %v1678
          %v1860 = vadd.f32 %v1859, %v1684
          %v1861 = vadd.f32 %v1860, %v1688
          %v1862 = vadd.f32 %v1861, %v1694
          %v1863 = vadd.f32 %v1862, %v1698
          %v1864 = vadd.f32 %v1863, %v1704
          %v1865 = vadd.f32 %v1864, %v1708
          %v1866 = vadd.f32 %v1865, %v1714
          %v1867 = vadd.f32 %v1866, %v1718
          %v1868 = vadd.f32 %v1867, %v1724
          %v1869 = vadd.f32 %v1868, %v1728
          %v1870 = vadd.f32 %v1869, %v1734
          %v1871 = vadd.f32 %v1870, %v1738
          %v1872 = vrot.slane %v1871, 4
          %v1873 = vadd.f32 %v1871, %v1872
          %v1874 = vrot.slane %v1873, 2
          %v1875 = vadd.f32 %v1873, %v1874
          %v1876 = vrot.slane %v1875, 1
          %v1877 = vadd.f32 %v1875, %v1876
          %v1878 = vmul.f32 %v1582, %v1582
          %v1879 = vmul.f32 %v1584, %v1584
          %v1880 = vmul.f32 %v1586, %v1586
          %v1881 = vmul.f32 %v1588, %v1588
          %v1882 = vmul.f32 %v1592, %v1592
          %v1883 = vmul.f32 %v1594, %v1594
          %v1884 = vmul.f32 %v1596, %v1596
          %v1885 = vmul.f32 %v1598, %v1598
          %v1886 = vmul.f32 %v1602, %v1602
          %v1887 = vmul.f32 %v1604, %v1604
          %v1888 = vmul.f32 %v1606, %v1606
          %v1889 = vmul.f32 %v1608, %v1608
          %v1890 = vmul.f32 %v1612, %v1612
          %v1891 = vmul.f32 %v1614, %v1614
          %v1892 = vmul.f32 %v1616, %v1616
          %v1893 = vmul.f32 %v1618, %v1618
          %v1894 = vmul.f32 %v1622, %v1622
          %v1895 = vmul.f32 %v1624, %v1624
          %v1896 = vmul.f32 %v1626, %v1626
          %v1897 = vmul.f32 %v1628, %v1628
          %v1898 = vmul.f32 %v1632, %v1632
          %v1899 = vmul.f32 %v1634, %v1634
          %v1900 = vmul.f32 %v1636, %v1636
          %v1901 = vmul.f32 %v1638, %v1638
          %v1902 = vmul.f32 %v1642, %v1642
          %v1903 = vmul.f32 %v1644, %v1644
          %v1904 = vmul.f32 %v1646, %v1646
          %v1905 = vmul.f32 %v1648, %v1648
          %v1906 = vmul.f32 %v1652, %v1652
          %v1907 = vmul.f32 %v1654, %v1654
          %v1908 = vmul.f32 %v1656, %v1656
          %v1909 = vmul.f32 %v1658, %v1658
          %v1910 = vmul.f32 %v1662, %v1662
          %v1911 = vmul.f32 %v1664, %v1664
          %v1912 = vmul.f32 %v1666, %v1666
          %v1913 = vmul.f32 %v1668, %v1668
          %v1914 = vmul.f32 %v1672, %v1672
          %v1915 = vmul.f32 %v1674, %v1674
          %v1916 = vmul.f32 %v1676, %v1676
          %v1917 = vmul.f32 %v1678, %v1678
          %v1918 = vmul.f32 %v1682, %v1682
          %v1919 = vmul.f32 %v1684, %v1684
          %v1920 = vmul.f32 %v1686, %v1686
          %v1921 = vmul.f32 %v1688, %v1688
          %v1922 = vmul.f32 %v1692, %v1692
          %v1923 = vmul.f32 %v1694, %v1694
          %v1924 = vmul.f32 %v1696, %v1696
          %v1925 = vmul.f32 %v1698, %v1698
          %v1926 = vmul.f32 %v1702, %v1702
          %v1927 = vmul.f32 %v1704, %v1704
          %v1928 = vmul.f32 %v1706, %v1706
          %v1929 = vmul.f32 %v1708, %v1708
          %v1930 = vmul.f32 %v1712, %v1712
          %v1931 = vmul.f32 %v1714, %v1714
          %v1932 = vmul.f32 %v1716, %v1716
          %v1933 = vmul.f32 %v1718, %v1718
          %v1934 = vmul.f32 %v1722, %v1722
          %v1935 = vmul.f32 %v1724, %v1724
          %v1936 = vmul.f32 %v1726, %v1726
          %v1937 = vmul.f32 %v1728, %v1728
          %v1938 = vmul.f32 %v1732, %v1732
          %v1939 = vmul.f32 %v1734, %v1734
          %v1940 = vmul.f32 %v1736, %v1736
          %v1941 = vmul.f32 %v1738, %v1738
          %v1942 = vadd.f32 %v1878, %v1880
          %v1943 = vadd.f32 %v1942, %v1882
          %v1944 = vadd.f32 %v1943, %v1884
          %v1945 = vadd.f32 %v1944, %v1886
          %v1946 = vadd.f32 %v1945, %v1888
          %v1947 = vadd.f32 %v1946, %v1890
          %v1948 = vadd.f32 %v1947, %v1892
          %v1949 = vadd.f32 %v1948, %v1894
          %v1950 = vadd.f32 %v1949, %v1896
          %v1951 = vadd.f32 %v1950, %v1898
          %v1952 = vadd.f32 %v1951, %v1900
          %v1953 = vadd.f32 %v1952, %v1902
          %v1954 = vadd.f32 %v1953, %v1904
          %v1955 = vadd.f32 %v1954, %v1906
          %v1956 = vadd.f32 %v1955, %v1908
          %v1957 = vadd.f32 %v1956, %v1910
          %v1958 = vadd.f32 %v1957, %v1912
          %v1959 = vadd.f32 %v1958, %v1914
          %v1960 = vadd.f32 %v1959, %v1916
          %v1961 = vadd.f32 %v1960, %v1918
          %v1962 = vadd.f32 %v1961, %v1920
          %v1963 = vadd.f32 %v1962, %v1922
          %v1964 = vadd.f32 %v1963, %v1924
          %v1965 = vadd.f32 %v1964, %v1926
          %v1966 = vadd.f32 %v1965, %v1928
          %v1967 = vadd.f32 %v1966, %v1930
          %v1968 = vadd.f32 %v1967, %v1932
          %v1969 = vadd.f32 %v1968, %v1934
          %v1970 = vadd.f32 %v1969, %v1936
          %v1971 = vadd.f32 %v1970, %v1938
          %v1972 = vadd.f32 %v1971, %v1940
          %v1973 = vrot.slane %v1972, 4
          %v1974 = vadd.f32 %v1972, %v1973
          %v1975 = vrot.slane %v1974, 2
          %v1976 = vadd.f32 %v1974, %v1975
          %v1977 = vrot.slane %v1976, 1
          %v1978 = vadd.f32 %v1976, %v1977
          %v1979 = vadd.f32 %v1879, %v1881
          %v1980 = vadd.f32 %v1979, %v1883
          %v1981 = vadd.f32 %v1980, %v1885
          %v1982 = vadd.f32 %v1981, %v1887
          %v1983 = vadd.f32 %v1982, %v1889
          %v1984 = vadd.f32 %v1983, %v1891
          %v1985 = vadd.f32 %v1984, %v1893
          %v1986 = vadd.f32 %v1985, %v1895
          %v1987 = vadd.f32 %v1986, %v1897
          %v1988 = vadd.f32 %v1987, %v1899
          %v1989 = vadd.f32 %v1988, %v1901
          %v1990 = vadd.f32 %v1989, %v1903
          %v1991 = vadd.f32 %v1990, %v1905
          %v1992 = vadd.f32 %v1991, %v1907
          %v1993 = vadd.f32 %v1992, %v1909
          %v1994 = vadd.f32 %v1993, %v1911
          %v1995 = vadd.f32 %v1994, %v1913
          %v1996 = vadd.f32 %v1995, %v1915
          %v1997 = vadd.f32 %v1996, %v1917
          %v1998 = vadd.f32 %v1997, %v1919
          %v1999 = vadd.f32 %v1998, %v1921
          %v2000 = vadd.f32 %v1999, %v1923
          %v2001 = vadd.f32 %v2000, %v1925
          %v2002 = vadd.f32 %v2001, %v1927
          %v2003 = vadd.f32 %v2002, %v1929
          %v2004 = vadd.f32 %v2003, %v1931
          %v2005 = vadd.f32 %v2004, %v1933
          %v2006 = vadd.f32 %v2005, %v1935
          %v2007 = vadd.f32 %v2006, %v1937
          %v2008 = vadd.f32 %v2007, %v1939
          %v2009 = vadd.f32 %v2008, %v1941
          %v2010 = vrot.slane %v2009, 4
          %v2011 = vadd.f32 %v2009, %v2010
          %v2012 = vrot.slane %v2011, 2
          %v2013 = vadd.f32 %v2011, %v2012
          %v2014 = vrot.slane %v2013, 1
          %v2015 = vadd.f32 %v2013, %v2014
          %v2016 = vlaneseq
          %v2017 = vshrl.u32 %v2016, 7
          %vm2018 = vcmp.eq.s32.totalorder %v2017, 0
          %vm2019 = vcmp.eq.s32.totalorder %v2017, 1
          %v2020 = vsel %vm2019, %v1978, 0.0
          %v2021 = vsel %vm2019, %v2015, 0.0
          %v2022 = vsel %vm2018, %v1840, %v2020
          %v2023 = vsel %vm2018, %v1877, %v2021
          %2024 = vst [vmem:[%s417] sm:$0xff] %v2022
          %2025 = vst [vmem:[%s417 + $0x8] sm:$0xff] %v2023
        $region78: #{gcn_forward.17} parent=65 // pred_fallthru
          _
        %s2026 = smul.u32 32, %s20
        %p2027 = scmp.lt.s32.totalorder %s2026, 63
        %s2028 = scalar_select %p2027, %s2026, 63
        %s2029 = smul.addr %s2028, 2
        %s2030 = smul.addr %s2029, 8
        %s2031 = scalar_lea.vmem %s3, %s2030
        %p2032 = scmp.lt.s32.totalorder %s20, 1
        %s2033 = scalar_select %p2032, %s20, 1
        %s2034 = smul.addr %s2033, 2
        %s2035 = smul.addr %s2034, 8
        %s2036 = scalar_lea.vmem %s4, %s2035
        // Predicated region
        $region79: #{gcn_forward.17} parent=65 // pred_check
          %p2037 = pneg %p121
        $region80: #{gcn_forward.17} parent=65 // pred_check_branch
          %2039 = sbr.rel (%p2037) target = $region82
        $region81: #{gcn_forward.17} parent=65 // pred_region
          %s2040 = smul.u32 32, %s20
        $region82: #{gcn_forward.17} parent=65 // pred_fallthru
          _
        // Predicated region
        $region83: #{gcn_forward.17} parent=65 // pred_check
          %p2041 = pneg %p147
        $region84: #{gcn_forward.17} parent=65 // pred_check_branch
          %2043 = sbr.rel (%p2041) target = $region86
        $region85: #{gcn_forward.17} parent=65 // pred_region
          _
        $region86: #{gcn_forward.17} parent=65 // pred_fallthru
          _
      $region66: #{gcn_forward.17} parent=5 // pred_fallthru
        _
      %p2044 = scmp.le.s32.totalorder 2, %s11
      // Predicated region
      $region87: #{gcn_forward.17} parent=5 // pred_check
        %p2045 = pneg %p2044
      $region88: #{gcn_forward.17} parent=5 // pred_check_branch
        %2047 = sbr.rel (%p2045) target = $region90
      $region89: #{gcn_forward.17} parent=5 // pred_region
        %s2048 = ssub.s32 %s11, 2
        // Predicated region
        $region91: #{gcn_forward.17} parent=89 // pred_check
          %p2049 = pneg %p127
        $region92: #{gcn_forward.17} parent=89 // pred_check_branch
          %2051 = sbr.rel (%p2049) target = $region94
        $region93: #{gcn_forward.17} parent=89 // pred_region
          %s2052 = smul.u32 32, %s22
          %p2053 = scmp.lt.s32.totalorder %s2052, 63
          %s2054 = scalar_select %p2053, %s2052, 63
          %s2055 = smul.addr %s2054, 2
          %s2056 = smul.addr %s2055, 8
          %s2057 = scalar_lea.vmem %s3, %s2056
        $region94: #{gcn_forward.17} parent=89 // pred_fallthru
          _
        // Predicated region
        $region95: #{gcn_forward.17} parent=89 // pred_check
          %p2058 = pneg %p153
        $region96: #{gcn_forward.17} parent=89 // pred_check_branch
          %2060 = sbr.rel (%p2058) target = $region98
        $region97: #{gcn_forward.17} parent=89 // pred_region
          %p2061 = scmp.lt.s32.totalorder %s22, 1
          %s2062 = scalar_select %p2061, %s22, 1
          %s2063 = smul.addr %s2062, 2
          %s2064 = smul.addr %s2063, 8
          %s2065 = scalar_lea.vmem %s4, %s2064
        $region98: #{gcn_forward.17} parent=89 // pred_fallthru
          _
      $region90: #{gcn_forward.17} parent=5 // pred_fallthru
        _
    $region6: #{gcn_forward.17} parent=1 // loop_footer
      %s15 = sadd.s32 1, %s11
    $region7: #{gcn_forward.17} parent=1 // loop_footer_branch
      %10 = sbr.rel target = $region3
    $region8: #{gcn_forward.17} parent=1 // loop_exit
      _

</llo_original>
